<compile_context>
chip_gen: v5e
topology: v5e:2x2
jax: 0.10.0
libtpu: 0.0.40
codegen_flags: <defaults>
</compile_context>

<pallas_src>
import numpy as np
import jax
import jax.numpy as jnp
from jax import lax
from jax.experimental import pallas as pl
from jax.experimental.pallas import tpu as pltpu


# ----------------------------------------------------------------------------
# Small helpers
# ----------------------------------------------------------------------------
def _round_up(x, m):
    return ((x + m - 1) // m) * m


def _elu(v):
    # exp() only sees the non-positive branch -> no inf in the dead branch.
    return jnp.where(v > 0, v, jnp.exp(jnp.minimum(v, 0)) - 1)


def _device_defaults():
    """Pick activation dtype / conv2 band size / batch tile from the chip."""
    try:
        kind = jax.devices()[0].device_kind.lower()
    except Exception:  # pragma: no cover
        kind = ""
    old_gen = any(t in kind for t in ("v2", "v3", "v4", "v5"))
    if old_gen:        # no bf16 VPU/EUP datapath, 128x128 MXU
        return jnp.float32, 4, 1024
    return jnp.bfloat16, 8, 2048


# ----------------------------------------------------------------------------
# Conv2 banding plan + weight packing (host-side, once per parameter set)
# ----------------------------------------------------------------------------
def _conv2_plan(group_size):
    """Groups of conv2 output positions.  Only positions 0..27 are computed:
    MaxPool1d(k=4, s=4) over 31 positions reads 7 windows = 28 positions.
    Each group is a whole number of pool windows (multiple of 4 positions)."""
    assert group_size % 4 == 0 and group_size > 0
    groups, p0 = [], 0
    while p0 < 28:
        glen = min(group_size, 28 - p0)
        groups.append((p0, glen))
        p0 += glen
    lens = tuple(sorted({g for _, g in groups}, reverse=True))
    sid = {g: i for i, g in enumerate(lens)}
    return tuple((p0, glen, sid[glen]) for p0, glen in groups), lens


def _dense_conv_matrix(w, lin):
    """Block-Toeplitz dense matrix for a stride-1 'VALID' Conv1d (numpy).

    w: (Cout, Cin, K).  Returns (Lout*Cout, Lin*Cin); rows are position-major
    (p*Cout + o), columns position-major (l*Cin + c)."""
    cout, cin, k = w.shape
    lout = lin - k + 1
    wk = w.transpose(0, 2, 1).reshape(cout, k * cin)          # [o, kk*Cin + c]
    m = np.zeros((lout * cout, lin * cin), np.float32)
    for p in range(lout):
        m[p * cout:(p + 1) * cout, p * cin:p * cin + k * cin] = wk
    return m


def _conv1_dense_channel_major(w, lin):
    """Conv1 dense matrix with CHANNEL-major columns (c*Lin + l) so the
    wrapper can feed x.reshape(N, Cin*Lin).T without a 3-D transpose."""
    cout, cin, k = w.shape
    lout = lin - k + 1
    m = np.zeros((lout * cout, cin * lin), np.float32)
    for p in range(lout):
        for c in range(cin):
            for kk in range(k):
                m[p * cout:(p + 1) * cout, c * lin + p + kk] = w[:, c, kk]
    return m


def prepare_params(params, *, act_dtype, slab_lens):
    """Pack raw PyTorch-layout params into the flat tuple of kernel arrays."""
    (cw1, cb1, cw2, cb2, cw3, cb3, w1, b1, w2, b2, w3, b3) = params
    bf = jnp.bfloat16
    f = lambda a: np.asarray(a, np.float32)

    w1d = jnp.asarray(_conv1_dense_channel_major(f(cw1), 41), bf)     # (608, 164)
    # One banded conv2 slab per distinct group length (the conv weight is
    # translation invariant, so equal-length groups share the same slab).
    w2s = tuple(jnp.asarray(_dense_conv_matrix(f(cw2), glen + 3), bf)
                for glen in slab_lens)                                 # (glen*32, (glen+3)*16)
    w3d = jnp.asarray(_dense_conv_matrix(f(cw3), 7), bf)               # (256, 224)

    # Per-channel conv biases commute with max-pool -> store them tiled over
    # the POOLED positions, already in the activation dtype.
    colp = lambda b, reps: jnp.asarray(np.tile(f(b), reps)[:, None], act_dtype)
    colf = lambda b: jnp.asarray(f(b)[:, None], jnp.float32)

    # Flatten of (64, 2) is channel-major (o*2 + t); pooled rows are
    # position-major (t*64 + o) -> permute the Linear(128, 64) columns once.
    wf1 = f(w1).reshape(64, 64, 2).transpose(0, 2, 1).reshape(64, 128)

    return ((w1d, colp(cb1, 34)) + w2s + (
        colp(cb2, 7), w3d, colp(cb3, 2),
        jnp.asarray(wf1, bf), colf(b1),
        jnp.asarray(f(w2), bf), colf(b2),
        jnp.asarray(f(w3), bf), colf(b3)))


# ----------------------------------------------------------------------------
# Kernel
# ----------------------------------------------------------------------------
def _make_kernel(plan, n_slabs, act_dtype):
    """Build the Pallas kernel for one batch tile (batch on the lane axis)."""

    def kernel(*refs):
        x_ref, w1_ref, b1_ref = refs[:3]
        w2_refs = refs[3:3 + n_slabs]
        (b2_ref, w3_ref, b3_ref, wf1_ref, bf1_ref,
         wf2_ref, bf2_ref, wf3_ref, bf3_ref, o_ref) = refs[3 + n_slabs:]
        bf = jnp.bfloat16

        x = x_ref[...]                                        # (164, TB) bf16
        tb = x.shape[-1]

        # ---- Conv1 as ONE dense MXU matmul (f32 accumulate) ----------------
        z1 = jnp.dot(w1_ref[...], x,
                     preferred_element_type=jnp.float32).astype(act_dtype)
        # MaxPool1d(k=5, s=1) on the pre-activation: max commutes with the
        # per-channel bias add and the monotone ELU.  Rows stay p*16 + o.
        m1 = z1[0:544]
        for j in range(1, 5):
            m1 = jnp.maximum(m1, z1[16 * j:16 * j + 544])
        p1 = _elu(m1 + b1_ref[...]).astype(bf)                # (544, TB)

        # ---- Conv2, banded over groups of output positions ------------------
        # Skips the ~88%-zero blocks of the full Toeplitz matrix and the 3
        # trailing positions the stride-4 pool never reads; MaxPool1d(k=4,s=4)
        # is fused per group as a reshape + tree max (no 7-way concat of a2).
        pooled = []
        for (p0, glen, sid) in plan:
            band = p1[p0 * 16:(p0 + glen + 3) * 16]           # ((glen+3)*16, TB)
            z2 = jnp.dot(w2_refs[sid][...], band,
                         preferred_element_type=jnp.float32).astype(act_dtype)
            t = z2.reshape(glen // 4, 128, tb)                # 4 positions / window
            m = jnp.maximum(jnp.maximum(t[:, 0:32], t[:, 32:64]),
                            jnp.maximum(t[:, 64:96], t[:, 96:128]))
            pooled.append(m.reshape((glen // 4) * 32, tb))
        p2 = _elu(jnp.concatenate(pooled, axis=0) + b2_ref[...]).astype(bf)  # (224, TB)

        # ---- Conv3 + fused MaxPool1d(k=2, s=2) + ELU ------------------------
        z3 = jnp.dot(w3_ref[...], p2,
                     preferred_element_type=jnp.float32).astype(act_dtype)   # (256, TB)
        t3 = z3.reshape(2, 128, tb)
        p3 = _elu(jnp.maximum(t3[:, 0:64], t3[:, 64:128]).reshape(128, tb)
                  + b3_ref[...]).astype(bf)                   # (128, TB), rows t*64+o

        # ---- Classifier (Dropout(0.25) is identity in eval mode) -----------
        # TODO(synk): train-mode dropout (random mask + 1/(1-p) scale) not implemented.
        h1 = jnp.dot(wf1_ref[...], p3,
                     preferred_element_type=jnp.float32) + bf1_ref[...]      # (64, TB)
        h2 = _elu(jnp.dot(wf2_ref[...], h1.astype(bf),
                          preferred_element_type=jnp.float32) + bf2_ref[...])  # (32, TB)
        h3 = jnp.dot(wf3_ref[...], h2.astype(bf),
                     preferred_element_type=jnp.float32) + bf3_ref[...]      # (1, TB)
        o_ref[0] = jax.nn.sigmoid(h3).astype(o_ref.dtype)

    return kernel


# ----------------------------------------------------------------------------
# Wrapper
# ----------------------------------------------------------------------------
def make_cnnnet_plus5(params, *, tb=None, act_dtype=None, conv2_group=None):
    """Pack params ONCE (per parameter set) and return a forward(x) callable."""
    d_act, d_grp, d_tb = _device_defaults()
    act_dtype = d_act if act_dtype is None else act_dtype
    conv2_group = d_grp if conv2_group is None else conv2_group
    tb = d_tb if tb is None else tb
    tb = max(128, _round_up(int(tb), 128))

    plan, slab_lens = _conv2_plan(conv2_group)
    kargs = prepare_params(params, act_dtype=act_dtype, slab_lens=slab_lens)
    kernel = _make_kernel(plan, len(slab_lens), act_dtype)

    macs = (608 * 164
            + sum((glen * 32) * ((glen + 3) * 16) for _, glen, _ in plan)
            + 256 * 224 + 64 * 128 + 32 * 64 + 1 * 32)
    trans = 544 + 224 + 128 + 32 + 1
    w_bytes = sum(int(a.size) * a.dtype.itemsize for a in kargs)

    def forward(x):
        N, cin, L = x.shape
        assert (cin, L) == (4, 41), "CNNnet_plus5 requires input shape (N, 4, 41)"

        n_lanes = _round_up(N, 128)
        tb_eff = min(tb, n_lanes)
        # Give the ("parallel") batch grid >= 2 tiles whenever there is enough
        # work, so both v7x TensorCores get a share (neutral on 1-TC chips).
        if n_lanes >= 256:
            tb_eff = min(tb_eff, _round_up(pl.cdiv(N, 2), 128))
        num_tiles = pl.cdiv(N, tb_eff)
        n_pad = num_tiles * tb_eff

        # Ship x as (Cin*L, N_pad) bf16, rows CHANNEL-major (c*41 + l) to match
        # the conv1 weight columns; batch on the lane axis.
        xt = x.reshape(N, cin * L).T.astype(jnp.bfloat16)
        if n_pad != N:
            xt = jnp.pad(xt, ((0, 0), (0, n_pad - N)))

        def full_spec(a):                          # resident weights / biases
            return pl.BlockSpec(a.shape, lambda n, _nd=a.ndim: (0,) * _nd)

        in_specs = [pl.BlockSpec((cin * L, tb_eff), lambda n: (0, n))]
        in_specs += [full_spec(a) for a in kargs]

        cost = pl.CostEstimate(
            flops=2 * macs * n_pad,
            transcendentals=trans * n_pad,
            bytes_accessed=int(xt.size) * 2 + n_pad * 4 + w_bytes)

        out = pl.pallas_call(
            kernel,
            out_shape=jax.ShapeDtypeStruct((num_tiles, 1, tb_eff), jnp.float32),
            grid=(num_tiles,),
            in_specs=in_specs,
            out_specs=pl.BlockSpec((1, 1, tb_eff), lambda n: (n, 0, 0)),
            compiler_params=pltpu.CompilerParams(
                dimension_semantics=("parallel",),
                vmem_limit_bytes=48 * 1024 * 1024),
            cost_estimate=cost,
        )(xt, *kargs)
        return out.reshape(n_pad)[:N].reshape(N, 1)

    return forward


def cnnnet_plus5_forward(x, params, **kwargs):
    """Convenience wrapper (packs weights per call; prefer make_cnnnet_plus5)."""
    return make_cnnnet_plus5(params, **kwargs)(x)


# ----------------------------------------------------------------------------
# Pure-JAX reference (mirrors the PyTorch module in eval mode)
# ----------------------------------------------------------------------------
def reference_forward(x, params):
    (cw1, cb1, cw2, cb2, cw3, cb3, w1, b1, w2, b2, w3, b3) = params
    dn = ('NCH', 'OIH', 'NCH')

    def conv(h, w, b):
        y = lax.conv_general_dilated(h, w, window_strides=(1,),
                                     padding='VALID', dimension_numbers=dn)
        return y + b[None, :, None]

    def maxpool(h, k, s):
        return lax.reduce_window(h, -jnp.inf, lax.max,
                                 window_dimensions=(1, 1, k),
                                 window_strides=(1, 1, s), padding='VALID')

    elu = lambda v: jnp.where(v > 0, v, jnp.exp(jnp.minimum(v, 0.0)) - 1.0)
    h = maxpool(elu(conv(x, cw1, cb1)), 5, 1)
    h = maxpool(elu(conv(h, cw2, cb2)), 4, 4)
    h = maxpool(elu(conv(h, cw3, cb3)), 2, 2)
    h = h.reshape(h.shape[0], -1)                       # (N, 128)
    h = h @ w1.T + b1
    h = h @ w2.T + b2
    h = elu(h)
    h = h @ w3.T + b3
    return jax.nn.sigmoid(h)


def init_params(key):
    ks = jax.random.split(key, 12)

    def u(k, shape, fan_in):
        bound = 1.0 / (fan_in ** 0.5)
        return jax.random.uniform(k, shape, jnp.float32, -bound, bound)

    cw1 = u(ks[0], (16, 4, 4), 4 * 4);    cb1 = u(ks[1], (16,), 4 * 4)
    cw2 = u(ks[2], (32, 16, 4), 16 * 4);  cb2 = u(ks[3], (32,), 16 * 4)
    cw3 = u(ks[4], (64, 32, 4), 32 * 4);  cb3 = u(ks[5], (64,), 32 * 4)
    w1 = u(ks[6], (64, 128), 128);        b1 = u(ks[7], (64,), 128)
    w2 = u(ks[8], (32, 64), 64);          b2 = u(ks[9], (32,), 64)
    w3 = u(ks[10], (1, 32), 32);          b3 = u(ks[11], (1,), 32)
    return (cw1, cb1, cw2, cb2, cw3, cb3, w1, b1, w2, b2, w3, b3)


if __name__ == "__main__":
    key = jax.random.PRNGKey(0)
    pkey, xkey, xkey2 = jax.random.split(key, 3)
    params = init_params(pkey)
    forward = make_cnnnet_plus5(params)     # weights packed once

    # batch=2, 4 input channels, sequence length 41
    # (length 41 is forced by Flatten -> Linear(128, 64)).
    x = jax.random.normal(xkey, (2, 4, 41), jnp.float32)
    out = jax.block_until_ready(forward(x))
    ref = reference_forward(x, params)
    assert out.shape == (2, 1), out.shape
    # bf16 matmul inputs (+ bf16 activation storage on v6e/v7x) -> bf16 tol.
    assert jnp.allclose(out, ref, atol=3e-2, rtol=3e-2), (out, ref)

    # Also exercise the multi-tile / padded-batch path (2 grid tiles of 256).
    x2 = jax.random.normal(xkey2, (300, 4, 41), jnp.float32)
    out2 = jax.block_until_ready(forward(x2))
    ref2 = reference_forward(x2, params)
    assert out2.shape == (300, 1), out2.shape
    assert jnp.allclose(out2, ref2, atol=4e-2, rtol=4e-2), \
        float(jnp.max(jnp.abs(out2 - ref2)))

    print("KERNEL_OK")
</pallas_src>

<mosaic_0001>
module attributes {stable_mosaic.version = 11 : i64} {
  func.func @kernel(%arg0: i32, %arg1: memref<164x128xbf16, #tpu.memory_space<vmem>>, %arg2: memref<608x164xbf16, #tpu.memory_space<vmem>>, %arg3: memref<544x1xbf16, #tpu.memory_space<vmem>>, %arg4: memref<256x176xbf16, #tpu.memory_space<vmem>>, %arg5: memref<128x112xbf16, #tpu.memory_space<vmem>>, %arg6: memref<224x1xbf16, #tpu.memory_space<vmem>>, %arg7: memref<256x224xbf16, #tpu.memory_space<vmem>>, %arg8: memref<128x1xbf16, #tpu.memory_space<vmem>>, %arg9: memref<64x128xbf16, #tpu.memory_space<vmem>>, %arg10: memref<64x1xf32, #tpu.memory_space<vmem>>, %arg11: memref<32x64xbf16, #tpu.memory_space<vmem>>, %arg12: memref<32x1xf32, #tpu.memory_space<vmem>>, %arg13: memref<1x32xbf16, #tpu.memory_space<vmem>>, %arg14: memref<1x1xf32, #tpu.memory_space<vmem>>, %arg15: memref<1x1x128xf32, #tpu.memory_space<vmem>>) attributes {dimension_semantics = [#tpu.dimension_semantics<parallel>], iteration_bounds = array<i64: 1>, scalar_prefetch = 0 : i64, scratch_operands = 0 : i64, tpu.core_type = #tpu.core_type<tc>, window_params = [{transform_indices = @transform_0, window_bounds = array<i64: 164, 128>}, {pipeline_mode = #tpu.pipeline_mode<synchronous>, transform_indices = @transform_1, window_bounds = array<i64: 608, 164>}, {pipeline_mode = #tpu.pipeline_mode<synchronous>, transform_indices = @transform_2, window_bounds = array<i64: 544, 1>}, {pipeline_mode = #tpu.pipeline_mode<synchronous>, transform_indices = @transform_3, window_bounds = array<i64: 256, 176>}, {pipeline_mode = #tpu.pipeline_mode<synchronous>, transform_indices = @transform_4, window_bounds = array<i64: 128, 112>}, {pipeline_mode = #tpu.pipeline_mode<synchronous>, transform_indices = @transform_5, window_bounds = array<i64: 224, 1>}, {pipeline_mode = #tpu.pipeline_mode<synchronous>, transform_indices = @transform_6, window_bounds = array<i64: 256, 224>}, {pipeline_mode = #tpu.pipeline_mode<synchronous>, transform_indices = @transform_7, window_bounds = array<i64: 128, 1>}, {pipeline_mode = #tpu.pipeline_mode<synchronous>, transform_indices = @transform_8, window_bounds = array<i64: 64, 128>}, {pipeline_mode = #tpu.pipeline_mode<synchronous>, transform_indices = @transform_9, window_bounds = array<i64: 64, 1>}, {pipeline_mode = #tpu.pipeline_mode<synchronous>, transform_indices = @transform_10, window_bounds = array<i64: 32, 64>}, {pipeline_mode = #tpu.pipeline_mode<synchronous>, transform_indices = @transform_11, window_bounds = array<i64: 32, 1>}, {pipeline_mode = #tpu.pipeline_mode<synchronous>, transform_indices = @transform_12, window_bounds = array<i64: 1, 32>}, {pipeline_mode = #tpu.pipeline_mode<synchronous>, transform_indices = @transform_13, window_bounds = array<i64: 1, 1>}, {transform_indices = @transform_14, window_bounds = array<i64: 1, 1, 128>}]} {
    %c0 = arith.constant 0 : index
    %c0_0 = arith.constant 0 : index
    %0 = vector.load %arg1[%c0, %c0_0] : memref<164x128xbf16, #tpu.memory_space<vmem>>, vector<164x128xbf16>
    %c0_1 = arith.constant 0 : index
    %c0_2 = arith.constant 0 : index
    %1 = vector.load %arg2[%c0_1, %c0_2] : memref<608x164xbf16, #tpu.memory_space<vmem>>, vector<608x164xbf16>
    %cst = arith.constant dense<0.000000e+00> : vector<608x128xf32>
    %2 = tpu.matmul %1, %0, %cst {dimension_numbers = #tpu.dot_dimension_numbers<[1], [0], [0], [1], [0, 0, 1, 1], [], []>} : vector<608x164xbf16>, vector<164x128xbf16>, vector<608x128xf32> -> vector<608x128xf32>
    %3 = arith.truncf %2 : vector<608x128xf32> to vector<608x128xbf16>
    %4 = vector.extract_strided_slice %3 {offsets = [0, 0], sizes = [544, 128], strides = [1, 1]} : vector<608x128xbf16> to vector<544x128xbf16>
    %5 = vector.extract_strided_slice %3 {offsets = [16, 0], sizes = [544, 128], strides = [1, 1]} : vector<608x128xbf16> to vector<544x128xbf16>
    %6 = arith.maximumf %4, %5 : vector<544x128xbf16>
    %7 = vector.extract_strided_slice %3 {offsets = [32, 0], sizes = [544, 128], strides = [1, 1]} : vector<608x128xbf16> to vector<544x128xbf16>
    %8 = arith.maximumf %6, %7 : vector<544x128xbf16>
    %9 = vector.extract_strided_slice %3 {offsets = [48, 0], sizes = [544, 128], strides = [1, 1]} : vector<608x128xbf16> to vector<544x128xbf16>
    %10 = arith.maximumf %8, %9 : vector<544x128xbf16>
    %11 = vector.extract_strided_slice %3 {offsets = [64, 0], sizes = [544, 128], strides = [1, 1]} : vector<608x128xbf16> to vector<544x128xbf16>
    %12 = arith.maximumf %10, %11 : vector<544x128xbf16>
    %c0_3 = arith.constant 0 : index
    %c0_4 = arith.constant 0 : index
    %13 = vector.load %arg3[%c0_3, %c0_4] : memref<544x1xbf16, #tpu.memory_space<vmem>>, vector<544x1xbf16>
    %14 = vector.broadcast %13 : vector<544x1xbf16> to vector<544x128xbf16>
    %15 = arith.addf %12, %14 : vector<544x128xbf16>
    %cst_5 = arith.constant 0.000000e+00 : bf16
    %16 = vector.broadcast %cst_5 : bf16 to vector<544x128xbf16>
    %17 = arith.cmpf ogt, %15, %16 : vector<544x128xbf16>
    %cst_6 = arith.constant 0.000000e+00 : bf16
    %18 = vector.broadcast %cst_6 : bf16 to vector<544x128xbf16>
    %19 = arith.minimumf %15, %18 : vector<544x128xbf16>
    %20 = math.exp %19 : vector<544x128xbf16>
    %cst_7 = arith.constant 1.000000e+00 : bf16
    %21 = vector.broadcast %cst_7 : bf16 to vector<544x128xbf16>
    %22 = arith.subf %20, %21 : vector<544x128xbf16>
    %23 = arith.select %17, %15, %22 : vector<544x128xi1>, vector<544x128xbf16>
    %24 = vector.extract_strided_slice %23 {offsets = [0, 0], sizes = [176, 128], strides = [1, 1]} : vector<544x128xbf16> to vector<176x128xbf16>
    %c0_8 = arith.constant 0 : index
    %c0_9 = arith.constant 0 : index
    %25 = vector.load %arg4[%c0_8, %c0_9] : memref<256x176xbf16, #tpu.memory_space<vmem>>, vector<256x176xbf16>
    %cst_10 = arith.constant dense<0.000000e+00> : vector<256x128xf32>
    %26 = tpu.matmul %25, %24, %cst_10 {dimension_numbers = #tpu.dot_dimension_numbers<[1], [0], [0], [1], [0, 0, 1, 1], [], []>} : vector<256x176xbf16>, vector<176x128xbf16>, vector<256x128xf32> -> vector<256x128xf32>
    %27 = arith.truncf %26 : vector<256x128xf32> to vector<256x128xbf16>
    %28 = vector.shape_cast %27 : vector<256x128xbf16> to vector<2x128x128xbf16>
    %29 = vector.extract_strided_slice %28 {offsets = [0, 0, 0], sizes = [2, 32, 128], strides = [1, 1, 1]} : vector<2x128x128xbf16> to vector<2x32x128xbf16>
    %30 = vector.extract_strided_slice %28 {offsets = [0, 32, 0], sizes = [2, 32, 128], strides = [1, 1, 1]} : vector<2x128x128xbf16> to vector<2x32x128xbf16>
    %31 = arith.maximumf %29, %30 : vector<2x32x128xbf16>
    %32 = vector.extract_strided_slice %28 {offsets = [0, 64, 0], sizes = [2, 32, 128], strides = [1, 1, 1]} : vector<2x128x128xbf16> to vector<2x32x128xbf16>
    %33 = vector.extract_strided_slice %28 {offsets = [0, 96, 0], sizes = [2, 32, 128], strides = [1, 1, 1]} : vector<2x128x128xbf16> to vector<2x32x128xbf16>
    %34 = arith.maximumf %32, %33 : vector<2x32x128xbf16>
    %35 = arith.maximumf %31, %34 : vector<2x32x128xbf16>
    %36 = vector.shape_cast %35 : vector<2x32x128xbf16> to vector<64x128xbf16>
    %37 = vector.extract_strided_slice %23 {offsets = [128, 0], sizes = [176, 128], strides = [1, 1]} : vector<544x128xbf16> to vector<176x128xbf16>
    %c0_11 = arith.constant 0 : index
    %c0_12 = arith.constant 0 : index
    %38 = vector.load %arg4[%c0_11, %c0_12] : memref<256x176xbf16, #tpu.memory_space<vmem>>, vector<256x176xbf16>
    %cst_13 = arith.constant dense<0.000000e+00> : vector<256x128xf32>
    %39 = tpu.matmul %38, %37, %cst_13 {dimension_numbers = #tpu.dot_dimension_numbers<[1], [0], [0], [1], [0, 0, 1, 1], [], []>} : vector<256x176xbf16>, vector<176x128xbf16>, vector<256x128xf32> -> vector<256x128xf32>
    %40 = arith.truncf %39 : vector<256x128xf32> to vector<256x128xbf16>
    %41 = vector.shape_cast %40 : vector<256x128xbf16> to vector<2x128x128xbf16>
    %42 = vector.extract_strided_slice %41 {offsets = [0, 0, 0], sizes = [2, 32, 128], strides = [1, 1, 1]} : vector<2x128x128xbf16> to vector<2x32x128xbf16>
    %43 = vector.extract_strided_slice %41 {offsets = [0, 32, 0], sizes = [2, 32, 128], strides = [1, 1, 1]} : vector<2x128x128xbf16> to vector<2x32x128xbf16>
    %44 = arith.maximumf %42, %43 : vector<2x32x128xbf16>
    %45 = vector.extract_strided_slice %41 {offsets = [0, 64, 0], sizes = [2, 32, 128], strides = [1, 1, 1]} : vector<2x128x128xbf16> to vector<2x32x128xbf16>
    %46 = vector.extract_strided_slice %41 {offsets = [0, 96, 0], sizes = [2, 32, 128], strides = [1, 1, 1]} : vector<2x128x128xbf16> to vector<2x32x128xbf16>
    %47 = arith.maximumf %45, %46 : vector<2x32x128xbf16>
    %48 = arith.maximumf %44, %47 : vector<2x32x128xbf16>
    %49 = vector.shape_cast %48 : vector<2x32x128xbf16> to vector<64x128xbf16>
    %50 = vector.extract_strided_slice %23 {offsets = [256, 0], sizes = [176, 128], strides = [1, 1]} : vector<544x128xbf16> to vector<176x128xbf16>
    %c0_14 = arith.constant 0 : index
    %c0_15 = arith.constant 0 : index
    %51 = vector.load %arg4[%c0_14, %c0_15] : memref<256x176xbf16, #tpu.memory_space<vmem>>, vector<256x176xbf16>
    %cst_16 = arith.constant dense<0.000000e+00> : vector<256x128xf32>
    %52 = tpu.matmul %51, %50, %cst_16 {dimension_numbers = #tpu.dot_dimension_numbers<[1], [0], [0], [1], [0, 0, 1, 1], [], []>} : vector<256x176xbf16>, vector<176x128xbf16>, vector<256x128xf32> -> vector<256x128xf32>
    %53 = arith.truncf %52 : vector<256x128xf32> to vector<256x128xbf16>
    %54 = vector.shape_cast %53 : vector<256x128xbf16> to vector<2x128x128xbf16>
    %55 = vector.extract_strided_slice %54 {offsets = [0, 0, 0], sizes = [2, 32, 128], strides = [1, 1, 1]} : vector<2x128x128xbf16> to vector<2x32x128xbf16>
    %56 = vector.extract_strided_slice %54 {offsets = [0, 32, 0], sizes = [2, 32, 128], strides = [1, 1, 1]} : vector<2x128x128xbf16> to vector<2x32x128xbf16>
    %57 = arith.maximumf %55, %56 : vector<2x32x128xbf16>
    %58 = vector.extract_strided_slice %54 {offsets = [0, 64, 0], sizes = [2, 32, 128], strides = [1, 1, 1]} : vector<2x128x128xbf16> to vector<2x32x128xbf16>
    %59 = vector.extract_strided_slice %54 {offsets = [0, 96, 0], sizes = [2, 32, 128], strides = [1, 1, 1]} : vector<2x128x128xbf16> to vector<2x32x128xbf16>
    %60 = arith.maximumf %58, %59 : vector<2x32x128xbf16>
    %61 = arith.maximumf %57, %60 : vector<2x32x128xbf16>
    %62 = vector.shape_cast %61 : vector<2x32x128xbf16> to vector<64x128xbf16>
    %63 = vector.extract_strided_slice %23 {offsets = [384, 0], sizes = [112, 128], strides = [1, 1]} : vector<544x128xbf16> to vector<112x128xbf16>
    %c0_17 = arith.constant 0 : index
    %c0_18 = arith.constant 0 : index
    %64 = vector.load %arg5[%c0_17, %c0_18] : memref<128x112xbf16, #tpu.memory_space<vmem>>, vector<128x112xbf16>
    %cst_19 = arith.constant dense<0.000000e+00> : vector<128x128xf32>
    %65 = tpu.matmul %64, %63, %cst_19 {dimension_numbers = #tpu.dot_dimension_numbers<[1], [0], [0], [1], [0, 0, 1, 1], [], []>} : vector<128x112xbf16>, vector<112x128xbf16>, vector<128x128xf32> -> vector<128x128xf32>
    %66 = arith.truncf %65 : vector<128x128xf32> to vector<128x128xbf16>
    %67 = vector.shape_cast %66 : vector<128x128xbf16> to vector<1x128x128xbf16>
    %68 = vector.extract_strided_slice %67 {offsets = [0, 0, 0], sizes = [1, 32, 128], strides = [1, 1, 1]} : vector<1x128x128xbf16> to vector<1x32x128xbf16>
    %69 = vector.extract_strided_slice %67 {offsets = [0, 32, 0], sizes = [1, 32, 128], strides = [1, 1, 1]} : vector<1x128x128xbf16> to vector<1x32x128xbf16>
    %70 = arith.maximumf %68, %69 : vector<1x32x128xbf16>
    %71 = vector.extract_strided_slice %67 {offsets = [0, 64, 0], sizes = [1, 32, 128], strides = [1, 1, 1]} : vector<1x128x128xbf16> to vector<1x32x128xbf16>
    %72 = vector.extract_strided_slice %67 {offsets = [0, 96, 0], sizes = [1, 32, 128], strides = [1, 1, 1]} : vector<1x128x128xbf16> to vector<1x32x128xbf16>
    %73 = arith.maximumf %71, %72 : vector<1x32x128xbf16>
    %74 = arith.maximumf %70, %73 : vector<1x32x128xbf16>
    %75 = vector.shape_cast %74 : vector<1x32x128xbf16> to vector<32x128xbf16>
    %76 = tpu.concatenate %36, %49, %62, %75 in 0 : vector<64x128xbf16>, vector<64x128xbf16>, vector<64x128xbf16>, vector<32x128xbf16> -> vector<224x128xbf16>
    %c0_20 = arith.constant 0 : index
    %c0_21 = arith.constant 0 : index
    %77 = vector.load %arg6[%c0_20, %c0_21] : memref<224x1xbf16, #tpu.memory_space<vmem>>, vector<224x1xbf16>
    %78 = vector.broadcast %77 : vector<224x1xbf16> to vector<224x128xbf16>
    %79 = arith.addf %76, %78 : vector<224x128xbf16>
    %cst_22 = arith.constant 0.000000e+00 : bf16
    %80 = vector.broadcast %cst_22 : bf16 to vector<224x128xbf16>
    %81 = arith.cmpf ogt, %79, %80 : vector<224x128xbf16>
    %cst_23 = arith.constant 0.000000e+00 : bf16
    %82 = vector.broadcast %cst_23 : bf16 to vector<224x128xbf16>
    %83 = arith.minimumf %79, %82 : vector<224x128xbf16>
    %84 = math.exp %83 : vector<224x128xbf16>
    %cst_24 = arith.constant 1.000000e+00 : bf16
    %85 = vector.broadcast %cst_24 : bf16 to vector<224x128xbf16>
    %86 = arith.subf %84, %85 : vector<224x128xbf16>
    %87 = arith.select %81, %79, %86 : vector<224x128xi1>, vector<224x128xbf16>
    %c0_25 = arith.constant 0 : index
    %c0_26 = arith.constant 0 : index
    %88 = vector.load %arg7[%c0_25, %c0_26] : memref<256x224xbf16, #tpu.memory_space<vmem>>, vector<256x224xbf16>
    %cst_27 = arith.constant dense<0.000000e+00> : vector<256x128xf32>
    %89 = tpu.matmul %88, %87, %cst_27 {dimension_numbers = #tpu.dot_dimension_numbers<[1], [0], [0], [1], [0, 0, 1, 1], [], []>} : vector<256x224xbf16>, vector<224x128xbf16>, vector<256x128xf32> -> vector<256x128xf32>
    %90 = arith.truncf %89 : vector<256x128xf32> to vector<256x128xbf16>
    %91 = vector.shape_cast %90 : vector<256x128xbf16> to vector<2x128x128xbf16>
    %92 = vector.extract_strided_slice %91 {offsets = [0, 0, 0], sizes = [2, 64, 128], strides = [1, 1, 1]} : vector<2x128x128xbf16> to vector<2x64x128xbf16>
    %93 = vector.extract_strided_slice %91 {offsets = [0, 64, 0], sizes = [2, 64, 128], strides = [1, 1, 1]} : vector<2x128x128xbf16> to vector<2x64x128xbf16>
    %94 = arith.maximumf %92, %93 : vector<2x64x128xbf16>
    %95 = vector.shape_cast %94 : vector<2x64x128xbf16> to vector<128x128xbf16>
    %c0_28 = arith.constant 0 : index
    %c0_29 = arith.constant 0 : index
    %96 = vector.load %arg8[%c0_28, %c0_29] : memref<128x1xbf16, #tpu.memory_space<vmem>>, vector<128x1xbf16>
    %97 = vector.broadcast %96 : vector<128x1xbf16> to vector<128x128xbf16>
    %98 = arith.addf %95, %97 : vector<128x128xbf16>
    %cst_30 = arith.constant 0.000000e+00 : bf16
    %99 = vector.broadcast %cst_30 : bf16 to vector<128x128xbf16>
    %100 = arith.cmpf ogt, %98, %99 : vector<128x128xbf16>
    %cst_31 = arith.constant 0.000000e+00 : bf16
    %101 = vector.broadcast %cst_31 : bf16 to vector<128x128xbf16>
    %102 = arith.minimumf %98, %101 : vector<128x128xbf16>
    %103 = math.exp %102 : vector<128x128xbf16>
    %cst_32 = arith.constant 1.000000e+00 : bf16
    %104 = vector.broadcast %cst_32 : bf16 to vector<128x128xbf16>
    %105 = arith.subf %103, %104 : vector<128x128xbf16>
    %106 = arith.select %100, %98, %105 : vector<128x128xi1>, vector<128x128xbf16>
    %c0_33 = arith.constant 0 : index
    %c0_34 = arith.constant 0 : index
    %107 = vector.load %arg9[%c0_33, %c0_34] : memref<64x128xbf16, #tpu.memory_space<vmem>>, vector<64x128xbf16>
    %cst_35 = arith.constant dense<0.000000e+00> : vector<64x128xf32>
    %108 = tpu.matmul %107, %106, %cst_35 {dimension_numbers = #tpu.dot_dimension_numbers<[1], [0], [0], [1], [0, 0, 1, 1], [], []>} : vector<64x128xbf16>, vector<128x128xbf16>, vector<64x128xf32> -> vector<64x128xf32>
    %c0_36 = arith.constant 0 : index
    %c0_37 = arith.constant 0 : index
    %109 = vector.load %arg10[%c0_36, %c0_37] : memref<64x1xf32, #tpu.memory_space<vmem>>, vector<64x1xf32>
    %110 = vector.broadcast %109 : vector<64x1xf32> to vector<64x128xf32>
    %111 = arith.addf %108, %110 : vector<64x128xf32>
    %c0_38 = arith.constant 0 : index
    %c0_39 = arith.constant 0 : index
    %112 = vector.load %arg11[%c0_38, %c0_39] : memref<32x64xbf16, #tpu.memory_space<vmem>>, vector<32x64xbf16>
    %113 = arith.truncf %111 : vector<64x128xf32> to vector<64x128xbf16>
    %cst_40 = arith.constant dense<0.000000e+00> : vector<32x128xf32>
    %114 = tpu.matmul %112, %113, %cst_40 {dimension_numbers = #tpu.dot_dimension_numbers<[1], [0], [0], [1], [0, 0, 1, 1], [], []>} : vector<32x64xbf16>, vector<64x128xbf16>, vector<32x128xf32> -> vector<32x128xf32>
    %c0_41 = arith.constant 0 : index
    %c0_42 = arith.constant 0 : index
    %115 = vector.load %arg12[%c0_41, %c0_42] : memref<32x1xf32, #tpu.memory_space<vmem>>, vector<32x1xf32>
    %116 = vector.broadcast %115 : vector<32x1xf32> to vector<32x128xf32>
    %117 = arith.addf %114, %116 : vector<32x128xf32>
    %cst_43 = arith.constant 0.000000e+00 : f32
    %118 = vector.broadcast %cst_43 : f32 to vector<32x128xf32>
    %119 = arith.cmpf ogt, %117, %118 : vector<32x128xf32>
    %cst_44 = arith.constant 0.000000e+00 : f32
    %120 = vector.broadcast %cst_44 : f32 to vector<32x128xf32>
    %121 = arith.minimumf %117, %120 : vector<32x128xf32>
    %122 = math.exp %121 : vector<32x128xf32>
    %cst_45 = arith.constant 1.000000e+00 : f32
    %123 = vector.broadcast %cst_45 : f32 to vector<32x128xf32>
    %124 = arith.subf %122, %123 : vector<32x128xf32>
    %125 = arith.select %119, %117, %124 : vector<32x128xi1>, vector<32x128xf32>
    %c0_46 = arith.constant 0 : index
    %c0_47 = arith.constant 0 : index
    %126 = vector.load %arg13[%c0_46, %c0_47] : memref<1x32xbf16, #tpu.memory_space<vmem>>, vector<1x32xbf16>
    %127 = arith.truncf %125 : vector<32x128xf32> to vector<32x128xbf16>
    %cst_48 = arith.constant dense<0.000000e+00> : vector<1x128xf32>
    %128 = tpu.matmul %126, %127, %cst_48 {dimension_numbers = #tpu.dot_dimension_numbers<[1], [0], [0], [1], [0, 0, 1, 1], [], []>} : vector<1x32xbf16>, vector<32x128xbf16>, vector<1x128xf32> -> vector<1x128xf32>
    %c0_49 = arith.constant 0 : index
    %c0_50 = arith.constant 0 : index
    %129 = vector.load %arg14[%c0_49, %c0_50] : memref<1x1xf32, #tpu.memory_space<vmem>>, vector<1x1xf32>
    %130 = vector.broadcast %129 : vector<1x1xf32> to vector<1x128xf32>
    %131 = arith.addf %128, %130 : vector<1x128xf32>
    %132 = arith.negf %131 : vector<1x128xf32>
    %133 = math.exp %132 : vector<1x128xf32>
    %cst_51 = arith.constant 1.000000e+00 : f32
    %134 = vector.broadcast %cst_51 : f32 to vector<1x128xf32>
    %135 = arith.addf %134, %133 : vector<1x128xf32>
    %136 = arith.divf %134, %135 : vector<1x128xf32>
    %c0_52 = arith.constant 0 : index
    %c0_53 = arith.constant 0 : index
    %c0_54 = arith.constant 0 : index
    %137 = vector.load %arg15[%c0_52, %c0_53, %c0_54] : memref<1x1x128xf32, #tpu.memory_space<vmem>>, vector<1x1x128xf32>
    %138 = vector.shape_cast %137 : vector<1x1x128xf32> to vector<1x128xf32>
    %139 = vector.shape_cast %136 : vector<1x128xf32> to vector<1x1x128xf32>
    tpu.vector_store %arg15[%c0_52, %c0_53, %c0_54], %139 {strides = array<i32>} : memref<1x1x128xf32, #tpu.memory_space<vmem>>, vector<1x1x128xf32>,
    return
  }
  func.func @transform_0(%arg0: i32) -> (i32, i32) {
    %c0_i32 = arith.constant 0 : i32
    %c0_i32_0 = arith.constant 0 : i32
    return %c0_i32, %arg0 : i32, i32
  }
  func.func @transform_1(%arg0: i32) -> (i32, i32) {
    %c0_i32 = arith.constant 0 : i32
    %c0_i32_0 = arith.constant 0 : i32
    %c0_i32_1 = arith.constant 0 : i32
    return %c0_i32, %c0_i32_0 : i32, i32
  }
  func.func @transform_2(%arg0: i32) -> (i32, i32) {
    %c0_i32 = arith.constant 0 : i32
    %c0_i32_0 = arith.constant 0 : i32
    %c0_i32_1 = arith.constant 0 : i32
    return %c0_i32, %c0_i32_0 : i32, i32
  }
  func.func @transform_3(%arg0: i32) -> (i32, i32) {
    %c0_i32 = arith.constant 0 : i32
    %c0_i32_0 = arith.constant 0 : i32
    %c0_i32_1 = arith.constant 0 : i32
    return %c0_i32, %c0_i32_0 : i32, i32
  }
  func.func @transform_4(%arg0: i32) -> (i32, i32) {
    %c0_i32 = arith.constant 0 : i32
    %c0_i32_0 = arith.constant 0 : i32
    %c0_i32_1 = arith.constant 0 : i32
    return %c0_i32, %c0_i32_0 : i32, i32
  }
  func.func @transform_5(%arg0: i32) -> (i32, i32) {
    %c0_i32 = arith.constant 0 : i32
    %c0_i32_0 = arith.constant 0 : i32
    %c0_i32_1 = arith.constant 0 : i32
    return %c0_i32, %c0_i32_0 : i32, i32
  }
  func.func @transform_6(%arg0: i32) -> (i32, i32) {
    %c0_i32 = arith.constant 0 : i32
    %c0_i32_0 = arith.constant 0 : i32
    %c0_i32_1 = arith.constant 0 : i32
    return %c0_i32, %c0_i32_0 : i32, i32
  }
  func.func @transform_7(%arg0: i32) -> (i32, i32) {
    %c0_i32 = arith.constant 0 : i32
    %c0_i32_0 = arith.constant 0 : i32
    %c0_i32_1 = arith.constant 0 : i32
    return %c0_i32, %c0_i32_0 : i32, i32
  }
  func.func @transform_8(%arg0: i32) -> (i32, i32) {
    %c0_i32 = arith.constant 0 : i32
    %c0_i32_0 = arith.constant 0 : i32
    %c0_i32_1 = arith.constant 0 : i32
    return %c0_i32, %c0_i32_0 : i32, i32
  }
  func.func @transform_9(%arg0: i32) -> (i32, i32) {
    %c0_i32 = arith.constant 0 : i32
    %c0_i32_0 = arith.constant 0 : i32
    %c0_i32_1 = arith.constant 0 : i32
    return %c0_i32, %c0_i32_0 : i32, i32
  }
  func.func @transform_10(%arg0: i32) -> (i32, i32) {
    %c0_i32 = arith.constant 0 : i32
    %c0_i32_0 = arith.constant 0 : i32
    %c0_i32_1 = arith.constant 0 : i32
    return %c0_i32, %c0_i32_0 : i32, i32
  }
  func.func @transform_11(%arg0: i32) -> (i32, i32) {
    %c0_i32 = arith.constant 0 : i32
    %c0_i32_0 = arith.constant 0 : i32
    %c0_i32_1 = arith.constant 0 : i32
    return %c0_i32, %c0_i32_0 : i32, i32
  }
  func.func @transform_12(%arg0: i32) -> (i32, i32) {
    %c0_i32 = arith.constant 0 : i32
    %c0_i32_0 = arith.constant 0 : i32
    %c0_i32_1 = arith.constant 0 : i32
    return %c0_i32, %c0_i32_0 : i32, i32
  }
  func.func @transform_13(%arg0: i32) -> (i32, i32) {
    %c0_i32 = arith.constant 0 : i32
    %c0_i32_0 = arith.constant 0 : i32
    %c0_i32_1 = arith.constant 0 : i32
    return %c0_i32, %c0_i32_0 : i32, i32
  }
  func.func @transform_14(%arg0: i32) -> (i32, i32, i32) {
    %c0_i32 = arith.constant 0 : i32
    %c0_i32_0 = arith.constant 0 : i32
    %c0_i32_1 = arith.constant 0 : i32
    return %arg0, %c0_i32, %c0_i32_0 : i32, i32, i32
  }
}

</mosaic_0001>

<llo_original>
// kernel: tpu_custom_call.1
$region0: #{tpu_custom_call.1}
  #allocation0 [shape = 'u32[]', space=smem, size = 0x4, offset = 0x4, fixed_abs, tag = 'smem constant byte address 0x4 - core index']
  #allocation1 [shape = 'u32[72,128]{1,0:T(1,128)}', space=vmem, size = 0x9000, scoped, tag = 'internal scratch']
  #allocation2 [shape = 'f32[1,1]{1,0:T(1,128)S(1)}', space=vmem, size = 0x200, scoped, tag = 'scoped memory for tpu_custom_call.1']
  %s0 = inlined_call_operand.vmem [shape: bf16[164,128], index: 0, kind: input, shape index: {}]
  %s1 = inlined_call_operand.vmem [shape: bf16[608,164], index: 1, kind: input, shape index: {}]
  %s2 = inlined_call_operand.vmem [shape: bf16[544,1], index: 2, kind: input, shape index: {}]
  %s3 = inlined_call_operand.vmem [shape: bf16[256,176], index: 3, kind: input, shape index: {}]
  %s4 = inlined_call_operand.vmem [shape: bf16[128,112], index: 4, kind: input, shape index: {}]
  %s5 = inlined_call_operand.vmem [shape: bf16[224,1], index: 5, kind: input, shape index: {}]
  %s6 = inlined_call_operand.vmem [shape: bf16[256,224], index: 6, kind: input, shape index: {}]
  %s7 = inlined_call_operand.vmem [shape: bf16[128,1], index: 7, kind: input, shape index: {}]
  %s8 = inlined_call_operand.vmem [shape: bf16[64,128], index: 8, kind: input, shape index: {}]
  %s9 = inlined_call_operand.vmem [shape: f32[64,1], index: 9, kind: input, shape index: {}]
  %s10 = inlined_call_operand.vmem [shape: bf16[32,64], index: 10, kind: input, shape index: {}]
  %s11 = inlined_call_operand.vmem [shape: f32[32,1], index: 11, kind: input, shape index: {}]
  %s12 = inlined_call_operand.vmem [shape: bf16[1,32], index: 12, kind: input, shape index: {}]
  %s13 = inlined_call_operand.<no memory space> [shape: f32[1,1], index: 13, kind: input, shape index: {}]
  %s14 = inlined_call_operand.hbm [shape: f32[1,1,128], index: 14, kind: output, shape index: {}]
  %s15 = sld [smem:[#allocation0]]
  $region66: #{tpu_custom_call.1} parent=0
    _
  %s17 = ssub.s32 1, %s15
  %s18 = scalar_select 0, %s17, %s15
  %v19 = vstv %s13
  %20 = vst [vmem:[#allocation2] sm:$0x1] %v19
  $region1: #{tpu_custom_call.1} parent=0
    #allocation3 [shape = 'u8[512]{0}', space=vmem, size = 0x400, scoped, tag = 'output window, operand 0, single buffered']
    #allocation4 [shape = 's32[1]{0}', space=sflag, size = 0x4, scoped, tag = 'scoped memory for tpu_custom_call.1']
    %21 = vsyncpa [#allocation4], 0
    // Predicated region
    $region2: #{tpu_custom_call.1} parent=1 // pred_check
      _
    $region3: #{tpu_custom_call.1} parent=1 // pred_check_branch
      %23 = sbr.rel (0) target = $region5
    $region4: #{tpu_custom_call.1} parent=1 // pred_region
      _
    $region5: #{tpu_custom_call.1} parent=1 // pred_fallthru
      _
    // Predicated region
    $region6: #{tpu_custom_call.1} parent=1 // pred_check
      _
    $region7: #{tpu_custom_call.1} parent=1 // pred_check_branch
      %25 = sbr.rel (0) target = $region9
    $region8: #{tpu_custom_call.1} parent=1 // pred_region
      _
    $region9: #{tpu_custom_call.1} parent=1 // pred_fallthru
      _
    // Predicated region
    $region10: #{tpu_custom_call.1} parent=1 // pred_check
      _
    $region11: #{tpu_custom_call.1} parent=1 // pred_check_branch
      %27 = sbr.rel (0) target = $region13
    $region12: #{tpu_custom_call.1} parent=1 // pred_region
      _
    $region13: #{tpu_custom_call.1} parent=1 // pred_fallthru
      _
    // Predicated region
    $region14: #{tpu_custom_call.1} parent=1 // pred_check
      _
    $region15: #{tpu_custom_call.1} parent=1 // pred_check_branch
      %29 = sbr.rel (0) target = $region17
    $region16: #{tpu_custom_call.1} parent=1 // pred_region
      _
    $region17: #{tpu_custom_call.1} parent=1 // pred_fallthru
      _
    // Predicated region
    $region18: #{tpu_custom_call.1} parent=1 // pred_check
      _
    $region19: #{tpu_custom_call.1} parent=1 // pred_check_branch
      %31 = sbr.rel (0) target = $region21
    $region20: #{tpu_custom_call.1} parent=1 // pred_region
      _
    $region21: #{tpu_custom_call.1} parent=1 // pred_fallthru
      _
    // Predicated region
    $region22: #{tpu_custom_call.1} parent=1 // pred_check
      _
    $region23: #{tpu_custom_call.1} parent=1 // pred_check_branch
      %33 = sbr.rel (0) target = $region25
    $region24: #{tpu_custom_call.1} parent=1 // pred_region
      _
    $region25: #{tpu_custom_call.1} parent=1 // pred_fallthru
      _
    // Predicated region
    $region26: #{tpu_custom_call.1} parent=1 // pred_check
      _
    $region27: #{tpu_custom_call.1} parent=1 // pred_check_branch
      %35 = sbr.rel (0) target = $region29
    $region28: #{tpu_custom_call.1} parent=1 // pred_region
      _
    $region29: #{tpu_custom_call.1} parent=1 // pred_fallthru
      _
    // Predicated region
    $region30: #{tpu_custom_call.1} parent=1 // pred_check
      _
    $region31: #{tpu_custom_call.1} parent=1 // pred_check_branch
      %37 = sbr.rel (0) target = $region33
    $region32: #{tpu_custom_call.1} parent=1 // pred_region
      _
    $region33: #{tpu_custom_call.1} parent=1 // pred_fallthru
      _
    // Predicated region
    $region34: #{tpu_custom_call.1} parent=1 // pred_check
      _
    $region35: #{tpu_custom_call.1} parent=1 // pred_check_branch
      %39 = sbr.rel (0) target = $region37
    $region36: #{tpu_custom_call.1} parent=1 // pred_region
      _
    $region37: #{tpu_custom_call.1} parent=1 // pred_fallthru
      _
    // Predicated region
    $region38: #{tpu_custom_call.1} parent=1 // pred_check
      _
    $region39: #{tpu_custom_call.1} parent=1 // pred_check_branch
      %41 = sbr.rel (0) target = $region41
    $region40: #{tpu_custom_call.1} parent=1 // pred_region
      _
    $region41: #{tpu_custom_call.1} parent=1 // pred_fallthru
      _
    // Predicated region
    $region42: #{tpu_custom_call.1} parent=1 // pred_check
      _
    $region43: #{tpu_custom_call.1} parent=1 // pred_check_branch
      %43 = sbr.rel (0) target = $region45
    $region44: #{tpu_custom_call.1} parent=1 // pred_region
      _
    $region45: #{tpu_custom_call.1} parent=1 // pred_fallthru
      _
    // Predicated region
    $region46: #{tpu_custom_call.1} parent=1 // pred_check
      _
    $region47: #{tpu_custom_call.1} parent=1 // pred_check_branch
      %45 = sbr.rel (0) target = $region49
    $region48: #{tpu_custom_call.1} parent=1 // pred_region
      _
    $region49: #{tpu_custom_call.1} parent=1 // pred_fallthru
      _
    // Predicated region
    $region50: #{tpu_custom_call.1} parent=1 // pred_check
      _
    $region51: #{tpu_custom_call.1} parent=1 // pred_check_branch
      %47 = sbr.rel (0) target = $region53
    $region52: #{tpu_custom_call.1} parent=1 // pred_region
      _
    $region53: #{tpu_custom_call.1} parent=1 // pred_fallthru
      _
    // Predicated region
    $region54: #{tpu_custom_call.1} parent=1 // pred_check
      _
    $region55: #{tpu_custom_call.1} parent=1 // pred_check_branch
      %49 = sbr.rel (0) target = $region57
    $region56: #{tpu_custom_call.1} parent=1 // pred_region
      _
    $region57: #{tpu_custom_call.1} parent=1 // pred_fallthru
      _
    %v51 = vld [vmem:[%s0] sm:$0xf]
    %v52 = vld [vmem:[%s0 + $0x4] sm:$0xf]
    %v53 = vld [vmem:[%s0 + $0x8] sm:$0xf]
    %v54 = vld [vmem:[%s0 + $0xc] sm:$0xf]
    %v55 = vld [vmem:[%s0 + $0x10] sm:$0xf]
    %v56 = vld [vmem:[%s0 + $0x14] sm:$0xf]
    %v57 = vld [vmem:[%s0 + $0x18] sm:$0xf]
    %v58 = vld [vmem:[%s0 + $0x1c] sm:$0xf]
    %v59 = vld [vmem:[%s0 + $0x20] sm:$0xf]
    %v60 = vld [vmem:[%s0 + $0x24] sm:$0xf]
    %v61 = vld [vmem:[%s0 + $0x28] sm:$0xf]
    %v62 = vld [vmem:[%s0 + $0x2c] sm:$0xf]
    %v63 = vld [vmem:[%s0 + $0x30] sm:$0xf]
    %v64 = vld [vmem:[%s0 + $0x34] sm:$0xf]
    %v65 = vld [vmem:[%s0 + $0x38] sm:$0xf]
    %v66 = vld [vmem:[%s0 + $0x3c] sm:$0xf]
    %v67 = vld [vmem:[%s0 + $0x40] sm:$0xf]
    %v68 = vld [vmem:[%s0 + $0x44] sm:$0xf]
    %v69 = vld [vmem:[%s0 + $0x48] sm:$0xf]
    %v70 = vld [vmem:[%s0 + $0x4c] sm:$0xf]
    %v71 = vld [vmem:[%s0 + $0x50] sm:$0x3]
    %v72 = vld [vmem:[%s1] sm:$0xff]
    %v73 = vld [vmem:[%s1 + $0x8] sm:$0xff]
    %v74 = vld [vmem:[%s1 + $0x10] sm:$0xff]
    %v75 = vld [vmem:[%s1 + $0x18] sm:$0xff]
    %v76 = vld [vmem:[%s1 + $0x20] sm:$0xff]
    %v77 = vld [vmem:[%s1 + $0x28] sm:$0xff]
    %v78 = vld [vmem:[%s1 + $0x30] sm:$0xff]
    %v79 = vld [vmem:[%s1 + $0x38] sm:$0xff]
    %v80 = vld [vmem:[%s1 + $0x40] sm:$0xff]
    %v81 = vld [vmem:[%s1 + $0x48] sm:$0xff]
    %v82 = vld [vmem:[%s1 + $0x50] sm:$0xff]
    %v83 = vld [vmem:[%s1 + $0x58] sm:$0xff]
    %v84 = vld [vmem:[%s1 + $0x60] sm:$0xff]
    %v85 = vld [vmem:[%s1 + $0x68] sm:$0xff]
    %v86 = vld [vmem:[%s1 + $0x70] sm:$0xff]
    %v87 = vld [vmem:[%s1 + $0x78] sm:$0xff]
    %v88 = vld [vmem:[%s1 + $0x80] sm:$0xff]
    %v89 = vld [vmem:[%s1 + $0x88] sm:$0xff]
    %v90 = vld [vmem:[%s1 + $0x90] sm:$0xff]
    %v91 = vld [vmem:[%s1 + $0x98] sm:$0xff]
    %v92 = vld [vmem:[%s1 + $0xa0] sm:$0xff]
    %v93 = vld [vmem:[%s1 + $0xa8] sm:$0xff]
    %v94 = vld [vmem:[%s1 + $0xb0] sm:$0xff]
    %v95 = vld [vmem:[%s1 + $0xb8] sm:$0xff]
    %v96 = vld [vmem:[%s1 + $0xc0] sm:$0xff]
    %v97 = vld [vmem:[%s1 + $0xc8] sm:$0xff]
    %v98 = vld [vmem:[%s1 + $0xd0] sm:$0xff]
    %v99 = vld [vmem:[%s1 + $0xd8] sm:$0xff]
    %v100 = vld [vmem:[%s1 + $0xe0] sm:$0xff]
    %v101 = vld [vmem:[%s1 + $0xe8] sm:$0xff]
    %v102 = vld [vmem:[%s1 + $0xf0] sm:$0xff]
    %v103 = vld [vmem:[%s1 + $0xf8] sm:$0xff]
    %v104 = vld [vmem:[%s1 + $0x100] sm:$0xff]
    %v105 = vld [vmem:[%s1 + $0x108] sm:$0xff]
    %v106 = vld [vmem:[%s1 + $0x110] sm:$0xff]
    %v107 = vld [vmem:[%s1 + $0x118] sm:$0xff]
    %v108 = vld [vmem:[%s1 + $0x120] sm:$0xff]
    %v109 = vld [vmem:[%s1 + $0x128] sm:$0xff]
    %v110 = vld [vmem:[%s1 + $0x130] sm:$0xff]
    %v111 = vld [vmem:[%s1 + $0x138] sm:$0xff]
    %v112 = vld [vmem:[%s1 + $0x140] sm:$0xff]
    %v113 = vld [vmem:[%s1 + $0x148] sm:$0xff]
    %v114 = vld [vmem:[%s1 + $0x150] sm:$0xff]
    %v115 = vld [vmem:[%s1 + $0x158] sm:$0xff]
    %v116 = vld [vmem:[%s1 + $0x160] sm:$0xff]
    %v117 = vld [vmem:[%s1 + $0x168] sm:$0xff]
    %v118 = vld [vmem:[%s1 + $0x170] sm:$0xff]
    %v119 = vld [vmem:[%s1 + $0x178] sm:$0xff]
    %v120 = vld [vmem:[%s1 + $0x180] sm:$0xff]
    %v121 = vld [vmem:[%s1 + $0x188] sm:$0xff]
    %v122 = vld [vmem:[%s1 + $0x190] sm:$0xff]
    %v123 = vld [vmem:[%s1 + $0x198] sm:$0xff]
    %v124 = vld [vmem:[%s1 + $0x1a0] sm:$0xff]
    %v125 = vld [vmem:[%s1 + $0x1a8] sm:$0xff]
    %v126 = vld [vmem:[%s1 + $0x1b0] sm:$0xff]
    %v127 = vld [vmem:[%s1 + $0x1b8] sm:$0xff]
    %v128 = vld [vmem:[%s1 + $0x1c0] sm:$0xff]
    %v129 = vld [vmem:[%s1 + $0x1c8] sm:$0xff]
    %v130 = vld [vmem:[%s1 + $0x1d0] sm:$0xff]
    %v131 = vld [vmem:[%s1 + $0x1d8] sm:$0xff]
    %v132 = vld [vmem:[%s1 + $0x1e0] sm:$0xff]
    %v133 = vld [vmem:[%s1 + $0x1e8] sm:$0xff]
    %v134 = vld [vmem:[%s1 + $0x1f0] sm:$0xff]
    %v135 = vld [vmem:[%s1 + $0x1f8] sm:$0xff]
    %v136 = vld [vmem:[%s1 + $0x200] sm:$0xff]
    %v137 = vld [vmem:[%s1 + $0x208] sm:$0xff]
    %v138 = vld [vmem:[%s1 + $0x210] sm:$0xff]
    %v139 = vld [vmem:[%s1 + $0x218] sm:$0xff]
    %v140 = vld [vmem:[%s1 + $0x220] sm:$0xff]
    %v141 = vld [vmem:[%s1 + $0x228] sm:$0xff]
    %v142 = vld [vmem:[%s1 + $0x230] sm:$0xff]
    %v143 = vld [vmem:[%s1 + $0x238] sm:$0xff]
    %v144 = vld [vmem:[%s1 + $0x240] sm:$0xff]
    %v145 = vld [vmem:[%s1 + $0x248] sm:$0xff]
    %v146 = vld [vmem:[%s1 + $0x250] sm:$0xff]
    %v147 = vld [vmem:[%s1 + $0x258] sm:$0xff]
    %v224 = vunpack.c.l.b16 %v72
    %v225 = vunpack.c.h.b16 %v72
    %v226 = vunpack.c.l.b16 %v73
    %v227 = vunpack.c.h.b16 %v73
    %v228 = vunpack.c.l.b16 %v74
    %v229 = vunpack.c.h.b16 %v74
    %v230 = vunpack.c.l.b16 %v75
    %v231 = vunpack.c.h.b16 %v75
    %v232 = vunpack.c.l.b16 %v76
    %v233 = vunpack.c.h.b16 %v76
    %v234 = vunpack.c.l.b16 %v77
    %v235 = vunpack.c.h.b16 %v77
    %v236 = vunpack.c.l.b16 %v78
    %v237 = vunpack.c.h.b16 %v78
    %v238 = vunpack.c.l.b16 %v79
    %v239 = vunpack.c.h.b16 %v79
    %v240 = vunpack.c.l.b16 %v80
    %v241 = vunpack.c.h.b16 %v80
    %v242 = vunpack.c.l.b16 %v81
    %v243 = vunpack.c.h.b16 %v81
    %v244 = vunpack.c.l.b16 %v82
    %v245 = vunpack.c.h.b16 %v82
    %v246 = vunpack.c.l.b16 %v83
    %v247 = vunpack.c.h.b16 %v83
    %v248 = vunpack.c.l.b16 %v84
    %v249 = vunpack.c.h.b16 %v84
    %v250 = vunpack.c.l.b16 %v85
    %v251 = vunpack.c.h.b16 %v85
    %v252 = vunpack.c.l.b16 %v86
    %v253 = vunpack.c.h.b16 %v86
    %v254 = vunpack.c.l.b16 %v87
    %v255 = vunpack.c.h.b16 %v87
    %v256 = vunpack.c.l.b16 %v88
    %v257 = vunpack.c.h.b16 %v88
    %v258 = vunpack.c.l.b16 %v89
    %v259 = vunpack.c.h.b16 %v89
    %v260 = vunpack.c.l.b16 %v90
    %v261 = vunpack.c.h.b16 %v90
    %v262 = vunpack.c.l.b16 %v91
    %v263 = vunpack.c.h.b16 %v91
    %v264 = vunpack.c.l.b16 %v92
    %v265 = vunpack.c.h.b16 %v92
    %v266 = vunpack.c.l.b16 %v93
    %v267 = vunpack.c.h.b16 %v93
    %v268 = vunpack.c.l.b16 %v94
    %v269 = vunpack.c.h.b16 %v94
    %v270 = vunpack.c.l.b16 %v95
    %v271 = vunpack.c.h.b16 %v95
    %v272 = vunpack.c.l.b16 %v96
    %v273 = vunpack.c.h.b16 %v96
    %v274 = vunpack.c.l.b16 %v97
    %v275 = vunpack.c.h.b16 %v97
    %v276 = vunpack.c.l.b16 %v98
    %v277 = vunpack.c.h.b16 %v98
    %v278 = vunpack.c.l.b16 %v99
    %v279 = vunpack.c.h.b16 %v99
    %v280 = vunpack.c.l.b16 %v100
    %v281 = vunpack.c.h.b16 %v100
    %v282 = vunpack.c.l.b16 %v101
    %v283 = vunpack.c.h.b16 %v101
    %v284 = vunpack.c.l.b16 %v102
    %v285 = vunpack.c.h.b16 %v102
    %v286 = vunpack.c.l.b16 %v103
    %v287 = vunpack.c.h.b16 %v103
    %v288 = vunpack.c.l.b16 %v104
    %v289 = vunpack.c.h.b16 %v104
    %v290 = vunpack.c.l.b16 %v105
    %v291 = vunpack.c.h.b16 %v105
    %v292 = vunpack.c.l.b16 %v106
    %v293 = vunpack.c.h.b16 %v106
    %v294 = vunpack.c.l.b16 %v107
    %v295 = vunpack.c.h.b16 %v107
    %v296 = vunpack.c.l.b16 %v108
    %v297 = vunpack.c.h.b16 %v108
    %v298 = vunpack.c.l.b16 %v109
    %v299 = vunpack.c.h.b16 %v109
    %v300 = vunpack.c.l.b16 %v110
    %v301 = vunpack.c.h.b16 %v110
    %v302 = vunpack.c.l.b16 %v111
    %v303 = vunpack.c.h.b16 %v111
    %v304 = vunpack.c.l.b16 %v112
    %v305 = vunpack.c.h.b16 %v112
    %v306 = vunpack.c.l.b16 %v113
    %v307 = vunpack.c.h.b16 %v113
    %v308 = vunpack.c.l.b16 %v114
    %v309 = vunpack.c.h.b16 %v114
    %v310 = vunpack.c.l.b16 %v115
    %v311 = vunpack.c.h.b16 %v115
    %v312 = vunpack.c.l.b16 %v116
    %v313 = vunpack.c.h.b16 %v116
    %v314 = vunpack.c.l.b16 %v117
    %v315 = vunpack.c.h.b16 %v117
    %v316 = vunpack.c.l.b16 %v118
    %v317 = vunpack.c.h.b16 %v118
    %v318 = vunpack.c.l.b16 %v119
    %v319 = vunpack.c.h.b16 %v119
    %v320 = vunpack.c.l.b16 %v120
    %v321 = vunpack.c.h.b16 %v120
    %v322 = vunpack.c.l.b16 %v121
    %v323 = vunpack.c.h.b16 %v121
    %v324 = vunpack.c.l.b16 %v122
    %v325 = vunpack.c.h.b16 %v122
    %v326 = vunpack.c.l.b16 %v123
    %v327 = vunpack.c.h.b16 %v123
    %v328 = vunpack.c.l.b16 %v124
    %v329 = vunpack.c.h.b16 %v124
    %v330 = vunpack.c.l.b16 %v125
    %v331 = vunpack.c.h.b16 %v125
    %v332 = vunpack.c.l.b16 %v126
    %v333 = vunpack.c.h.b16 %v126
    %v334 = vunpack.c.l.b16 %v127
    %v335 = vunpack.c.h.b16 %v127
    %v336 = vunpack.c.l.b16 %v128
    %v337 = vunpack.c.h.b16 %v128
    %v338 = vunpack.c.l.b16 %v129
    %v339 = vunpack.c.h.b16 %v129
    %v340 = vunpack.c.l.b16 %v130
    %v341 = vunpack.c.h.b16 %v130
    %v342 = vunpack.c.l.b16 %v131
    %v343 = vunpack.c.h.b16 %v131
    %v344 = vunpack.c.l.b16 %v132
    %v345 = vunpack.c.h.b16 %v132
    %v346 = vunpack.c.l.b16 %v133
    %v347 = vunpack.c.h.b16 %v133
    %v348 = vunpack.c.l.b16 %v134
    %v349 = vunpack.c.h.b16 %v134
    %v350 = vunpack.c.l.b16 %v135
    %v351 = vunpack.c.h.b16 %v135
    %v352 = vunpack.c.l.b16 %v136
    %v353 = vunpack.c.h.b16 %v136
    %v354 = vunpack.c.l.b16 %v137
    %v355 = vunpack.c.h.b16 %v137
    %v356 = vunpack.c.l.b16 %v138
    %v357 = vunpack.c.h.b16 %v138
    %v358 = vunpack.c.l.b16 %v139
    %v359 = vunpack.c.h.b16 %v139
    %v360 = vunpack.c.l.b16 %v140
    %v361 = vunpack.c.h.b16 %v140
    %v362 = vunpack.c.l.b16 %v141
    %v363 = vunpack.c.h.b16 %v141
    %v364 = vunpack.c.l.b16 %v142
    %v365 = vunpack.c.h.b16 %v142
    %v366 = vunpack.c.l.b16 %v143
    %v367 = vunpack.c.h.b16 %v143
    %v368 = vunpack.c.l.b16 %v144
    %v369 = vunpack.c.h.b16 %v144
    %v370 = vunpack.c.l.b16 %v145
    %v371 = vunpack.c.h.b16 %v145
    %v372 = vunpack.c.l.b16 %v146
    %v373 = vunpack.c.h.b16 %v146
    %v374 = vunpack.c.l.b16 %v147
    %v375 = vunpack.c.h.b16 %v147
    %v376 = vpack.c.b16 %v226, %v224
    %v377 = vpack.c.b16 %v227, %v225
    %v378 = vpack.c.b16 %v230, %v228
    %v379 = vpack.c.b16 %v231, %v229
    %v380 = vpack.c.b16 %v234, %v232
    %v381 = vpack.c.b16 %v235, %v233
    %v382 = vpack.c.b16 %v238, %v236
    %v383 = vpack.c.b16 %v239, %v237
    %v384 = vpack.c.b16 %v242, %v240
    %v385 = vpack.c.b16 %v243, %v241
    %v386 = vpack.c.b16 %v246, %v244
    %v387 = vpack.c.b16 %v247, %v245
    %v388 = vpack.c.b16 %v250, %v248
    %v389 = vpack.c.b16 %v251, %v249
    %v390 = vpack.c.b16 %v254, %v252
    %v391 = vpack.c.b16 %v255, %v253
    %v392 = vpack.c.b16 %v258, %v256
    %v393 = vpack.c.b16 %v259, %v257
    %v394 = vpack.c.b16 %v262, %v260
    %v395 = vpack.c.b16 %v263, %v261
    %v396 = vpack.c.b16 %v266, %v264
    %v397 = vpack.c.b16 %v267, %v265
    %v398 = vpack.c.b16 %v270, %v268
    %v399 = vpack.c.b16 %v271, %v269
    %v400 = vpack.c.b16 %v274, %v272
    %v401 = vpack.c.b16 %v275, %v273
    %v402 = vpack.c.b16 %v278, %v276
    %v403 = vpack.c.b16 %v279, %v277
    %v404 = vpack.c.b16 %v282, %v280
    %v405 = vpack.c.b16 %v283, %v281
    %v406 = vpack.c.b16 %v286, %v284
    %v407 = vpack.c.b16 %v287, %v285
    %v408 = vpack.c.b16 %v290, %v288
    %v409 = vpack.c.b16 %v291, %v289
    %v410 = vpack.c.b16 %v294, %v292
    %v411 = vpack.c.b16 %v295, %v293
    %v412 = vpack.c.b16 %v298, %v296
    %v413 = vpack.c.b16 %v299, %v297
    %v414 = vpack.c.b16 %v302, %v300
    %v415 = vpack.c.b16 %v303, %v301
    %v416 = vpack.c.b16 %v306, %v304
    %v417 = vpack.c.b16 %v307, %v305
    %v418 = vpack.c.b16 %v310, %v308
    %v419 = vpack.c.b16 %v311, %v309
    %v420 = vpack.c.b16 %v314, %v312
    %v421 = vpack.c.b16 %v315, %v313
    %v422 = vpack.c.b16 %v318, %v316
    %v423 = vpack.c.b16 %v319, %v317
    %v424 = vpack.c.b16 %v322, %v320
    %v425 = vpack.c.b16 %v323, %v321
    %v426 = vpack.c.b16 %v326, %v324
    %v427 = vpack.c.b16 %v327, %v325
    %v428 = vpack.c.b16 %v330, %v328
    %v429 = vpack.c.b16 %v331, %v329
    %v430 = vpack.c.b16 %v334, %v332
    %v431 = vpack.c.b16 %v335, %v333
    %v432 = vpack.c.b16 %v338, %v336
    %v433 = vpack.c.b16 %v339, %v337
    %v434 = vpack.c.b16 %v342, %v340
    %v435 = vpack.c.b16 %v343, %v341
    %v436 = vpack.c.b16 %v346, %v344
    %v437 = vpack.c.b16 %v347, %v345
    %v438 = vpack.c.b16 %v350, %v348
    %v439 = vpack.c.b16 %v351, %v349
    %v440 = vpack.c.b16 %v354, %v352
    %v441 = vpack.c.b16 %v355, %v353
    %v442 = vpack.c.b16 %v358, %v356
    %v443 = vpack.c.b16 %v359, %v357
    %v444 = vpack.c.b16 %v362, %v360
    %v445 = vpack.c.b16 %v363, %v361
    %v446 = vpack.c.b16 %v366, %v364
    %v447 = vpack.c.b16 %v367, %v365
    %v448 = vpack.c.b16 %v370, %v368
    %v449 = vpack.c.b16 %v371, %v369
    %v450 = vpack.c.b16 %v374, %v372
    %v451 = vpack.c.b16 %v375, %v373
    %v511 = vunpack.c.l.b16 %v51
    %v512 = vunpack.c.l.b16 %v52
    %v513 = vunpack.c.l.b16 %v53
    %v514 = vunpack.c.l.b16 %v54
    %v515 = vunpack.c.l.b16 %v55
    %v516 = vunpack.c.l.b16 %v56
    %v517 = vunpack.c.l.b16 %v57
    %v518 = vunpack.c.l.b16 %v58
    %v519 = vunpack.c.l.b16 %v59
    %v520 = vunpack.c.l.b16 %v60
    %v521 = vunpack.c.l.b16 %v61
    %v522 = vunpack.c.l.b16 %v62
    %v523 = vunpack.c.l.b16 %v63
    %v524 = vunpack.c.l.b16 %v64
    %v525 = vunpack.c.l.b16 %v65
    %v526 = vunpack.c.l.b16 %v66
    %v527 = vunpack.c.l.b16 %v67
    %v528 = vunpack.c.l.b16 %v68
    %v529 = vunpack.c.l.b16 %v69
    %v530 = vunpack.c.l.b16 %v70
    %v531 = vunpack.c.l.b16 %v71
    %v532 = vpack.c.b16 %v512, %v511
    %v533 = vpack.c.b16 %v514, %v513
    %v534 = vpack.c.b16 %v516, %v515
    %v535 = vpack.c.b16 %v518, %v517
    %v536 = vpack.c.b16 %v520, %v519
    %v537 = vpack.c.b16 %v522, %v521
    %v538 = vpack.c.b16 %v524, %v523
    %v539 = vpack.c.b16 %v526, %v525
    %v540 = vpack.c.b16 %v528, %v527
    %v541 = vpack.c.b16 %v530, %v529
    %v542 = vpack.c.b16 %v531, %v531
    %vm553 = vcmask 293888
    %v555 = vsel %vm553, %v377, 0
    %v558 = vsel %vm553, %v379, 0
    %v561 = vsel %vm553, %v381, 0
    %v564 = vsel %vm553, %v383, 0
    %v567 = vsel %vm553, %v385, 0
    %v570 = vsel %vm553, %v387, 0
    %v573 = vsel %vm553, %v389, 0
    %v576 = vsel %vm553, %v391, 0
    %v579 = vsel %vm553, %v393, 0
    %v582 = vsel %vm553, %v395, 0
    %v585 = vsel %vm553, %v397, 0
    %v588 = vsel %vm553, %v399, 0
    %v591 = vsel %vm553, %v401, 0
    %v594 = vsel %vm553, %v403, 0
    %v597 = vsel %vm553, %v405, 0
    %v600 = vsel %vm553, %v407, 0
    %v603 = vsel %vm553, %v409, 0
    %v606 = vsel %vm553, %v411, 0
    %v609 = vsel %vm553, %v413, 0
    %v612 = vsel %vm553, %v415, 0
    %v615 = vsel %vm553, %v417, 0
    %v618 = vsel %vm553, %v419, 0
    %v621 = vsel %vm553, %v421, 0
    %v624 = vsel %vm553, %v423, 0
    %v627 = vsel %vm553, %v425, 0
    %v630 = vsel %vm553, %v427, 0
    %v633 = vsel %vm553, %v429, 0
    %v636 = vsel %vm553, %v431, 0
    %v639 = vsel %vm553, %v433, 0
    %v642 = vsel %vm553, %v435, 0
    %v645 = vsel %vm553, %v437, 0
    %v648 = vsel %vm553, %v439, 0
    %v651 = vsel %vm553, %v441, 0
    %v654 = vsel %vm553, %v443, 0
    %v657 = vsel %vm553, %v445, 0
    %v660 = vsel %vm553, %v447, 0
    %v663 = vsel %vm553, %v449, 0
    %v666 = vsel %vm553, %v451, 0
    %vm668 = vcmask 1041408
    %v670 = vsel %vm668, %v542, 0
    %672 = vmatpush.bf16.msra.mxu0 %v539
    %673 = vmatpush.bf16.msra.mxu0 %v538
    %674 = vmatpush.bf16.msra.mxu0 %v537
    %675 = vmatpush.bf16.msra.mxu0 %v536
    %676 = vmatpush.bf16.msra.mxu0 %v535
    %677 = vmatpush.bf16.msra.mxu0 %v534
    %678 = vmatpush.bf16.msra.mxu0 %v533
    %679 = vmatpush.bf16.msra.mxu0 %v532
    %680 = vmatmul.bf16.gmra.mxu0 %v376
    %v681 = vpop.f32.mrf.mxu0
    %v682 = vadd.f32 0.0, %v681
    %v683 = vpop.f32.mrf.mxu0
    %v684 = vadd.f32 0.0, %v683
    %685 = vmatmul.bf16.gmra.mxu0 %v378
    %v686 = vpop.f32.mrf.mxu0
    %v687 = vadd.f32 0.0, %v686
    %v688 = vpop.f32.mrf.mxu0
    %v689 = vadd.f32 0.0, %v688
    %690 = vmatmul.bf16.gmra.mxu0 %v380
    %v691 = vpop.f32.mrf.mxu0
    %v692 = vadd.f32 0.0, %v691
    %v693 = vpop.f32.mrf.mxu0
    %v694 = vadd.f32 0.0, %v693
    %695 = vmatmul.bf16.gmra.mxu0 %v382
    %v696 = vpop.f32.mrf.mxu0
    %v697 = vadd.f32 0.0, %v696
    %v698 = vpop.f32.mrf.mxu0
    %v699 = vadd.f32 0.0, %v698
    %700 = vmatmul.bf16.gmra.mxu0 %v384
    %v701 = vpop.f32.mrf.mxu0
    %v702 = vadd.f32 0.0, %v701
    %v703 = vpop.f32.mrf.mxu0
    %v704 = vadd.f32 0.0, %v703
    %705 = vmatmul.bf16.gmra.mxu0 %v386
    %v706 = vpop.f32.mrf.mxu0
    %v707 = vadd.f32 0.0, %v706
    %v708 = vpop.f32.mrf.mxu0
    %v709 = vadd.f32 0.0, %v708
    %710 = vmatmul.bf16.gmra.mxu0 %v388
    %v711 = vpop.f32.mrf.mxu0
    %v712 = vadd.f32 0.0, %v711
    %v713 = vpop.f32.mrf.mxu0
    %v714 = vadd.f32 0.0, %v713
    %715 = vmatmul.bf16.gmra.mxu0 %v390
    %v716 = vpop.f32.mrf.mxu0
    %v717 = vadd.f32 0.0, %v716
    %v718 = vpop.f32.mrf.mxu0
    %v719 = vadd.f32 0.0, %v718
    %720 = vmatmul.bf16.gmra.mxu0 %v392
    %v721 = vpop.f32.mrf.mxu0
    %v722 = vadd.f32 0.0, %v721
    %v723 = vpop.f32.mrf.mxu0
    %v724 = vadd.f32 0.0, %v723
    %725 = vmatmul.bf16.gmra.mxu0 %v394
    %v726 = vpop.f32.mrf.mxu0
    %v727 = vadd.f32 0.0, %v726
    %v728 = vpop.f32.mrf.mxu0
    %v729 = vadd.f32 0.0, %v728
    %730 = vmatmul.bf16.gmra.mxu0 %v396
    %v731 = vpop.f32.mrf.mxu0
    %v732 = vadd.f32 0.0, %v731
    %v733 = vpop.f32.mrf.mxu0
    %v734 = vadd.f32 0.0, %v733
    %735 = vmatmul.bf16.gmra.mxu0 %v398
    %v736 = vpop.f32.mrf.mxu0
    %v737 = vadd.f32 0.0, %v736
    %v738 = vpop.f32.mrf.mxu0
    %v739 = vadd.f32 0.0, %v738
    %740 = vmatmul.bf16.gmra.mxu0 %v400
    %v741 = vpop.f32.mrf.mxu0
    %v742 = vadd.f32 0.0, %v741
    %v743 = vpop.f32.mrf.mxu0
    %v744 = vadd.f32 0.0, %v743
    %745 = vmatmul.bf16.gmra.mxu0 %v402
    %v746 = vpop.f32.mrf.mxu0
    %v747 = vadd.f32 0.0, %v746
    %v748 = vpop.f32.mrf.mxu0
    %v749 = vadd.f32 0.0, %v748
    %750 = vmatmul.bf16.gmra.mxu0 %v404
    %v751 = vpop.f32.mrf.mxu0
    %v752 = vadd.f32 0.0, %v751
    %v753 = vpop.f32.mrf.mxu0
    %v754 = vadd.f32 0.0, %v753
    %755 = vmatmul.bf16.gmra.mxu0 %v406
    %v756 = vpop.f32.mrf.mxu0
    %v757 = vadd.f32 0.0, %v756
    %v758 = vpop.f32.mrf.mxu0
    %v759 = vadd.f32 0.0, %v758
    %760 = vmatmul.bf16.gmra.mxu0 %v408
    %v761 = vpop.f32.mrf.mxu0
    %v762 = vadd.f32 0.0, %v761
    %v763 = vpop.f32.mrf.mxu0
    %v764 = vadd.f32 0.0, %v763
    %765 = vmatmul.bf16.gmra.mxu0 %v410
    %v766 = vpop.f32.mrf.mxu0
    %v767 = vadd.f32 0.0, %v766
    %v768 = vpop.f32.mrf.mxu0
    %v769 = vadd.f32 0.0, %v768
    %770 = vmatmul.bf16.gmra.mxu0 %v412
    %v771 = vpop.f32.mrf.mxu0
    %v772 = vadd.f32 0.0, %v771
    %v773 = vpop.f32.mrf.mxu0
    %v774 = vadd.f32 0.0, %v773
    %775 = vmatmul.bf16.gmra.mxu0 %v414
    %v776 = vpop.f32.mrf.mxu0
    %v777 = vadd.f32 0.0, %v776
    %v778 = vpop.f32.mrf.mxu0
    %v779 = vadd.f32 0.0, %v778
    %780 = vmatmul.bf16.gmra.mxu0 %v416
    %v781 = vpop.f32.mrf.mxu0
    %v782 = vadd.f32 0.0, %v781
    %v783 = vpop.f32.mrf.mxu0
    %v784 = vadd.f32 0.0, %v783
    %785 = vmatmul.bf16.gmra.mxu0 %v418
    %v786 = vpop.f32.mrf.mxu0
    %v787 = vadd.f32 0.0, %v786
    %v788 = vpop.f32.mrf.mxu0
    %v789 = vadd.f32 0.0, %v788
    %790 = vmatmul.bf16.gmra.mxu0 %v420
    %v791 = vpop.f32.mrf.mxu0
    %v792 = vadd.f32 0.0, %v791
    %v793 = vpop.f32.mrf.mxu0
    %v794 = vadd.f32 0.0, %v793
    %795 = vmatmul.bf16.gmra.mxu0 %v422
    %v796 = vpop.f32.mrf.mxu0
    %v797 = vadd.f32 0.0, %v796
    %v798 = vpop.f32.mrf.mxu0
    %v799 = vadd.f32 0.0, %v798
    %800 = vmatmul.bf16.gmra.mxu0 %v424
    %v801 = vpop.f32.mrf.mxu0
    %v802 = vadd.f32 0.0, %v801
    %v803 = vpop.f32.mrf.mxu0
    %v804 = vadd.f32 0.0, %v803
    %805 = vmatmul.bf16.gmra.mxu0 %v426
    %v806 = vpop.f32.mrf.mxu0
    %v807 = vadd.f32 0.0, %v806
    %v808 = vpop.f32.mrf.mxu0
    %v809 = vadd.f32 0.0, %v808
    %810 = vmatmul.bf16.gmra.mxu0 %v428
    %v811 = vpop.f32.mrf.mxu0
    %v812 = vadd.f32 0.0, %v811
    %v813 = vpop.f32.mrf.mxu0
    %v814 = vadd.f32 0.0, %v813
    %815 = vmatmul.bf16.gmra.mxu0 %v430
    %v816 = vpop.f32.mrf.mxu0
    %v817 = vadd.f32 0.0, %v816
    %v818 = vpop.f32.mrf.mxu0
    %v819 = vadd.f32 0.0, %v818
    %820 = vmatmul.bf16.gmra.mxu0 %v432
    %v821 = vpop.f32.mrf.mxu0
    %v822 = vadd.f32 0.0, %v821
    %v823 = vpop.f32.mrf.mxu0
    %v824 = vadd.f32 0.0, %v823
    %825 = vmatmul.bf16.gmra.mxu0 %v434
    %v826 = vpop.f32.mrf.mxu0
    %v827 = vadd.f32 0.0, %v826
    %v828 = vpop.f32.mrf.mxu0
    %v829 = vadd.f32 0.0, %v828
    %830 = vmatmul.bf16.gmra.mxu0 %v436
    %v831 = vpop.f32.mrf.mxu0
    %v832 = vadd.f32 0.0, %v831
    %v833 = vpop.f32.mrf.mxu0
    %v834 = vadd.f32 0.0, %v833
    %835 = vmatmul.bf16.gmra.mxu0 %v438
    %v836 = vpop.f32.mrf.mxu0
    %v837 = vadd.f32 0.0, %v836
    %v838 = vpop.f32.mrf.mxu0
    %v839 = vadd.f32 0.0, %v838
    %840 = vmatmul.bf16.gmra.mxu0 %v440
    %v841 = vpop.f32.mrf.mxu0
    %v842 = vadd.f32 0.0, %v841
    %v843 = vpop.f32.mrf.mxu0
    %v844 = vadd.f32 0.0, %v843
    %845 = vmatmul.bf16.gmra.mxu0 %v442
    %v846 = vpop.f32.mrf.mxu0
    %v847 = vadd.f32 0.0, %v846
    %v848 = vpop.f32.mrf.mxu0
    %v849 = vadd.f32 0.0, %v848
    %850 = vmatmul.bf16.gmra.mxu0 %v444
    %v851 = vpop.f32.mrf.mxu0
    %v852 = vadd.f32 0.0, %v851
    %v853 = vpop.f32.mrf.mxu0
    %v854 = vadd.f32 0.0, %v853
    %855 = vmatmul.bf16.gmra.mxu0 %v446
    %v856 = vpop.f32.mrf.mxu0
    %v857 = vpop.f32.mrf.mxu0
    %858 = vmatmul.bf16.gmra.mxu0 %v448
    %v859 = vpop.f32.mrf.mxu0
    %v860 = vpop.f32.mrf.mxu0
    %861 = vmatmul.bf16.gmra.mxu0 %v450
    %v862 = vpop.f32.mrf.mxu0
    %v863 = vpop.f32.mrf.mxu0
    %864 = vdwg.mxu0
    %865 = vmatpush.bf16.msra.mxu0 0
    %866 = vmatpush.bf16.msra.mxu0 0
    %867 = vmatpush.bf16.msra.mxu0 0
    %868 = vmatpush.bf16.msra.mxu0 0
    %869 = vmatpush.bf16.msra.mxu0 0
    %870 = vmatpush.bf16.msra.mxu0 %v670
    %871 = vmatpush.bf16.msra.mxu0 %v541
    %872 = vmatpush.bf16.msra.mxu0 %v540
    %873 = vmatmul.bf16.gmra.mxu0 %v555
    %v874 = vpop.f32.mrf.mxu0
    %v875 = vadd.f32 %v682, %v874
    %v876 = vpop.f32.mrf.mxu0
    %v877 = vadd.f32 %v684, %v876
    %878 = vmatmul.bf16.gmra.mxu0 %v558
    %v879 = vpop.f32.mrf.mxu0
    %v880 = vadd.f32 %v687, %v879
    %v881 = vpop.f32.mrf.mxu0
    %v882 = vadd.f32 %v689, %v881
    %883 = vmatmul.bf16.gmra.mxu0 %v561
    %v884 = vpop.f32.mrf.mxu0
    %v885 = vadd.f32 %v692, %v884
    %v886 = vpop.f32.mrf.mxu0
    %v887 = vadd.f32 %v694, %v886
    %888 = vmatmul.bf16.gmra.mxu0 %v564
    %v889 = vpop.f32.mrf.mxu0
    %v890 = vadd.f32 %v697, %v889
    %v891 = vpop.f32.mrf.mxu0
    %v892 = vadd.f32 %v699, %v891
    %893 = vmatmul.bf16.gmra.mxu0 %v567
    %v894 = vpop.f32.mrf.mxu0
    %v895 = vadd.f32 %v702, %v894
    %v896 = vpop.f32.mrf.mxu0
    %v897 = vadd.f32 %v704, %v896
    %898 = vmatmul.bf16.gmra.mxu0 %v570
    %v899 = vpop.f32.mrf.mxu0
    %v900 = vadd.f32 %v707, %v899
    %v901 = vpop.f32.mrf.mxu0
    %v902 = vadd.f32 %v709, %v901
    %903 = vmatmul.bf16.gmra.mxu0 %v573
    %v904 = vpop.f32.mrf.mxu0
    %v905 = vadd.f32 %v712, %v904
    %v906 = vpop.f32.mrf.mxu0
    %v907 = vadd.f32 %v714, %v906
    %908 = vmatmul.bf16.gmra.mxu0 %v576
    %v909 = vpop.f32.mrf.mxu0
    %v910 = vadd.f32 %v717, %v909
    %v911 = vpop.f32.mrf.mxu0
    %v912 = vadd.f32 %v719, %v911
    %913 = vmatmul.bf16.gmra.mxu0 %v579
    %v914 = vpop.f32.mrf.mxu0
    %v915 = vadd.f32 %v722, %v914
    %v916 = vpop.f32.mrf.mxu0
    %v917 = vadd.f32 %v724, %v916
    %918 = vmatmul.bf16.gmra.mxu0 %v582
    %v919 = vpop.f32.mrf.mxu0
    %v920 = vadd.f32 %v727, %v919
    %v921 = vpop.f32.mrf.mxu0
    %v922 = vadd.f32 %v729, %v921
    %923 = vmatmul.bf16.gmra.mxu0 %v585
    %v924 = vpop.f32.mrf.mxu0
    %v925 = vadd.f32 %v732, %v924
    %v926 = vpop.f32.mrf.mxu0
    %v927 = vadd.f32 %v734, %v926
    %928 = vmatmul.bf16.gmra.mxu0 %v588
    %v929 = vpop.f32.mrf.mxu0
    %v930 = vadd.f32 %v737, %v929
    %v931 = vpop.f32.mrf.mxu0
    %v932 = vadd.f32 %v739, %v931
    %933 = vmatmul.bf16.gmra.mxu0 %v591
    %v934 = vpop.f32.mrf.mxu0
    %v935 = vadd.f32 %v742, %v934
    %v936 = vpop.f32.mrf.mxu0
    %v937 = vadd.f32 %v744, %v936
    %938 = vmatmul.bf16.gmra.mxu0 %v594
    %v939 = vpop.f32.mrf.mxu0
    %v940 = vadd.f32 %v747, %v939
    %v941 = vpop.f32.mrf.mxu0
    %v942 = vadd.f32 %v749, %v941
    %943 = vmatmul.bf16.gmra.mxu0 %v597
    %v944 = vpop.f32.mrf.mxu0
    %v945 = vadd.f32 %v752, %v944
    %v946 = vpop.f32.mrf.mxu0
    %v947 = vadd.f32 %v754, %v946
    %948 = vmatmul.bf16.gmra.mxu0 %v600
    %v949 = vpop.f32.mrf.mxu0
    %v950 = vadd.f32 %v757, %v949
    %v951 = vpop.f32.mrf.mxu0
    %v952 = vadd.f32 %v759, %v951
    %953 = vmatmul.bf16.gmra.mxu0 %v603
    %v954 = vpop.f32.mrf.mxu0
    %v955 = vadd.f32 %v762, %v954
    %v956 = vpop.f32.mrf.mxu0
    %v957 = vadd.f32 %v764, %v956
    %958 = vmatmul.bf16.gmra.mxu0 %v606
    %v959 = vpop.f32.mrf.mxu0
    %v960 = vadd.f32 %v767, %v959
    %v961 = vpop.f32.mrf.mxu0
    %v962 = vadd.f32 %v769, %v961
    %963 = vmatmul.bf16.gmra.mxu0 %v609
    %v964 = vpop.f32.mrf.mxu0
    %v965 = vadd.f32 %v772, %v964
    %v966 = vpop.f32.mrf.mxu0
    %v967 = vadd.f32 %v774, %v966
    %968 = vmatmul.bf16.gmra.mxu0 %v612
    %v969 = vpop.f32.mrf.mxu0
    %v970 = vadd.f32 %v777, %v969
    %v971 = vpop.f32.mrf.mxu0
    %v972 = vadd.f32 %v779, %v971
    %973 = vmatmul.bf16.gmra.mxu0 %v615
    %v974 = vpop.f32.mrf.mxu0
    %v975 = vadd.f32 %v782, %v974
    %v976 = vpop.f32.mrf.mxu0
    %v977 = vadd.f32 %v784, %v976
    %978 = vmatmul.bf16.gmra.mxu0 %v618
    %v979 = vpop.f32.mrf.mxu0
    %v980 = vadd.f32 %v787, %v979
    %v981 = vpop.f32.mrf.mxu0
    %v982 = vadd.f32 %v789, %v981
    %983 = vmatmul.bf16.gmra.mxu0 %v621
    %v984 = vpop.f32.mrf.mxu0
    %v985 = vadd.f32 %v792, %v984
    %v986 = vpop.f32.mrf.mxu0
    %v987 = vadd.f32 %v794, %v986
    %988 = vmatmul.bf16.gmra.mxu0 %v624
    %v989 = vpop.f32.mrf.mxu0
    %v990 = vadd.f32 %v797, %v989
    %v991 = vpop.f32.mrf.mxu0
    %v992 = vadd.f32 %v799, %v991
    %993 = vmatmul.bf16.gmra.mxu0 %v627
    %v994 = vpop.f32.mrf.mxu0
    %v995 = vadd.f32 %v802, %v994
    %v996 = vpop.f32.mrf.mxu0
    %v997 = vadd.f32 %v804, %v996
    %998 = vmatmul.bf16.gmra.mxu0 %v630
    %v999 = vpop.f32.mrf.mxu0
    %v1000 = vadd.f32 %v807, %v999
    %v1001 = vpop.f32.mrf.mxu0
    %v1002 = vadd.f32 %v809, %v1001
    %1003 = vmatmul.bf16.gmra.mxu0 %v633
    %v1004 = vpop.f32.mrf.mxu0
    %v1005 = vadd.f32 %v812, %v1004
    %v1006 = vpop.f32.mrf.mxu0
    %v1007 = vadd.f32 %v814, %v1006
    %1008 = vmatmul.bf16.gmra.mxu0 %v636
    %v1009 = vpop.f32.mrf.mxu0
    %v1010 = vadd.f32 %v817, %v1009
    %v1011 = vpop.f32.mrf.mxu0
    %v1012 = vadd.f32 %v819, %v1011
    %1013 = vmatmul.bf16.gmra.mxu0 %v639
    %v1014 = vpop.f32.mrf.mxu0
    %v1015 = vadd.f32 %v822, %v1014
    %v1016 = vpop.f32.mrf.mxu0
    %v1017 = vadd.f32 %v824, %v1016
    %1018 = vmatmul.bf16.gmra.mxu0 %v642
    %v1019 = vpop.f32.mrf.mxu0
    %v1020 = vadd.f32 %v827, %v1019
    %v1021 = vpop.f32.mrf.mxu0
    %v1022 = vadd.f32 %v829, %v1021
    %1023 = vmatmul.bf16.gmra.mxu0 %v645
    %v1024 = vpop.f32.mrf.mxu0
    %v1025 = vadd.f32 %v832, %v1024
    %v1026 = vpop.f32.mrf.mxu0
    %v1027 = vadd.f32 %v834, %v1026
    %1028 = vmatmul.bf16.gmra.mxu0 %v648
    %v1029 = vpop.f32.mrf.mxu0
    %v1030 = vadd.f32 %v837, %v1029
    %v1031 = vpop.f32.mrf.mxu0
    %v1032 = vadd.f32 %v839, %v1031
    %1033 = vmatmul.bf16.gmra.mxu0 %v651
    %v1034 = vpop.f32.mrf.mxu0
    %v1035 = vadd.f32 %v842, %v1034
    %v1036 = vpop.f32.mrf.mxu0
    %v1037 = vadd.f32 %v844, %v1036
    %1038 = vmatmul.bf16.gmra.mxu0 %v654
    %v1039 = vpop.f32.mrf.mxu0
    %v1040 = vadd.f32 %v847, %v1039
    %v1041 = vpop.f32.mrf.mxu0
    %v1042 = vadd.f32 %v849, %v1041
    %1043 = vmatmul.bf16.gmra.mxu0 %v657
    %v1044 = vpop.f32.mrf.mxu0
    %v1045 = vadd.f32 %v852, %v1044
    %v1046 = vpop.f32.mrf.mxu0
    %v1047 = vadd.f32 %v854, %v1046
    %1048 = vmatmul.bf16.gmra.mxu0 %v660
    %v1049 = vpop.f32.mrf.mxu0
    %v1050 = vpop.f32.mrf.mxu0
    %1051 = vmatmul.bf16.gmra.mxu0 %v663
    %v1052 = vpop.f32.mrf.mxu0
    %v1053 = vpop.f32.mrf.mxu0
    %1054 = vmatmul.bf16.gmra.mxu0 %v666
    %v1055 = vpop.f32.mrf.mxu0
    %v1056 = vpop.f32.mrf.mxu0
    %1057 = vdwg.mxu0
    %v1058 = vpack.c.bf16 %v875, %v875
    %v1059 = vpack.c.bf16 %v877, %v877
    %v1060 = vpack.c.bf16 %v880, %v880
    %v1061 = vpack.c.bf16 %v882, %v882
    %v1062 = vpack.c.bf16 %v885, %v885
    %v1063 = vpack.c.bf16 %v887, %v887
    %v1064 = vpack.c.bf16 %v890, %v890
    %v1065 = vpack.c.bf16 %v892, %v892
    %v1066 = vpack.c.bf16 %v895, %v895
    %v1067 = vpack.c.bf16 %v897, %v897
    %v1068 = vpack.c.bf16 %v900, %v900
    %v1069 = vpack.c.bf16 %v902, %v902
    %v1070 = vpack.c.bf16 %v905, %v905
    %v1071 = vpack.c.bf16 %v907, %v907
    %v1072 = vpack.c.bf16 %v910, %v910
    %v1073 = vpack.c.bf16 %v912, %v912
    %v1074 = vpack.c.bf16 %v915, %v915
    %v1075 = vpack.c.bf16 %v917, %v917
    %v1076 = vpack.c.bf16 %v920, %v920
    %v1077 = vpack.c.bf16 %v922, %v922
    %v1078 = vpack.c.bf16 %v925, %v925
    %v1079 = vpack.c.bf16 %v927, %v927
    %v1080 = vpack.c.bf16 %v930, %v930
    %v1081 = vpack.c.bf16 %v932, %v932
    %v1082 = vpack.c.bf16 %v935, %v935
    %v1083 = vpack.c.bf16 %v937, %v937
    %v1084 = vpack.c.bf16 %v940, %v940
    %v1085 = vpack.c.bf16 %v942, %v942
    %v1086 = vpack.c.bf16 %v945, %v945
    %v1087 = vpack.c.bf16 %v947, %v947
    %v1088 = vpack.c.bf16 %v950, %v950
    %v1089 = vpack.c.bf16 %v952, %v952
    %v1090 = vpack.c.bf16 %v955, %v955
    %v1091 = vpack.c.bf16 %v957, %v957
    %v1092 = vpack.c.bf16 %v960, %v960
    %v1093 = vpack.c.bf16 %v962, %v962
    %v1094 = vpack.c.bf16 %v965, %v965
    %v1095 = vpack.c.bf16 %v967, %v967
    %v1096 = vpack.c.bf16 %v970, %v970
    %v1097 = vpack.c.bf16 %v972, %v972
    %v1098 = vpack.c.bf16 %v975, %v975
    %v1099 = vpack.c.bf16 %v977, %v977
    %v1100 = vpack.c.bf16 %v980, %v980
    %v1101 = vpack.c.bf16 %v982, %v982
    %v1102 = vpack.c.bf16 %v985, %v985
    %v1103 = vpack.c.bf16 %v987, %v987
    %v1104 = vpack.c.bf16 %v990, %v990
    %v1105 = vpack.c.bf16 %v992, %v992
    %v1106 = vpack.c.bf16 %v995, %v995
    %v1107 = vpack.c.bf16 %v997, %v997
    %v1108 = vpack.c.bf16 %v1000, %v1000
    %v1109 = vpack.c.bf16 %v1002, %v1002
    %v1110 = vpack.c.bf16 %v1005, %v1005
    %v1111 = vpack.c.bf16 %v1007, %v1007
    %v1112 = vpack.c.bf16 %v1010, %v1010
    %v1113 = vpack.c.bf16 %v1012, %v1012
    %v1114 = vpack.c.bf16 %v1015, %v1015
    %v1115 = vpack.c.bf16 %v1017, %v1017
    %v1116 = vpack.c.bf16 %v1020, %v1020
    %v1117 = vpack.c.bf16 %v1022, %v1022
    %v1118 = vpack.c.bf16 %v1025, %v1025
    %v1119 = vpack.c.bf16 %v1027, %v1027
    %v1120 = vpack.c.bf16 %v1030, %v1030
    %v1121 = vpack.c.bf16 %v1032, %v1032
    %v1122 = vpack.c.bf16 %v1035, %v1035
    %v1123 = vpack.c.bf16 %v1037, %v1037
    %v1124 = vpack.c.bf16 %v1040, %v1040
    %v1125 = vpack.c.bf16 %v1042, %v1042
    %v1126 = vpack.c.bf16 %v1045, %v1045
    %v1127 = vpack.c.bf16 %v1047, %v1047
    %v1128 = vunpack.c.l.bf16 %v1058
    %v1129 = vunpack.c.l.bf16 %v1059
    %v1130 = vunpack.c.l.bf16 %v1060
    %v1131 = vunpack.c.l.bf16 %v1061
    %v1132 = vunpack.c.l.bf16 %v1062
    %v1133 = vunpack.c.l.bf16 %v1063
    %v1134 = vunpack.c.l.bf16 %v1064
    %v1135 = vunpack.c.l.bf16 %v1065
    %v1136 = vunpack.c.l.bf16 %v1066
    %v1137 = vunpack.c.l.bf16 %v1067
    %v1138 = vunpack.c.l.bf16 %v1068
    %v1139 = vunpack.c.l.bf16 %v1069
    %v1140 = vunpack.c.l.bf16 %v1070
    %v1141 = vunpack.c.l.bf16 %v1071
    %v1142 = vunpack.c.l.bf16 %v1072
    %v1143 = vunpack.c.l.bf16 %v1073
    %v1144 = vunpack.c.l.bf16 %v1074
    %v1145 = vunpack.c.l.bf16 %v1075
    %v1146 = vunpack.c.l.bf16 %v1076
    %v1147 = vunpack.c.l.bf16 %v1077
    %v1148 = vunpack.c.l.bf16 %v1078
    %v1149 = vunpack.c.l.bf16 %v1079
    %v1150 = vunpack.c.l.bf16 %v1080
    %v1151 = vunpack.c.l.bf16 %v1081
    %v1152 = vunpack.c.l.bf16 %v1082
    %v1153 = vunpack.c.l.bf16 %v1083
    %v1154 = vunpack.c.l.bf16 %v1084
    %v1155 = vunpack.c.l.bf16 %v1085
    %v1156 = vunpack.c.l.bf16 %v1086
    %v1157 = vunpack.c.l.bf16 %v1087
    %v1158 = vunpack.c.l.bf16 %v1088
    %v1159 = vunpack.c.l.bf16 %v1089
    %v1160 = vunpack.c.l.bf16 %v1090
    %v1161 = vunpack.c.l.bf16 %v1091
    %v1162 = vunpack.c.l.bf16 %v1092
    %v1163 = vunpack.c.l.bf16 %v1093
    %v1164 = vunpack.c.l.bf16 %v1094
    %v1165 = vunpack.c.l.bf16 %v1095
    %v1166 = vunpack.c.l.bf16 %v1096
    %v1167 = vunpack.c.l.bf16 %v1097
    %v1168 = vunpack.c.l.bf16 %v1098
    %v1169 = vunpack.c.l.bf16 %v1099
    %v1170 = vunpack.c.l.bf16 %v1100
    %v1171 = vunpack.c.l.bf16 %v1101
    %v1172 = vunpack.c.l.bf16 %v1102
    %v1173 = vunpack.c.l.bf16 %v1103
    %v1174 = vunpack.c.l.bf16 %v1104
    %v1175 = vunpack.c.l.bf16 %v1105
    %v1176 = vunpack.c.l.bf16 %v1106
    %v1177 = vunpack.c.l.bf16 %v1107
    %v1178 = vunpack.c.l.bf16 %v1108
    %v1179 = vunpack.c.l.bf16 %v1109
    %v1180 = vunpack.c.l.bf16 %v1110
    %v1181 = vunpack.c.l.bf16 %v1111
    %v1182 = vunpack.c.l.bf16 %v1112
    %v1183 = vunpack.c.l.bf16 %v1113
    %v1184 = vunpack.c.l.bf16 %v1114
    %v1185 = vunpack.c.l.bf16 %v1115
    %v1186 = vunpack.c.l.bf16 %v1116
    %v1187 = vunpack.c.l.bf16 %v1117
    %v1188 = vunpack.c.l.bf16 %v1118
    %v1189 = vunpack.c.l.bf16 %v1119
    %v1190 = vunpack.c.l.bf16 %v1120
    %v1191 = vunpack.c.l.bf16 %v1121
    %v1192 = vmax.f32 %v1128, %v1130
    %v1193 = vmax.f32 %v1129, %v1131
    %v1194 = vmax.f32 %v1130, %v1132
    %v1195 = vmax.f32 %v1131, %v1133
    %v1196 = vmax.f32 %v1132, %v1134
    %v1197 = vmax.f32 %v1133, %v1135
    %v1198 = vmax.f32 %v1134, %v1136
    %v1199 = vmax.f32 %v1135, %v1137
    %v1200 = vmax.f32 %v1136, %v1138
    %v1201 = vmax.f32 %v1137, %v1139
    %v1202 = vmax.f32 %v1138, %v1140
    %v1203 = vmax.f32 %v1139, %v1141
    %v1204 = vmax.f32 %v1140, %v1142
    %v1205 = vmax.f32 %v1141, %v1143
    %v1206 = vmax.f32 %v1142, %v1144
    %v1207 = vmax.f32 %v1143, %v1145
    %v1208 = vmax.f32 %v1144, %v1146
    %v1209 = vmax.f32 %v1145, %v1147
    %v1210 = vmax.f32 %v1146, %v1148
    %v1211 = vmax.f32 %v1147, %v1149
    %v1212 = vmax.f32 %v1148, %v1150
    %v1213 = vmax.f32 %v1149, %v1151
    %v1214 = vmax.f32 %v1150, %v1152
    %v1215 = vmax.f32 %v1151, %v1153
    %v1216 = vmax.f32 %v1152, %v1154
    %v1217 = vmax.f32 %v1153, %v1155
    %v1218 = vmax.f32 %v1154, %v1156
    %v1219 = vmax.f32 %v1155, %v1157
    %v1220 = vmax.f32 %v1156, %v1158
    %v1221 = vmax.f32 %v1157, %v1159
    %v1222 = vmax.f32 %v1158, %v1160
    %v1223 = vmax.f32 %v1159, %v1161
    %v1224 = vmax.f32 %v1160, %v1162
    %v1225 = vmax.f32 %v1161, %v1163
    %v1226 = vmax.f32 %v1162, %v1164
    %v1227 = vmax.f32 %v1163, %v1165
    %v1228 = vmax.f32 %v1164, %v1166
    %v1229 = vmax.f32 %v1165, %v1167
    %v1230 = vmax.f32 %v1166, %v1168
    %v1231 = vmax.f32 %v1167, %v1169
    %v1232 = vmax.f32 %v1168, %v1170
    %v1233 = vmax.f32 %v1169, %v1171
    %v1234 = vmax.f32 %v1170, %v1172
    %v1235 = vmax.f32 %v1171, %v1173
    %v1236 = vmax.f32 %v1172, %v1174
    %v1237 = vmax.f32 %v1173, %v1175
    %v1238 = vmax.f32 %v1174, %v1176
    %v1239 = vmax.f32 %v1175, %v1177
    %v1240 = vmax.f32 %v1176, %v1178
    %v1241 = vmax.f32 %v1177, %v1179
    %v1242 = vmax.f32 %v1178, %v1180
    %v1243 = vmax.f32 %v1179, %v1181
    %v1244 = vmax.f32 %v1180, %v1182
    %v1245 = vmax.f32 %v1181, %v1183
    %v1246 = vmax.f32 %v1182, %v1184
    %v1247 = vmax.f32 %v1183, %v1185
    %v1248 = vmax.f32 %v1184, %v1186
    %v1249 = vmax.f32 %v1185, %v1187
    %v1250 = vmax.f32 %v1186, %v1188
    %v1251 = vmax.f32 %v1187, %v1189
    %v1252 = vmax.f32 %v1188, %v1190
    %v1253 = vmax.f32 %v1189, %v1191
    %v1254 = vpack.c.bf16 %v1192, %v1192
    %v1255 = vpack.c.bf16 %v1193, %v1193
    %v1256 = vpack.c.bf16 %v1194, %v1194
    %v1257 = vpack.c.bf16 %v1195, %v1195
    %v1258 = vpack.c.bf16 %v1196, %v1196
    %v1259 = vpack.c.bf16 %v1197, %v1197
    %v1260 = vpack.c.bf16 %v1198, %v1198
    %v1261 = vpack.c.bf16 %v1199, %v1199
    %v1262 = vpack.c.bf16 %v1200, %v1200
    %v1263 = vpack.c.bf16 %v1201, %v1201
    %v1264 = vpack.c.bf16 %v1202, %v1202
    %v1265 = vpack.c.bf16 %v1203, %v1203
    %v1266 = vpack.c.bf16 %v1204, %v1204
    %v1267 = vpack.c.bf16 %v1205, %v1205
    %v1268 = vpack.c.bf16 %v1206, %v1206
    %v1269 = vpack.c.bf16 %v1207, %v1207
    %v1270 = vpack.c.bf16 %v1208, %v1208
    %v1271 = vpack.c.bf16 %v1209, %v1209
    %v1272 = vpack.c.bf16 %v1210, %v1210
    %v1273 = vpack.c.bf16 %v1211, %v1211
    %v1274 = vpack.c.bf16 %v1212, %v1212
    %v1275 = vpack.c.bf16 %v1213, %v1213
    %v1276 = vpack.c.bf16 %v1214, %v1214
    %v1277 = vpack.c.bf16 %v1215, %v1215
    %v1278 = vpack.c.bf16 %v1216, %v1216
    %v1279 = vpack.c.bf16 %v1217, %v1217
    %v1280 = vpack.c.bf16 %v1218, %v1218
    %v1281 = vpack.c.bf16 %v1219, %v1219
    %v1282 = vpack.c.bf16 %v1220, %v1220
    %v1283 = vpack.c.bf16 %v1221, %v1221
    %v1284 = vpack.c.bf16 %v1222, %v1222
    %v1285 = vpack.c.bf16 %v1223, %v1223
    %v1286 = vpack.c.bf16 %v1224, %v1224
    %v1287 = vpack.c.bf16 %v1225, %v1225
    %v1288 = vpack.c.bf16 %v1226, %v1226
    %v1289 = vpack.c.bf16 %v1227, %v1227
    %v1290 = vpack.c.bf16 %v1228, %v1228
    %v1291 = vpack.c.bf16 %v1229, %v1229
    %v1292 = vpack.c.bf16 %v1230, %v1230
    %v1293 = vpack.c.bf16 %v1231, %v1231
    %v1294 = vpack.c.bf16 %v1232, %v1232
    %v1295 = vpack.c.bf16 %v1233, %v1233
    %v1296 = vpack.c.bf16 %v1234, %v1234
    %v1297 = vpack.c.bf16 %v1235, %v1235
    %v1298 = vpack.c.bf16 %v1236, %v1236
    %v1299 = vpack.c.bf16 %v1237, %v1237
    %v1300 = vpack.c.bf16 %v1238, %v1238
    %v1301 = vpack.c.bf16 %v1239, %v1239
    %v1302 = vpack.c.bf16 %v1240, %v1240
    %v1303 = vpack.c.bf16 %v1241, %v1241
    %v1304 = vpack.c.bf16 %v1242, %v1242
    %v1305 = vpack.c.bf16 %v1243, %v1243
    %v1306 = vpack.c.bf16 %v1244, %v1244
    %v1307 = vpack.c.bf16 %v1245, %v1245
    %v1308 = vpack.c.bf16 %v1246, %v1246
    %v1309 = vpack.c.bf16 %v1247, %v1247
    %v1310 = vpack.c.bf16 %v1248, %v1248
    %v1311 = vpack.c.bf16 %v1249, %v1249
    %v1312 = vpack.c.bf16 %v1250, %v1250
    %v1313 = vpack.c.bf16 %v1251, %v1251
    %v1314 = vpack.c.bf16 %v1252, %v1252
    %v1315 = vpack.c.bf16 %v1253, %v1253
    %v1316 = vunpack.c.l.bf16 %v1254
    %v1317 = vunpack.c.l.bf16 %v1255
    %v1318 = vunpack.c.l.bf16 %v1256
    %v1319 = vunpack.c.l.bf16 %v1257
    %v1320 = vunpack.c.l.bf16 %v1258
    %v1321 = vunpack.c.l.bf16 %v1259
    %v1322 = vunpack.c.l.bf16 %v1260
    %v1323 = vunpack.c.l.bf16 %v1261
    %v1324 = vunpack.c.l.bf16 %v1262
    %v1325 = vunpack.c.l.bf16 %v1263
    %v1326 = vunpack.c.l.bf16 %v1264
    %v1327 = vunpack.c.l.bf16 %v1265
    %v1328 = vunpack.c.l.bf16 %v1266
    %v1329 = vunpack.c.l.bf16 %v1267
    %v1330 = vunpack.c.l.bf16 %v1268
    %v1331 = vunpack.c.l.bf16 %v1269
    %v1332 = vunpack.c.l.bf16 %v1270
    %v1333 = vunpack.c.l.bf16 %v1271
    %v1334 = vunpack.c.l.bf16 %v1272
    %v1335 = vunpack.c.l.bf16 %v1273
    %v1336 = vunpack.c.l.bf16 %v1274
    %v1337 = vunpack.c.l.bf16 %v1275
    %v1338 = vunpack.c.l.bf16 %v1276
    %v1339 = vunpack.c.l.bf16 %v1277
    %v1340 = vunpack.c.l.bf16 %v1278
    %v1341 = vunpack.c.l.bf16 %v1279
    %v1342 = vunpack.c.l.bf16 %v1280
    %v1343 = vunpack.c.l.bf16 %v1281
    %v1344 = vunpack.c.l.bf16 %v1282
    %v1345 = vunpack.c.l.bf16 %v1283
    %v1346 = vunpack.c.l.bf16 %v1284
    %v1347 = vunpack.c.l.bf16 %v1285
    %v1348 = vunpack.c.l.bf16 %v1286
    %v1349 = vunpack.c.l.bf16 %v1287
    %v1350 = vunpack.c.l.bf16 %v1288
    %v1351 = vunpack.c.l.bf16 %v1289
    %v1352 = vunpack.c.l.bf16 %v1290
    %v1353 = vunpack.c.l.bf16 %v1291
    %v1354 = vunpack.c.l.bf16 %v1292
    %v1355 = vunpack.c.l.bf16 %v1293
    %v1356 = vunpack.c.l.bf16 %v1294
    %v1357 = vunpack.c.l.bf16 %v1295
    %v1358 = vunpack.c.l.bf16 %v1296
    %v1359 = vunpack.c.l.bf16 %v1297
    %v1360 = vunpack.c.l.bf16 %v1298
    %v1361 = vunpack.c.l.bf16 %v1299
    %v1362 = vunpack.c.l.bf16 %v1300
    %v1363 = vunpack.c.l.bf16 %v1301
    %v1364 = vunpack.c.l.bf16 %v1302
    %v1365 = vunpack.c.l.bf16 %v1303
    %v1366 = vunpack.c.l.bf16 %v1304
    %v1367 = vunpack.c.l.bf16 %v1305
    %v1368 = vunpack.c.l.bf16 %v1306
    %v1369 = vunpack.c.l.bf16 %v1307
    %v1370 = vunpack.c.l.bf16 %v1308
    %v1371 = vunpack.c.l.bf16 %v1309
    %v1372 = vunpack.c.l.bf16 %v1310
    %v1373 = vunpack.c.l.bf16 %v1311
    %v1374 = vunpack.c.l.bf16 %v1312
    %v1375 = vunpack.c.l.bf16 %v1313
    %v1376 = vunpack.c.l.bf16 %v1314
    %v1377 = vunpack.c.l.bf16 %v1315
    %v1378 = vunpack.c.l.bf16 %v1122
    %v1379 = vunpack.c.l.bf16 %v1123
    %v1380 = vmax.f32 %v1316, %v1132
    %v1381 = vmax.f32 %v1317, %v1133
    %v1382 = vmax.f32 %v1318, %v1134
    %v1383 = vmax.f32 %v1319, %v1135
    %v1384 = vmax.f32 %v1320, %v1136
    %v1385 = vmax.f32 %v1321, %v1137
    %v1386 = vmax.f32 %v1322, %v1138
    %v1387 = vmax.f32 %v1323, %v1139
    %v1388 = vmax.f32 %v1324, %v1140
    %v1389 = vmax.f32 %v1325, %v1141
    %v1390 = vmax.f32 %v1326, %v1142
    %v1391 = vmax.f32 %v1327, %v1143
    %v1392 = vmax.f32 %v1328, %v1144
    %v1393 = vmax.f32 %v1329, %v1145
    %v1394 = vmax.f32 %v1330, %v1146
    %v1395 = vmax.f32 %v1331, %v1147
    %v1396 = vmax.f32 %v1332, %v1148
    %v1397 = vmax.f32 %v1333, %v1149
    %v1398 = vmax.f32 %v1334, %v1150
    %v1399 = vmax.f32 %v1335, %v1151
    %v1400 = vmax.f32 %v1336, %v1152
    %v1401 = vmax.f32 %v1337, %v1153
    %v1402 = vmax.f32 %v1338, %v1154
    %v1403 = vmax.f32 %v1339, %v1155
    %v1404 = vmax.f32 %v1340, %v1156
    %v1405 = vmax.f32 %v1341, %v1157
    %v1406 = vmax.f32 %v1342, %v1158
    %v1407 = vmax.f32 %v1343, %v1159
    %v1408 = vmax.f32 %v1344, %v1160
    %v1409 = vmax.f32 %v1345, %v1161
    %v1410 = vmax.f32 %v1346, %v1162
    %v1411 = vmax.f32 %v1347, %v1163
    %v1412 = vmax.f32 %v1348, %v1164
    %v1413 = vmax.f32 %v1349, %v1165
    %v1414 = vmax.f32 %v1350, %v1166
    %v1415 = vmax.f32 %v1351, %v1167
    %v1416 = vmax.f32 %v1352, %v1168
    %v1417 = vmax.f32 %v1353, %v1169
    %v1418 = vmax.f32 %v1354, %v1170
    %v1419 = vmax.f32 %v1355, %v1171
    %v1420 = vmax.f32 %v1356, %v1172
    %v1421 = vmax.f32 %v1357, %v1173
    %v1422 = vmax.f32 %v1358, %v1174
    %v1423 = vmax.f32 %v1359, %v1175
    %v1424 = vmax.f32 %v1360, %v1176
    %v1425 = vmax.f32 %v1361, %v1177
    %v1426 = vmax.f32 %v1362, %v1178
    %v1427 = vmax.f32 %v1363, %v1179
    %v1428 = vmax.f32 %v1364, %v1180
    %v1429 = vmax.f32 %v1365, %v1181
    %v1430 = vmax.f32 %v1366, %v1182
    %v1431 = vmax.f32 %v1367, %v1183
    %v1432 = vmax.f32 %v1368, %v1184
    %v1433 = vmax.f32 %v1369, %v1185
    %v1434 = vmax.f32 %v1370, %v1186
    %v1435 = vmax.f32 %v1371, %v1187
    %v1436 = vmax.f32 %v1372, %v1188
    %v1437 = vmax.f32 %v1373, %v1189
    %v1438 = vmax.f32 %v1374, %v1190
    %v1439 = vmax.f32 %v1375, %v1191
    %v1440 = vmax.f32 %v1376, %v1378
    %v1441 = vmax.f32 %v1377, %v1379
    %v1442 = vpack.c.bf16 %v1380, %v1380
    %v1443 = vpack.c.bf16 %v1381, %v1381
    %v1444 = vpack.c.bf16 %v1382, %v1382
    %v1445 = vpack.c.bf16 %v1383, %v1383
    %v1446 = vpack.c.bf16 %v1384, %v1384
    %v1447 = vpack.c.bf16 %v1385, %v1385
    %v1448 = vpack.c.bf16 %v1386, %v1386
    %v1449 = vpack.c.bf16 %v1387, %v1387
    %v1450 = vpack.c.bf16 %v1388, %v1388
    %v1451 = vpack.c.bf16 %v1389, %v1389
    %v1452 = vpack.c.bf16 %v1390, %v1390
    %v1453 = vpack.c.bf16 %v1391, %v1391
    %v1454 = vpack.c.bf16 %v1392, %v1392
    %v1455 = vpack.c.bf16 %v1393, %v1393
    %v1456 = vpack.c.bf16 %v1394, %v1394
    %v1457 = vpack.c.bf16 %v1395, %v1395
    %v1458 = vpack.c.bf16 %v1396, %v1396
    %v1459 = vpack.c.bf16 %v1397, %v1397
    %v1460 = vpack.c.bf16 %v1398, %v1398
    %v1461 = vpack.c.bf16 %v1399, %v1399
    %v1462 = vpack.c.bf16 %v1400, %v1400
    %v1463 = vpack.c.bf16 %v1401, %v1401
    %v1464 = vpack.c.bf16 %v1402, %v1402
    %v1465 = vpack.c.bf16 %v1403, %v1403
    %v1466 = vpack.c.bf16 %v1404, %v1404
    %v1467 = vpack.c.bf16 %v1405, %v1405
    %v1468 = vpack.c.bf16 %v1406, %v1406
    %v1469 = vpack.c.bf16 %v1407, %v1407
    %v1470 = vpack.c.bf16 %v1408, %v1408
    %v1471 = vpack.c.bf16 %v1409, %v1409
    %v1472 = vpack.c.bf16 %v1410, %v1410
    %v1473 = vpack.c.bf16 %v1411, %v1411
    %v1474 = vpack.c.bf16 %v1412, %v1412
    %v1475 = vpack.c.bf16 %v1413, %v1413
    %v1476 = vpack.c.bf16 %v1414, %v1414
    %v1477 = vpack.c.bf16 %v1415, %v1415
    %v1478 = vpack.c.bf16 %v1416, %v1416
    %v1479 = vpack.c.bf16 %v1417, %v1417
    %v1480 = vpack.c.bf16 %v1418, %v1418
    %v1481 = vpack.c.bf16 %v1419, %v1419
    %v1482 = vpack.c.bf16 %v1420, %v1420
    %v1483 = vpack.c.bf16 %v1421, %v1421
    %v1484 = vpack.c.bf16 %v1422, %v1422
    %v1485 = vpack.c.bf16 %v1423, %v1423
    %v1486 = vpack.c.bf16 %v1424, %v1424
    %v1487 = vpack.c.bf16 %v1425, %v1425
    %v1488 = vpack.c.bf16 %v1426, %v1426
    %v1489 = vpack.c.bf16 %v1427, %v1427
    %v1490 = vpack.c.bf16 %v1428, %v1428
    %v1491 = vpack.c.bf16 %v1429, %v1429
    %v1492 = vpack.c.bf16 %v1430, %v1430
    %v1493 = vpack.c.bf16 %v1431, %v1431
    %v1494 = vpack.c.bf16 %v1432, %v1432
    %v1495 = vpack.c.bf16 %v1433, %v1433
    %v1496 = vpack.c.bf16 %v1434, %v1434
    %v1497 = vpack.c.bf16 %v1435, %v1435
    %v1498 = vpack.c.bf16 %v1436, %v1436
    %v1499 = vpack.c.bf16 %v1437, %v1437
    %v1500 = vpack.c.bf16 %v1438, %v1438
    %v1501 = vpack.c.bf16 %v1439, %v1439
    %v1502 = vpack.c.bf16 %v1440, %v1440
    %v1503 = vpack.c.bf16 %v1441, %v1441
    %v1504 = vunpack.c.l.bf16 %v1442
    %v1505 = vunpack.c.l.bf16 %v1443
    %v1506 = vunpack.c.l.bf16 %v1444
    %v1507 = vunpack.c.l.bf16 %v1445
    %v1508 = vunpack.c.l.bf16 %v1446
    %v1509 = vunpack.c.l.bf16 %v1447
    %v1510 = vunpack.c.l.bf16 %v1448
    %v1511 = vunpack.c.l.bf16 %v1449
    %v1512 = vunpack.c.l.bf16 %v1450
    %v1513 = vunpack.c.l.bf16 %v1451
    %v1514 = vunpack.c.l.bf16 %v1452
    %v1515 = vunpack.c.l.bf16 %v1453
    %v1516 = vunpack.c.l.bf16 %v1454
    %v1517 = vunpack.c.l.bf16 %v1455
    %v1518 = vunpack.c.l.bf16 %v1456
    %v1519 = vunpack.c.l.bf16 %v1457
    %v1520 = vunpack.c.l.bf16 %v1458
    %v1521 = vunpack.c.l.bf16 %v1459
    %v1522 = vunpack.c.l.bf16 %v1460
    %v1523 = vunpack.c.l.bf16 %v1461
    %v1524 = vunpack.c.l.bf16 %v1462
    %v1525 = vunpack.c.l.bf16 %v1463
    %v1526 = vunpack.c.l.bf16 %v1464
    %v1527 = vunpack.c.l.bf16 %v1465
    %v1528 = vunpack.c.l.bf16 %v1466
    %v1529 = vunpack.c.l.bf16 %v1467
    %v1530 = vunpack.c.l.bf16 %v1468
    %v1531 = vunpack.c.l.bf16 %v1469
    %v1532 = vunpack.c.l.bf16 %v1470
    %v1533 = vunpack.c.l.bf16 %v1471
    %v1534 = vunpack.c.l.bf16 %v1472
    %v1535 = vunpack.c.l.bf16 %v1473
    %v1536 = vunpack.c.l.bf16 %v1474
    %v1537 = vunpack.c.l.bf16 %v1475
    %v1538 = vunpack.c.l.bf16 %v1476
    %v1539 = vunpack.c.l.bf16 %v1477
    %v1540 = vunpack.c.l.bf16 %v1478
    %v1541 = vunpack.c.l.bf16 %v1479
    %v1542 = vunpack.c.l.bf16 %v1480
    %v1543 = vunpack.c.l.bf16 %v1481
    %v1544 = vunpack.c.l.bf16 %v1482
    %v1545 = vunpack.c.l.bf16 %v1483
    %v1546 = vunpack.c.l.bf16 %v1484
    %v1547 = vunpack.c.l.bf16 %v1485
    %v1548 = vunpack.c.l.bf16 %v1486
    %v1549 = vunpack.c.l.bf16 %v1487
    %v1550 = vunpack.c.l.bf16 %v1488
    %v1551 = vunpack.c.l.bf16 %v1489
    %v1552 = vunpack.c.l.bf16 %v1490
    %v1553 = vunpack.c.l.bf16 %v1491
    %v1554 = vunpack.c.l.bf16 %v1492
    %v1555 = vunpack.c.l.bf16 %v1493
    %v1556 = vunpack.c.l.bf16 %v1494
    %v1557 = vunpack.c.l.bf16 %v1495
    %v1558 = vunpack.c.l.bf16 %v1496
    %v1559 = vunpack.c.l.bf16 %v1497
    %v1560 = vunpack.c.l.bf16 %v1498
    %v1561 = vunpack.c.l.bf16 %v1499
    %v1562 = vunpack.c.l.bf16 %v1500
    %v1563 = vunpack.c.l.bf16 %v1501
    %v1564 = vunpack.c.l.bf16 %v1502
    %v1565 = vunpack.c.l.bf16 %v1503
    %v1566 = vunpack.c.l.bf16 %v1124
    %v1567 = vunpack.c.l.bf16 %v1125
    %v1568 = vmax.f32 %v1504, %v1134
    %v1569 = vmax.f32 %v1505, %v1135
    %v1570 = vmax.f32 %v1506, %v1136
    %v1571 = vmax.f32 %v1507, %v1137
    %v1572 = vmax.f32 %v1508, %v1138
    %v1573 = vmax.f32 %v1509, %v1139
    %v1574 = vmax.f32 %v1510, %v1140
    %v1575 = vmax.f32 %v1511, %v1141
    %v1576 = vmax.f32 %v1512, %v1142
    %v1577 = vmax.f32 %v1513, %v1143
    %v1578 = vmax.f32 %v1514, %v1144
    %v1579 = vmax.f32 %v1515, %v1145
    %v1580 = vmax.f32 %v1516, %v1146
    %v1581 = vmax.f32 %v1517, %v1147
    %v1582 = vmax.f32 %v1518, %v1148
    %v1583 = vmax.f32 %v1519, %v1149
    %v1584 = vmax.f32 %v1520, %v1150
    %v1585 = vmax.f32 %v1521, %v1151
    %v1586 = vmax.f32 %v1522, %v1152
    %v1587 = vmax.f32 %v1523, %v1153
    %v1588 = vmax.f32 %v1524, %v1154
    %v1589 = vmax.f32 %v1525, %v1155
    %v1590 = vmax.f32 %v1526, %v1156
    %v1591 = vmax.f32 %v1527, %v1157
    %v1592 = vmax.f32 %v1528, %v1158
    %v1593 = vmax.f32 %v1529, %v1159
    %v1594 = vmax.f32 %v1530, %v1160
    %v1595 = vmax.f32 %v1531, %v1161
    %v1596 = vmax.f32 %v1532, %v1162
    %v1597 = vmax.f32 %v1533, %v1163
    %v1598 = vmax.f32 %v1534, %v1164
    %v1599 = vmax.f32 %v1535, %v1165
    %v1600 = vmax.f32 %v1536, %v1166
    %v1601 = vmax.f32 %v1537, %v1167
    %v1602 = vmax.f32 %v1538, %v1168
    %v1603 = vmax.f32 %v1539, %v1169
    %v1604 = vmax.f32 %v1540, %v1170
    %v1605 = vmax.f32 %v1541, %v1171
    %v1606 = vmax.f32 %v1542, %v1172
    %v1607 = vmax.f32 %v1543, %v1173
    %v1608 = vmax.f32 %v1544, %v1174
    %v1609 = vmax.f32 %v1545, %v1175
    %v1610 = vmax.f32 %v1546, %v1176
    %v1611 = vmax.f32 %v1547, %v1177
    %v1612 = vmax.f32 %v1548, %v1178
    %v1613 = vmax.f32 %v1549, %v1179
    %v1614 = vmax.f32 %v1550, %v1180
    %v1615 = vmax.f32 %v1551, %v1181
    %v1616 = vmax.f32 %v1552, %v1182
    %v1617 = vmax.f32 %v1553, %v1183
    %v1618 = vmax.f32 %v1554, %v1184
    %v1619 = vmax.f32 %v1555, %v1185
    %v1620 = vmax.f32 %v1556, %v1186
    %v1621 = vmax.f32 %v1557, %v1187
    %v1622 = vmax.f32 %v1558, %v1188
    %v1623 = vmax.f32 %v1559, %v1189
    %v1624 = vmax.f32 %v1560, %v1190
    %v1625 = vmax.f32 %v1561, %v1191
    %v1626 = vmax.f32 %v1562, %v1378
    %v1627 = vmax.f32 %v1563, %v1379
    %v1628 = vmax.f32 %v1564, %v1566
    %v1629 = vmax.f32 %v1565, %v1567
    %v1630 = vpack.c.bf16 %v1568, %v1568
    %v1631 = vpack.c.bf16 %v1569, %v1569
    %v1632 = vpack.c.bf16 %v1570, %v1570
    %v1633 = vpack.c.bf16 %v1571, %v1571
    %v1634 = vpack.c.bf16 %v1572, %v1572
    %v1635 = vpack.c.bf16 %v1573, %v1573
    %v1636 = vpack.c.bf16 %v1574, %v1574
    %v1637 = vpack.c.bf16 %v1575, %v1575
    %v1638 = vpack.c.bf16 %v1576, %v1576
    %v1639 = vpack.c.bf16 %v1577, %v1577
    %v1640 = vpack.c.bf16 %v1578, %v1578
    %v1641 = vpack.c.bf16 %v1579, %v1579
    %v1642 = vpack.c.bf16 %v1580, %v1580
    %v1643 = vpack.c.bf16 %v1581, %v1581
    %v1644 = vpack.c.bf16 %v1582, %v1582
    %v1645 = vpack.c.bf16 %v1583, %v1583
    %v1646 = vpack.c.bf16 %v1584, %v1584
    %v1647 = vpack.c.bf16 %v1585, %v1585
    %v1648 = vpack.c.bf16 %v1586, %v1586
    %v1649 = vpack.c.bf16 %v1587, %v1587
    %v1650 = vpack.c.bf16 %v1588, %v1588
    %v1651 = vpack.c.bf16 %v1589, %v1589
    %v1652 = vpack.c.bf16 %v1590, %v1590
    %v1653 = vpack.c.bf16 %v1591, %v1591
    %v1654 = vpack.c.bf16 %v1592, %v1592
    %v1655 = vpack.c.bf16 %v1593, %v1593
    %v1656 = vpack.c.bf16 %v1594, %v1594
    %v1657 = vpack.c.bf16 %v1595, %v1595
    %v1658 = vpack.c.bf16 %v1596, %v1596
    %v1659 = vpack.c.bf16 %v1597, %v1597
    %v1660 = vpack.c.bf16 %v1598, %v1598
    %v1661 = vpack.c.bf16 %v1599, %v1599
    %v1662 = vpack.c.bf16 %v1600, %v1600
    %v1663 = vpack.c.bf16 %v1601, %v1601
    %v1664 = vpack.c.bf16 %v1602, %v1602
    %v1665 = vpack.c.bf16 %v1603, %v1603
    %v1666 = vpack.c.bf16 %v1604, %v1604
    %v1667 = vpack.c.bf16 %v1605, %v1605
    %v1668 = vpack.c.bf16 %v1606, %v1606
    %v1669 = vpack.c.bf16 %v1607, %v1607
    %v1670 = vpack.c.bf16 %v1608, %v1608
    %v1671 = vpack.c.bf16 %v1609, %v1609
    %v1672 = vpack.c.bf16 %v1610, %v1610
    %v1673 = vpack.c.bf16 %v1611, %v1611
    %v1674 = vpack.c.bf16 %v1612, %v1612
    %v1675 = vpack.c.bf16 %v1613, %v1613
    %v1676 = vpack.c.bf16 %v1614, %v1614
    %v1677 = vpack.c.bf16 %v1615, %v1615
    %v1678 = vpack.c.bf16 %v1616, %v1616
    %v1679 = vpack.c.bf16 %v1617, %v1617
    %v1680 = vpack.c.bf16 %v1618, %v1618
    %v1681 = vpack.c.bf16 %v1619, %v1619
    %v1682 = vpack.c.bf16 %v1620, %v1620
    %v1683 = vpack.c.bf16 %v1621, %v1621
    %v1684 = vpack.c.bf16 %v1622, %v1622
    %v1685 = vpack.c.bf16 %v1623, %v1623
    %v1686 = vpack.c.bf16 %v1624, %v1624
    %v1687 = vpack.c.bf16 %v1625, %v1625
    %v1688 = vpack.c.bf16 %v1626, %v1626
    %v1689 = vpack.c.bf16 %v1627, %v1627
    %v1690 = vpack.c.bf16 %v1628, %v1628
    %v1691 = vpack.c.bf16 %v1629, %v1629
    %v1692 = vunpack.c.l.bf16 %v1630
    %v1693 = vunpack.c.l.bf16 %v1631
    %v1694 = vunpack.c.l.bf16 %v1632
    %v1695 = vunpack.c.l.bf16 %v1633
    %v1696 = vunpack.c.l.bf16 %v1634
    %v1697 = vunpack.c.l.bf16 %v1635
    %v1698 = vunpack.c.l.bf16 %v1636
    %v1699 = vunpack.c.l.bf16 %v1637
    %v1700 = vunpack.c.l.bf16 %v1638
    %v1701 = vunpack.c.l.bf16 %v1639
    %v1702 = vunpack.c.l.bf16 %v1640
    %v1703 = vunpack.c.l.bf16 %v1641
    %v1704 = vunpack.c.l.bf16 %v1642
    %v1705 = vunpack.c.l.bf16 %v1643
    %v1706 = vunpack.c.l.bf16 %v1644
    %v1707 = vunpack.c.l.bf16 %v1645
    %v1708 = vunpack.c.l.bf16 %v1646
    %v1709 = vunpack.c.l.bf16 %v1647
    %v1710 = vunpack.c.l.bf16 %v1648
    %v1711 = vunpack.c.l.bf16 %v1649
    %v1712 = vunpack.c.l.bf16 %v1650
    %v1713 = vunpack.c.l.bf16 %v1651
    %v1714 = vunpack.c.l.bf16 %v1652
    %v1715 = vunpack.c.l.bf16 %v1653
    %v1716 = vunpack.c.l.bf16 %v1654
    %v1717 = vunpack.c.l.bf16 %v1655
    %v1718 = vunpack.c.l.bf16 %v1656
    %v1719 = vunpack.c.l.bf16 %v1657
    %v1720 = vunpack.c.l.bf16 %v1658
    %v1721 = vunpack.c.l.bf16 %v1659
    %v1722 = vunpack.c.l.bf16 %v1660
    %v1723 = vunpack.c.l.bf16 %v1661
    %v1724 = vunpack.c.l.bf16 %v1662
    %v1725 = vunpack.c.l.bf16 %v1663
    %v1726 = vunpack.c.l.bf16 %v1664
    %v1727 = vunpack.c.l.bf16 %v1665
    %v1728 = vunpack.c.l.bf16 %v1666
    %v1729 = vunpack.c.l.bf16 %v1667
    %v1730 = vunpack.c.l.bf16 %v1668
    %v1731 = vunpack.c.l.bf16 %v1669
    %v1732 = vunpack.c.l.bf16 %v1670
    %v1733 = vunpack.c.l.bf16 %v1671
    %v1734 = vunpack.c.l.bf16 %v1672
    %v1735 = vunpack.c.l.bf16 %v1673
    %v1736 = vunpack.c.l.bf16 %v1674
    %v1737 = vunpack.c.l.bf16 %v1675
    %v1738 = vunpack.c.l.bf16 %v1676
    %v1739 = vunpack.c.l.bf16 %v1677
    %v1740 = vunpack.c.l.bf16 %v1678
    %v1741 = vunpack.c.l.bf16 %v1679
    %v1742 = vunpack.c.l.bf16 %v1680
    %v1743 = vunpack.c.l.bf16 %v1681
    %v1744 = vunpack.c.l.bf16 %v1682
    %v1745 = vunpack.c.l.bf16 %v1683
    %v1746 = vunpack.c.l.bf16 %v1684
    %v1747 = vunpack.c.l.bf16 %v1685
    %v1748 = vunpack.c.l.bf16 %v1686
    %v1749 = vunpack.c.l.bf16 %v1687
    %v1750 = vunpack.c.l.bf16 %v1688
    %v1751 = vunpack.c.l.bf16 %v1689
    %v1752 = vunpack.c.l.bf16 %v1690
    %v1753 = vunpack.c.l.bf16 %v1691
    %v1754 = vunpack.c.l.bf16 %v1126
    %v1755 = vunpack.c.l.bf16 %v1127
    %v1756 = vmax.f32 %v1692, %v1136
    %v1757 = vmax.f32 %v1693, %v1137
    %v1758 = vmax.f32 %v1694, %v1138
    %v1759 = vmax.f32 %v1695, %v1139
    %v1760 = vmax.f32 %v1696, %v1140
    %v1761 = vmax.f32 %v1697, %v1141
    %v1762 = vmax.f32 %v1698, %v1142
    %v1763 = vmax.f32 %v1699, %v1143
    %v1764 = vmax.f32 %v1700, %v1144
    %v1765 = vmax.f32 %v1701, %v1145
    %v1766 = vmax.f32 %v1702, %v1146
    %v1767 = vmax.f32 %v1703, %v1147
    %v1768 = vmax.f32 %v1704, %v1148
    %v1769 = vmax.f32 %v1705, %v1149
    %v1770 = vmax.f32 %v1706, %v1150
    %v1771 = vmax.f32 %v1707, %v1151
    %v1772 = vmax.f32 %v1708, %v1152
    %v1773 = vmax.f32 %v1709, %v1153
    %v1774 = vmax.f32 %v1710, %v1154
    %v1775 = vmax.f32 %v1711, %v1155
    %v1776 = vmax.f32 %v1712, %v1156
    %v1777 = vmax.f32 %v1713, %v1157
    %v1778 = vmax.f32 %v1714, %v1158
    %v1779 = vmax.f32 %v1715, %v1159
    %v1780 = vmax.f32 %v1716, %v1160
    %v1781 = vmax.f32 %v1717, %v1161
    %v1782 = vmax.f32 %v1718, %v1162
    %v1783 = vmax.f32 %v1719, %v1163
    %v1784 = vmax.f32 %v1720, %v1164
    %v1785 = vmax.f32 %v1721, %v1165
    %v1786 = vmax.f32 %v1722, %v1166
    %v1787 = vmax.f32 %v1723, %v1167
    %v1788 = vmax.f32 %v1724, %v1168
    %v1789 = vmax.f32 %v1725, %v1169
    %v1790 = vmax.f32 %v1726, %v1170
    %v1791 = vmax.f32 %v1727, %v1171
    %v1792 = vmax.f32 %v1728, %v1172
    %v1793 = vmax.f32 %v1729, %v1173
    %v1794 = vmax.f32 %v1730, %v1174
    %v1795 = vmax.f32 %v1731, %v1175
    %v1796 = vmax.f32 %v1732, %v1176
    %v1797 = vmax.f32 %v1733, %v1177
    %v1798 = vmax.f32 %v1734, %v1178
    %v1799 = vmax.f32 %v1735, %v1179
    %v1800 = vmax.f32 %v1736, %v1180
    %v1801 = vmax.f32 %v1737, %v1181
    %v1802 = vmax.f32 %v1738, %v1182
    %v1803 = vmax.f32 %v1739, %v1183
    %v1804 = vmax.f32 %v1740, %v1184
    %v1805 = vmax.f32 %v1741, %v1185
    %v1806 = vmax.f32 %v1742, %v1186
    %v1807 = vmax.f32 %v1743, %v1187
    %v1808 = vmax.f32 %v1744, %v1188
    %v1809 = vmax.f32 %v1745, %v1189
    %v1810 = vmax.f32 %v1746, %v1190
    %v1811 = vmax.f32 %v1747, %v1191
    %v1812 = vmax.f32 %v1748, %v1378
    %v1813 = vmax.f32 %v1749, %v1379
    %v1814 = vmax.f32 %v1750, %v1566
    %v1815 = vmax.f32 %v1751, %v1567
    %v1816 = vmax.f32 %v1752, %v1754
    %v1817 = vmax.f32 %v1753, %v1755
    %v1818 = vpack.c.bf16 %v1756, %v1756
    %v1819 = vpack.c.bf16 %v1757, %v1757
    %v1820 = vpack.c.bf16 %v1758, %v1758
    %v1821 = vpack.c.bf16 %v1759, %v1759
    %v1822 = vpack.c.bf16 %v1760, %v1760
    %v1823 = vpack.c.bf16 %v1761, %v1761
    %v1824 = vpack.c.bf16 %v1762, %v1762
    %v1825 = vpack.c.bf16 %v1763, %v1763
    %v1826 = vpack.c.bf16 %v1764, %v1764
    %v1827 = vpack.c.bf16 %v1765, %v1765
    %v1828 = vpack.c.bf16 %v1766, %v1766
    %v1829 = vpack.c.bf16 %v1767, %v1767
    %v1830 = vpack.c.bf16 %v1768, %v1768
    %v1831 = vpack.c.bf16 %v1769, %v1769
    %v1832 = vpack.c.bf16 %v1770, %v1770
    %v1833 = vpack.c.bf16 %v1771, %v1771
    %v1834 = vpack.c.bf16 %v1772, %v1772
    %v1835 = vpack.c.bf16 %v1773, %v1773
    %v1836 = vpack.c.bf16 %v1774, %v1774
    %v1837 = vpack.c.bf16 %v1775, %v1775
    %v1838 = vpack.c.bf16 %v1776, %v1776
    %v1839 = vpack.c.bf16 %v1777, %v1777
    %v1840 = vpack.c.bf16 %v1778, %v1778
    %v1841 = vpack.c.bf16 %v1779, %v1779
    %v1842 = vpack.c.bf16 %v1780, %v1780
    %v1843 = vpack.c.bf16 %v1781, %v1781
    %v1844 = vpack.c.bf16 %v1782, %v1782
    %v1845 = vpack.c.bf16 %v1783, %v1783
    %v1846 = vpack.c.bf16 %v1784, %v1784
    %v1847 = vpack.c.bf16 %v1785, %v1785
    %v1848 = vpack.c.bf16 %v1786, %v1786
    %v1849 = vpack.c.bf16 %v1787, %v1787
    %v1850 = vpack.c.bf16 %v1788, %v1788
    %v1851 = vpack.c.bf16 %v1789, %v1789
    %v1852 = vpack.c.bf16 %v1790, %v1790
    %v1853 = vpack.c.bf16 %v1791, %v1791
    %v1854 = vpack.c.bf16 %v1792, %v1792
    %v1855 = vpack.c.bf16 %v1793, %v1793
    %v1856 = vpack.c.bf16 %v1794, %v1794
    %v1857 = vpack.c.bf16 %v1795, %v1795
    %v1858 = vpack.c.bf16 %v1796, %v1796
    %v1859 = vpack.c.bf16 %v1797, %v1797
    %v1860 = vpack.c.bf16 %v1798, %v1798
    %v1861 = vpack.c.bf16 %v1799, %v1799
    %v1862 = vpack.c.bf16 %v1800, %v1800
    %v1863 = vpack.c.bf16 %v1801, %v1801
    %v1864 = vpack.c.bf16 %v1802, %v1802
    %v1865 = vpack.c.bf16 %v1803, %v1803
    %v1866 = vpack.c.bf16 %v1804, %v1804
    %v1867 = vpack.c.bf16 %v1805, %v1805
    %v1868 = vpack.c.bf16 %v1806, %v1806
    %v1869 = vpack.c.bf16 %v1807, %v1807
    %v1870 = vpack.c.bf16 %v1808, %v1808
    %v1871 = vpack.c.bf16 %v1809, %v1809
    %v1872 = vpack.c.bf16 %v1810, %v1810
    %v1873 = vpack.c.bf16 %v1811, %v1811
    %v1874 = vpack.c.bf16 %v1812, %v1812
    %v1875 = vpack.c.bf16 %v1813, %v1813
    %v1876 = vpack.c.bf16 %v1814, %v1814
    %v1877 = vpack.c.bf16 %v1815, %v1815
    %v1878 = vpack.c.bf16 %v1816, %v1816
    %v1879 = vpack.c.bf16 %v1817, %v1817
    %v1880 = vld [vmem:[%s2] sm:$0xf]
    %v1881 = vld [vmem:[%s2 + $0x4] sm:$0xf]
    %v1882 = vld [vmem:[%s2 + $0x8] sm:$0xf]
    %v1883 = vld [vmem:[%s2 + $0xc] sm:$0xf]
    %v1884 = vld [vmem:[%s2 + $0x10] sm:$0xf]
    %v1885 = vld [vmem:[%s2 + $0x14] sm:$0xf]
    %v1886 = vld [vmem:[%s2 + $0x18] sm:$0xf]
    %v1887 = vld [vmem:[%s2 + $0x1c] sm:$0xf]
    %v1888 = vld [vmem:[%s2 + $0x20] sm:$0xf]
    %v1889 = vld [vmem:[%s2 + $0x24] sm:$0xf]
    %v1890 = vld [vmem:[%s2 + $0x28] sm:$0xf]
    %v1891 = vld [vmem:[%s2 + $0x2c] sm:$0xf]
    %v1892 = vld [vmem:[%s2 + $0x30] sm:$0xf]
    %v1893 = vld [vmem:[%s2 + $0x34] sm:$0xf]
    %v1894 = vld [vmem:[%s2 + $0x38] sm:$0xf]
    %v1895 = vld [vmem:[%s2 + $0x3c] sm:$0xf]
    %v1896 = vld [vmem:[%s2 + $0x40] sm:$0xf]
    %v1897 = vld [vmem:[%s2 + $0x44] sm:$0xf]
    %v1898 = vld [vmem:[%s2 + $0x48] sm:$0xf]
    %v1899 = vld [vmem:[%s2 + $0x4c] sm:$0xf]
    %v1900 = vld [vmem:[%s2 + $0x50] sm:$0xf]
    %v1901 = vld [vmem:[%s2 + $0x54] sm:$0xf]
    %v1902 = vld [vmem:[%s2 + $0x58] sm:$0xf]
    %v1903 = vld [vmem:[%s2 + $0x5c] sm:$0xf]
    %v1904 = vld [vmem:[%s2 + $0x60] sm:$0xf]
    %v1905 = vld [vmem:[%s2 + $0x64] sm:$0xf]
    %v1906 = vld [vmem:[%s2 + $0x68] sm:$0xf]
    %v1907 = vld [vmem:[%s2 + $0x6c] sm:$0xf]
    %v1908 = vld [vmem:[%s2 + $0x70] sm:$0xf]
    %v1909 = vld [vmem:[%s2 + $0x74] sm:$0xf]
    %v1910 = vld [vmem:[%s2 + $0x78] sm:$0xf]
    %v1911 = vld [vmem:[%s2 + $0x7c] sm:$0xf]
    %v1912 = vld [vmem:[%s2 + $0x80] sm:$0xf]
    %v1913 = vld [vmem:[%s2 + $0x84] sm:$0xf]
    %v1914 = vld [vmem:[%s2 + $0x88] sm:$0xf]
    %v1915 = vld [vmem:[%s2 + $0x8c] sm:$0xf]
    %v1916 = vld [vmem:[%s2 + $0x90] sm:$0xf]
    %v1917 = vld [vmem:[%s2 + $0x94] sm:$0xf]
    %v1918 = vld [vmem:[%s2 + $0x98] sm:$0xf]
    %v1919 = vld [vmem:[%s2 + $0x9c] sm:$0xf]
    %v1920 = vld [vmem:[%s2 + $0xa0] sm:$0xf]
    %v1921 = vld [vmem:[%s2 + $0xa4] sm:$0xf]
    %v1922 = vld [vmem:[%s2 + $0xa8] sm:$0xf]
    %v1923 = vld [vmem:[%s2 + $0xac] sm:$0xf]
    %v1924 = vld [vmem:[%s2 + $0xb0] sm:$0xf]
    %v1925 = vld [vmem:[%s2 + $0xb4] sm:$0xf]
    %v1926 = vld [vmem:[%s2 + $0xb8] sm:$0xf]
    %v1927 = vld [vmem:[%s2 + $0xbc] sm:$0xf]
    %v1928 = vld [vmem:[%s2 + $0xc0] sm:$0xf]
    %v1929 = vld [vmem:[%s2 + $0xc4] sm:$0xf]
    %v1930 = vld [vmem:[%s2 + $0xc8] sm:$0xf]
    %v1931 = vld [vmem:[%s2 + $0xcc] sm:$0xf]
    %v1932 = vld [vmem:[%s2 + $0xd0] sm:$0xf]
    %v1933 = vld [vmem:[%s2 + $0xd4] sm:$0xf]
    %v1934 = vld [vmem:[%s2 + $0xd8] sm:$0xf]
    %v1935 = vld [vmem:[%s2 + $0xdc] sm:$0xf]
    %v1936 = vld [vmem:[%s2 + $0xe0] sm:$0xf]
    %v1937 = vld [vmem:[%s2 + $0xe4] sm:$0xf]
    %v1938 = vld [vmem:[%s2 + $0xe8] sm:$0xf]
    %v1939 = vld [vmem:[%s2 + $0xec] sm:$0xf]
    %v1940 = vld [vmem:[%s2 + $0xf0] sm:$0xf]
    %v1941 = vld [vmem:[%s2 + $0xf4] sm:$0xf]
    %1943 = vset.pattern.permute.xlu0 0
    %1944 = vperm.xlu0 %1943, %v1880
    %v1945 = vpop.permute.xlu0 %1944
    %v1948 = vunpack.c.l.s4 839922192
    %v1949 = vunpack.c.0.s8 %v1948
    %v1950 = vperm.slane %v1945, %v1949
    %1952 = vset.pattern.permute.xlu0 0
    %1953 = vperm.xlu0 %1952, %v1881
    %v1954 = vpop.permute.xlu0 %1953
    %v1957 = vunpack.c.l.s4 839922192
    %v1958 = vunpack.c.0.s8 %v1957
    %v1959 = vperm.slane %v1954, %v1958
    %1961 = vset.pattern.permute.xlu0 0
    %1962 = vperm.xlu0 %1961, %v1882
    %v1963 = vpop.permute.xlu0 %1962
    %v1966 = vunpack.c.l.s4 839922192
    %v1967 = vunpack.c.0.s8 %v1966
    %v1968 = vperm.slane %v1963, %v1967
    %1970 = vset.pattern.permute.xlu0 0
    %1971 = vperm.xlu0 %1970, %v1883
    %v1972 = vpop.permute.xlu0 %1971
    %v1975 = vunpack.c.l.s4 839922192
    %v1976 = vunpack.c.0.s8 %v1975
    %v1977 = vperm.slane %v1972, %v1976
    %1979 = vset.pattern.permute.xlu0 0
    %1980 = vperm.xlu0 %1979, %v1884
    %v1981 = vpop.permute.xlu0 %1980
    %v1984 = vunpack.c.l.s4 839922192
    %v1985 = vunpack.c.0.s8 %v1984
    %v1986 = vperm.slane %v1981, %v1985
    %1988 = vset.pattern.permute.xlu0 0
    %1989 = vperm.xlu0 %1988, %v1885
    %v1990 = vpop.permute.xlu0 %1989
    %v1993 = vunpack.c.l.s4 839922192
    %v1994 = vunpack.c.0.s8 %v1993
    %v1995 = vperm.slane %v1990, %v1994
    %1997 = vset.pattern.permute.xlu0 0
    %1998 = vperm.xlu0 %1997, %v1886
    %v1999 = vpop.permute.xlu0 %1998
    %v2002 = vunpack.c.l.s4 839922192
    %v2003 = vunpack.c.0.s8 %v2002
    %v2004 = vperm.slane %v1999, %v2003
    %2006 = vset.pattern.permute.xlu0 0
    %2007 = vperm.xlu0 %2006, %v1887
    %v2008 = vpop.permute.xlu0 %2007
    %v2011 = vunpack.c.l.s4 839922192
    %v2012 = vunpack.c.0.s8 %v2011
    %v2013 = vperm.slane %v2008, %v2012
    %2015 = vset.pattern.permute.xlu0 0
    %2016 = vperm.xlu0 %2015, %v1888
    %v2017 = vpop.permute.xlu0 %2016
    %v2020 = vunpack.c.l.s4 839922192
    %v2021 = vunpack.c.0.s8 %v2020
    %v2022 = vperm.slane %v2017, %v2021
    %2024 = vset.pattern.permute.xlu0 0
    %2025 = vperm.xlu0 %2024, %v1889
    %v2026 = vpop.permute.xlu0 %2025
    %v2029 = vunpack.c.l.s4 839922192
    %v2030 = vunpack.c.0.s8 %v2029
    %v2031 = vperm.slane %v2026, %v2030
    %2033 = vset.pattern.permute.xlu0 0
    %2034 = vperm.xlu0 %2033, %v1890
    %v2035 = vpop.permute.xlu0 %2034
    %v2038 = vunpack.c.l.s4 839922192
    %v2039 = vunpack.c.0.s8 %v2038
    %v2040 = vperm.slane %v2035, %v2039
    %2042 = vset.pattern.permute.xlu0 0
    %2043 = vperm.xlu0 %2042, %v1891
    %v2044 = vpop.permute.xlu0 %2043
    %v2047 = vunpack.c.l.s4 839922192
    %v2048 = vunpack.c.0.s8 %v2047
    %v2049 = vperm.slane %v2044, %v2048
    %2051 = vset.pattern.permute.xlu0 0
    %2052 = vperm.xlu0 %2051, %v1892
    %v2053 = vpop.permute.xlu0 %2052
    %v2056 = vunpack.c.l.s4 839922192
    %v2057 = vunpack.c.0.s8 %v2056
    %v2058 = vperm.slane %v2053, %v2057
    %2060 = vset.pattern.permute.xlu0 0
    %2061 = vperm.xlu0 %2060, %v1893
    %v2062 = vpop.permute.xlu0 %2061
    %v2065 = vunpack.c.l.s4 839922192
    %v2066 = vunpack.c.0.s8 %v2065
    %v2067 = vperm.slane %v2062, %v2066
    %2069 = vset.pattern.permute.xlu0 0
    %2070 = vperm.xlu0 %2069, %v1894
    %v2071 = vpop.permute.xlu0 %2070
    %v2074 = vunpack.c.l.s4 839922192
    %v2075 = vunpack.c.0.s8 %v2074
    %v2076 = vperm.slane %v2071, %v2075
    %2078 = vset.pattern.permute.xlu0 0
    %2079 = vperm.xlu0 %2078, %v1895
    %v2080 = vpop.permute.xlu0 %2079
    %v2083 = vunpack.c.l.s4 839922192
    %v2084 = vunpack.c.0.s8 %v2083
    %v2085 = vperm.slane %v2080, %v2084
    %2087 = vset.pattern.permute.xlu0 0
    %2088 = vperm.xlu0 %2087, %v1896
    %v2089 = vpop.permute.xlu0 %2088
    %v2092 = vunpack.c.l.s4 839922192
    %v2093 = vunpack.c.0.s8 %v2092
    %v2094 = vperm.slane %v2089, %v2093
    %2096 = vset.pattern.permute.xlu0 0
    %2097 = vperm.xlu0 %2096, %v1897
    %v2098 = vpop.permute.xlu0 %2097
    %v2101 = vunpack.c.l.s4 839922192
    %v2102 = vunpack.c.0.s8 %v2101
    %v2103 = vperm.slane %v2098, %v2102
    %2105 = vset.pattern.permute.xlu0 0
    %2106 = vperm.xlu0 %2105, %v1898
    %v2107 = vpop.permute.xlu0 %2106
    %v2110 = vunpack.c.l.s4 839922192
    %v2111 = vunpack.c.0.s8 %v2110
    %v2112 = vperm.slane %v2107, %v2111
    %2114 = vset.pattern.permute.xlu0 0
    %2115 = vperm.xlu0 %2114, %v1899
    %v2116 = vpop.permute.xlu0 %2115
    %v2119 = vunpack.c.l.s4 839922192
    %v2120 = vunpack.c.0.s8 %v2119
    %v2121 = vperm.slane %v2116, %v2120
    %2123 = vset.pattern.permute.xlu0 0
    %2124 = vperm.xlu0 %2123, %v1900
    %v2125 = vpop.permute.xlu0 %2124
    %v2128 = vunpack.c.l.s4 839922192
    %v2129 = vunpack.c.0.s8 %v2128
    %v2130 = vperm.slane %v2125, %v2129
    %2132 = vset.pattern.permute.xlu0 0
    %2133 = vperm.xlu0 %2132, %v1901
    %v2134 = vpop.permute.xlu0 %2133
    %v2137 = vunpack.c.l.s4 839922192
    %v2138 = vunpack.c.0.s8 %v2137
    %v2139 = vperm.slane %v2134, %v2138
    %2141 = vset.pattern.permute.xlu0 0
    %2142 = vperm.xlu0 %2141, %v1902
    %v2143 = vpop.permute.xlu0 %2142
    %v2146 = vunpack.c.l.s4 839922192
    %v2147 = vunpack.c.0.s8 %v2146
    %v2148 = vperm.slane %v2143, %v2147
    %2150 = vset.pattern.permute.xlu0 0
    %2151 = vperm.xlu0 %2150, %v1903
    %v2152 = vpop.permute.xlu0 %2151
    %v2155 = vunpack.c.l.s4 839922192
    %v2156 = vunpack.c.0.s8 %v2155
    %v2157 = vperm.slane %v2152, %v2156
    %2159 = vset.pattern.permute.xlu0 0
    %2160 = vperm.xlu0 %2159, %v1904
    %v2161 = vpop.permute.xlu0 %2160
    %v2164 = vunpack.c.l.s4 839922192
    %v2165 = vunpack.c.0.s8 %v2164
    %v2166 = vperm.slane %v2161, %v2165
    %2168 = vset.pattern.permute.xlu0 0
    %2169 = vperm.xlu0 %2168, %v1905
    %v2170 = vpop.permute.xlu0 %2169
    %v2173 = vunpack.c.l.s4 839922192
    %v2174 = vunpack.c.0.s8 %v2173
    %v2175 = vperm.slane %v2170, %v2174
    %2177 = vset.pattern.permute.xlu0 0
    %2178 = vperm.xlu0 %2177, %v1906
    %v2179 = vpop.permute.xlu0 %2178
    %v2182 = vunpack.c.l.s4 839922192
    %v2183 = vunpack.c.0.s8 %v2182
    %v2184 = vperm.slane %v2179, %v2183
    %2186 = vset.pattern.permute.xlu0 0
    %2187 = vperm.xlu0 %2186, %v1907
    %v2188 = vpop.permute.xlu0 %2187
    %v2191 = vunpack.c.l.s4 839922192
    %v2192 = vunpack.c.0.s8 %v2191
    %v2193 = vperm.slane %v2188, %v2192
    %2195 = vset.pattern.permute.xlu0 0
    %2196 = vperm.xlu0 %2195, %v1908
    %v2197 = vpop.permute.xlu0 %2196
    %v2200 = vunpack.c.l.s4 839922192
    %v2201 = vunpack.c.0.s8 %v2200
    %v2202 = vperm.slane %v2197, %v2201
    %2204 = vset.pattern.permute.xlu0 0
    %2205 = vperm.xlu0 %2204, %v1909
    %v2206 = vpop.permute.xlu0 %2205
    %v2209 = vunpack.c.l.s4 839922192
    %v2210 = vunpack.c.0.s8 %v2209
    %v2211 = vperm.slane %v2206, %v2210
    %2213 = vset.pattern.permute.xlu0 0
    %2214 = vperm.xlu0 %2213, %v1910
    %v2215 = vpop.permute.xlu0 %2214
    %v2218 = vunpack.c.l.s4 839922192
    %v2219 = vunpack.c.0.s8 %v2218
    %v2220 = vperm.slane %v2215, %v2219
    %2222 = vset.pattern.permute.xlu0 0
    %2223 = vperm.xlu0 %2222, %v1911
    %v2224 = vpop.permute.xlu0 %2223
    %v2227 = vunpack.c.l.s4 839922192
    %v2228 = vunpack.c.0.s8 %v2227
    %v2229 = vperm.slane %v2224, %v2228
    %2231 = vset.pattern.permute.xlu0 0
    %2232 = vperm.xlu0 %2231, %v1912
    %v2233 = vpop.permute.xlu0 %2232
    %v2236 = vunpack.c.l.s4 839922192
    %v2237 = vunpack.c.0.s8 %v2236
    %v2238 = vperm.slane %v2233, %v2237
    %2240 = vset.pattern.permute.xlu0 0
    %2241 = vperm.xlu0 %2240, %v1913
    %v2242 = vpop.permute.xlu0 %2241
    %v2245 = vunpack.c.l.s4 839922192
    %v2246 = vunpack.c.0.s8 %v2245
    %v2247 = vperm.slane %v2242, %v2246
    %2249 = vset.pattern.permute.xlu0 0
    %2250 = vperm.xlu0 %2249, %v1914
    %v2251 = vpop.permute.xlu0 %2250
    %v2254 = vunpack.c.l.s4 839922192
    %v2255 = vunpack.c.0.s8 %v2254
    %v2256 = vperm.slane %v2251, %v2255
    %2258 = vset.pattern.permute.xlu0 0
    %2259 = vperm.xlu0 %2258, %v1915
    %v2260 = vpop.permute.xlu0 %2259
    %v2263 = vunpack.c.l.s4 839922192
    %v2264 = vunpack.c.0.s8 %v2263
    %v2265 = vperm.slane %v2260, %v2264
    %2267 = vset.pattern.permute.xlu0 0
    %2268 = vperm.xlu0 %2267, %v1916
    %v2269 = vpop.permute.xlu0 %2268
    %v2272 = vunpack.c.l.s4 839922192
    %v2273 = vunpack.c.0.s8 %v2272
    %v2274 = vperm.slane %v2269, %v2273
    %2276 = vset.pattern.permute.xlu0 0
    %2277 = vperm.xlu0 %2276, %v1917
    %v2278 = vpop.permute.xlu0 %2277
    %v2281 = vunpack.c.l.s4 839922192
    %v2282 = vunpack.c.0.s8 %v2281
    %v2283 = vperm.slane %v2278, %v2282
    %2285 = vset.pattern.permute.xlu0 0
    %2286 = vperm.xlu0 %2285, %v1918
    %v2287 = vpop.permute.xlu0 %2286
    %v2290 = vunpack.c.l.s4 839922192
    %v2291 = vunpack.c.0.s8 %v2290
    %v2292 = vperm.slane %v2287, %v2291
    %2294 = vset.pattern.permute.xlu0 0
    %2295 = vperm.xlu0 %2294, %v1919
    %v2296 = vpop.permute.xlu0 %2295
    %v2299 = vunpack.c.l.s4 839922192
    %v2300 = vunpack.c.0.s8 %v2299
    %v2301 = vperm.slane %v2296, %v2300
    %2303 = vset.pattern.permute.xlu0 0
    %2304 = vperm.xlu0 %2303, %v1920
    %v2305 = vpop.permute.xlu0 %2304
    %v2308 = vunpack.c.l.s4 839922192
    %v2309 = vunpack.c.0.s8 %v2308
    %v2310 = vperm.slane %v2305, %v2309
    %2312 = vset.pattern.permute.xlu0 0
    %2313 = vperm.xlu0 %2312, %v1921
    %v2314 = vpop.permute.xlu0 %2313
    %v2317 = vunpack.c.l.s4 839922192
    %v2318 = vunpack.c.0.s8 %v2317
    %v2319 = vperm.slane %v2314, %v2318
    %2321 = vset.pattern.permute.xlu0 0
    %2322 = vperm.xlu0 %2321, %v1922
    %v2323 = vpop.permute.xlu0 %2322
    %v2326 = vunpack.c.l.s4 839922192
    %v2327 = vunpack.c.0.s8 %v2326
    %v2328 = vperm.slane %v2323, %v2327
    %2330 = vset.pattern.permute.xlu0 0
    %2331 = vperm.xlu0 %2330, %v1923
    %v2332 = vpop.permute.xlu0 %2331
    %v2335 = vunpack.c.l.s4 839922192
    %v2336 = vunpack.c.0.s8 %v2335
    %v2337 = vperm.slane %v2332, %v2336
    %2339 = vset.pattern.permute.xlu0 0
    %2340 = vperm.xlu0 %2339, %v1924
    %v2341 = vpop.permute.xlu0 %2340
    %v2344 = vunpack.c.l.s4 839922192
    %v2345 = vunpack.c.0.s8 %v2344
    %v2346 = vperm.slane %v2341, %v2345
    %2348 = vset.pattern.permute.xlu0 0
    %2349 = vperm.xlu0 %2348, %v1925
    %v2350 = vpop.permute.xlu0 %2349
    %v2353 = vunpack.c.l.s4 839922192
    %v2354 = vunpack.c.0.s8 %v2353
    %v2355 = vperm.slane %v2350, %v2354
    %2357 = vset.pattern.permute.xlu0 0
    %2358 = vperm.xlu0 %2357, %v1926
    %v2359 = vpop.permute.xlu0 %2358
    %v2362 = vunpack.c.l.s4 839922192
    %v2363 = vunpack.c.0.s8 %v2362
    %v2364 = vperm.slane %v2359, %v2363
    %2366 = vset.pattern.permute.xlu0 0
    %2367 = vperm.xlu0 %2366, %v1927
    %v2368 = vpop.permute.xlu0 %2367
    %v2371 = vunpack.c.l.s4 839922192
    %v2372 = vunpack.c.0.s8 %v2371
    %v2373 = vperm.slane %v2368, %v2372
    %2375 = vset.pattern.permute.xlu0 0
    %2376 = vperm.xlu0 %2375, %v1928
    %v2377 = vpop.permute.xlu0 %2376
    %v2380 = vunpack.c.l.s4 839922192
    %v2381 = vunpack.c.0.s8 %v2380
    %v2382 = vperm.slane %v2377, %v2381
    %2384 = vset.pattern.permute.xlu0 0
    %2385 = vperm.xlu0 %2384, %v1929
    %v2386 = vpop.permute.xlu0 %2385
    %v2389 = vunpack.c.l.s4 839922192
    %v2390 = vunpack.c.0.s8 %v2389
    %v2391 = vperm.slane %v2386, %v2390
    %2393 = vset.pattern.permute.xlu0 0
    %2394 = vperm.xlu0 %2393, %v1930
    %v2395 = vpop.permute.xlu0 %2394
    %v2398 = vunpack.c.l.s4 839922192
    %v2399 = vunpack.c.0.s8 %v2398
    %v2400 = vperm.slane %v2395, %v2399
    %2402 = vset.pattern.permute.xlu0 0
    %2403 = vperm.xlu0 %2402, %v1931
    %v2404 = vpop.permute.xlu0 %2403
    %v2407 = vunpack.c.l.s4 839922192
    %v2408 = vunpack.c.0.s8 %v2407
    %v2409 = vperm.slane %v2404, %v2408
    %2411 = vset.pattern.permute.xlu0 0
    %2412 = vperm.xlu0 %2411, %v1932
    %v2413 = vpop.permute.xlu0 %2412
    %v2416 = vunpack.c.l.s4 839922192
    %v2417 = vunpack.c.0.s8 %v2416
    %v2418 = vperm.slane %v2413, %v2417
    %2420 = vset.pattern.permute.xlu0 0
    %2421 = vperm.xlu0 %2420, %v1933
    %v2422 = vpop.permute.xlu0 %2421
    %v2425 = vunpack.c.l.s4 839922192
    %v2426 = vunpack.c.0.s8 %v2425
    %v2427 = vperm.slane %v2422, %v2426
    %2429 = vset.pattern.permute.xlu0 0
    %2430 = vperm.xlu0 %2429, %v1934
    %v2431 = vpop.permute.xlu0 %2430
    %v2434 = vunpack.c.l.s4 839922192
    %v2435 = vunpack.c.0.s8 %v2434
    %v2436 = vperm.slane %v2431, %v2435
    %2438 = vset.pattern.permute.xlu0 0
    %2439 = vperm.xlu0 %2438, %v1935
    %v2440 = vpop.permute.xlu0 %2439
    %v2443 = vunpack.c.l.s4 839922192
    %v2444 = vunpack.c.0.s8 %v2443
    %v2445 = vperm.slane %v2440, %v2444
    %2447 = vset.pattern.permute.xlu0 0
    %2448 = vperm.xlu0 %2447, %v1936
    %v2449 = vpop.permute.xlu0 %2448
    %v2452 = vunpack.c.l.s4 839922192
    %v2453 = vunpack.c.0.s8 %v2452
    %v2454 = vperm.slane %v2449, %v2453
    %2456 = vset.pattern.permute.xlu0 0
    %2457 = vperm.xlu0 %2456, %v1937
    %v2458 = vpop.permute.xlu0 %2457
    %v2461 = vunpack.c.l.s4 839922192
    %v2462 = vunpack.c.0.s8 %v2461
    %v2463 = vperm.slane %v2458, %v2462
    %2465 = vset.pattern.permute.xlu0 0
    %2466 = vperm.xlu0 %2465, %v1938
    %v2467 = vpop.permute.xlu0 %2466
    %v2470 = vunpack.c.l.s4 839922192
    %v2471 = vunpack.c.0.s8 %v2470
    %v2472 = vperm.slane %v2467, %v2471
    %2474 = vset.pattern.permute.xlu0 0
    %2475 = vperm.xlu0 %2474, %v1939
    %v2476 = vpop.permute.xlu0 %2475
    %v2479 = vunpack.c.l.s4 839922192
    %v2480 = vunpack.c.0.s8 %v2479
    %v2481 = vperm.slane %v2476, %v2480
    %2483 = vset.pattern.permute.xlu0 0
    %2484 = vperm.xlu0 %2483, %v1940
    %v2485 = vpop.permute.xlu0 %2484
    %v2488 = vunpack.c.l.s4 839922192
    %v2489 = vunpack.c.0.s8 %v2488
    %v2490 = vperm.slane %v2485, %v2489
    %2492 = vset.pattern.permute.xlu0 0
    %2493 = vperm.xlu0 %2492, %v1941
    %v2494 = vpop.permute.xlu0 %2493
    %v2497 = vunpack.c.l.s4 839922192
    %v2498 = vunpack.c.0.s8 %v2497
    %v2499 = vperm.slane %v2494, %v2498
    %v2500 = vunpack.c.l.bf16 %v1818
    %v2501 = vunpack.c.l.bf16 %v1819
    %v2502 = vunpack.c.l.bf16 %v1820
    %v2503 = vunpack.c.l.bf16 %v1821
    %v2504 = vunpack.c.l.bf16 %v1822
    %v2505 = vunpack.c.l.bf16 %v1823
    %v2506 = vunpack.c.l.bf16 %v1824
    %v2507 = vunpack.c.l.bf16 %v1825
    %v2508 = vunpack.c.l.bf16 %v1826
    %v2509 = vunpack.c.l.bf16 %v1827
    %v2510 = vunpack.c.l.bf16 %v1828
    %v2511 = vunpack.c.l.bf16 %v1829
    %v2512 = vunpack.c.l.bf16 %v1830
    %v2513 = vunpack.c.l.bf16 %v1831
    %v2514 = vunpack.c.l.bf16 %v1832
    %v2515 = vunpack.c.l.bf16 %v1833
    %v2516 = vunpack.c.l.bf16 %v1834
    %v2517 = vunpack.c.l.bf16 %v1835
    %v2518 = vunpack.c.l.bf16 %v1836
    %v2519 = vunpack.c.l.bf16 %v1837
    %v2520 = vunpack.c.l.bf16 %v1838
    %v2521 = vunpack.c.l.bf16 %v1839
    %v2522 = vunpack.c.l.bf16 %v1840
    %v2523 = vunpack.c.l.bf16 %v1841
    %v2524 = vunpack.c.l.bf16 %v1842
    %v2525 = vunpack.c.l.bf16 %v1843
    %v2526 = vunpack.c.l.bf16 %v1844
    %v2527 = vunpack.c.l.bf16 %v1845
    %v2528 = vunpack.c.l.bf16 %v1846
    %v2529 = vunpack.c.l.bf16 %v1847
    %v2530 = vunpack.c.l.bf16 %v1848
    %v2531 = vunpack.c.l.bf16 %v1849
    %v2532 = vunpack.c.l.bf16 %v1850
    %v2533 = vunpack.c.l.bf16 %v1851
    %v2534 = vunpack.c.l.bf16 %v1852
    %v2535 = vunpack.c.l.bf16 %v1853
    %v2536 = vunpack.c.l.bf16 %v1854
    %v2537 = vunpack.c.l.bf16 %v1855
    %v2538 = vunpack.c.l.bf16 %v1856
    %v2539 = vunpack.c.l.bf16 %v1857
    %v2540 = vunpack.c.l.bf16 %v1858
    %v2541 = vunpack.c.l.bf16 %v1859
    %v2542 = vunpack.c.l.bf16 %v1860
    %v2543 = vunpack.c.l.bf16 %v1861
    %v2544 = vunpack.c.l.bf16 %v1862
    %v2545 = vunpack.c.l.bf16 %v1863
    %v2546 = vunpack.c.l.bf16 %v1864
    %v2547 = vunpack.c.l.bf16 %v1865
    %v2548 = vunpack.c.l.bf16 %v1866
    %v2549 = vunpack.c.l.bf16 %v1867
    %v2550 = vunpack.c.l.bf16 %v1868
    %v2551 = vunpack.c.l.bf16 %v1869
    %v2552 = vunpack.c.l.bf16 %v1870
    %v2553 = vunpack.c.l.bf16 %v1871
    %v2554 = vunpack.c.l.bf16 %v1872
    %v2555 = vunpack.c.l.bf16 %v1873
    %v2556 = vunpack.c.l.bf16 %v1874
    %v2557 = vunpack.c.l.bf16 %v1875
    %v2558 = vunpack.c.l.bf16 %v1876
    %v2559 = vunpack.c.l.bf16 %v1877
    %v2560 = vunpack.c.l.bf16 %v1878
    %v2561 = vunpack.c.l.bf16 %v1879
    %v2562 = vunpack.c.l.bf16 %v1950
    %v2563 = vunpack.c.l.bf16 %v1959
    %v2564 = vunpack.c.l.bf16 %v1968
    %v2565 = vunpack.c.l.bf16 %v1977
    %v2566 = vunpack.c.l.bf16 %v1986
    %v2567 = vunpack.c.l.bf16 %v1995
    %v2568 = vunpack.c.l.bf16 %v2004
    %v2569 = vunpack.c.l.bf16 %v2013
    %v2570 = vunpack.c.l.bf16 %v2022
    %v2571 = vunpack.c.l.bf16 %v2031
    %v2572 = vunpack.c.l.bf16 %v2040
    %v2573 = vunpack.c.l.bf16 %v2049
    %v2574 = vunpack.c.l.bf16 %v2058
    %v2575 = vunpack.c.l.bf16 %v2067
    %v2576 = vunpack.c.l.bf16 %v2076
    %v2577 = vunpack.c.l.bf16 %v2085
    %v2578 = vunpack.c.l.bf16 %v2094
    %v2579 = vunpack.c.l.bf16 %v2103
    %v2580 = vunpack.c.l.bf16 %v2112
    %v2581 = vunpack.c.l.bf16 %v2121
    %v2582 = vunpack.c.l.bf16 %v2130
    %v2583 = vunpack.c.l.bf16 %v2139
    %v2584 = vunpack.c.l.bf16 %v2148
    %v2585 = vunpack.c.l.bf16 %v2157
    %v2586 = vunpack.c.l.bf16 %v2166
    %v2587 = vunpack.c.l.bf16 %v2175
    %v2588 = vunpack.c.l.bf16 %v2184
    %v2589 = vunpack.c.l.bf16 %v2193
    %v2590 = vunpack.c.l.bf16 %v2202
    %v2591 = vunpack.c.l.bf16 %v2211
    %v2592 = vunpack.c.l.bf16 %v2220
    %v2593 = vunpack.c.l.bf16 %v2229
    %v2594 = vunpack.c.l.bf16 %v2238
    %v2595 = vunpack.c.l.bf16 %v2247
    %v2596 = vunpack.c.l.bf16 %v2256
    %v2597 = vunpack.c.l.bf16 %v2265
    %v2598 = vunpack.c.l.bf16 %v2274
    %v2599 = vunpack.c.l.bf16 %v2283
    %v2600 = vunpack.c.l.bf16 %v2292
    %v2601 = vunpack.c.l.bf16 %v2301
    %v2602 = vunpack.c.l.bf16 %v2310
    %v2603 = vunpack.c.l.bf16 %v2319
    %v2604 = vunpack.c.l.bf16 %v2328
    %v2605 = vunpack.c.l.bf16 %v2337
    %v2606 = vunpack.c.l.bf16 %v2346
    %v2607 = vunpack.c.l.bf16 %v2355
    %v2608 = vunpack.c.l.bf16 %v2364
    %v2609 = vunpack.c.l.bf16 %v2373
    %v2610 = vunpack.c.l.bf16 %v2382
    %v2611 = vunpack.c.l.bf16 %v2391
    %v2612 = vunpack.c.l.bf16 %v2400
    %v2613 = vunpack.c.l.bf16 %v2409
    %v2614 = vunpack.c.l.bf16 %v2418
    %v2615 = vunpack.c.l.bf16 %v2427
    %v2616 = vunpack.c.l.bf16 %v2436
    %v2617 = vunpack.c.l.bf16 %v2445
    %v2618 = vunpack.c.l.bf16 %v2454
    %v2619 = vunpack.c.l.bf16 %v2463
    %v2620 = vunpack.c.l.bf16 %v2472
    %v2621 = vunpack.c.l.bf16 %v2481
    %v2622 = vunpack.c.l.bf16 %v2490
    %v2623 = vunpack.c.l.bf16 %v2499
    %v2624 = vadd.f32 %v2500, %v2562
    %v2625 = vadd.f32 %v2501, %v2563
    %v2626 = vadd.f32 %v2502, %v2564
    %v2627 = vadd.f32 %v2503, %v2565
    %v2628 = vadd.f32 %v2504, %v2566
    %v2629 = vadd.f32 %v2505, %v2567
    %v2630 = vadd.f32 %v2506, %v2568
    %v2631 = vadd.f32 %v2507, %v2569
    %v2632 = vadd.f32 %v2508, %v2570
    %v2633 = vadd.f32 %v2509, %v2571
    %v2634 = vadd.f32 %v2510, %v2572
    %v2635 = vadd.f32 %v2511, %v2573
    %v2636 = vadd.f32 %v2512, %v2574
    %v2637 = vadd.f32 %v2513, %v2575
    %v2638 = vadd.f32 %v2514, %v2576
    %v2639 = vadd.f32 %v2515, %v2577
    %v2640 = vadd.f32 %v2516, %v2578
    %v2641 = vadd.f32 %v2517, %v2579
    %v2642 = vadd.f32 %v2518, %v2580
    %v2643 = vadd.f32 %v2519, %v2581
    %v2644 = vadd.f32 %v2520, %v2582
    %v2645 = vadd.f32 %v2521, %v2583
    %v2646 = vadd.f32 %v2522, %v2584
    %v2647 = vadd.f32 %v2523, %v2585
    %v2648 = vadd.f32 %v2524, %v2586
    %v2649 = vadd.f32 %v2525, %v2587
    %v2650 = vadd.f32 %v2526, %v2588
    %v2651 = vadd.f32 %v2527, %v2589
    %v2652 = vadd.f32 %v2528, %v2590
    %v2653 = vadd.f32 %v2529, %v2591
    %v2654 = vadd.f32 %v2530, %v2592
    %v2655 = vadd.f32 %v2531, %v2593
    %v2656 = vadd.f32 %v2532, %v2594
    %v2657 = vadd.f32 %v2533, %v2595
    %v2658 = vadd.f32 %v2534, %v2596
    %v2659 = vadd.f32 %v2535, %v2597
    %v2660 = vadd.f32 %v2536, %v2598
    %v2661 = vadd.f32 %v2537, %v2599
    %v2662 = vadd.f32 %v2538, %v2600
    %v2663 = vadd.f32 %v2539, %v2601
    %v2664 = vadd.f32 %v2540, %v2602
    %v2665 = vadd.f32 %v2541, %v2603
    %v2666 = vadd.f32 %v2542, %v2604
    %v2667 = vadd.f32 %v2543, %v2605
    %v2668 = vadd.f32 %v2544, %v2606
    %v2669 = vadd.f32 %v2545, %v2607
    %v2670 = vadd.f32 %v2546, %v2608
    %v2671 = vadd.f32 %v2547, %v2609
    %v2672 = vadd.f32 %v2548, %v2610
    %v2673 = vadd.f32 %v2549, %v2611
    %v2674 = vadd.f32 %v2550, %v2612
    %v2675 = vadd.f32 %v2551, %v2613
    %v2676 = vadd.f32 %v2552, %v2614
    %v2677 = vadd.f32 %v2553, %v2615
    %v2678 = vadd.f32 %v2554, %v2616
    %v2679 = vadd.f32 %v2555, %v2617
    %v2680 = vadd.f32 %v2556, %v2618
    %v2681 = vadd.f32 %v2557, %v2619
    %v2682 = vadd.f32 %v2558, %v2620
    %v2683 = vadd.f32 %v2559, %v2621
    %v2684 = vadd.f32 %v2560, %v2622
    %v2685 = vadd.f32 %v2561, %v2623
    %v2686 = vpack.c.bf16 %v2624, %v2624
    %v2687 = vpack.c.bf16 %v2625, %v2625
    %v2688 = vpack.c.bf16 %v2626, %v2626
    %v2689 = vpack.c.bf16 %v2627, %v2627
    %v2690 = vpack.c.bf16 %v2628, %v2628
    %v2691 = vpack.c.bf16 %v2629, %v2629
    %v2692 = vpack.c.bf16 %v2630, %v2630
    %v2693 = vpack.c.bf16 %v2631, %v2631
    %v2694 = vpack.c.bf16 %v2632, %v2632
    %v2695 = vpack.c.bf16 %v2633, %v2633
    %v2696 = vpack.c.bf16 %v2634, %v2634
    %v2697 = vpack.c.bf16 %v2635, %v2635
    %v2698 = vpack.c.bf16 %v2636, %v2636
    %v2699 = vpack.c.bf16 %v2637, %v2637
    %v2700 = vpack.c.bf16 %v2638, %v2638
    %v2701 = vpack.c.bf16 %v2639, %v2639
    %v2702 = vpack.c.bf16 %v2640, %v2640
    %v2703 = vpack.c.bf16 %v2641, %v2641
    %v2704 = vpack.c.bf16 %v2642, %v2642
    %v2705 = vpack.c.bf16 %v2643, %v2643
    %v2706 = vpack.c.bf16 %v2644, %v2644
    %v2707 = vpack.c.bf16 %v2645, %v2645
    %v2708 = vpack.c.bf16 %v2646, %v2646
    %v2709 = vpack.c.bf16 %v2647, %v2647
    %v2710 = vpack.c.bf16 %v2648, %v2648
    %v2711 = vpack.c.bf16 %v2649, %v2649
    %v2712 = vpack.c.bf16 %v2650, %v2650
    %v2713 = vpack.c.bf16 %v2651, %v2651
    %v2714 = vpack.c.bf16 %v2652, %v2652
    %v2715 = vpack.c.bf16 %v2653, %v2653
    %v2716 = vpack.c.bf16 %v2654, %v2654
    %v2717 = vpack.c.bf16 %v2655, %v2655
    %v2718 = vpack.c.bf16 %v2656, %v2656
    %v2719 = vpack.c.bf16 %v2657, %v2657
    %v2720 = vpack.c.bf16 %v2658, %v2658
    %v2721 = vpack.c.bf16 %v2659, %v2659
    %v2722 = vpack.c.bf16 %v2660, %v2660
    %v2723 = vpack.c.bf16 %v2661, %v2661
    %v2724 = vpack.c.bf16 %v2662, %v2662
    %v2725 = vpack.c.bf16 %v2663, %v2663
    %v2726 = vpack.c.bf16 %v2664, %v2664
    %v2727 = vpack.c.bf16 %v2665, %v2665
    %v2728 = vpack.c.bf16 %v2666, %v2666
    %v2729 = vpack.c.bf16 %v2667, %v2667
    %v2730 = vpack.c.bf16 %v2668, %v2668
    %v2731 = vpack.c.bf16 %v2669, %v2669
    %v2732 = vpack.c.bf16 %v2670, %v2670
    %v2733 = vpack.c.bf16 %v2671, %v2671
    %v2734 = vpack.c.bf16 %v2672, %v2672
    %v2735 = vpack.c.bf16 %v2673, %v2673
    %v2736 = vpack.c.bf16 %v2674, %v2674
    %v2737 = vpack.c.bf16 %v2675, %v2675
    %v2738 = vpack.c.bf16 %v2676, %v2676
    %v2739 = vpack.c.bf16 %v2677, %v2677
    %v2740 = vpack.c.bf16 %v2678, %v2678
    %v2741 = vpack.c.bf16 %v2679, %v2679
    %v2742 = vpack.c.bf16 %v2680, %v2680
    %v2743 = vpack.c.bf16 %v2681, %v2681
    %v2744 = vpack.c.bf16 %v2682, %v2682
    %v2745 = vpack.c.bf16 %v2683, %v2683
    %v2746 = vpack.c.bf16 %v2684, %v2684
    %v2747 = vpack.c.bf16 %v2685, %v2685
    %v2748 = vunpack.c.l.bf16 %v2686
    %v2749 = vunpack.c.l.bf16 %v2687
    %v2750 = vunpack.c.l.bf16 %v2688
    %v2751 = vunpack.c.l.bf16 %v2689
    %v2752 = vunpack.c.l.bf16 %v2690
    %v2753 = vunpack.c.l.bf16 %v2691
    %v2754 = vunpack.c.l.bf16 %v2692
    %v2755 = vunpack.c.l.bf16 %v2693
    %v2756 = vunpack.c.l.bf16 %v2694
    %v2757 = vunpack.c.l.bf16 %v2695
    %v2758 = vunpack.c.l.bf16 %v2696
    %v2759 = vunpack.c.l.bf16 %v2697
    %v2760 = vunpack.c.l.bf16 %v2698
    %v2761 = vunpack.c.l.bf16 %v2699
    %v2762 = vunpack.c.l.bf16 %v2700
    %v2763 = vunpack.c.l.bf16 %v2701
    %v2764 = vunpack.c.l.bf16 %v2702
    %v2765 = vunpack.c.l.bf16 %v2703
    %v2766 = vunpack.c.l.bf16 %v2704
    %v2767 = vunpack.c.l.bf16 %v2705
    %v2768 = vunpack.c.l.bf16 %v2706
    %v2769 = vunpack.c.l.bf16 %v2707
    %v2770 = vunpack.c.l.bf16 %v2708
    %v2771 = vunpack.c.l.bf16 %v2709
    %v2772 = vunpack.c.l.bf16 %v2710
    %v2773 = vunpack.c.l.bf16 %v2711
    %v2774 = vunpack.c.l.bf16 %v2712
    %v2775 = vunpack.c.l.bf16 %v2713
    %v2776 = vunpack.c.l.bf16 %v2714
    %v2777 = vunpack.c.l.bf16 %v2715
    %v2778 = vunpack.c.l.bf16 %v2716
    %v2779 = vunpack.c.l.bf16 %v2717
    %v2780 = vunpack.c.l.bf16 %v2718
    %v2781 = vunpack.c.l.bf16 %v2719
    %v2782 = vunpack.c.l.bf16 %v2720
    %v2783 = vunpack.c.l.bf16 %v2721
    %v2784 = vunpack.c.l.bf16 %v2722
    %v2785 = vunpack.c.l.bf16 %v2723
    %v2786 = vunpack.c.l.bf16 %v2724
    %v2787 = vunpack.c.l.bf16 %v2725
    %v2788 = vunpack.c.l.bf16 %v2726
    %v2789 = vunpack.c.l.bf16 %v2727
    %v2790 = vunpack.c.l.bf16 %v2728
    %v2791 = vunpack.c.l.bf16 %v2729
    %v2792 = vunpack.c.l.bf16 %v2730
    %v2793 = vunpack.c.l.bf16 %v2731
    %v2794 = vunpack.c.l.bf16 %v2732
    %v2795 = vunpack.c.l.bf16 %v2733
    %v2796 = vunpack.c.l.bf16 %v2734
    %v2797 = vunpack.c.l.bf16 %v2735
    %v2798 = vunpack.c.l.bf16 %v2736
    %v2799 = vunpack.c.l.bf16 %v2737
    %v2800 = vunpack.c.l.bf16 %v2738
    %v2801 = vunpack.c.l.bf16 %v2739
    %v2802 = vunpack.c.l.bf16 %v2740
    %v2803 = vunpack.c.l.bf16 %v2741
    %v2804 = vunpack.c.l.bf16 %v2742
    %v2805 = vunpack.c.l.bf16 %v2743
    %v2806 = vunpack.c.l.bf16 %v2744
    %v2807 = vunpack.c.l.bf16 %v2745
    %v2808 = vunpack.c.l.bf16 %v2746
    %v2809 = vunpack.c.l.bf16 %v2747
    %vm2810 = vcmp.gt.f32.partialorder %v2748, 0.0
    %vm2811 = vcmp.gt.f32.partialorder %v2749, 0.0
    %vm2812 = vcmp.gt.f32.partialorder %v2750, 0.0
    %vm2813 = vcmp.gt.f32.partialorder %v2751, 0.0
    %vm2814 = vcmp.gt.f32.partialorder %v2752, 0.0
    %vm2815 = vcmp.gt.f32.partialorder %v2753, 0.0
    %vm2816 = vcmp.gt.f32.partialorder %v2754, 0.0
    %vm2817 = vcmp.gt.f32.partialorder %v2755, 0.0
    %vm2818 = vcmp.gt.f32.partialorder %v2756, 0.0
    %vm2819 = vcmp.gt.f32.partialorder %v2757, 0.0
    %vm2820 = vcmp.gt.f32.partialorder %v2758, 0.0
    %vm2821 = vcmp.gt.f32.partialorder %v2759, 0.0
    %vm2822 = vcmp.gt.f32.partialorder %v2760, 0.0
    %vm2823 = vcmp.gt.f32.partialorder %v2761, 0.0
    %vm2824 = vcmp.gt.f32.partialorder %v2762, 0.0
    %vm2825 = vcmp.gt.f32.partialorder %v2763, 0.0
    %vm2826 = vcmp.gt.f32.partialorder %v2764, 0.0
    %vm2827 = vcmp.gt.f32.partialorder %v2765, 0.0
    %vm2828 = vcmp.gt.f32.partialorder %v2766, 0.0
    %vm2829 = vcmp.gt.f32.partialorder %v2767, 0.0
    %vm2830 = vcmp.gt.f32.partialorder %v2768, 0.0
    %vm2831 = vcmp.gt.f32.partialorder %v2769, 0.0
    %vm2832 = vcmp.gt.f32.partialorder %v2770, 0.0
    %vm2833 = vcmp.gt.f32.partialorder %v2771, 0.0
    %vm2834 = vcmp.gt.f32.partialorder %v2772, 0.0
    %vm2835 = vcmp.gt.f32.partialorder %v2773, 0.0
    %vm2836 = vcmp.gt.f32.partialorder %v2774, 0.0
    %vm2837 = vcmp.gt.f32.partialorder %v2775, 0.0
    %vm2838 = vcmp.gt.f32.partialorder %v2776, 0.0
    %vm2839 = vcmp.gt.f32.partialorder %v2777, 0.0
    %vm2840 = vcmp.gt.f32.partialorder %v2778, 0.0
    %vm2841 = vcmp.gt.f32.partialorder %v2779, 0.0
    %vm2842 = vcmp.gt.f32.partialorder %v2780, 0.0
    %vm2843 = vcmp.gt.f32.partialorder %v2781, 0.0
    %vm2844 = vcmp.gt.f32.partialorder %v2782, 0.0
    %vm2845 = vcmp.gt.f32.partialorder %v2783, 0.0
    %vm2846 = vcmp.gt.f32.partialorder %v2784, 0.0
    %vm2847 = vcmp.gt.f32.partialorder %v2785, 0.0
    %vm2848 = vcmp.gt.f32.partialorder %v2786, 0.0
    %vm2849 = vcmp.gt.f32.partialorder %v2787, 0.0
    %vm2850 = vcmp.gt.f32.partialorder %v2788, 0.0
    %vm2851 = vcmp.gt.f32.partialorder %v2789, 0.0
    %vm2852 = vcmp.gt.f32.partialorder %v2790, 0.0
    %vm2853 = vcmp.gt.f32.partialorder %v2791, 0.0
    %vm2854 = vcmp.gt.f32.partialorder %v2792, 0.0
    %vm2855 = vcmp.gt.f32.partialorder %v2793, 0.0
    %vm2856 = vcmp.gt.f32.partialorder %v2794, 0.0
    %vm2857 = vcmp.gt.f32.partialorder %v2795, 0.0
    %vm2858 = vcmp.gt.f32.partialorder %v2796, 0.0
    %vm2859 = vcmp.gt.f32.partialorder %v2797, 0.0
    %vm2860 = vcmp.gt.f32.partialorder %v2798, 0.0
    %vm2861 = vcmp.gt.f32.partialorder %v2799, 0.0
    %vm2862 = vcmp.gt.f32.partialorder %v2800, 0.0
    %vm2863 = vcmp.gt.f32.partialorder %v2801, 0.0
    %vm2864 = vcmp.gt.f32.partialorder %v2802, 0.0
    %vm2865 = vcmp.gt.f32.partialorder %v2803, 0.0
    %vm2866 = vcmp.gt.f32.partialorder %v2804, 0.0
    %vm2867 = vcmp.gt.f32.partialorder %v2805, 0.0
    %vm2868 = vcmp.gt.f32.partialorder %v2806, 0.0
    %vm2869 = vcmp.gt.f32.partialorder %v2807, 0.0
    %vm2870 = vcmp.gt.f32.partialorder %v2808, 0.0
    %vm2871 = vcmp.gt.f32.partialorder %v2809, 0.0
    %v2872 = vmin.f32 %v2748, 0.0
    %v2873 = vmin.f32 %v2749, 0.0
    %v2874 = vmin.f32 %v2750, 0.0
    %v2875 = vmin.f32 %v2751, 0.0
    %v2876 = vmin.f32 %v2752, 0.0
    %v2877 = vmin.f32 %v2753, 0.0
    %v2878 = vmin.f32 %v2754, 0.0
    %v2879 = vmin.f32 %v2755, 0.0
    %v2880 = vmin.f32 %v2756, 0.0
    %v2881 = vmin.f32 %v2757, 0.0
    %v2882 = vmin.f32 %v2758, 0.0
    %v2883 = vmin.f32 %v2759, 0.0
    %v2884 = vmin.f32 %v2760, 0.0
    %v2885 = vmin.f32 %v2761, 0.0
    %v2886 = vmin.f32 %v2762, 0.0
    %v2887 = vmin.f32 %v2763, 0.0
    %v2888 = vmin.f32 %v2764, 0.0
    %v2889 = vmin.f32 %v2765, 0.0
    %v2890 = vmin.f32 %v2766, 0.0
    %v2891 = vmin.f32 %v2767, 0.0
    %v2892 = vmin.f32 %v2768, 0.0
    %v2893 = vmin.f32 %v2769, 0.0
    %v2894 = vmin.f32 %v2770, 0.0
    %v2895 = vmin.f32 %v2771, 0.0
    %v2896 = vmin.f32 %v2772, 0.0
    %v2897 = vmin.f32 %v2773, 0.0
    %v2898 = vmin.f32 %v2774, 0.0
    %v2899 = vmin.f32 %v2775, 0.0
    %v2900 = vmin.f32 %v2776, 0.0
    %v2901 = vmin.f32 %v2777, 0.0
    %v2902 = vmin.f32 %v2778, 0.0
    %v2903 = vmin.f32 %v2779, 0.0
    %v2904 = vmin.f32 %v2780, 0.0
    %v2905 = vmin.f32 %v2781, 0.0
    %v2906 = vmin.f32 %v2782, 0.0
    %v2907 = vmin.f32 %v2783, 0.0
    %v2908 = vmin.f32 %v2784, 0.0
    %v2909 = vmin.f32 %v2785, 0.0
    %v2910 = vmin.f32 %v2786, 0.0
    %v2911 = vmin.f32 %v2787, 0.0
    %v2912 = vmin.f32 %v2788, 0.0
    %v2913 = vmin.f32 %v2789, 0.0
    %v2914 = vmin.f32 %v2790, 0.0
    %v2915 = vmin.f32 %v2791, 0.0
    %v2916 = vmin.f32 %v2792, 0.0
    %v2917 = vmin.f32 %v2793, 0.0
    %v2918 = vmin.f32 %v2794, 0.0
    %v2919 = vmin.f32 %v2795, 0.0
    %v2920 = vmin.f32 %v2796, 0.0
    %v2921 = vmin.f32 %v2797, 0.0
    %v2922 = vmin.f32 %v2798, 0.0
    %v2923 = vmin.f32 %v2799, 0.0
    %v2924 = vmin.f32 %v2800, 0.0
    %v2925 = vmin.f32 %v2801, 0.0
    %v2926 = vmin.f32 %v2802, 0.0
    %v2927 = vmin.f32 %v2803, 0.0
    %v2928 = vmin.f32 %v2804, 0.0
    %v2929 = vmin.f32 %v2805, 0.0
    %v2930 = vmin.f32 %v2806, 0.0
    %v2931 = vmin.f32 %v2807, 0.0
    %v2932 = vmin.f32 %v2808, 0.0
    %v2933 = vmin.f32 %v2809, 0.0
    %v2934 = vpack.c.bf16 %v2872, %v2872
    %v2935 = vpack.c.bf16 %v2873, %v2873
    %v2936 = vpack.c.bf16 %v2874, %v2874
    %v2937 = vpack.c.bf16 %v2875, %v2875
    %v2938 = vpack.c.bf16 %v2876, %v2876
    %v2939 = vpack.c.bf16 %v2877, %v2877
    %v2940 = vpack.c.bf16 %v2878, %v2878
    %v2941 = vpack.c.bf16 %v2879, %v2879
    %v2942 = vpack.c.bf16 %v2880, %v2880
    %v2943 = vpack.c.bf16 %v2881, %v2881
    %v2944 = vpack.c.bf16 %v2882, %v2882
    %v2945 = vpack.c.bf16 %v2883, %v2883
    %v2946 = vpack.c.bf16 %v2884, %v2884
    %v2947 = vpack.c.bf16 %v2885, %v2885
    %v2948 = vpack.c.bf16 %v2886, %v2886
    %v2949 = vpack.c.bf16 %v2887, %v2887
    %v2950 = vpack.c.bf16 %v2888, %v2888
    %v2951 = vpack.c.bf16 %v2889, %v2889
    %v2952 = vpack.c.bf16 %v2890, %v2890
    %v2953 = vpack.c.bf16 %v2891, %v2891
    %v2954 = vpack.c.bf16 %v2892, %v2892
    %v2955 = vpack.c.bf16 %v2893, %v2893
    %v2956 = vpack.c.bf16 %v2894, %v2894
    %v2957 = vpack.c.bf16 %v2895, %v2895
    %v2958 = vpack.c.bf16 %v2896, %v2896
    %v2959 = vpack.c.bf16 %v2897, %v2897
    %v2960 = vpack.c.bf16 %v2898, %v2898
    %v2961 = vpack.c.bf16 %v2899, %v2899
    %v2962 = vpack.c.bf16 %v2900, %v2900
    %v2963 = vpack.c.bf16 %v2901, %v2901
    %v2964 = vpack.c.bf16 %v2902, %v2902
    %v2965 = vpack.c.bf16 %v2903, %v2903
    %v2966 = vpack.c.bf16 %v2904, %v2904
    %v2967 = vpack.c.bf16 %v2905, %v2905
    %v2968 = vpack.c.bf16 %v2906, %v2906
    %v2969 = vpack.c.bf16 %v2907, %v2907
    %v2970 = vpack.c.bf16 %v2908, %v2908
    %v2971 = vpack.c.bf16 %v2909, %v2909
    %v2972 = vpack.c.bf16 %v2910, %v2910
    %v2973 = vpack.c.bf16 %v2911, %v2911
    %v2974 = vpack.c.bf16 %v2912, %v2912
    %v2975 = vpack.c.bf16 %v2913, %v2913
    %v2976 = vpack.c.bf16 %v2914, %v2914
    %v2977 = vpack.c.bf16 %v2915, %v2915
    %v2978 = vpack.c.bf16 %v2916, %v2916
    %v2979 = vpack.c.bf16 %v2917, %v2917
    %v2980 = vpack.c.bf16 %v2918, %v2918
    %v2981 = vpack.c.bf16 %v2919, %v2919
    %v2982 = vpack.c.bf16 %v2920, %v2920
    %v2983 = vpack.c.bf16 %v2921, %v2921
    %v2984 = vpack.c.bf16 %v2922, %v2922
    %v2985 = vpack.c.bf16 %v2923, %v2923
    %v2986 = vpack.c.bf16 %v2924, %v2924
    %v2987 = vpack.c.bf16 %v2925, %v2925
    %v2988 = vpack.c.bf16 %v2926, %v2926
    %v2989 = vpack.c.bf16 %v2927, %v2927
    %v2990 = vpack.c.bf16 %v2928, %v2928
    %v2991 = vpack.c.bf16 %v2929, %v2929
    %v2992 = vpack.c.bf16 %v2930, %v2930
    %v2993 = vpack.c.bf16 %v2931, %v2931
    %v2994 = vpack.c.bf16 %v2932, %v2932
    %v2995 = vpack.c.bf16 %v2933, %v2933
    %v2996 = vunpack.c.l.bf16 %v2934
    %v2997 = vunpack.c.l.bf16 %v2935
    %v2998 = vunpack.c.l.bf16 %v2936
    %v2999 = vunpack.c.l.bf16 %v2937
    %v3000 = vunpack.c.l.bf16 %v2938
    %v3001 = vunpack.c.l.bf16 %v2939
    %v3002 = vunpack.c.l.bf16 %v2940
    %v3003 = vunpack.c.l.bf16 %v2941
    %v3004 = vunpack.c.l.bf16 %v2942
    %v3005 = vunpack.c.l.bf16 %v2943
    %v3006 = vunpack.c.l.bf16 %v2944
    %v3007 = vunpack.c.l.bf16 %v2945
    %v3008 = vunpack.c.l.bf16 %v2946
    %v3009 = vunpack.c.l.bf16 %v2947
    %v3010 = vunpack.c.l.bf16 %v2948
    %v3011 = vunpack.c.l.bf16 %v2949
    %v3012 = vunpack.c.l.bf16 %v2950
    %v3013 = vunpack.c.l.bf16 %v2951
    %v3014 = vunpack.c.l.bf16 %v2952
    %v3015 = vunpack.c.l.bf16 %v2953
    %v3016 = vunpack.c.l.bf16 %v2954
    %v3017 = vunpack.c.l.bf16 %v2955
    %v3018 = vunpack.c.l.bf16 %v2956
    %v3019 = vunpack.c.l.bf16 %v2957
    %v3020 = vunpack.c.l.bf16 %v2958
    %v3021 = vunpack.c.l.bf16 %v2959
    %v3022 = vunpack.c.l.bf16 %v2960
    %v3023 = vunpack.c.l.bf16 %v2961
    %v3024 = vunpack.c.l.bf16 %v2962
    %v3025 = vunpack.c.l.bf16 %v2963
    %v3026 = vunpack.c.l.bf16 %v2964
    %v3027 = vunpack.c.l.bf16 %v2965
    %v3028 = vunpack.c.l.bf16 %v2966
    %v3029 = vunpack.c.l.bf16 %v2967
    %v3030 = vunpack.c.l.bf16 %v2968
    %v3031 = vunpack.c.l.bf16 %v2969
    %v3032 = vunpack.c.l.bf16 %v2970
    %v3033 = vunpack.c.l.bf16 %v2971
    %v3034 = vunpack.c.l.bf16 %v2972
    %v3035 = vunpack.c.l.bf16 %v2973
    %v3036 = vunpack.c.l.bf16 %v2974
    %v3037 = vunpack.c.l.bf16 %v2975
    %v3038 = vunpack.c.l.bf16 %v2976
    %v3039 = vunpack.c.l.bf16 %v2977
    %v3040 = vunpack.c.l.bf16 %v2978
    %v3041 = vunpack.c.l.bf16 %v2979
    %v3042 = vunpack.c.l.bf16 %v2980
    %v3043 = vunpack.c.l.bf16 %v2981
    %v3044 = vunpack.c.l.bf16 %v2982
    %v3045 = vunpack.c.l.bf16 %v2983
    %v3046 = vunpack.c.l.bf16 %v2984
    %v3047 = vunpack.c.l.bf16 %v2985
    %v3048 = vunpack.c.l.bf16 %v2986
    %v3049 = vunpack.c.l.bf16 %v2987
    %v3050 = vunpack.c.l.bf16 %v2988
    %v3051 = vunpack.c.l.bf16 %v2989
    %v3052 = vunpack.c.l.bf16 %v2990
    %v3053 = vunpack.c.l.bf16 %v2991
    %v3054 = vunpack.c.l.bf16 %v2992
    %v3055 = vunpack.c.l.bf16 %v2993
    %v3056 = vunpack.c.l.bf16 %v2994
    %v3057 = vunpack.c.l.bf16 %v2995
    %v3058 = vmul.f32 %v2996, 1.442695
    %v3059 = vpow.pop %v3058
    %v3060 = vmul.f32 %v2997, 1.442695
    %v3061 = vpow.pop %v3060
    %v3062 = vmul.f32 %v2998, 1.442695
    %v3063 = vpow.pop %v3062
    %v3064 = vmul.f32 %v2999, 1.442695
    %v3065 = vpow.pop %v3064
    %v3066 = vmul.f32 %v3000, 1.442695
    %v3067 = vpow.pop %v3066
    %v3068 = vmul.f32 %v3001, 1.442695
    %v3069 = vpow.pop %v3068
    %v3070 = vmul.f32 %v3002, 1.442695
    %v3071 = vpow.pop %v3070
    %v3072 = vmul.f32 %v3003, 1.442695
    %v3073 = vpow.pop %v3072
    %v3074 = vmul.f32 %v3004, 1.442695
    %v3075 = vpow.pop %v3074
    %v3076 = vmul.f32 %v3005, 1.442695
    %v3077 = vpow.pop %v3076
    %v3078 = vmul.f32 %v3006, 1.442695
    %v3079 = vpow.pop %v3078
    %v3080 = vmul.f32 %v3007, 1.442695
    %v3081 = vpow.pop %v3080
    %v3082 = vmul.f32 %v3008, 1.442695
    %v3083 = vpow.pop %v3082
    %v3084 = vmul.f32 %v3009, 1.442695
    %v3085 = vpow.pop %v3084
    %v3086 = vmul.f32 %v3010, 1.442695
    %v3087 = vpow.pop %v3086
    %v3088 = vmul.f32 %v3011, 1.442695
    %v3089 = vpow.pop %v3088
    %v3090 = vmul.f32 %v3012, 1.442695
    %v3091 = vpow.pop %v3090
    %v3092 = vmul.f32 %v3013, 1.442695
    %v3093 = vpow.pop %v3092
    %v3094 = vmul.f32 %v3014, 1.442695
    %v3095 = vpow.pop %v3094
    %v3096 = vmul.f32 %v3015, 1.442695
    %v3097 = vpow.pop %v3096
    %v3098 = vmul.f32 %v3016, 1.442695
    %v3099 = vpow.pop %v3098
    %v3100 = vmul.f32 %v3017, 1.442695
    %v3101 = vpow.pop %v3100
    %v3102 = vmul.f32 %v3018, 1.442695
    %v3103 = vpow.pop %v3102
    %v3104 = vmul.f32 %v3019, 1.442695
    %v3105 = vpow.pop %v3104
    %v3106 = vmul.f32 %v3020, 1.442695
    %v3107 = vpow.pop %v3106
    %v3108 = vmul.f32 %v3021, 1.442695
    %v3109 = vpow.pop %v3108
    %v3110 = vmul.f32 %v3022, 1.442695
    %v3111 = vpow.pop %v3110
    %v3112 = vmul.f32 %v3023, 1.442695
    %v3113 = vpow.pop %v3112
    %v3114 = vmul.f32 %v3024, 1.442695
    %v3115 = vpow.pop %v3114
    %v3116 = vmul.f32 %v3025, 1.442695
    %v3117 = vpow.pop %v3116
    %v3118 = vmul.f32 %v3026, 1.442695
    %v3119 = vpow.pop %v3118
    %v3120 = vmul.f32 %v3027, 1.442695
    %v3121 = vpow.pop %v3120
    %v3122 = vmul.f32 %v3028, 1.442695
    %v3123 = vpow.pop %v3122
    %v3124 = vmul.f32 %v3029, 1.442695
    %v3125 = vpow.pop %v3124
    %v3126 = vmul.f32 %v3030, 1.442695
    %v3127 = vpow.pop %v3126
    %v3128 = vmul.f32 %v3031, 1.442695
    %v3129 = vpow.pop %v3128
    %v3130 = vmul.f32 %v3032, 1.442695
    %v3131 = vpow.pop %v3130
    %v3132 = vmul.f32 %v3033, 1.442695
    %v3133 = vpow.pop %v3132
    %v3134 = vmul.f32 %v3034, 1.442695
    %v3135 = vpow.pop %v3134
    %v3136 = vmul.f32 %v3035, 1.442695
    %v3137 = vpow.pop %v3136
    %v3138 = vmul.f32 %v3036, 1.442695
    %v3139 = vpow.pop %v3138
    %v3140 = vmul.f32 %v3037, 1.442695
    %v3141 = vpow.pop %v3140
    %v3142 = vmul.f32 %v3038, 1.442695
    %v3143 = vpow.pop %v3142
    %v3144 = vmul.f32 %v3039, 1.442695
    %v3145 = vpow.pop %v3144
    %v3146 = vmul.f32 %v3040, 1.442695
    %v3147 = vpow.pop %v3146
    %v3148 = vmul.f32 %v3041, 1.442695
    %v3149 = vpow.pop %v3148
    %v3150 = vmul.f32 %v3042, 1.442695
    %v3151 = vpow.pop %v3150
    %v3152 = vmul.f32 %v3043, 1.442695
    %v3153 = vpow.pop %v3152
    %v3154 = vmul.f32 %v3044, 1.442695
    %v3155 = vpow.pop %v3154
    %v3156 = vmul.f32 %v3045, 1.442695
    %v3157 = vpow.pop %v3156
    %v3158 = vmul.f32 %v3046, 1.442695
    %v3159 = vpow.pop %v3158
    %v3160 = vmul.f32 %v3047, 1.442695
    %v3161 = vpow.pop %v3160
    %v3162 = vmul.f32 %v3048, 1.442695
    %v3163 = vpow.pop %v3162
    %v3164 = vmul.f32 %v3049, 1.442695
    %v3165 = vpow.pop %v3164
    %v3166 = vmul.f32 %v3050, 1.442695
    %v3167 = vpow.pop %v3166
    %v3168 = vmul.f32 %v3051, 1.442695
    %v3169 = vpow.pop %v3168
    %v3170 = vmul.f32 %v3052, 1.442695
    %v3171 = vpow.pop %v3170
    %v3172 = vmul.f32 %v3053, 1.442695
    %v3173 = vpow.pop %v3172
    %v3174 = vmul.f32 %v3054, 1.442695
    %v3175 = vpow.pop %v3174
    %v3176 = vmul.f32 %v3055, 1.442695
    %v3177 = vpow.pop %v3176
    %v3178 = vmul.f32 %v3056, 1.442695
    %v3179 = vpow.pop %v3178
    %v3180 = vmul.f32 %v3057, 1.442695
    %v3181 = vpow.pop %v3180
    %v3182 = vpack.c.bf16 %v3059, %v3059
    %v3183 = vpack.c.bf16 %v3061, %v3061
    %v3184 = vpack.c.bf16 %v3063, %v3063
    %v3185 = vpack.c.bf16 %v3065, %v3065
    %v3186 = vpack.c.bf16 %v3067, %v3067
    %v3187 = vpack.c.bf16 %v3069, %v3069
    %v3188 = vpack.c.bf16 %v3071, %v3071
    %v3189 = vpack.c.bf16 %v3073, %v3073
    %v3190 = vpack.c.bf16 %v3075, %v3075
    %v3191 = vpack.c.bf16 %v3077, %v3077
    %v3192 = vpack.c.bf16 %v3079, %v3079
    %v3193 = vpack.c.bf16 %v3081, %v3081
    %v3194 = vpack.c.bf16 %v3083, %v3083
    %v3195 = vpack.c.bf16 %v3085, %v3085
    %v3196 = vpack.c.bf16 %v3087, %v3087
    %v3197 = vpack.c.bf16 %v3089, %v3089
    %v3198 = vpack.c.bf16 %v3091, %v3091
    %v3199 = vpack.c.bf16 %v3093, %v3093
    %v3200 = vpack.c.bf16 %v3095, %v3095
    %v3201 = vpack.c.bf16 %v3097, %v3097
    %v3202 = vpack.c.bf16 %v3099, %v3099
    %v3203 = vpack.c.bf16 %v3101, %v3101
    %v3204 = vpack.c.bf16 %v3103, %v3103
    %v3205 = vpack.c.bf16 %v3105, %v3105
    %v3206 = vpack.c.bf16 %v3107, %v3107
    %v3207 = vpack.c.bf16 %v3109, %v3109
    %v3208 = vpack.c.bf16 %v3111, %v3111
    %v3209 = vpack.c.bf16 %v3113, %v3113
    %v3210 = vpack.c.bf16 %v3115, %v3115
    %v3211 = vpack.c.bf16 %v3117, %v3117
    %v3212 = vpack.c.bf16 %v3119, %v3119
    %v3213 = vpack.c.bf16 %v3121, %v3121
    %v3214 = vpack.c.bf16 %v3123, %v3123
    %v3215 = vpack.c.bf16 %v3125, %v3125
    %v3216 = vpack.c.bf16 %v3127, %v3127
    %v3217 = vpack.c.bf16 %v3129, %v3129
    %v3218 = vpack.c.bf16 %v3131, %v3131
    %v3219 = vpack.c.bf16 %v3133, %v3133
    %v3220 = vpack.c.bf16 %v3135, %v3135
    %v3221 = vpack.c.bf16 %v3137, %v3137
    %v3222 = vpack.c.bf16 %v3139, %v3139
    %v3223 = vpack.c.bf16 %v3141, %v3141
    %v3224 = vpack.c.bf16 %v3143, %v3143
    %v3225 = vpack.c.bf16 %v3145, %v3145
    %v3226 = vpack.c.bf16 %v3147, %v3147
    %v3227 = vpack.c.bf16 %v3149, %v3149
    %v3228 = vpack.c.bf16 %v3151, %v3151
    %v3229 = vpack.c.bf16 %v3153, %v3153
    %v3230 = vpack.c.bf16 %v3155, %v3155
    %v3231 = vpack.c.bf16 %v3157, %v3157
    %v3232 = vpack.c.bf16 %v3159, %v3159
    %v3233 = vpack.c.bf16 %v3161, %v3161
    %v3234 = vpack.c.bf16 %v3163, %v3163
    %v3235 = vpack.c.bf16 %v3165, %v3165
    %v3236 = vpack.c.bf16 %v3167, %v3167
    %v3237 = vpack.c.bf16 %v3169, %v3169
    %v3238 = vpack.c.bf16 %v3171, %v3171
    %v3239 = vpack.c.bf16 %v3173, %v3173
    %v3240 = vpack.c.bf16 %v3175, %v3175
    %v3241 = vpack.c.bf16 %v3177, %v3177
    %v3242 = vpack.c.bf16 %v3179, %v3179
    %v3243 = vpack.c.bf16 %v3181, %v3181
    %v3244 = vunpack.c.l.bf16 %v3182
    %v3245 = vunpack.c.l.bf16 %v3183
    %v3246 = vunpack.c.l.bf16 %v3184
    %v3247 = vunpack.c.l.bf16 %v3185
    %v3248 = vunpack.c.l.bf16 %v3186
    %v3249 = vunpack.c.l.bf16 %v3187
    %v3250 = vunpack.c.l.bf16 %v3188
    %v3251 = vunpack.c.l.bf16 %v3189
    %v3252 = vunpack.c.l.bf16 %v3190
    %v3253 = vunpack.c.l.bf16 %v3191
    %v3254 = vunpack.c.l.bf16 %v3192
    %v3255 = vunpack.c.l.bf16 %v3193
    %v3256 = vunpack.c.l.bf16 %v3194
    %v3257 = vunpack.c.l.bf16 %v3195
    %v3258 = vunpack.c.l.bf16 %v3196
    %v3259 = vunpack.c.l.bf16 %v3197
    %v3260 = vunpack.c.l.bf16 %v3198
    %v3261 = vunpack.c.l.bf16 %v3199
    %v3262 = vunpack.c.l.bf16 %v3200
    %v3263 = vunpack.c.l.bf16 %v3201
    %v3264 = vunpack.c.l.bf16 %v3202
    %v3265 = vunpack.c.l.bf16 %v3203
    %v3266 = vunpack.c.l.bf16 %v3204
    %v3267 = vunpack.c.l.bf16 %v3205
    %v3268 = vunpack.c.l.bf16 %v3206
    %v3269 = vunpack.c.l.bf16 %v3207
    %v3270 = vunpack.c.l.bf16 %v3208
    %v3271 = vunpack.c.l.bf16 %v3209
    %v3272 = vunpack.c.l.bf16 %v3210
    %v3273 = vunpack.c.l.bf16 %v3211
    %v3274 = vunpack.c.l.bf16 %v3212
    %v3275 = vunpack.c.l.bf16 %v3213
    %v3276 = vunpack.c.l.bf16 %v3214
    %v3277 = vunpack.c.l.bf16 %v3215
    %v3278 = vunpack.c.l.bf16 %v3216
    %v3279 = vunpack.c.l.bf16 %v3217
    %v3280 = vunpack.c.l.bf16 %v3218
    %v3281 = vunpack.c.l.bf16 %v3219
    %v3282 = vunpack.c.l.bf16 %v3220
    %v3283 = vunpack.c.l.bf16 %v3221
    %v3284 = vunpack.c.l.bf16 %v3222
    %v3285 = vunpack.c.l.bf16 %v3223
    %v3286 = vunpack.c.l.bf16 %v3224
    %v3287 = vunpack.c.l.bf16 %v3225
    %v3288 = vunpack.c.l.bf16 %v3226
    %v3289 = vunpack.c.l.bf16 %v3227
    %v3290 = vunpack.c.l.bf16 %v3228
    %v3291 = vunpack.c.l.bf16 %v3229
    %v3292 = vunpack.c.l.bf16 %v3230
    %v3293 = vunpack.c.l.bf16 %v3231
    %v3294 = vunpack.c.l.bf16 %v3232
    %v3295 = vunpack.c.l.bf16 %v3233
    %v3296 = vunpack.c.l.bf16 %v3234
    %v3297 = vunpack.c.l.bf16 %v3235
    %v3298 = vunpack.c.l.bf16 %v3236
    %v3299 = vunpack.c.l.bf16 %v3237
    %v3300 = vunpack.c.l.bf16 %v3238
    %v3301 = vunpack.c.l.bf16 %v3239
    %v3302 = vunpack.c.l.bf16 %v3240
    %v3303 = vunpack.c.l.bf16 %v3241
    %v3304 = vunpack.c.l.bf16 %v3242
    %v3305 = vunpack.c.l.bf16 %v3243
    %v3306 = vsub.f32 %v3244, 1.0
    %v3307 = vsub.f32 %v3245, 1.0
    %v3308 = vsub.f32 %v3246, 1.0
    %v3309 = vsub.f32 %v3247, 1.0
    %v3310 = vsub.f32 %v3248, 1.0
    %v3311 = vsub.f32 %v3249, 1.0
    %v3312 = vsub.f32 %v3250, 1.0
    %v3313 = vsub.f32 %v3251, 1.0
    %v3314 = vsub.f32 %v3252, 1.0
    %v3315 = vsub.f32 %v3253, 1.0
    %v3316 = vsub.f32 %v3254, 1.0
    %v3317 = vsub.f32 %v3255, 1.0
    %v3318 = vsub.f32 %v3256, 1.0
    %v3319 = vsub.f32 %v3257, 1.0
    %v3320 = vsub.f32 %v3258, 1.0
    %v3321 = vsub.f32 %v3259, 1.0
    %v3322 = vsub.f32 %v3260, 1.0
    %v3323 = vsub.f32 %v3261, 1.0
    %v3324 = vsub.f32 %v3262, 1.0
    %v3325 = vsub.f32 %v3263, 1.0
    %v3326 = vsub.f32 %v3264, 1.0
    %v3327 = vsub.f32 %v3265, 1.0
    %v3328 = vsub.f32 %v3266, 1.0
    %v3329 = vsub.f32 %v3267, 1.0
    %v3330 = vsub.f32 %v3268, 1.0
    %v3331 = vsub.f32 %v3269, 1.0
    %v3332 = vsub.f32 %v3270, 1.0
    %v3333 = vsub.f32 %v3271, 1.0
    %v3334 = vsub.f32 %v3272, 1.0
    %v3335 = vsub.f32 %v3273, 1.0
    %v3336 = vsub.f32 %v3274, 1.0
    %v3337 = vsub.f32 %v3275, 1.0
    %v3338 = vsub.f32 %v3276, 1.0
    %v3339 = vsub.f32 %v3277, 1.0
    %v3340 = vsub.f32 %v3278, 1.0
    %v3341 = vsub.f32 %v3279, 1.0
    %v3342 = vsub.f32 %v3280, 1.0
    %v3343 = vsub.f32 %v3281, 1.0
    %v3344 = vsub.f32 %v3282, 1.0
    %v3345 = vsub.f32 %v3283, 1.0
    %v3346 = vsub.f32 %v3284, 1.0
    %v3347 = vsub.f32 %v3285, 1.0
    %v3348 = vsub.f32 %v3286, 1.0
    %v3349 = vsub.f32 %v3287, 1.0
    %v3350 = vsub.f32 %v3288, 1.0
    %v3351 = vsub.f32 %v3289, 1.0
    %v3352 = vsub.f32 %v3290, 1.0
    %v3353 = vsub.f32 %v3291, 1.0
    %v3354 = vsub.f32 %v3292, 1.0
    %v3355 = vsub.f32 %v3293, 1.0
    %v3356 = vsub.f32 %v3294, 1.0
    %v3357 = vsub.f32 %v3295, 1.0
    %v3358 = vsub.f32 %v3296, 1.0
    %v3359 = vsub.f32 %v3297, 1.0
    %v3360 = vsub.f32 %v3298, 1.0
    %v3361 = vsub.f32 %v3299, 1.0
    %v3362 = vsub.f32 %v3300, 1.0
    %v3363 = vsub.f32 %v3301, 1.0
    %v3364 = vsub.f32 %v3302, 1.0
    %v3365 = vsub.f32 %v3303, 1.0
    %v3366 = vsub.f32 %v3304, 1.0
    %v3367 = vsub.f32 %v3305, 1.0
    %v3368 = vpack.c.bf16 %v3306, %v3306
    %v3369 = vpack.c.bf16 %v3307, %v3307
    %v3370 = vpack.c.bf16 %v3308, %v3308
    %v3371 = vpack.c.bf16 %v3309, %v3309
    %v3372 = vpack.c.bf16 %v3310, %v3310
    %v3373 = vpack.c.bf16 %v3311, %v3311
    %v3374 = vpack.c.bf16 %v3312, %v3312
    %v3375 = vpack.c.bf16 %v3313, %v3313
    %v3376 = vpack.c.bf16 %v3314, %v3314
    %v3377 = vpack.c.bf16 %v3315, %v3315
    %v3378 = vpack.c.bf16 %v3316, %v3316
    %v3379 = vpack.c.bf16 %v3317, %v3317
    %v3380 = vpack.c.bf16 %v3318, %v3318
    %v3381 = vpack.c.bf16 %v3319, %v3319
    %v3382 = vpack.c.bf16 %v3320, %v3320
    %v3383 = vpack.c.bf16 %v3321, %v3321
    %v3384 = vpack.c.bf16 %v3322, %v3322
    %v3385 = vpack.c.bf16 %v3323, %v3323
    %v3386 = vpack.c.bf16 %v3324, %v3324
    %v3387 = vpack.c.bf16 %v3325, %v3325
    %v3388 = vpack.c.bf16 %v3326, %v3326
    %v3389 = vpack.c.bf16 %v3327, %v3327
    %v3390 = vpack.c.bf16 %v3328, %v3328
    %v3391 = vpack.c.bf16 %v3329, %v3329
    %v3392 = vpack.c.bf16 %v3330, %v3330
    %v3393 = vpack.c.bf16 %v3331, %v3331
    %v3394 = vpack.c.bf16 %v3332, %v3332
    %v3395 = vpack.c.bf16 %v3333, %v3333
    %v3396 = vpack.c.bf16 %v3334, %v3334
    %v3397 = vpack.c.bf16 %v3335, %v3335
    %v3398 = vpack.c.bf16 %v3336, %v3336
    %v3399 = vpack.c.bf16 %v3337, %v3337
    %v3400 = vpack.c.bf16 %v3338, %v3338
    %v3401 = vpack.c.bf16 %v3339, %v3339
    %v3402 = vpack.c.bf16 %v3340, %v3340
    %v3403 = vpack.c.bf16 %v3341, %v3341
    %v3404 = vpack.c.bf16 %v3342, %v3342
    %v3405 = vpack.c.bf16 %v3343, %v3343
    %v3406 = vpack.c.bf16 %v3344, %v3344
    %v3407 = vpack.c.bf16 %v3345, %v3345
    %v3408 = vpack.c.bf16 %v3346, %v3346
    %v3409 = vpack.c.bf16 %v3347, %v3347
    %v3410 = vpack.c.bf16 %v3348, %v3348
    %v3411 = vpack.c.bf16 %v3349, %v3349
    %v3412 = vpack.c.bf16 %v3350, %v3350
    %v3413 = vpack.c.bf16 %v3351, %v3351
    %v3414 = vpack.c.bf16 %v3352, %v3352
    %v3415 = vpack.c.bf16 %v3353, %v3353
    %v3416 = vpack.c.bf16 %v3354, %v3354
    %v3417 = vpack.c.bf16 %v3355, %v3355
    %v3418 = vpack.c.bf16 %v3356, %v3356
    %v3419 = vpack.c.bf16 %v3357, %v3357
    %v3420 = vpack.c.bf16 %v3358, %v3358
    %v3421 = vpack.c.bf16 %v3359, %v3359
    %v3422 = vpack.c.bf16 %v3360, %v3360
    %v3423 = vpack.c.bf16 %v3361, %v3361
    %v3424 = vpack.c.bf16 %v3362, %v3362
    %v3425 = vpack.c.bf16 %v3363, %v3363
    %v3426 = vpack.c.bf16 %v3364, %v3364
    %v3427 = vpack.c.bf16 %v3365, %v3365
    %v3428 = vpack.c.bf16 %v3366, %v3366
    %v3429 = vpack.c.bf16 %v3367, %v3367
    %vm3430 = vmpackc.low %vm2810, %vm2810
    %vm3431 = vmpackc.low %vm2811, %vm2811
    %vm3432 = vmpackc.low %vm2812, %vm2812
    %vm3433 = vmpackc.low %vm2813, %vm2813
    %vm3434 = vmpackc.low %vm2814, %vm2814
    %vm3435 = vmpackc.low %vm2815, %vm2815
    %vm3436 = vmpackc.low %vm2816, %vm2816
    %vm3437 = vmpackc.low %vm2817, %vm2817
    %vm3438 = vmpackc.low %vm2818, %vm2818
    %vm3439 = vmpackc.low %vm2819, %vm2819
    %vm3440 = vmpackc.low %vm2820, %vm2820
    %vm3441 = vmpackc.low %vm2821, %vm2821
    %vm3442 = vmpackc.low %vm2822, %vm2822
    %vm3443 = vmpackc.low %vm2823, %vm2823
    %vm3444 = vmpackc.low %vm2824, %vm2824
    %vm3445 = vmpackc.low %vm2825, %vm2825
    %vm3446 = vmpackc.low %vm2826, %vm2826
    %vm3447 = vmpackc.low %vm2827, %vm2827
    %vm3448 = vmpackc.low %vm2828, %vm2828
    %vm3449 = vmpackc.low %vm2829, %vm2829
    %vm3450 = vmpackc.low %vm2830, %vm2830
    %vm3451 = vmpackc.low %vm2831, %vm2831
    %vm3452 = vmpackc.low %vm2832, %vm2832
    %vm3453 = vmpackc.low %vm2833, %vm2833
    %vm3454 = vmpackc.low %vm2834, %vm2834
    %vm3455 = vmpackc.low %vm2835, %vm2835
    %vm3456 = vmpackc.low %vm2836, %vm2836
    %vm3457 = vmpackc.low %vm2837, %vm2837
    %vm3458 = vmpackc.low %vm2838, %vm2838
    %vm3459 = vmpackc.low %vm2839, %vm2839
    %vm3460 = vmpackc.low %vm2840, %vm2840
    %vm3461 = vmpackc.low %vm2841, %vm2841
    %vm3462 = vmpackc.low %vm2842, %vm2842
    %vm3463 = vmpackc.low %vm2843, %vm2843
    %vm3464 = vmpackc.low %vm2844, %vm2844
    %vm3465 = vmpackc.low %vm2845, %vm2845
    %vm3466 = vmpackc.low %vm2846, %vm2846
    %vm3467 = vmpackc.low %vm2847, %vm2847
    %vm3468 = vmpackc.low %vm2848, %vm2848
    %vm3469 = vmpackc.low %vm2849, %vm2849
    %vm3470 = vmpackc.low %vm2850, %vm2850
    %vm3471 = vmpackc.low %vm2851, %vm2851
    %vm3472 = vmpackc.low %vm2852, %vm2852
    %vm3473 = vmpackc.low %vm2853, %vm2853
    %vm3474 = vmpackc.low %vm2854, %vm2854
    %vm3475 = vmpackc.low %vm2855, %vm2855
    %vm3476 = vmpackc.low %vm2856, %vm2856
    %vm3477 = vmpackc.low %vm2857, %vm2857
    %vm3478 = vmpackc.low %vm2858, %vm2858
    %vm3479 = vmpackc.low %vm2859, %vm2859
    %vm3480 = vmpackc.low %vm2860, %vm2860
    %vm3481 = vmpackc.low %vm2861, %vm2861
    %vm3482 = vmpackc.low %vm2862, %vm2862
    %vm3483 = vmpackc.low %vm2863, %vm2863
    %vm3484 = vmpackc.low %vm2864, %vm2864
    %vm3485 = vmpackc.low %vm2865, %vm2865
    %vm3486 = vmpackc.low %vm2866, %vm2866
    %vm3487 = vmpackc.low %vm2867, %vm2867
    %vm3488 = vmpackc.low %vm2868, %vm2868
    %vm3489 = vmpackc.low %vm2869, %vm2869
    %vm3490 = vmpackc.low %vm2870, %vm2870
    %vm3491 = vmpackc.low %vm2871, %vm2871
    %v3492 = vsel %vm3430, %v2686, %v3368
    %v3493 = vsel %vm3431, %v2687, %v3369
    %v3494 = vsel %vm3432, %v2688, %v3370
    %v3495 = vsel %vm3433, %v2689, %v3371
    %v3496 = vsel %vm3434, %v2690, %v3372
    %v3497 = vsel %vm3435, %v2691, %v3373
    %v3498 = vsel %vm3436, %v2692, %v3374
    %v3499 = vsel %vm3437, %v2693, %v3375
    %v3500 = vsel %vm3438, %v2694, %v3376
    %v3501 = vsel %vm3439, %v2695, %v3377
    %v3502 = vsel %vm3440, %v2696, %v3378
    %v3503 = vsel %vm3441, %v2697, %v3379
    %v3504 = vsel %vm3442, %v2698, %v3380
    %v3505 = vsel %vm3443, %v2699, %v3381
    %v3506 = vsel %vm3444, %v2700, %v3382
    %v3507 = vsel %vm3445, %v2701, %v3383
    %v3508 = vsel %vm3446, %v2702, %v3384
    %v3509 = vsel %vm3447, %v2703, %v3385
    %v3510 = vsel %vm3448, %v2704, %v3386
    %v3511 = vsel %vm3449, %v2705, %v3387
    %v3512 = vsel %vm3450, %v2706, %v3388
    %v3513 = vsel %vm3451, %v2707, %v3389
    %v3514 = vsel %vm3452, %v2708, %v3390
    %v3515 = vsel %vm3453, %v2709, %v3391
    %v3516 = vsel %vm3454, %v2710, %v3392
    %v3517 = vsel %vm3455, %v2711, %v3393
    %v3518 = vsel %vm3456, %v2712, %v3394
    %v3519 = vsel %vm3457, %v2713, %v3395
    %v3520 = vsel %vm3458, %v2714, %v3396
    %v3521 = vsel %vm3459, %v2715, %v3397
    %v3522 = vsel %vm3460, %v2716, %v3398
    %v3523 = vsel %vm3461, %v2717, %v3399
    %v3524 = vsel %vm3462, %v2718, %v3400
    %v3525 = vsel %vm3463, %v2719, %v3401
    %v3526 = vsel %vm3464, %v2720, %v3402
    %v3527 = vsel %vm3465, %v2721, %v3403
    %v3528 = vsel %vm3466, %v2722, %v3404
    %v3529 = vsel %vm3467, %v2723, %v3405
    %v3530 = vsel %vm3468, %v2724, %v3406
    %v3531 = vsel %vm3469, %v2725, %v3407
    %v3532 = vsel %vm3470, %v2726, %v3408
    %v3533 = vsel %vm3471, %v2727, %v3409
    %v3534 = vsel %vm3472, %v2728, %v3410
    %v3535 = vsel %vm3473, %v2729, %v3411
    %v3536 = vsel %vm3474, %v2730, %v3412
    %v3537 = vsel %vm3475, %v2731, %v3413
    %v3538 = vsel %vm3476, %v2732, %v3414
    %v3539 = vsel %vm3477, %v2733, %v3415
    %v3540 = vsel %vm3478, %v2734, %v3416
    %v3541 = vsel %vm3479, %v2735, %v3417
    %v3542 = vsel %vm3480, %v2736, %v3418
    %v3543 = vsel %vm3481, %v2737, %v3419
    %v3544 = vsel %vm3482, %v2738, %v3420
    %v3545 = vsel %vm3483, %v2739, %v3421
    %v3546 = vsel %vm3484, %v2740, %v3422
    %v3547 = vsel %vm3485, %v2741, %v3423
    %v3548 = vsel %vm3486, %v2742, %v3424
    %v3549 = vsel %vm3487, %v2743, %v3425
    %v3550 = vsel %vm3488, %v2744, %v3426
    %v3551 = vsel %vm3489, %v2745, %v3427
    %v3552 = vsel %vm3490, %v2746, %v3428
    %v3553 = vsel %vm3491, %v2747, %v3429
    %v3554 = vld [vmem:[%s3] sm:$0xff]
    %v3555 = vld [vmem:[%s3 + $0x8] sm:$0xff]
    %v3556 = vld [vmem:[%s3 + $0x10] sm:$0xff]
    %v3557 = vld [vmem:[%s3 + $0x18] sm:$0xff]
    %v3558 = vld [vmem:[%s3 + $0x20] sm:$0xff]
    %v3559 = vld [vmem:[%s3 + $0x28] sm:$0xff]
    %v3560 = vld [vmem:[%s3 + $0x30] sm:$0xff]
    %v3561 = vld [vmem:[%s3 + $0x38] sm:$0xff]
    %v3562 = vld [vmem:[%s3 + $0x40] sm:$0xff]
    %v3563 = vld [vmem:[%s3 + $0x48] sm:$0xff]
    %v3564 = vld [vmem:[%s3 + $0x50] sm:$0xff]
    %v3565 = vld [vmem:[%s3 + $0x58] sm:$0xff]
    %v3566 = vld [vmem:[%s3 + $0x60] sm:$0xff]
    %v3567 = vld [vmem:[%s3 + $0x68] sm:$0xff]
    %v3568 = vld [vmem:[%s3 + $0x70] sm:$0xff]
    %v3569 = vld [vmem:[%s3 + $0x78] sm:$0xff]
    %v3570 = vld [vmem:[%s3 + $0x80] sm:$0xff]
    %v3571 = vld [vmem:[%s3 + $0x88] sm:$0xff]
    %v3572 = vld [vmem:[%s3 + $0x90] sm:$0xff]
    %v3573 = vld [vmem:[%s3 + $0x98] sm:$0xff]
    %v3574 = vld [vmem:[%s3 + $0xa0] sm:$0xff]
    %v3575 = vld [vmem:[%s3 + $0xa8] sm:$0xff]
    %v3576 = vld [vmem:[%s3 + $0xb0] sm:$0xff]
    %v3577 = vld [vmem:[%s3 + $0xb8] sm:$0xff]
    %v3578 = vld [vmem:[%s3 + $0xc0] sm:$0xff]
    %v3579 = vld [vmem:[%s3 + $0xc8] sm:$0xff]
    %v3580 = vld [vmem:[%s3 + $0xd0] sm:$0xff]
    %v3581 = vld [vmem:[%s3 + $0xd8] sm:$0xff]
    %v3582 = vld [vmem:[%s3 + $0xe0] sm:$0xff]
    %v3583 = vld [vmem:[%s3 + $0xe8] sm:$0xff]
    %v3584 = vld [vmem:[%s3 + $0xf0] sm:$0xff]
    %v3585 = vld [vmem:[%s3 + $0xf8] sm:$0xff]
    %v3618 = vunpack.c.l.b16 %v3554
    %v3619 = vunpack.c.h.b16 %v3554
    %v3620 = vunpack.c.l.b16 %v3555
    %v3621 = vunpack.c.h.b16 %v3555
    %v3622 = vunpack.c.l.b16 %v3556
    %v3623 = vunpack.c.h.b16 %v3556
    %v3624 = vunpack.c.l.b16 %v3557
    %v3625 = vunpack.c.h.b16 %v3557
    %v3626 = vunpack.c.l.b16 %v3558
    %v3627 = vunpack.c.h.b16 %v3558
    %v3628 = vunpack.c.l.b16 %v3559
    %v3629 = vunpack.c.h.b16 %v3559
    %v3630 = vunpack.c.l.b16 %v3560
    %v3631 = vunpack.c.h.b16 %v3560
    %v3632 = vunpack.c.l.b16 %v3561
    %v3633 = vunpack.c.h.b16 %v3561
    %v3634 = vunpack.c.l.b16 %v3562
    %v3635 = vunpack.c.h.b16 %v3562
    %v3636 = vunpack.c.l.b16 %v3563
    %v3637 = vunpack.c.h.b16 %v3563
    %v3638 = vunpack.c.l.b16 %v3564
    %v3639 = vunpack.c.h.b16 %v3564
    %v3640 = vunpack.c.l.b16 %v3565
    %v3641 = vunpack.c.h.b16 %v3565
    %v3642 = vunpack.c.l.b16 %v3566
    %v3643 = vunpack.c.h.b16 %v3566
    %v3644 = vunpack.c.l.b16 %v3567
    %v3645 = vunpack.c.h.b16 %v3567
    %v3646 = vunpack.c.l.b16 %v3568
    %v3647 = vunpack.c.h.b16 %v3568
    %v3648 = vunpack.c.l.b16 %v3569
    %v3649 = vunpack.c.h.b16 %v3569
    %v3650 = vunpack.c.l.b16 %v3570
    %v3651 = vunpack.c.h.b16 %v3570
    %v3652 = vunpack.c.l.b16 %v3571
    %v3653 = vunpack.c.h.b16 %v3571
    %v3654 = vunpack.c.l.b16 %v3572
    %v3655 = vunpack.c.h.b16 %v3572
    %v3656 = vunpack.c.l.b16 %v3573
    %v3657 = vunpack.c.h.b16 %v3573
    %v3658 = vunpack.c.l.b16 %v3574
    %v3659 = vunpack.c.h.b16 %v3574
    %v3660 = vunpack.c.l.b16 %v3575
    %v3661 = vunpack.c.h.b16 %v3575
    %v3662 = vunpack.c.l.b16 %v3576
    %v3663 = vunpack.c.h.b16 %v3576
    %v3664 = vunpack.c.l.b16 %v3577
    %v3665 = vunpack.c.h.b16 %v3577
    %v3666 = vunpack.c.l.b16 %v3578
    %v3667 = vunpack.c.h.b16 %v3578
    %v3668 = vunpack.c.l.b16 %v3579
    %v3669 = vunpack.c.h.b16 %v3579
    %v3670 = vunpack.c.l.b16 %v3580
    %v3671 = vunpack.c.h.b16 %v3580
    %v3672 = vunpack.c.l.b16 %v3581
    %v3673 = vunpack.c.h.b16 %v3581
    %v3674 = vunpack.c.l.b16 %v3582
    %v3675 = vunpack.c.h.b16 %v3582
    %v3676 = vunpack.c.l.b16 %v3583
    %v3677 = vunpack.c.h.b16 %v3583
    %v3678 = vunpack.c.l.b16 %v3584
    %v3679 = vunpack.c.h.b16 %v3584
    %v3680 = vunpack.c.l.b16 %v3585
    %v3681 = vunpack.c.h.b16 %v3585
    %v3682 = vpack.c.b16 %v3620, %v3618
    %v3683 = vpack.c.b16 %v3621, %v3619
    %v3684 = vpack.c.b16 %v3624, %v3622
    %v3685 = vpack.c.b16 %v3625, %v3623
    %v3686 = vpack.c.b16 %v3628, %v3626
    %v3687 = vpack.c.b16 %v3629, %v3627
    %v3688 = vpack.c.b16 %v3632, %v3630
    %v3689 = vpack.c.b16 %v3633, %v3631
    %v3690 = vpack.c.b16 %v3636, %v3634
    %v3691 = vpack.c.b16 %v3637, %v3635
    %v3692 = vpack.c.b16 %v3640, %v3638
    %v3693 = vpack.c.b16 %v3641, %v3639
    %v3694 = vpack.c.b16 %v3644, %v3642
    %v3695 = vpack.c.b16 %v3645, %v3643
    %v3696 = vpack.c.b16 %v3648, %v3646
    %v3697 = vpack.c.b16 %v3649, %v3647
    %v3698 = vpack.c.b16 %v3652, %v3650
    %v3699 = vpack.c.b16 %v3653, %v3651
    %v3700 = vpack.c.b16 %v3656, %v3654
    %v3701 = vpack.c.b16 %v3657, %v3655
    %v3702 = vpack.c.b16 %v3660, %v3658
    %v3703 = vpack.c.b16 %v3661, %v3659
    %v3704 = vpack.c.b16 %v3664, %v3662
    %v3705 = vpack.c.b16 %v3665, %v3663
    %v3706 = vpack.c.b16 %v3668, %v3666
    %v3707 = vpack.c.b16 %v3669, %v3667
    %v3708 = vpack.c.b16 %v3672, %v3670
    %v3709 = vpack.c.b16 %v3673, %v3671
    %v3710 = vpack.c.b16 %v3676, %v3674
    %v3711 = vpack.c.b16 %v3677, %v3675
    %v3712 = vpack.c.b16 %v3680, %v3678
    %v3713 = vpack.c.b16 %v3681, %v3679
    %v3752 = vunpack.c.l.b16 %v3492
    %v3753 = vunpack.c.l.b16 %v3493
    %v3754 = vunpack.c.l.b16 %v3494
    %v3755 = vunpack.c.l.b16 %v3495
    %v3756 = vunpack.c.l.b16 %v3496
    %v3757 = vunpack.c.l.b16 %v3497
    %v3758 = vunpack.c.l.b16 %v3498
    %v3759 = vunpack.c.l.b16 %v3499
    %v3760 = vunpack.c.l.b16 %v3500
    %v3761 = vunpack.c.l.b16 %v3501
    %v3762 = vunpack.c.l.b16 %v3502
    %v3763 = vunpack.c.l.b16 %v3503
    %v3764 = vunpack.c.l.b16 %v3504
    %v3765 = vunpack.c.l.b16 %v3505
    %v3766 = vunpack.c.l.b16 %v3506
    %v3767 = vunpack.c.l.b16 %v3507
    %v3768 = vunpack.c.l.b16 %v3508
    %v3769 = vunpack.c.l.b16 %v3509
    %v3770 = vunpack.c.l.b16 %v3510
    %v3771 = vunpack.c.l.b16 %v3511
    %v3772 = vunpack.c.l.b16 %v3512
    %v3773 = vunpack.c.l.b16 %v3513
    %v3774 = vpack.c.b16 %v3753, %v3752
    %v3775 = vpack.c.b16 %v3755, %v3754
    %v3776 = vpack.c.b16 %v3757, %v3756
    %v3777 = vpack.c.b16 %v3759, %v3758
    %v3778 = vpack.c.b16 %v3761, %v3760
    %v3779 = vpack.c.b16 %v3763, %v3762
    %v3780 = vpack.c.b16 %v3765, %v3764
    %v3781 = vpack.c.b16 %v3767, %v3766
    %v3782 = vpack.c.b16 %v3769, %v3768
    %v3783 = vpack.c.b16 %v3771, %v3770
    %v3784 = vpack.c.b16 %v3773, %v3772
    %vm3796 = vcmask 392192
    %v3798 = vsel %vm3796, %v3683, 0
    %v3801 = vsel %vm3796, %v3685, 0
    %v3804 = vsel %vm3796, %v3687, 0
    %v3807 = vsel %vm3796, %v3689, 0
    %v3810 = vsel %vm3796, %v3691, 0
    %v3813 = vsel %vm3796, %v3693, 0
    %v3816 = vsel %vm3796, %v3695, 0
    %v3819 = vsel %vm3796, %v3697, 0
    %v3822 = vsel %vm3796, %v3699, 0
    %v3825 = vsel %vm3796, %v3701, 0
    %v3828 = vsel %vm3796, %v3703, 0
    %v3831 = vsel %vm3796, %v3705, 0
    %v3834 = vsel %vm3796, %v3707, 0
    %v3837 = vsel %vm3796, %v3709, 0
    %v3840 = vsel %vm3796, %v3711, 0
    %v3843 = vsel %vm3796, %v3713, 0
    %3845 = vmatpush.bf16.msra.mxu0 %v3781
    %3846 = vmatpush.bf16.msra.mxu0 %v3780
    %3847 = vmatpush.bf16.msra.mxu0 %v3779
    %3848 = vmatpush.bf16.msra.mxu0 %v3778
    %3849 = vmatpush.bf16.msra.mxu0 %v3777
    %3850 = vmatpush.bf16.msra.mxu0 %v3776
    %3851 = vmatpush.bf16.msra.mxu0 %v3775
    %3852 = vmatpush.bf16.msra.mxu0 %v3774
    %3853 = vmatmul.bf16.gmra.mxu0 %v3682
    %v3854 = vpop.f32.mrf.mxu0
    %v3855 = vadd.f32 0.0, %v3854
    %v3856 = vpop.f32.mrf.mxu0
    %v3857 = vadd.f32 0.0, %v3856
    %3858 = vmatmul.bf16.gmra.mxu0 %v3684
    %v3859 = vpop.f32.mrf.mxu0
    %v3860 = vadd.f32 0.0, %v3859
    %v3861 = vpop.f32.mrf.mxu0
    %v3862 = vadd.f32 0.0, %v3861
    %3863 = vmatmul.bf16.gmra.mxu0 %v3686
    %v3864 = vpop.f32.mrf.mxu0
    %v3865 = vadd.f32 0.0, %v3864
    %v3866 = vpop.f32.mrf.mxu0
    %v3867 = vadd.f32 0.0, %v3866
    %3868 = vmatmul.bf16.gmra.mxu0 %v3688
    %v3869 = vpop.f32.mrf.mxu0
    %v3870 = vadd.f32 0.0, %v3869
    %v3871 = vpop.f32.mrf.mxu0
    %v3872 = vadd.f32 0.0, %v3871
    %3873 = vmatmul.bf16.gmra.mxu0 %v3690
    %v3874 = vpop.f32.mrf.mxu0
    %v3875 = vadd.f32 0.0, %v3874
    %v3876 = vpop.f32.mrf.mxu0
    %v3877 = vadd.f32 0.0, %v3876
    %3878 = vmatmul.bf16.gmra.mxu0 %v3692
    %v3879 = vpop.f32.mrf.mxu0
    %v3880 = vadd.f32 0.0, %v3879
    %v3881 = vpop.f32.mrf.mxu0
    %v3882 = vadd.f32 0.0, %v3881
    %3883 = vmatmul.bf16.gmra.mxu0 %v3694
    %v3884 = vpop.f32.mrf.mxu0
    %v3885 = vadd.f32 0.0, %v3884
    %v3886 = vpop.f32.mrf.mxu0
    %v3887 = vadd.f32 0.0, %v3886
    %3888 = vmatmul.bf16.gmra.mxu0 %v3696
    %v3889 = vpop.f32.mrf.mxu0
    %v3890 = vadd.f32 0.0, %v3889
    %v3891 = vpop.f32.mrf.mxu0
    %v3892 = vadd.f32 0.0, %v3891
    %3893 = vmatmul.bf16.gmra.mxu0 %v3698
    %v3894 = vpop.f32.mrf.mxu0
    %v3895 = vadd.f32 0.0, %v3894
    %v3896 = vpop.f32.mrf.mxu0
    %v3897 = vadd.f32 0.0, %v3896
    %3898 = vmatmul.bf16.gmra.mxu0 %v3700
    %v3899 = vpop.f32.mrf.mxu0
    %v3900 = vadd.f32 0.0, %v3899
    %v3901 = vpop.f32.mrf.mxu0
    %v3902 = vadd.f32 0.0, %v3901
    %3903 = vmatmul.bf16.gmra.mxu0 %v3702
    %v3904 = vpop.f32.mrf.mxu0
    %v3905 = vadd.f32 0.0, %v3904
    %v3906 = vpop.f32.mrf.mxu0
    %v3907 = vadd.f32 0.0, %v3906
    %3908 = vmatmul.bf16.gmra.mxu0 %v3704
    %v3909 = vpop.f32.mrf.mxu0
    %v3910 = vadd.f32 0.0, %v3909
    %v3911 = vpop.f32.mrf.mxu0
    %v3912 = vadd.f32 0.0, %v3911
    %3913 = vmatmul.bf16.gmra.mxu0 %v3706
    %v3914 = vpop.f32.mrf.mxu0
    %v3915 = vadd.f32 0.0, %v3914
    %v3916 = vpop.f32.mrf.mxu0
    %v3917 = vadd.f32 0.0, %v3916
    %3918 = vmatmul.bf16.gmra.mxu0 %v3708
    %v3919 = vpop.f32.mrf.mxu0
    %v3920 = vadd.f32 0.0, %v3919
    %v3921 = vpop.f32.mrf.mxu0
    %v3922 = vadd.f32 0.0, %v3921
    %3923 = vmatmul.bf16.gmra.mxu0 %v3710
    %v3924 = vpop.f32.mrf.mxu0
    %v3925 = vadd.f32 0.0, %v3924
    %v3926 = vpop.f32.mrf.mxu0
    %v3927 = vadd.f32 0.0, %v3926
    %3928 = vmatmul.bf16.gmra.mxu0 %v3712
    %v3929 = vpop.f32.mrf.mxu0
    %v3930 = vadd.f32 0.0, %v3929
    %v3931 = vpop.f32.mrf.mxu0
    %v3932 = vadd.f32 0.0, %v3931
    %3933 = vdwg.mxu0
    %3934 = vmatpush.bf16.msra.mxu0 0
    %3935 = vmatpush.bf16.msra.mxu0 0
    %3936 = vmatpush.bf16.msra.mxu0 0
    %3937 = vmatpush.bf16.msra.mxu0 0
    %3938 = vmatpush.bf16.msra.mxu0 0
    %3939 = vmatpush.bf16.msra.mxu0 %v3784
    %3940 = vmatpush.bf16.msra.mxu0 %v3783
    %3941 = vmatpush.bf16.msra.mxu0 %v3782
    %3942 = vmatmul.bf16.gmra.mxu0 %v3798
    %v3943 = vpop.f32.mrf.mxu0
    %v3944 = vadd.f32 %v3855, %v3943
    %v3945 = vpop.f32.mrf.mxu0
    %v3946 = vadd.f32 %v3857, %v3945
    %3947 = vmatmul.bf16.gmra.mxu0 %v3801
    %v3948 = vpop.f32.mrf.mxu0
    %v3949 = vadd.f32 %v3860, %v3948
    %v3950 = vpop.f32.mrf.mxu0
    %v3951 = vadd.f32 %v3862, %v3950
    %3952 = vmatmul.bf16.gmra.mxu0 %v3804
    %v3953 = vpop.f32.mrf.mxu0
    %v3954 = vadd.f32 %v3865, %v3953
    %v3955 = vpop.f32.mrf.mxu0
    %v3956 = vadd.f32 %v3867, %v3955
    %3957 = vmatmul.bf16.gmra.mxu0 %v3807
    %v3958 = vpop.f32.mrf.mxu0
    %v3959 = vadd.f32 %v3870, %v3958
    %v3960 = vpop.f32.mrf.mxu0
    %v3961 = vadd.f32 %v3872, %v3960
    %3962 = vmatmul.bf16.gmra.mxu0 %v3810
    %v3963 = vpop.f32.mrf.mxu0
    %v3964 = vadd.f32 %v3875, %v3963
    %v3965 = vpop.f32.mrf.mxu0
    %v3966 = vadd.f32 %v3877, %v3965
    %3967 = vmatmul.bf16.gmra.mxu0 %v3813
    %v3968 = vpop.f32.mrf.mxu0
    %v3969 = vadd.f32 %v3880, %v3968
    %v3970 = vpop.f32.mrf.mxu0
    %v3971 = vadd.f32 %v3882, %v3970
    %3972 = vmatmul.bf16.gmra.mxu0 %v3816
    %v3973 = vpop.f32.mrf.mxu0
    %v3974 = vadd.f32 %v3885, %v3973
    %v3975 = vpop.f32.mrf.mxu0
    %v3976 = vadd.f32 %v3887, %v3975
    %3977 = vmatmul.bf16.gmra.mxu0 %v3819
    %v3978 = vpop.f32.mrf.mxu0
    %v3979 = vadd.f32 %v3890, %v3978
    %v3980 = vpop.f32.mrf.mxu0
    %v3981 = vadd.f32 %v3892, %v3980
    %3982 = vmatmul.bf16.gmra.mxu0 %v3822
    %v3983 = vpop.f32.mrf.mxu0
    %v3984 = vadd.f32 %v3895, %v3983
    %v3985 = vpop.f32.mrf.mxu0
    %v3986 = vadd.f32 %v3897, %v3985
    %3987 = vmatmul.bf16.gmra.mxu0 %v3825
    %v3988 = vpop.f32.mrf.mxu0
    %v3989 = vadd.f32 %v3900, %v3988
    %v3990 = vpop.f32.mrf.mxu0
    %v3991 = vadd.f32 %v3902, %v3990
    %3992 = vmatmul.bf16.gmra.mxu0 %v3828
    %v3993 = vpop.f32.mrf.mxu0
    %v3994 = vadd.f32 %v3905, %v3993
    %v3995 = vpop.f32.mrf.mxu0
    %v3996 = vadd.f32 %v3907, %v3995
    %3997 = vmatmul.bf16.gmra.mxu0 %v3831
    %v3998 = vpop.f32.mrf.mxu0
    %v3999 = vadd.f32 %v3910, %v3998
    %v4000 = vpop.f32.mrf.mxu0
    %v4001 = vadd.f32 %v3912, %v4000
    %4002 = vmatmul.bf16.gmra.mxu0 %v3834
    %v4003 = vpop.f32.mrf.mxu0
    %v4004 = vadd.f32 %v3915, %v4003
    %v4005 = vpop.f32.mrf.mxu0
    %v4006 = vadd.f32 %v3917, %v4005
    %4007 = vmatmul.bf16.gmra.mxu0 %v3837
    %v4008 = vpop.f32.mrf.mxu0
    %v4009 = vadd.f32 %v3920, %v4008
    %v4010 = vpop.f32.mrf.mxu0
    %v4011 = vadd.f32 %v3922, %v4010
    %4012 = vmatmul.bf16.gmra.mxu0 %v3840
    %v4013 = vpop.f32.mrf.mxu0
    %v4014 = vadd.f32 %v3925, %v4013
    %v4015 = vpop.f32.mrf.mxu0
    %v4016 = vadd.f32 %v3927, %v4015
    %4017 = vmatmul.bf16.gmra.mxu0 %v3843
    %v4018 = vpop.f32.mrf.mxu0
    %v4019 = vadd.f32 %v3930, %v4018
    %v4020 = vpop.f32.mrf.mxu0
    %v4021 = vadd.f32 %v3932, %v4020
    %4022 = vdwg.mxu0
    %v4023 = vpack.c.bf16 %v3944, %v3944
    %v4024 = vpack.c.bf16 %v3946, %v3946
    %v4025 = vpack.c.bf16 %v3949, %v3949
    %v4026 = vpack.c.bf16 %v3951, %v3951
    %v4027 = vpack.c.bf16 %v3954, %v3954
    %v4028 = vpack.c.bf16 %v3956, %v3956
    %v4029 = vpack.c.bf16 %v3959, %v3959
    %v4030 = vpack.c.bf16 %v3961, %v3961
    %v4031 = vpack.c.bf16 %v3964, %v3964
    %v4032 = vpack.c.bf16 %v3966, %v3966
    %v4033 = vpack.c.bf16 %v3969, %v3969
    %v4034 = vpack.c.bf16 %v3971, %v3971
    %v4035 = vpack.c.bf16 %v3974, %v3974
    %v4036 = vpack.c.bf16 %v3976, %v3976
    %v4037 = vpack.c.bf16 %v3979, %v3979
    %v4038 = vpack.c.bf16 %v3981, %v3981
    %v4039 = vpack.c.bf16 %v3984, %v3984
    %v4040 = vpack.c.bf16 %v3986, %v3986
    %v4041 = vpack.c.bf16 %v3989, %v3989
    %v4042 = vpack.c.bf16 %v3991, %v3991
    %v4043 = vpack.c.bf16 %v3994, %v3994
    %v4044 = vpack.c.bf16 %v3996, %v3996
    %v4045 = vpack.c.bf16 %v3999, %v3999
    %v4046 = vpack.c.bf16 %v4001, %v4001
    %v4047 = vpack.c.bf16 %v4004, %v4004
    %v4048 = vpack.c.bf16 %v4006, %v4006
    %v4049 = vpack.c.bf16 %v4009, %v4009
    %v4050 = vpack.c.bf16 %v4011, %v4011
    %v4051 = vpack.c.bf16 %v4014, %v4014
    %v4052 = vpack.c.bf16 %v4016, %v4016
    %v4053 = vpack.c.bf16 %v4019, %v4019
    %v4054 = vpack.c.bf16 %v4021, %v4021
    %v4055 = vunpack.c.l.bf16 %v4023
    %v4056 = vunpack.c.l.bf16 %v4024
    %v4057 = vunpack.c.l.bf16 %v4025
    %v4058 = vunpack.c.l.bf16 %v4026
    %v4059 = vunpack.c.l.bf16 %v4039
    %v4060 = vunpack.c.l.bf16 %v4040
    %v4061 = vunpack.c.l.bf16 %v4041
    %v4062 = vunpack.c.l.bf16 %v4042
    %v4063 = vunpack.c.l.bf16 %v4027
    %v4064 = vunpack.c.l.bf16 %v4028
    %v4065 = vunpack.c.l.bf16 %v4029
    %v4066 = vunpack.c.l.bf16 %v4030
    %v4067 = vunpack.c.l.bf16 %v4043
    %v4068 = vunpack.c.l.bf16 %v4044
    %v4069 = vunpack.c.l.bf16 %v4045
    %v4070 = vunpack.c.l.bf16 %v4046
    %v4071 = vmax.f32 %v4055, %v4063
    %v4072 = vmax.f32 %v4056, %v4064
    %v4073 = vmax.f32 %v4057, %v4065
    %v4074 = vmax.f32 %v4058, %v4066
    %v4075 = vmax.f32 %v4059, %v4067
    %v4076 = vmax.f32 %v4060, %v4068
    %v4077 = vmax.f32 %v4061, %v4069
    %v4078 = vmax.f32 %v4062, %v4070
    %v4079 = vpack.c.bf16 %v4071, %v4071
    %v4080 = vpack.c.bf16 %v4072, %v4072
    %v4081 = vpack.c.bf16 %v4073, %v4073
    %v4082 = vpack.c.bf16 %v4074, %v4074
    %v4083 = vpack.c.bf16 %v4075, %v4075
    %v4084 = vpack.c.bf16 %v4076, %v4076
    %v4085 = vpack.c.bf16 %v4077, %v4077
    %v4086 = vpack.c.bf16 %v4078, %v4078
    %v4087 = vunpack.c.l.bf16 %v4031
    %v4088 = vunpack.c.l.bf16 %v4032
    %v4089 = vunpack.c.l.bf16 %v4033
    %v4090 = vunpack.c.l.bf16 %v4034
    %v4091 = vunpack.c.l.bf16 %v4047
    %v4092 = vunpack.c.l.bf16 %v4048
    %v4093 = vunpack.c.l.bf16 %v4049
    %v4094 = vunpack.c.l.bf16 %v4050
    %v4095 = vunpack.c.l.bf16 %v4035
    %v4096 = vunpack.c.l.bf16 %v4036
    %v4097 = vunpack.c.l.bf16 %v4037
    %v4098 = vunpack.c.l.bf16 %v4038
    %v4099 = vunpack.c.l.bf16 %v4051
    %v4100 = vunpack.c.l.bf16 %v4052
    %v4101 = vunpack.c.l.bf16 %v4053
    %v4102 = vunpack.c.l.bf16 %v4054
    %v4103 = vmax.f32 %v4087, %v4095
    %v4104 = vmax.f32 %v4088, %v4096
    %v4105 = vmax.f32 %v4089, %v4097
    %v4106 = vmax.f32 %v4090, %v4098
    %v4107 = vmax.f32 %v4091, %v4099
    %v4108 = vmax.f32 %v4092, %v4100
    %v4109 = vmax.f32 %v4093, %v4101
    %v4110 = vmax.f32 %v4094, %v4102
    %v4111 = vpack.c.bf16 %v4103, %v4103
    %v4112 = vpack.c.bf16 %v4104, %v4104
    %v4113 = vpack.c.bf16 %v4105, %v4105
    %v4114 = vpack.c.bf16 %v4106, %v4106
    %v4115 = vpack.c.bf16 %v4107, %v4107
    %v4116 = vpack.c.bf16 %v4108, %v4108
    %v4117 = vpack.c.bf16 %v4109, %v4109
    %v4118 = vpack.c.bf16 %v4110, %v4110
    %v4119 = vunpack.c.l.bf16 %v4079
    %v4120 = vunpack.c.l.bf16 %v4080
    %v4121 = vunpack.c.l.bf16 %v4081
    %v4122 = vunpack.c.l.bf16 %v4082
    %v4123 = vunpack.c.l.bf16 %v4083
    %v4124 = vunpack.c.l.bf16 %v4084
    %v4125 = vunpack.c.l.bf16 %v4085
    %v4126 = vunpack.c.l.bf16 %v4086
    %v4127 = vunpack.c.l.bf16 %v4111
    %v4128 = vunpack.c.l.bf16 %v4112
    %v4129 = vunpack.c.l.bf16 %v4113
    %v4130 = vunpack.c.l.bf16 %v4114
    %v4131 = vunpack.c.l.bf16 %v4115
    %v4132 = vunpack.c.l.bf16 %v4116
    %v4133 = vunpack.c.l.bf16 %v4117
    %v4134 = vunpack.c.l.bf16 %v4118
    %v4135 = vmax.f32 %v4119, %v4127
    %v4136 = vmax.f32 %v4120, %v4128
    %v4137 = vmax.f32 %v4121, %v4129
    %v4138 = vmax.f32 %v4122, %v4130
    %v4139 = vmax.f32 %v4123, %v4131
    %v4140 = vmax.f32 %v4124, %v4132
    %v4141 = vmax.f32 %v4125, %v4133
    %v4142 = vmax.f32 %v4126, %v4134
    %v4143 = vpack.c.bf16 %v4135, %v4135
    %v4144 = vpack.c.bf16 %v4136, %v4136
    %v4145 = vpack.c.bf16 %v4137, %v4137
    %v4146 = vpack.c.bf16 %v4138, %v4138
    %v4147 = vpack.c.bf16 %v4139, %v4139
    %v4148 = vpack.c.bf16 %v4140, %v4140
    %v4149 = vpack.c.bf16 %v4141, %v4141
    %v4150 = vpack.c.bf16 %v4142, %v4142
    %v4167 = vunpack.c.l.b16 %v3514
    %v4168 = vunpack.c.l.b16 %v3515
    %v4169 = vunpack.c.l.b16 %v3516
    %v4170 = vunpack.c.l.b16 %v3517
    %v4171 = vunpack.c.l.b16 %v3518
    %v4172 = vunpack.c.l.b16 %v3519
    %v4173 = vunpack.c.l.b16 %v3520
    %v4174 = vunpack.c.l.b16 %v3521
    %v4175 = vunpack.c.l.b16 %v3522
    %v4176 = vunpack.c.l.b16 %v3523
    %v4177 = vunpack.c.l.b16 %v3524
    %v4178 = vunpack.c.l.b16 %v3525
    %v4179 = vunpack.c.l.b16 %v3526
    %v4180 = vunpack.c.l.b16 %v3527
    %v4181 = vunpack.c.l.b16 %v3528
    %v4182 = vunpack.c.l.b16 %v3529
    %v4183 = vpack.c.b16 %v4168, %v4167
    %v4184 = vpack.c.b16 %v4170, %v4169
    %v4185 = vpack.c.b16 %v4172, %v4171
    %v4186 = vpack.c.b16 %v4174, %v4173
    %v4187 = vpack.c.b16 %v4176, %v4175
    %v4188 = vpack.c.b16 %v4178, %v4177
    %v4189 = vpack.c.b16 %v4180, %v4179
    %v4190 = vpack.c.b16 %v4182, %v4181
    %4199 = vmatpush.bf16.msra.mxu0 %v4187
    %4200 = vmatpush.bf16.msra.mxu0 %v4186
    %4201 = vmatpush.bf16.msra.mxu0 %v4185
    %4202 = vmatpush.bf16.msra.mxu0 %v4184
    %4203 = vmatpush.bf16.msra.mxu0 %v4183
    %4204 = vmatpush.bf16.msra.mxu0 %v3784
    %4205 = vmatpush.bf16.msra.mxu0 %v3783
    %4206 = vmatpush.bf16.msra.mxu0 %v3782
    %4207 = vmatmul.bf16.gmra.mxu0 %v3682
    %v4208 = vpop.f32.mrf.mxu0
    %v4209 = vadd.f32 0.0, %v4208
    %v4210 = vpop.f32.mrf.mxu0
    %v4211 = vadd.f32 0.0, %v4210
    %4212 = vmatmul.bf16.gmra.mxu0 %v3684
    %v4213 = vpop.f32.mrf.mxu0
    %v4214 = vadd.f32 0.0, %v4213
    %v4215 = vpop.f32.mrf.mxu0
    %v4216 = vadd.f32 0.0, %v4215
    %4217 = vmatmul.bf16.gmra.mxu0 %v3686
    %v4218 = vpop.f32.mrf.mxu0
    %v4219 = vadd.f32 0.0, %v4218
    %v4220 = vpop.f32.mrf.mxu0
    %v4221 = vadd.f32 0.0, %v4220
    %4222 = vmatmul.bf16.gmra.mxu0 %v3688
    %v4223 = vpop.f32.mrf.mxu0
    %v4224 = vadd.f32 0.0, %v4223
    %v4225 = vpop.f32.mrf.mxu0
    %v4226 = vadd.f32 0.0, %v4225
    %4227 = vmatmul.bf16.gmra.mxu0 %v3690
    %v4228 = vpop.f32.mrf.mxu0
    %v4229 = vadd.f32 0.0, %v4228
    %v4230 = vpop.f32.mrf.mxu0
    %v4231 = vadd.f32 0.0, %v4230
    %4232 = vmatmul.bf16.gmra.mxu0 %v3692
    %v4233 = vpop.f32.mrf.mxu0
    %v4234 = vadd.f32 0.0, %v4233
    %v4235 = vpop.f32.mrf.mxu0
    %v4236 = vadd.f32 0.0, %v4235
    %4237 = vmatmul.bf16.gmra.mxu0 %v3694
    %v4238 = vpop.f32.mrf.mxu0
    %v4239 = vadd.f32 0.0, %v4238
    %v4240 = vpop.f32.mrf.mxu0
    %v4241 = vadd.f32 0.0, %v4240
    %4242 = vmatmul.bf16.gmra.mxu0 %v3696
    %v4243 = vpop.f32.mrf.mxu0
    %v4244 = vadd.f32 0.0, %v4243
    %v4245 = vpop.f32.mrf.mxu0
    %v4246 = vadd.f32 0.0, %v4245
    %4247 = vmatmul.bf16.gmra.mxu0 %v3698
    %v4248 = vpop.f32.mrf.mxu0
    %v4249 = vadd.f32 0.0, %v4248
    %v4250 = vpop.f32.mrf.mxu0
    %v4251 = vadd.f32 0.0, %v4250
    %4252 = vmatmul.bf16.gmra.mxu0 %v3700
    %v4253 = vpop.f32.mrf.mxu0
    %v4254 = vadd.f32 0.0, %v4253
    %v4255 = vpop.f32.mrf.mxu0
    %v4256 = vadd.f32 0.0, %v4255
    %4257 = vmatmul.bf16.gmra.mxu0 %v3702
    %v4258 = vpop.f32.mrf.mxu0
    %v4259 = vadd.f32 0.0, %v4258
    %v4260 = vpop.f32.mrf.mxu0
    %v4261 = vadd.f32 0.0, %v4260
    %4262 = vmatmul.bf16.gmra.mxu0 %v3704
    %v4263 = vpop.f32.mrf.mxu0
    %v4264 = vadd.f32 0.0, %v4263
    %v4265 = vpop.f32.mrf.mxu0
    %v4266 = vadd.f32 0.0, %v4265
    %4267 = vmatmul.bf16.gmra.mxu0 %v3706
    %v4268 = vpop.f32.mrf.mxu0
    %v4269 = vadd.f32 0.0, %v4268
    %v4270 = vpop.f32.mrf.mxu0
    %v4271 = vadd.f32 0.0, %v4270
    %4272 = vmatmul.bf16.gmra.mxu0 %v3708
    %v4273 = vpop.f32.mrf.mxu0
    %v4274 = vadd.f32 0.0, %v4273
    %v4275 = vpop.f32.mrf.mxu0
    %v4276 = vadd.f32 0.0, %v4275
    %4277 = vmatmul.bf16.gmra.mxu0 %v3710
    %v4278 = vpop.f32.mrf.mxu0
    %v4279 = vadd.f32 0.0, %v4278
    %v4280 = vpop.f32.mrf.mxu0
    %v4281 = vadd.f32 0.0, %v4280
    %4282 = vmatmul.bf16.gmra.mxu0 %v3712
    %v4283 = vpop.f32.mrf.mxu0
    %v4284 = vadd.f32 0.0, %v4283
    %v4285 = vpop.f32.mrf.mxu0
    %v4286 = vadd.f32 0.0, %v4285
    %4287 = vdwg.mxu0
    %4288 = vmatpush.bf16.msra.mxu0 0
    %4289 = vmatpush.bf16.msra.mxu0 0
    %4290 = vmatpush.bf16.msra.mxu0 0
    %4291 = vmatpush.bf16.msra.mxu0 0
    %4292 = vmatpush.bf16.msra.mxu0 0
    %4293 = vmatpush.bf16.msra.mxu0 %v4190
    %4294 = vmatpush.bf16.msra.mxu0 %v4189
    %4295 = vmatpush.bf16.msra.mxu0 %v4188
    %4296 = vmatmul.bf16.gmra.mxu0 %v3798
    %v4297 = vpop.f32.mrf.mxu0
    %v4298 = vadd.f32 %v4209, %v4297
    %v4299 = vpop.f32.mrf.mxu0
    %v4300 = vadd.f32 %v4211, %v4299
    %4301 = vmatmul.bf16.gmra.mxu0 %v3801
    %v4302 = vpop.f32.mrf.mxu0
    %v4303 = vadd.f32 %v4214, %v4302
    %v4304 = vpop.f32.mrf.mxu0
    %v4305 = vadd.f32 %v4216, %v4304
    %4306 = vmatmul.bf16.gmra.mxu0 %v3804
    %v4307 = vpop.f32.mrf.mxu0
    %v4308 = vadd.f32 %v4219, %v4307
    %v4309 = vpop.f32.mrf.mxu0
    %v4310 = vadd.f32 %v4221, %v4309
    %4311 = vmatmul.bf16.gmra.mxu0 %v3807
    %v4312 = vpop.f32.mrf.mxu0
    %v4313 = vadd.f32 %v4224, %v4312
    %v4314 = vpop.f32.mrf.mxu0
    %v4315 = vadd.f32 %v4226, %v4314
    %4316 = vmatmul.bf16.gmra.mxu0 %v3810
    %v4317 = vpop.f32.mrf.mxu0
    %v4318 = vadd.f32 %v4229, %v4317
    %v4319 = vpop.f32.mrf.mxu0
    %v4320 = vadd.f32 %v4231, %v4319
    %4321 = vmatmul.bf16.gmra.mxu0 %v3813
    %v4322 = vpop.f32.mrf.mxu0
    %v4323 = vadd.f32 %v4234, %v4322
    %v4324 = vpop.f32.mrf.mxu0
    %v4325 = vadd.f32 %v4236, %v4324
    %4326 = vmatmul.bf16.gmra.mxu0 %v3816
    %v4327 = vpop.f32.mrf.mxu0
    %v4328 = vadd.f32 %v4239, %v4327
    %v4329 = vpop.f32.mrf.mxu0
    %v4330 = vadd.f32 %v4241, %v4329
    %4331 = vmatmul.bf16.gmra.mxu0 %v3819
    %v4332 = vpop.f32.mrf.mxu0
    %v4333 = vadd.f32 %v4244, %v4332
    %v4334 = vpop.f32.mrf.mxu0
    %v4335 = vadd.f32 %v4246, %v4334
    %4336 = vmatmul.bf16.gmra.mxu0 %v3822
    %v4337 = vpop.f32.mrf.mxu0
    %v4338 = vadd.f32 %v4249, %v4337
    %v4339 = vpop.f32.mrf.mxu0
    %v4340 = vadd.f32 %v4251, %v4339
    %4341 = vmatmul.bf16.gmra.mxu0 %v3825
    %v4342 = vpop.f32.mrf.mxu0
    %v4343 = vadd.f32 %v4254, %v4342
    %v4344 = vpop.f32.mrf.mxu0
    %v4345 = vadd.f32 %v4256, %v4344
    %4346 = vmatmul.bf16.gmra.mxu0 %v3828
    %v4347 = vpop.f32.mrf.mxu0
    %v4348 = vadd.f32 %v4259, %v4347
    %v4349 = vpop.f32.mrf.mxu0
    %v4350 = vadd.f32 %v4261, %v4349
    %4351 = vmatmul.bf16.gmra.mxu0 %v3831
    %v4352 = vpop.f32.mrf.mxu0
    %v4353 = vadd.f32 %v4264, %v4352
    %v4354 = vpop.f32.mrf.mxu0
    %v4355 = vadd.f32 %v4266, %v4354
    %4356 = vmatmul.bf16.gmra.mxu0 %v3834
    %v4357 = vpop.f32.mrf.mxu0
    %v4358 = vadd.f32 %v4269, %v4357
    %v4359 = vpop.f32.mrf.mxu0
    %v4360 = vadd.f32 %v4271, %v4359
    %4361 = vmatmul.bf16.gmra.mxu0 %v3837
    %v4362 = vpop.f32.mrf.mxu0
    %v4363 = vadd.f32 %v4274, %v4362
    %v4364 = vpop.f32.mrf.mxu0
    %v4365 = vadd.f32 %v4276, %v4364
    %4366 = vmatmul.bf16.gmra.mxu0 %v3840
    %v4367 = vpop.f32.mrf.mxu0
    %v4368 = vadd.f32 %v4279, %v4367
    %v4369 = vpop.f32.mrf.mxu0
    %v4370 = vadd.f32 %v4281, %v4369
    %4371 = vmatmul.bf16.gmra.mxu0 %v3843
    %v4372 = vpop.f32.mrf.mxu0
    %v4373 = vadd.f32 %v4284, %v4372
    %v4374 = vpop.f32.mrf.mxu0
    %v4375 = vadd.f32 %v4286, %v4374
    %4376 = vdwg.mxu0
    %v4377 = vpack.c.bf16 %v4298, %v4298
    %v4378 = vpack.c.bf16 %v4300, %v4300
    %v4379 = vpack.c.bf16 %v4303, %v4303
    %v4380 = vpack.c.bf16 %v4305, %v4305
    %v4381 = vpack.c.bf16 %v4308, %v4308
    %v4382 = vpack.c.bf16 %v4310, %v4310
    %v4383 = vpack.c.bf16 %v4313, %v4313
    %v4384 = vpack.c.bf16 %v4315, %v4315
    %v4385 = vpack.c.bf16 %v4318, %v4318
    %v4386 = vpack.c.bf16 %v4320, %v4320
    %v4387 = vpack.c.bf16 %v4323, %v4323
    %v4388 = vpack.c.bf16 %v4325, %v4325
    %v4389 = vpack.c.bf16 %v4328, %v4328
    %v4390 = vpack.c.bf16 %v4330, %v4330
    %v4391 = vpack.c.bf16 %v4333, %v4333
    %v4392 = vpack.c.bf16 %v4335, %v4335
    %v4393 = vpack.c.bf16 %v4338, %v4338
    %v4394 = vpack.c.bf16 %v4340, %v4340
    %v4395 = vpack.c.bf16 %v4343, %v4343
    %v4396 = vpack.c.bf16 %v4345, %v4345
    %v4397 = vpack.c.bf16 %v4348, %v4348
    %v4398 = vpack.c.bf16 %v4350, %v4350
    %v4399 = vpack.c.bf16 %v4353, %v4353
    %v4400 = vpack.c.bf16 %v4355, %v4355
    %v4401 = vpack.c.bf16 %v4358, %v4358
    %v4402 = vpack.c.bf16 %v4360, %v4360
    %v4403 = vpack.c.bf16 %v4363, %v4363
    %v4404 = vpack.c.bf16 %v4365, %v4365
    %v4405 = vpack.c.bf16 %v4368, %v4368
    %v4406 = vpack.c.bf16 %v4370, %v4370
    %v4407 = vpack.c.bf16 %v4373, %v4373
    %v4408 = vpack.c.bf16 %v4375, %v4375
    %v4409 = vunpack.c.l.bf16 %v4377
    %v4410 = vunpack.c.l.bf16 %v4378
    %v4411 = vunpack.c.l.bf16 %v4379
    %v4412 = vunpack.c.l.bf16 %v4380
    %v4413 = vunpack.c.l.bf16 %v4393
    %v4414 = vunpack.c.l.bf16 %v4394
    %v4415 = vunpack.c.l.bf16 %v4395
    %v4416 = vunpack.c.l.bf16 %v4396
    %v4417 = vunpack.c.l.bf16 %v4381
    %v4418 = vunpack.c.l.bf16 %v4382
    %v4419 = vunpack.c.l.bf16 %v4383
    %v4420 = vunpack.c.l.bf16 %v4384
    %v4421 = vunpack.c.l.bf16 %v4397
    %v4422 = vunpack.c.l.bf16 %v4398
    %v4423 = vunpack.c.l.bf16 %v4399
    %v4424 = vunpack.c.l.bf16 %v4400
    %v4425 = vmax.f32 %v4409, %v4417
    %v4426 = vmax.f32 %v4410, %v4418
    %v4427 = vmax.f32 %v4411, %v4419
    %v4428 = vmax.f32 %v4412, %v4420
    %v4429 = vmax.f32 %v4413, %v4421
    %v4430 = vmax.f32 %v4414, %v4422
    %v4431 = vmax.f32 %v4415, %v4423
    %v4432 = vmax.f32 %v4416, %v4424
    %v4433 = vpack.c.bf16 %v4425, %v4425
    %v4434 = vpack.c.bf16 %v4426, %v4426
    %v4435 = vpack.c.bf16 %v4427, %v4427
    %v4436 = vpack.c.bf16 %v4428, %v4428
    %v4437 = vpack.c.bf16 %v4429, %v4429
    %v4438 = vpack.c.bf16 %v4430, %v4430
    %v4439 = vpack.c.bf16 %v4431, %v4431
    %v4440 = vpack.c.bf16 %v4432, %v4432
    %v4441 = vunpack.c.l.bf16 %v4385
    %v4442 = vunpack.c.l.bf16 %v4386
    %v4443 = vunpack.c.l.bf16 %v4387
    %v4444 = vunpack.c.l.bf16 %v4388
    %v4445 = vunpack.c.l.bf16 %v4401
    %v4446 = vunpack.c.l.bf16 %v4402
    %v4447 = vunpack.c.l.bf16 %v4403
    %v4448 = vunpack.c.l.bf16 %v4404
    %v4449 = vunpack.c.l.bf16 %v4389
    %v4450 = vunpack.c.l.bf16 %v4390
    %v4451 = vunpack.c.l.bf16 %v4391
    %v4452 = vunpack.c.l.bf16 %v4392
    %v4453 = vunpack.c.l.bf16 %v4405
    %v4454 = vunpack.c.l.bf16 %v4406
    %v4455 = vunpack.c.l.bf16 %v4407
    %v4456 = vunpack.c.l.bf16 %v4408
    %v4457 = vmax.f32 %v4441, %v4449
    %v4458 = vmax.f32 %v4442, %v4450
    %v4459 = vmax.f32 %v4443, %v4451
    %v4460 = vmax.f32 %v4444, %v4452
    %v4461 = vmax.f32 %v4445, %v4453
    %v4462 = vmax.f32 %v4446, %v4454
    %v4463 = vmax.f32 %v4447, %v4455
    %v4464 = vmax.f32 %v4448, %v4456
    %v4465 = vpack.c.bf16 %v4457, %v4457
    %v4466 = vpack.c.bf16 %v4458, %v4458
    %v4467 = vpack.c.bf16 %v4459, %v4459
    %v4468 = vpack.c.bf16 %v4460, %v4460
    %v4469 = vpack.c.bf16 %v4461, %v4461
    %v4470 = vpack.c.bf16 %v4462, %v4462
    %v4471 = vpack.c.bf16 %v4463, %v4463
    %v4472 = vpack.c.bf16 %v4464, %v4464
    %v4473 = vunpack.c.l.bf16 %v4433
    %v4474 = vunpack.c.l.bf16 %v4434
    %v4475 = vunpack.c.l.bf16 %v4435
    %v4476 = vunpack.c.l.bf16 %v4436
    %v4477 = vunpack.c.l.bf16 %v4437
    %v4478 = vunpack.c.l.bf16 %v4438
    %v4479 = vunpack.c.l.bf16 %v4439
    %v4480 = vunpack.c.l.bf16 %v4440
    %v4481 = vunpack.c.l.bf16 %v4465
    %v4482 = vunpack.c.l.bf16 %v4466
    %v4483 = vunpack.c.l.bf16 %v4467
    %v4484 = vunpack.c.l.bf16 %v4468
    %v4485 = vunpack.c.l.bf16 %v4469
    %v4486 = vunpack.c.l.bf16 %v4470
    %v4487 = vunpack.c.l.bf16 %v4471
    %v4488 = vunpack.c.l.bf16 %v4472
    %v4489 = vmax.f32 %v4473, %v4481
    %v4490 = vmax.f32 %v4474, %v4482
    %v4491 = vmax.f32 %v4475, %v4483
    %v4492 = vmax.f32 %v4476, %v4484
    %v4493 = vmax.f32 %v4477, %v4485
    %v4494 = vmax.f32 %v4478, %v4486
    %v4495 = vmax.f32 %v4479, %v4487
    %v4496 = vmax.f32 %v4480, %v4488
    %v4497 = vpack.c.bf16 %v4489, %v4489
    %v4498 = vpack.c.bf16 %v4490, %v4490
    %v4499 = vpack.c.bf16 %v4491, %v4491
    %v4500 = vpack.c.bf16 %v4492, %v4492
    %v4501 = vpack.c.bf16 %v4493, %v4493
    %v4502 = vpack.c.bf16 %v4494, %v4494
    %v4503 = vpack.c.bf16 %v4495, %v4495
    %v4504 = vpack.c.bf16 %v4496, %v4496
    %v4521 = vunpack.c.l.b16 %v3530
    %v4522 = vunpack.c.l.b16 %v3531
    %v4523 = vunpack.c.l.b16 %v3532
    %v4524 = vunpack.c.l.b16 %v3533
    %v4525 = vunpack.c.l.b16 %v3534
    %v4526 = vunpack.c.l.b16 %v3535
    %v4527 = vunpack.c.l.b16 %v3536
    %v4528 = vunpack.c.l.b16 %v3537
    %v4529 = vunpack.c.l.b16 %v3538
    %v4530 = vunpack.c.l.b16 %v3539
    %v4531 = vunpack.c.l.b16 %v3540
    %v4532 = vunpack.c.l.b16 %v3541
    %v4533 = vunpack.c.l.b16 %v3542
    %v4534 = vunpack.c.l.b16 %v3543
    %v4535 = vunpack.c.l.b16 %v3544
    %v4536 = vunpack.c.l.b16 %v3545
    %v4537 = vpack.c.b16 %v4522, %v4521
    %v4538 = vpack.c.b16 %v4524, %v4523
    %v4539 = vpack.c.b16 %v4526, %v4525
    %v4540 = vpack.c.b16 %v4528, %v4527
    %v4541 = vpack.c.b16 %v4530, %v4529
    %v4542 = vpack.c.b16 %v4532, %v4531
    %v4543 = vpack.c.b16 %v4534, %v4533
    %v4544 = vpack.c.b16 %v4536, %v4535
    %4553 = vmatpush.bf16.msra.mxu0 %v4541
    %4554 = vmatpush.bf16.msra.mxu0 %v4540
    %4555 = vmatpush.bf16.msra.mxu0 %v4539
    %4556 = vmatpush.bf16.msra.mxu0 %v4538
    %4557 = vmatpush.bf16.msra.mxu0 %v4537
    %4558 = vmatpush.bf16.msra.mxu0 %v4190
    %4559 = vmatpush.bf16.msra.mxu0 %v4189
    %4560 = vmatpush.bf16.msra.mxu0 %v4188
    %4561 = vmatmul.bf16.gmra.mxu0 %v3682
    %v4562 = vpop.f32.mrf.mxu0
    %v4563 = vadd.f32 0.0, %v4562
    %v4564 = vpop.f32.mrf.mxu0
    %v4565 = vadd.f32 0.0, %v4564
    %4566 = vmatmul.bf16.gmra.mxu0 %v3684
    %v4567 = vpop.f32.mrf.mxu0
    %v4568 = vadd.f32 0.0, %v4567
    %v4569 = vpop.f32.mrf.mxu0
    %v4570 = vadd.f32 0.0, %v4569
    %4571 = vmatmul.bf16.gmra.mxu0 %v3686
    %v4572 = vpop.f32.mrf.mxu0
    %v4573 = vadd.f32 0.0, %v4572
    %v4574 = vpop.f32.mrf.mxu0
    %v4575 = vadd.f32 0.0, %v4574
    %4576 = vmatmul.bf16.gmra.mxu0 %v3688
    %v4577 = vpop.f32.mrf.mxu0
    %v4578 = vadd.f32 0.0, %v4577
    %v4579 = vpop.f32.mrf.mxu0
    %v4580 = vadd.f32 0.0, %v4579
    %4581 = vmatmul.bf16.gmra.mxu0 %v3690
    %v4582 = vpop.f32.mrf.mxu0
    %v4583 = vadd.f32 0.0, %v4582
    %v4584 = vpop.f32.mrf.mxu0
    %v4585 = vadd.f32 0.0, %v4584
    %4586 = vmatmul.bf16.gmra.mxu0 %v3692
    %v4587 = vpop.f32.mrf.mxu0
    %v4588 = vadd.f32 0.0, %v4587
    %v4589 = vpop.f32.mrf.mxu0
    %v4590 = vadd.f32 0.0, %v4589
    %4591 = vmatmul.bf16.gmra.mxu0 %v3694
    %v4592 = vpop.f32.mrf.mxu0
    %v4593 = vadd.f32 0.0, %v4592
    %v4594 = vpop.f32.mrf.mxu0
    %v4595 = vadd.f32 0.0, %v4594
    %4596 = vmatmul.bf16.gmra.mxu0 %v3696
    %v4597 = vpop.f32.mrf.mxu0
    %v4598 = vadd.f32 0.0, %v4597
    %v4599 = vpop.f32.mrf.mxu0
    %v4600 = vadd.f32 0.0, %v4599
    %4601 = vmatmul.bf16.gmra.mxu0 %v3698
    %v4602 = vpop.f32.mrf.mxu0
    %v4603 = vadd.f32 0.0, %v4602
    %v4604 = vpop.f32.mrf.mxu0
    %v4605 = vadd.f32 0.0, %v4604
    %4606 = vmatmul.bf16.gmra.mxu0 %v3700
    %v4607 = vpop.f32.mrf.mxu0
    %v4608 = vadd.f32 0.0, %v4607
    %v4609 = vpop.f32.mrf.mxu0
    %v4610 = vadd.f32 0.0, %v4609
    %4611 = vmatmul.bf16.gmra.mxu0 %v3702
    %v4612 = vpop.f32.mrf.mxu0
    %v4613 = vadd.f32 0.0, %v4612
    %v4614 = vpop.f32.mrf.mxu0
    %v4615 = vadd.f32 0.0, %v4614
    %4616 = vmatmul.bf16.gmra.mxu0 %v3704
    %v4617 = vpop.f32.mrf.mxu0
    %v4618 = vadd.f32 0.0, %v4617
    %v4619 = vpop.f32.mrf.mxu0
    %v4620 = vadd.f32 0.0, %v4619
    %4621 = vmatmul.bf16.gmra.mxu0 %v3706
    %v4622 = vpop.f32.mrf.mxu0
    %v4623 = vadd.f32 0.0, %v4622
    %v4624 = vpop.f32.mrf.mxu0
    %v4625 = vadd.f32 0.0, %v4624
    %4626 = vmatmul.bf16.gmra.mxu0 %v3708
    %v4627 = vpop.f32.mrf.mxu0
    %v4628 = vadd.f32 0.0, %v4627
    %v4629 = vpop.f32.mrf.mxu0
    %v4630 = vadd.f32 0.0, %v4629
    %4631 = vmatmul.bf16.gmra.mxu0 %v3710
    %v4632 = vpop.f32.mrf.mxu0
    %v4633 = vadd.f32 0.0, %v4632
    %v4634 = vpop.f32.mrf.mxu0
    %v4635 = vadd.f32 0.0, %v4634
    %4636 = vmatmul.bf16.gmra.mxu0 %v3712
    %v4637 = vpop.f32.mrf.mxu0
    %v4638 = vadd.f32 0.0, %v4637
    %v4639 = vpop.f32.mrf.mxu0
    %v4640 = vadd.f32 0.0, %v4639
    %4641 = vdwg.mxu0
    %4642 = vmatpush.bf16.msra.mxu0 0
    %4643 = vmatpush.bf16.msra.mxu0 0
    %4644 = vmatpush.bf16.msra.mxu0 0
    %4645 = vmatpush.bf16.msra.mxu0 0
    %4646 = vmatpush.bf16.msra.mxu0 0
    %4647 = vmatpush.bf16.msra.mxu0 %v4544
    %4648 = vmatpush.bf16.msra.mxu0 %v4543
    %4649 = vmatpush.bf16.msra.mxu0 %v4542
    %4650 = vmatmul.bf16.gmra.mxu0 %v3798
    %v4651 = vpop.f32.mrf.mxu0
    %v4652 = vadd.f32 %v4563, %v4651
    %v4653 = vpop.f32.mrf.mxu0
    %v4654 = vadd.f32 %v4565, %v4653
    %4655 = vmatmul.bf16.gmra.mxu0 %v3801
    %v4656 = vpop.f32.mrf.mxu0
    %v4657 = vadd.f32 %v4568, %v4656
    %v4658 = vpop.f32.mrf.mxu0
    %v4659 = vadd.f32 %v4570, %v4658
    %4660 = vmatmul.bf16.gmra.mxu0 %v3804
    %v4661 = vpop.f32.mrf.mxu0
    %v4662 = vadd.f32 %v4573, %v4661
    %v4663 = vpop.f32.mrf.mxu0
    %v4664 = vadd.f32 %v4575, %v4663
    %4665 = vmatmul.bf16.gmra.mxu0 %v3807
    %v4666 = vpop.f32.mrf.mxu0
    %v4667 = vadd.f32 %v4578, %v4666
    %v4668 = vpop.f32.mrf.mxu0
    %v4669 = vadd.f32 %v4580, %v4668
    %4670 = vmatmul.bf16.gmra.mxu0 %v3810
    %v4671 = vpop.f32.mrf.mxu0
    %v4672 = vadd.f32 %v4583, %v4671
    %v4673 = vpop.f32.mrf.mxu0
    %v4674 = vadd.f32 %v4585, %v4673
    %4675 = vmatmul.bf16.gmra.mxu0 %v3813
    %v4676 = vpop.f32.mrf.mxu0
    %v4677 = vadd.f32 %v4588, %v4676
    %v4678 = vpop.f32.mrf.mxu0
    %v4679 = vadd.f32 %v4590, %v4678
    %4680 = vmatmul.bf16.gmra.mxu0 %v3816
    %v4681 = vpop.f32.mrf.mxu0
    %v4682 = vadd.f32 %v4593, %v4681
    %v4683 = vpop.f32.mrf.mxu0
    %v4684 = vadd.f32 %v4595, %v4683
    %4685 = vmatmul.bf16.gmra.mxu0 %v3819
    %v4686 = vpop.f32.mrf.mxu0
    %v4687 = vadd.f32 %v4598, %v4686
    %v4688 = vpop.f32.mrf.mxu0
    %v4689 = vadd.f32 %v4600, %v4688
    %4690 = vmatmul.bf16.gmra.mxu0 %v3822
    %v4691 = vpop.f32.mrf.mxu0
    %v4692 = vadd.f32 %v4603, %v4691
    %v4693 = vpop.f32.mrf.mxu0
    %v4694 = vadd.f32 %v4605, %v4693
    %4695 = vmatmul.bf16.gmra.mxu0 %v3825
    %v4696 = vpop.f32.mrf.mxu0
    %v4697 = vadd.f32 %v4608, %v4696
    %v4698 = vpop.f32.mrf.mxu0
    %v4699 = vadd.f32 %v4610, %v4698
    %4700 = vmatmul.bf16.gmra.mxu0 %v3828
    %v4701 = vpop.f32.mrf.mxu0
    %v4702 = vadd.f32 %v4613, %v4701
    %v4703 = vpop.f32.mrf.mxu0
    %v4704 = vadd.f32 %v4615, %v4703
    %4705 = vmatmul.bf16.gmra.mxu0 %v3831
    %v4706 = vpop.f32.mrf.mxu0
    %v4707 = vadd.f32 %v4618, %v4706
    %v4708 = vpop.f32.mrf.mxu0
    %v4709 = vadd.f32 %v4620, %v4708
    %4710 = vmatmul.bf16.gmra.mxu0 %v3834
    %v4711 = vpop.f32.mrf.mxu0
    %v4712 = vadd.f32 %v4623, %v4711
    %v4713 = vpop.f32.mrf.mxu0
    %v4714 = vadd.f32 %v4625, %v4713
    %4715 = vmatmul.bf16.gmra.mxu0 %v3837
    %v4716 = vpop.f32.mrf.mxu0
    %v4717 = vadd.f32 %v4628, %v4716
    %v4718 = vpop.f32.mrf.mxu0
    %v4719 = vadd.f32 %v4630, %v4718
    %4720 = vmatmul.bf16.gmra.mxu0 %v3840
    %v4721 = vpop.f32.mrf.mxu0
    %v4722 = vadd.f32 %v4633, %v4721
    %v4723 = vpop.f32.mrf.mxu0
    %v4724 = vadd.f32 %v4635, %v4723
    %4725 = vmatmul.bf16.gmra.mxu0 %v3843
    %v4726 = vpop.f32.mrf.mxu0
    %v4727 = vadd.f32 %v4638, %v4726
    %v4728 = vpop.f32.mrf.mxu0
    %v4729 = vadd.f32 %v4640, %v4728
    %4730 = vdwg.mxu0
    %v4731 = vpack.c.bf16 %v4652, %v4652
    %v4732 = vpack.c.bf16 %v4654, %v4654
    %v4733 = vpack.c.bf16 %v4657, %v4657
    %v4734 = vpack.c.bf16 %v4659, %v4659
    %v4735 = vpack.c.bf16 %v4662, %v4662
    %v4736 = vpack.c.bf16 %v4664, %v4664
    %v4737 = vpack.c.bf16 %v4667, %v4667
    %v4738 = vpack.c.bf16 %v4669, %v4669
    %v4739 = vpack.c.bf16 %v4672, %v4672
    %v4740 = vpack.c.bf16 %v4674, %v4674
    %v4741 = vpack.c.bf16 %v4677, %v4677
    %v4742 = vpack.c.bf16 %v4679, %v4679
    %v4743 = vpack.c.bf16 %v4682, %v4682
    %v4744 = vpack.c.bf16 %v4684, %v4684
    %v4745 = vpack.c.bf16 %v4687, %v4687
    %v4746 = vpack.c.bf16 %v4689, %v4689
    %v4747 = vpack.c.bf16 %v4692, %v4692
    %v4748 = vpack.c.bf16 %v4694, %v4694
    %v4749 = vpack.c.bf16 %v4697, %v4697
    %v4750 = vpack.c.bf16 %v4699, %v4699
    %v4751 = vpack.c.bf16 %v4702, %v4702
    %v4752 = vpack.c.bf16 %v4704, %v4704
    %v4753 = vpack.c.bf16 %v4707, %v4707
    %v4754 = vpack.c.bf16 %v4709, %v4709
    %v4755 = vpack.c.bf16 %v4712, %v4712
    %v4756 = vpack.c.bf16 %v4714, %v4714
    %v4757 = vpack.c.bf16 %v4717, %v4717
    %v4758 = vpack.c.bf16 %v4719, %v4719
    %v4759 = vpack.c.bf16 %v4722, %v4722
    %v4760 = vpack.c.bf16 %v4724, %v4724
    %v4761 = vpack.c.bf16 %v4727, %v4727
    %v4762 = vpack.c.bf16 %v4729, %v4729
    %v4763 = vunpack.c.l.bf16 %v4731
    %v4764 = vunpack.c.l.bf16 %v4732
    %v4765 = vunpack.c.l.bf16 %v4733
    %v4766 = vunpack.c.l.bf16 %v4734
    %v4767 = vunpack.c.l.bf16 %v4747
    %v4768 = vunpack.c.l.bf16 %v4748
    %v4769 = vunpack.c.l.bf16 %v4749
    %v4770 = vunpack.c.l.bf16 %v4750
    %v4771 = vunpack.c.l.bf16 %v4735
    %v4772 = vunpack.c.l.bf16 %v4736
    %v4773 = vunpack.c.l.bf16 %v4737
    %v4774 = vunpack.c.l.bf16 %v4738
    %v4775 = vunpack.c.l.bf16 %v4751
    %v4776 = vunpack.c.l.bf16 %v4752
    %v4777 = vunpack.c.l.bf16 %v4753
    %v4778 = vunpack.c.l.bf16 %v4754
    %v4779 = vmax.f32 %v4763, %v4771
    %v4780 = vmax.f32 %v4764, %v4772
    %v4781 = vmax.f32 %v4765, %v4773
    %v4782 = vmax.f32 %v4766, %v4774
    %v4783 = vmax.f32 %v4767, %v4775
    %v4784 = vmax.f32 %v4768, %v4776
    %v4785 = vmax.f32 %v4769, %v4777
    %v4786 = vmax.f32 %v4770, %v4778
    %v4787 = vpack.c.bf16 %v4779, %v4779
    %v4788 = vpack.c.bf16 %v4780, %v4780
    %v4789 = vpack.c.bf16 %v4781, %v4781
    %v4790 = vpack.c.bf16 %v4782, %v4782
    %v4791 = vpack.c.bf16 %v4783, %v4783
    %v4792 = vpack.c.bf16 %v4784, %v4784
    %v4793 = vpack.c.bf16 %v4785, %v4785
    %v4794 = vpack.c.bf16 %v4786, %v4786
    %v4795 = vunpack.c.l.bf16 %v4739
    %v4796 = vunpack.c.l.bf16 %v4740
    %v4797 = vunpack.c.l.bf16 %v4741
    %v4798 = vunpack.c.l.bf16 %v4742
    %v4799 = vunpack.c.l.bf16 %v4755
    %v4800 = vunpack.c.l.bf16 %v4756
    %v4801 = vunpack.c.l.bf16 %v4757
    %v4802 = vunpack.c.l.bf16 %v4758
    %v4803 = vunpack.c.l.bf16 %v4743
    %v4804 = vunpack.c.l.bf16 %v4744
    %v4805 = vunpack.c.l.bf16 %v4745
    %v4806 = vunpack.c.l.bf16 %v4746
    %v4807 = vunpack.c.l.bf16 %v4759
    %v4808 = vunpack.c.l.bf16 %v4760
    %v4809 = vunpack.c.l.bf16 %v4761
    %v4810 = vunpack.c.l.bf16 %v4762
    %v4811 = vmax.f32 %v4795, %v4803
    %v4812 = vmax.f32 %v4796, %v4804
    %v4813 = vmax.f32 %v4797, %v4805
    %v4814 = vmax.f32 %v4798, %v4806
    %v4815 = vmax.f32 %v4799, %v4807
    %v4816 = vmax.f32 %v4800, %v4808
    %v4817 = vmax.f32 %v4801, %v4809
    %v4818 = vmax.f32 %v4802, %v4810
    %v4819 = vpack.c.bf16 %v4811, %v4811
    %v4820 = vpack.c.bf16 %v4812, %v4812
    %v4821 = vpack.c.bf16 %v4813, %v4813
    %v4822 = vpack.c.bf16 %v4814, %v4814
    %v4823 = vpack.c.bf16 %v4815, %v4815
    %v4824 = vpack.c.bf16 %v4816, %v4816
    %v4825 = vpack.c.bf16 %v4817, %v4817
    %v4826 = vpack.c.bf16 %v4818, %v4818
    %v4827 = vunpack.c.l.bf16 %v4787
    %v4828 = vunpack.c.l.bf16 %v4788
    %v4829 = vunpack.c.l.bf16 %v4789
    %v4830 = vunpack.c.l.bf16 %v4790
    %v4831 = vunpack.c.l.bf16 %v4791
    %v4832 = vunpack.c.l.bf16 %v4792
    %v4833 = vunpack.c.l.bf16 %v4793
    %v4834 = vunpack.c.l.bf16 %v4794
    %v4835 = vunpack.c.l.bf16 %v4819
    %v4836 = vunpack.c.l.bf16 %v4820
    %v4837 = vunpack.c.l.bf16 %v4821
    %v4838 = vunpack.c.l.bf16 %v4822
    %v4839 = vunpack.c.l.bf16 %v4823
    %v4840 = vunpack.c.l.bf16 %v4824
    %v4841 = vunpack.c.l.bf16 %v4825
    %v4842 = vunpack.c.l.bf16 %v4826
    %v4843 = vmax.f32 %v4827, %v4835
    %v4844 = vmax.f32 %v4828, %v4836
    %v4845 = vmax.f32 %v4829, %v4837
    %v4846 = vmax.f32 %v4830, %v4838
    %v4847 = vmax.f32 %v4831, %v4839
    %v4848 = vmax.f32 %v4832, %v4840
    %v4849 = vmax.f32 %v4833, %v4841
    %v4850 = vmax.f32 %v4834, %v4842
    %v4851 = vpack.c.bf16 %v4843, %v4843
    %v4852 = vpack.c.bf16 %v4844, %v4844
    %v4853 = vpack.c.bf16 %v4845, %v4845
    %v4854 = vpack.c.bf16 %v4846, %v4846
    %v4855 = vpack.c.bf16 %v4847, %v4847
    %v4856 = vpack.c.bf16 %v4848, %v4848
    %v4857 = vpack.c.bf16 %v4849, %v4849
    %v4858 = vpack.c.bf16 %v4850, %v4850
    %v4859 = vld [vmem:[%s4] sm:$0xf]
    %v4860 = vld [vmem:[%s4 + $0x4] sm:$0xf]
    %v4861 = vld [vmem:[%s4 + $0x8] sm:$0xf]
    %v4862 = vld [vmem:[%s4 + $0xc] sm:$0xf]
    %v4863 = vld [vmem:[%s4 + $0x10] sm:$0xf]
    %v4864 = vld [vmem:[%s4 + $0x14] sm:$0xf]
    %v4865 = vld [vmem:[%s4 + $0x18] sm:$0xf]
    %v4866 = vld [vmem:[%s4 + $0x1c] sm:$0xf]
    %v4867 = vld [vmem:[%s4 + $0x20] sm:$0xf]
    %v4868 = vld [vmem:[%s4 + $0x24] sm:$0xf]
    %v4869 = vld [vmem:[%s4 + $0x28] sm:$0xf]
    %v4870 = vld [vmem:[%s4 + $0x2c] sm:$0xf]
    %v4871 = vld [vmem:[%s4 + $0x30] sm:$0xf]
    %v4872 = vld [vmem:[%s4 + $0x34] sm:$0xf]
    %v4873 = vld [vmem:[%s4 + $0x38] sm:$0xf]
    %v4874 = vld [vmem:[%s4 + $0x3c] sm:$0xf]
    %v4891 = vunpack.c.l.b16 %v4859
    %v4892 = vunpack.c.l.b16 %v4860
    %v4893 = vunpack.c.l.b16 %v4861
    %v4894 = vunpack.c.l.b16 %v4862
    %v4895 = vunpack.c.l.b16 %v4863
    %v4896 = vunpack.c.l.b16 %v4864
    %v4897 = vunpack.c.l.b16 %v4865
    %v4898 = vunpack.c.l.b16 %v4866
    %v4899 = vunpack.c.l.b16 %v4867
    %v4900 = vunpack.c.l.b16 %v4868
    %v4901 = vunpack.c.l.b16 %v4869
    %v4902 = vunpack.c.l.b16 %v4870
    %v4903 = vunpack.c.l.b16 %v4871
    %v4904 = vunpack.c.l.b16 %v4872
    %v4905 = vunpack.c.l.b16 %v4873
    %v4906 = vunpack.c.l.b16 %v4874
    %v4907 = vpack.c.b16 %v4892, %v4891
    %v4908 = vpack.c.b16 %v4894, %v4893
    %v4909 = vpack.c.b16 %v4896, %v4895
    %v4910 = vpack.c.b16 %v4898, %v4897
    %v4911 = vpack.c.b16 %v4900, %v4899
    %v4912 = vpack.c.b16 %v4902, %v4901
    %v4913 = vpack.c.b16 %v4904, %v4903
    %v4914 = vpack.c.b16 %v4906, %v4905
    %v4923 = vunpack.c.l.b16 %v3546
    %v4924 = vunpack.c.l.b16 %v3547
    %v4925 = vunpack.c.l.b16 %v3548
    %v4926 = vunpack.c.l.b16 %v3549
    %v4927 = vunpack.c.l.b16 %v3550
    %v4928 = vunpack.c.l.b16 %v3551
    %v4929 = vunpack.c.l.b16 %v3552
    %v4930 = vunpack.c.l.b16 %v3553
    %v4931 = vpack.c.b16 %v4924, %v4923
    %v4932 = vpack.c.b16 %v4926, %v4925
    %v4933 = vpack.c.b16 %v4928, %v4927
    %v4934 = vpack.c.b16 %v4930, %v4929
    %vm4939 = vcmask 916480
    %v4941 = vsel %vm4939, %v4907, 0
    %v4944 = vsel %vm4939, %v4908, 0
    %v4947 = vsel %vm4939, %v4909, 0
    %v4950 = vsel %vm4939, %v4910, 0
    %v4953 = vsel %vm4939, %v4911, 0
    %v4956 = vsel %vm4939, %v4912, 0
    %v4959 = vsel %vm4939, %v4913, 0
    %v4962 = vsel %vm4939, %v4914, 0
    %4964 = vmatpush.bf16.msra.mxu0 0
    %4965 = vmatpush.bf16.msra.mxu0 %v4934
    %4966 = vmatpush.bf16.msra.mxu0 %v4933
    %4967 = vmatpush.bf16.msra.mxu0 %v4932
    %4968 = vmatpush.bf16.msra.mxu0 %v4931
    %4969 = vmatpush.bf16.msra.mxu0 %v4544
    %4970 = vmatpush.bf16.msra.mxu0 %v4543
    %4971 = vmatpush.bf16.msra.mxu0 %v4542
    %4972 = vmatmul.bf16.gmra.mxu0 %v4941
    %v4973 = vpop.f32.mrf.mxu0
    %v4974 = vadd.f32 0.0, %v4973
    %v4975 = vpop.f32.mrf.mxu0
    %v4976 = vadd.f32 0.0, %v4975
    %4977 = vmatmul.bf16.gmra.mxu0 %v4944
    %v4978 = vpop.f32.mrf.mxu0
    %v4979 = vadd.f32 0.0, %v4978
    %v4980 = vpop.f32.mrf.mxu0
    %v4981 = vadd.f32 0.0, %v4980
    %4982 = vmatmul.bf16.gmra.mxu0 %v4947
    %v4983 = vpop.f32.mrf.mxu0
    %v4984 = vadd.f32 0.0, %v4983
    %v4985 = vpop.f32.mrf.mxu0
    %v4986 = vadd.f32 0.0, %v4985
    %4987 = vmatmul.bf16.gmra.mxu0 %v4950
    %v4988 = vpop.f32.mrf.mxu0
    %v4989 = vadd.f32 0.0, %v4988
    %v4990 = vpop.f32.mrf.mxu0
    %v4991 = vadd.f32 0.0, %v4990
    %4992 = vmatmul.bf16.gmra.mxu0 %v4953
    %v4993 = vpop.f32.mrf.mxu0
    %v4994 = vadd.f32 0.0, %v4993
    %v4995 = vpop.f32.mrf.mxu0
    %v4996 = vadd.f32 0.0, %v4995
    %4997 = vmatmul.bf16.gmra.mxu0 %v4956
    %v4998 = vpop.f32.mrf.mxu0
    %v4999 = vadd.f32 0.0, %v4998
    %v5000 = vpop.f32.mrf.mxu0
    %v5001 = vadd.f32 0.0, %v5000
    %5002 = vmatmul.bf16.gmra.mxu0 %v4959
    %v5003 = vpop.f32.mrf.mxu0
    %v5004 = vadd.f32 0.0, %v5003
    %v5005 = vpop.f32.mrf.mxu0
    %v5006 = vadd.f32 0.0, %v5005
    %5007 = vmatmul.bf16.gmra.mxu0 %v4962
    %v5008 = vpop.f32.mrf.mxu0
    %v5009 = vadd.f32 0.0, %v5008
    %v5010 = vpop.f32.mrf.mxu0
    %v5011 = vadd.f32 0.0, %v5010
    %5012 = vdwg.mxu0
    %v5013 = vpack.c.bf16 %v4974, %v4974
    %v5014 = vpack.c.bf16 %v4976, %v4976
    %v5015 = vpack.c.bf16 %v4979, %v4979
    %v5016 = vpack.c.bf16 %v4981, %v4981
    %v5017 = vpack.c.bf16 %v4984, %v4984
    %v5018 = vpack.c.bf16 %v4986, %v4986
    %v5019 = vpack.c.bf16 %v4989, %v4989
    %v5020 = vpack.c.bf16 %v4991, %v4991
    %v5021 = vpack.c.bf16 %v4994, %v4994
    %v5022 = vpack.c.bf16 %v4996, %v4996
    %v5023 = vpack.c.bf16 %v4999, %v4999
    %v5024 = vpack.c.bf16 %v5001, %v5001
    %v5025 = vpack.c.bf16 %v5004, %v5004
    %v5026 = vpack.c.bf16 %v5006, %v5006
    %v5027 = vpack.c.bf16 %v5009, %v5009
    %v5028 = vpack.c.bf16 %v5011, %v5011
    %v5029 = vunpack.c.l.bf16 %v5013
    %v5030 = vunpack.c.l.bf16 %v5014
    %v5031 = vunpack.c.l.bf16 %v5015
    %v5032 = vunpack.c.l.bf16 %v5016
    %v5033 = vunpack.c.l.bf16 %v5017
    %v5034 = vunpack.c.l.bf16 %v5018
    %v5035 = vunpack.c.l.bf16 %v5019
    %v5036 = vunpack.c.l.bf16 %v5020
    %v5037 = vmax.f32 %v5029, %v5033
    %v5038 = vmax.f32 %v5030, %v5034
    %v5039 = vmax.f32 %v5031, %v5035
    %v5040 = vmax.f32 %v5032, %v5036
    %v5041 = vpack.c.bf16 %v5037, %v5037
    %v5042 = vpack.c.bf16 %v5038, %v5038
    %v5043 = vpack.c.bf16 %v5039, %v5039
    %v5044 = vpack.c.bf16 %v5040, %v5040
    %v5045 = vunpack.c.l.bf16 %v5021
    %v5046 = vunpack.c.l.bf16 %v5022
    %v5047 = vunpack.c.l.bf16 %v5023
    %v5048 = vunpack.c.l.bf16 %v5024
    %v5049 = vunpack.c.l.bf16 %v5025
    %v5050 = vunpack.c.l.bf16 %v5026
    %v5051 = vunpack.c.l.bf16 %v5027
    %v5052 = vunpack.c.l.bf16 %v5028
    %v5053 = vmax.f32 %v5045, %v5049
    %v5054 = vmax.f32 %v5046, %v5050
    %v5055 = vmax.f32 %v5047, %v5051
    %v5056 = vmax.f32 %v5048, %v5052
    %v5057 = vpack.c.bf16 %v5053, %v5053
    %v5058 = vpack.c.bf16 %v5054, %v5054
    %v5059 = vpack.c.bf16 %v5055, %v5055
    %v5060 = vpack.c.bf16 %v5056, %v5056
    %v5061 = vunpack.c.l.bf16 %v5041
    %v5062 = vunpack.c.l.bf16 %v5042
    %v5063 = vunpack.c.l.bf16 %v5043
    %v5064 = vunpack.c.l.bf16 %v5044
    %v5065 = vunpack.c.l.bf16 %v5057
    %v5066 = vunpack.c.l.bf16 %v5058
    %v5067 = vunpack.c.l.bf16 %v5059
    %v5068 = vunpack.c.l.bf16 %v5060
    %v5069 = vmax.f32 %v5061, %v5065
    %v5070 = vmax.f32 %v5062, %v5066
    %v5071 = vmax.f32 %v5063, %v5067
    %v5072 = vmax.f32 %v5064, %v5068
    %v5073 = vpack.c.bf16 %v5069, %v5069
    %v5074 = vpack.c.bf16 %v5070, %v5070
    %v5075 = vpack.c.bf16 %v5071, %v5071
    %v5076 = vpack.c.bf16 %v5072, %v5072
    %v5085 = vunpack.c.l.b16 %v4143
    %v5086 = vunpack.c.l.b16 %v4144
    %v5087 = vunpack.c.l.b16 %v4145
    %v5088 = vunpack.c.l.b16 %v4146
    %v5089 = vunpack.c.l.b16 %v4147
    %v5090 = vunpack.c.l.b16 %v4148
    %v5091 = vunpack.c.l.b16 %v4149
    %v5092 = vunpack.c.l.b16 %v4150
    %v5093 = vpack.c.b16 %v5086, %v5085
    %v5094 = vpack.c.b16 %v5088, %v5087
    %v5095 = vpack.c.b16 %v5090, %v5089
    %v5096 = vpack.c.b16 %v5092, %v5091
    %v5109 = vunpack.c.l.b16 %v4497
    %v5110 = vunpack.c.l.b16 %v4498
    %v5111 = vunpack.c.l.b16 %v4499
    %v5112 = vunpack.c.l.b16 %v4500
    %v5113 = vunpack.c.l.b16 %v4501
    %v5114 = vunpack.c.l.b16 %v4502
    %v5115 = vunpack.c.l.b16 %v4503
    %v5116 = vunpack.c.l.b16 %v4504
    %v5117 = vpack.c.b16 %v5110, %v5109
    %v5118 = vpack.c.b16 %v5112, %v5111
    %v5119 = vpack.c.b16 %v5114, %v5113
    %v5120 = vpack.c.b16 %v5116, %v5115
    %v5133 = vunpack.c.l.b16 %v4851
    %v5134 = vunpack.c.l.b16 %v4852
    %v5135 = vunpack.c.l.b16 %v4853
    %v5136 = vunpack.c.l.b16 %v4854
    %v5137 = vunpack.c.l.b16 %v4855
    %v5138 = vunpack.c.l.b16 %v4856
    %v5139 = vunpack.c.l.b16 %v4857
    %v5140 = vunpack.c.l.b16 %v4858
    %v5141 = vpack.c.b16 %v5134, %v5133
    %v5142 = vpack.c.b16 %v5136, %v5135
    %v5143 = vpack.c.b16 %v5138, %v5137
    %v5144 = vpack.c.b16 %v5140, %v5139
    %v5153 = vunpack.c.l.b16 %v5073
    %v5154 = vunpack.c.l.b16 %v5074
    %v5155 = vunpack.c.l.b16 %v5075
    %v5156 = vunpack.c.l.b16 %v5076
    %v5157 = vpack.c.b16 %v5154, %v5153
    %v5158 = vpack.c.b16 %v5156, %v5155
    %v5161 = vld [vmem:[%s5] sm:$0xf]
    %v5162 = vld [vmem:[%s5 + $0x4] sm:$0xf]
    %v5163 = vld [vmem:[%s5 + $0x8] sm:$0xf]
    %v5164 = vld [vmem:[%s5 + $0xc] sm:$0xf]
    %v5165 = vld [vmem:[%s5 + $0x10] sm:$0xf]
    %v5166 = vld [vmem:[%s5 + $0x14] sm:$0xf]
    %v5167 = vld [vmem:[%s5 + $0x18] sm:$0xf]
    %v5168 = vld [vmem:[%s5 + $0x1c] sm:$0xf]
    %v5169 = vld [vmem:[%s5 + $0x20] sm:$0xf]
    %v5170 = vld [vmem:[%s5 + $0x24] sm:$0xf]
    %v5171 = vld [vmem:[%s5 + $0x28] sm:$0xf]
    %v5172 = vld [vmem:[%s5 + $0x2c] sm:$0xf]
    %v5173 = vld [vmem:[%s5 + $0x30] sm:$0xf]
    %v5174 = vld [vmem:[%s5 + $0x34] sm:$0xf]
    %v5175 = vld [vmem:[%s5 + $0x38] sm:$0xf]
    %v5176 = vld [vmem:[%s5 + $0x3c] sm:$0xf]
    %v5177 = vld [vmem:[%s5 + $0x40] sm:$0xf]
    %v5178 = vld [vmem:[%s5 + $0x44] sm:$0xf]
    %v5179 = vld [vmem:[%s5 + $0x48] sm:$0xf]
    %v5180 = vld [vmem:[%s5 + $0x4c] sm:$0xf]
    %v5181 = vld [vmem:[%s5 + $0x50] sm:$0xf]
    %v5182 = vld [vmem:[%s5 + $0x54] sm:$0xf]
    %v5183 = vld [vmem:[%s5 + $0x58] sm:$0xf]
    %v5184 = vld [vmem:[%s5 + $0x5c] sm:$0xf]
    %v5185 = vld [vmem:[%s5 + $0x60] sm:$0xf]
    %v5186 = vld [vmem:[%s5 + $0x64] sm:$0xf]
    %v5187 = vld [vmem:[%s5 + $0x68] sm:$0xf]
    %v5188 = vld [vmem:[%s5 + $0x6c] sm:$0xf]
    %5190 = vset.pattern.permute.xlu0 0
    %5191 = vperm.xlu0 %5190, %v5161
    %v5192 = vpop.permute.xlu0 %5191
    %v5195 = vunpack.c.l.s4 839922192
    %v5196 = vunpack.c.0.s8 %v5195
    %v5197 = vperm.slane %v5192, %v5196
    %5199 = vset.pattern.permute.xlu0 0
    %5200 = vperm.xlu0 %5199, %v5162
    %v5201 = vpop.permute.xlu0 %5200
    %v5204 = vunpack.c.l.s4 839922192
    %v5205 = vunpack.c.0.s8 %v5204
    %v5206 = vperm.slane %v5201, %v5205
    %5208 = vset.pattern.permute.xlu0 0
    %5209 = vperm.xlu0 %5208, %v5163
    %v5210 = vpop.permute.xlu0 %5209
    %v5213 = vunpack.c.l.s4 839922192
    %v5214 = vunpack.c.0.s8 %v5213
    %v5215 = vperm.slane %v5210, %v5214
    %5217 = vset.pattern.permute.xlu0 0
    %5218 = vperm.xlu0 %5217, %v5164
    %v5219 = vpop.permute.xlu0 %5218
    %v5222 = vunpack.c.l.s4 839922192
    %v5223 = vunpack.c.0.s8 %v5222
    %v5224 = vperm.slane %v5219, %v5223
    %5226 = vset.pattern.permute.xlu0 0
    %5227 = vperm.xlu0 %5226, %v5165
    %v5228 = vpop.permute.xlu0 %5227
    %v5231 = vunpack.c.l.s4 839922192
    %v5232 = vunpack.c.0.s8 %v5231
    %v5233 = vperm.slane %v5228, %v5232
    %5235 = vset.pattern.permute.xlu0 0
    %5236 = vperm.xlu0 %5235, %v5166
    %v5237 = vpop.permute.xlu0 %5236
    %v5240 = vunpack.c.l.s4 839922192
    %v5241 = vunpack.c.0.s8 %v5240
    %v5242 = vperm.slane %v5237, %v5241
    %5244 = vset.pattern.permute.xlu0 0
    %5245 = vperm.xlu0 %5244, %v5167
    %v5246 = vpop.permute.xlu0 %5245
    %v5249 = vunpack.c.l.s4 839922192
    %v5250 = vunpack.c.0.s8 %v5249
    %v5251 = vperm.slane %v5246, %v5250
    %5253 = vset.pattern.permute.xlu0 0
    %5254 = vperm.xlu0 %5253, %v5168
    %v5255 = vpop.permute.xlu0 %5254
    %v5258 = vunpack.c.l.s4 839922192
    %v5259 = vunpack.c.0.s8 %v5258
    %v5260 = vperm.slane %v5255, %v5259
    %5262 = vset.pattern.permute.xlu0 0
    %5263 = vperm.xlu0 %5262, %v5169
    %v5264 = vpop.permute.xlu0 %5263
    %v5267 = vunpack.c.l.s4 839922192
    %v5268 = vunpack.c.0.s8 %v5267
    %v5269 = vperm.slane %v5264, %v5268
    %5271 = vset.pattern.permute.xlu0 0
    %5272 = vperm.xlu0 %5271, %v5170
    %v5273 = vpop.permute.xlu0 %5272
    %v5276 = vunpack.c.l.s4 839922192
    %v5277 = vunpack.c.0.s8 %v5276
    %v5278 = vperm.slane %v5273, %v5277
    %5280 = vset.pattern.permute.xlu0 0
    %5281 = vperm.xlu0 %5280, %v5171
    %v5282 = vpop.permute.xlu0 %5281
    %v5285 = vunpack.c.l.s4 839922192
    %v5286 = vunpack.c.0.s8 %v5285
    %v5287 = vperm.slane %v5282, %v5286
    %5289 = vset.pattern.permute.xlu0 0
    %5290 = vperm.xlu0 %5289, %v5172
    %v5291 = vpop.permute.xlu0 %5290
    %v5294 = vunpack.c.l.s4 839922192
    %v5295 = vunpack.c.0.s8 %v5294
    %v5296 = vperm.slane %v5291, %v5295
    %5298 = vset.pattern.permute.xlu0 0
    %5299 = vperm.xlu0 %5298, %v5173
    %v5300 = vpop.permute.xlu0 %5299
    %v5303 = vunpack.c.l.s4 839922192
    %v5304 = vunpack.c.0.s8 %v5303
    %v5305 = vperm.slane %v5300, %v5304
    %5307 = vset.pattern.permute.xlu0 0
    %5308 = vperm.xlu0 %5307, %v5174
    %v5309 = vpop.permute.xlu0 %5308
    %v5312 = vunpack.c.l.s4 839922192
    %v5313 = vunpack.c.0.s8 %v5312
    %v5314 = vperm.slane %v5309, %v5313
    %5316 = vset.pattern.permute.xlu0 0
    %5317 = vperm.xlu0 %5316, %v5175
    %v5318 = vpop.permute.xlu0 %5317
    %v5321 = vunpack.c.l.s4 839922192
    %v5322 = vunpack.c.0.s8 %v5321
    %v5323 = vperm.slane %v5318, %v5322
    %5325 = vset.pattern.permute.xlu0 0
    %5326 = vperm.xlu0 %5325, %v5176
    %v5327 = vpop.permute.xlu0 %5326
    %v5330 = vunpack.c.l.s4 839922192
    %v5331 = vunpack.c.0.s8 %v5330
    %v5332 = vperm.slane %v5327, %v5331
    %5334 = vset.pattern.permute.xlu0 0
    %5335 = vperm.xlu0 %5334, %v5177
    %v5336 = vpop.permute.xlu0 %5335
    %v5339 = vunpack.c.l.s4 839922192
    %v5340 = vunpack.c.0.s8 %v5339
    %v5341 = vperm.slane %v5336, %v5340
    %5343 = vset.pattern.permute.xlu0 0
    %5344 = vperm.xlu0 %5343, %v5178
    %v5345 = vpop.permute.xlu0 %5344
    %v5348 = vunpack.c.l.s4 839922192
    %v5349 = vunpack.c.0.s8 %v5348
    %v5350 = vperm.slane %v5345, %v5349
    %5352 = vset.pattern.permute.xlu0 0
    %5353 = vperm.xlu0 %5352, %v5179
    %v5354 = vpop.permute.xlu0 %5353
    %v5357 = vunpack.c.l.s4 839922192
    %v5358 = vunpack.c.0.s8 %v5357
    %v5359 = vperm.slane %v5354, %v5358
    %5361 = vset.pattern.permute.xlu0 0
    %5362 = vperm.xlu0 %5361, %v5180
    %v5363 = vpop.permute.xlu0 %5362
    %v5366 = vunpack.c.l.s4 839922192
    %v5367 = vunpack.c.0.s8 %v5366
    %v5368 = vperm.slane %v5363, %v5367
    %5370 = vset.pattern.permute.xlu0 0
    %5371 = vperm.xlu0 %5370, %v5181
    %v5372 = vpop.permute.xlu0 %5371
    %v5375 = vunpack.c.l.s4 839922192
    %v5376 = vunpack.c.0.s8 %v5375
    %v5377 = vperm.slane %v5372, %v5376
    %5379 = vset.pattern.permute.xlu0 0
    %5380 = vperm.xlu0 %5379, %v5182
    %v5381 = vpop.permute.xlu0 %5380
    %v5384 = vunpack.c.l.s4 839922192
    %v5385 = vunpack.c.0.s8 %v5384
    %v5386 = vperm.slane %v5381, %v5385
    %5388 = vset.pattern.permute.xlu0 0
    %5389 = vperm.xlu0 %5388, %v5183
    %v5390 = vpop.permute.xlu0 %5389
    %v5393 = vunpack.c.l.s4 839922192
    %v5394 = vunpack.c.0.s8 %v5393
    %v5395 = vperm.slane %v5390, %v5394
    %5397 = vset.pattern.permute.xlu0 0
    %5398 = vperm.xlu0 %5397, %v5184
    %v5399 = vpop.permute.xlu0 %5398
    %v5402 = vunpack.c.l.s4 839922192
    %v5403 = vunpack.c.0.s8 %v5402
    %v5404 = vperm.slane %v5399, %v5403
    %5406 = vset.pattern.permute.xlu0 0
    %5407 = vperm.xlu0 %5406, %v5185
    %v5408 = vpop.permute.xlu0 %5407
    %v5411 = vunpack.c.l.s4 839922192
    %v5412 = vunpack.c.0.s8 %v5411
    %v5413 = vperm.slane %v5408, %v5412
    %5415 = vset.pattern.permute.xlu0 0
    %5416 = vperm.xlu0 %5415, %v5186
    %v5417 = vpop.permute.xlu0 %5416
    %v5420 = vunpack.c.l.s4 839922192
    %v5421 = vunpack.c.0.s8 %v5420
    %v5422 = vperm.slane %v5417, %v5421
    %5424 = vset.pattern.permute.xlu0 0
    %5425 = vperm.xlu0 %5424, %v5187
    %v5426 = vpop.permute.xlu0 %5425
    %v5429 = vunpack.c.l.s4 839922192
    %v5430 = vunpack.c.0.s8 %v5429
    %v5431 = vperm.slane %v5426, %v5430
    %5433 = vset.pattern.permute.xlu0 0
    %5434 = vperm.xlu0 %5433, %v5188
    %v5435 = vpop.permute.xlu0 %5434
    %v5438 = vunpack.c.l.s4 839922192
    %v5439 = vunpack.c.0.s8 %v5438
    %v5440 = vperm.slane %v5435, %v5439
    %v5441 = vunpack.c.l.bf16 %v5093
    %v5442 = vunpack.c.h.bf16 %v5093
    %v5443 = vunpack.c.l.bf16 %v5094
    %v5444 = vunpack.c.h.bf16 %v5094
    %v5445 = vunpack.c.l.bf16 %v5095
    %v5446 = vunpack.c.h.bf16 %v5095
    %v5447 = vunpack.c.l.bf16 %v5096
    %v5448 = vunpack.c.h.bf16 %v5096
    %v5449 = vunpack.c.l.bf16 %v5117
    %v5450 = vunpack.c.h.bf16 %v5117
    %v5451 = vunpack.c.l.bf16 %v5118
    %v5452 = vunpack.c.h.bf16 %v5118
    %v5453 = vunpack.c.l.bf16 %v5119
    %v5454 = vunpack.c.h.bf16 %v5119
    %v5455 = vunpack.c.l.bf16 %v5120
    %v5456 = vunpack.c.h.bf16 %v5120
    %v5457 = vunpack.c.l.bf16 %v5141
    %v5458 = vunpack.c.h.bf16 %v5141
    %v5459 = vunpack.c.l.bf16 %v5142
    %v5460 = vunpack.c.h.bf16 %v5142
    %v5461 = vunpack.c.l.bf16 %v5143
    %v5462 = vunpack.c.h.bf16 %v5143
    %v5463 = vunpack.c.l.bf16 %v5144
    %v5464 = vunpack.c.h.bf16 %v5144
    %v5465 = vunpack.c.l.bf16 %v5157
    %v5466 = vunpack.c.h.bf16 %v5157
    %v5467 = vunpack.c.l.bf16 %v5158
    %v5468 = vunpack.c.h.bf16 %v5158
    %v5469 = vunpack.c.l.bf16 %v5197
    %v5470 = vunpack.c.l.bf16 %v5206
    %v5471 = vunpack.c.l.bf16 %v5215
    %v5472 = vunpack.c.l.bf16 %v5224
    %v5473 = vunpack.c.l.bf16 %v5233
    %v5474 = vunpack.c.l.bf16 %v5242
    %v5475 = vunpack.c.l.bf16 %v5251
    %v5476 = vunpack.c.l.bf16 %v5260
    %v5477 = vunpack.c.l.bf16 %v5269
    %v5478 = vunpack.c.l.bf16 %v5278
    %v5479 = vunpack.c.l.bf16 %v5287
    %v5480 = vunpack.c.l.bf16 %v5296
    %v5481 = vunpack.c.l.bf16 %v5305
    %v5482 = vunpack.c.l.bf16 %v5314
    %v5483 = vunpack.c.l.bf16 %v5323
    %v5484 = vunpack.c.l.bf16 %v5332
    %v5485 = vunpack.c.l.bf16 %v5341
    %v5486 = vunpack.c.l.bf16 %v5350
    %v5487 = vunpack.c.l.bf16 %v5359
    %v5488 = vunpack.c.l.bf16 %v5368
    %v5489 = vunpack.c.l.bf16 %v5377
    %v5490 = vunpack.c.l.bf16 %v5386
    %v5491 = vunpack.c.l.bf16 %v5395
    %v5492 = vunpack.c.l.bf16 %v5404
    %v5493 = vunpack.c.l.bf16 %v5413
    %v5494 = vunpack.c.l.bf16 %v5422
    %v5495 = vunpack.c.l.bf16 %v5431
    %v5496 = vunpack.c.l.bf16 %v5440
    %v5497 = vadd.f32 %v5441, %v5469
    %v5498 = vadd.f32 %v5442, %v5470
    %v5499 = vadd.f32 %v5443, %v5471
    %v5500 = vadd.f32 %v5444, %v5472
    %v5501 = vadd.f32 %v5445, %v5473
    %v5502 = vadd.f32 %v5446, %v5474
    %v5503 = vadd.f32 %v5447, %v5475
    %v5504 = vadd.f32 %v5448, %v5476
    %v5505 = vadd.f32 %v5449, %v5477
    %v5506 = vadd.f32 %v5450, %v5478
    %v5507 = vadd.f32 %v5451, %v5479
    %v5508 = vadd.f32 %v5452, %v5480
    %v5509 = vadd.f32 %v5453, %v5481
    %v5510 = vadd.f32 %v5454, %v5482
    %v5511 = vadd.f32 %v5455, %v5483
    %v5512 = vadd.f32 %v5456, %v5484
    %v5513 = vadd.f32 %v5457, %v5485
    %v5514 = vadd.f32 %v5458, %v5486
    %v5515 = vadd.f32 %v5459, %v5487
    %v5516 = vadd.f32 %v5460, %v5488
    %v5517 = vadd.f32 %v5461, %v5489
    %v5518 = vadd.f32 %v5462, %v5490
    %v5519 = vadd.f32 %v5463, %v5491
    %v5520 = vadd.f32 %v5464, %v5492
    %v5521 = vadd.f32 %v5465, %v5493
    %v5522 = vadd.f32 %v5466, %v5494
    %v5523 = vadd.f32 %v5467, %v5495
    %v5524 = vadd.f32 %v5468, %v5496
    %v5525 = vpack.c.bf16 %v5497, %v5497
    %v5526 = vpack.c.bf16 %v5498, %v5498
    %v5527 = vpack.c.bf16 %v5499, %v5499
    %v5528 = vpack.c.bf16 %v5500, %v5500
    %v5529 = vpack.c.bf16 %v5501, %v5501
    %v5530 = vpack.c.bf16 %v5502, %v5502
    %v5531 = vpack.c.bf16 %v5503, %v5503
    %v5532 = vpack.c.bf16 %v5504, %v5504
    %v5533 = vpack.c.bf16 %v5505, %v5505
    %v5534 = vpack.c.bf16 %v5506, %v5506
    %v5535 = vpack.c.bf16 %v5507, %v5507
    %v5536 = vpack.c.bf16 %v5508, %v5508
    %v5537 = vpack.c.bf16 %v5509, %v5509
    %v5538 = vpack.c.bf16 %v5510, %v5510
    %v5539 = vpack.c.bf16 %v5511, %v5511
    %v5540 = vpack.c.bf16 %v5512, %v5512
    %v5541 = vpack.c.bf16 %v5513, %v5513
    %v5542 = vpack.c.bf16 %v5514, %v5514
    %v5543 = vpack.c.bf16 %v5515, %v5515
    %v5544 = vpack.c.bf16 %v5516, %v5516
    %v5545 = vpack.c.bf16 %v5517, %v5517
    %v5546 = vpack.c.bf16 %v5518, %v5518
    %v5547 = vpack.c.bf16 %v5519, %v5519
    %v5548 = vpack.c.bf16 %v5520, %v5520
    %v5549 = vpack.c.bf16 %v5521, %v5521
    %v5550 = vpack.c.bf16 %v5522, %v5522
    %v5551 = vpack.c.bf16 %v5523, %v5523
    %v5552 = vpack.c.bf16 %v5524, %v5524
    %v5553 = vunpack.c.l.bf16 %v5525
    %v5554 = vunpack.c.l.bf16 %v5526
    %v5555 = vunpack.c.l.bf16 %v5527
    %v5556 = vunpack.c.l.bf16 %v5528
    %v5557 = vunpack.c.l.bf16 %v5529
    %v5558 = vunpack.c.l.bf16 %v5530
    %v5559 = vunpack.c.l.bf16 %v5531
    %v5560 = vunpack.c.l.bf16 %v5532
    %v5561 = vunpack.c.l.bf16 %v5533
    %v5562 = vunpack.c.l.bf16 %v5534
    %v5563 = vunpack.c.l.bf16 %v5535
    %v5564 = vunpack.c.l.bf16 %v5536
    %v5565 = vunpack.c.l.bf16 %v5537
    %v5566 = vunpack.c.l.bf16 %v5538
    %v5567 = vunpack.c.l.bf16 %v5539
    %v5568 = vunpack.c.l.bf16 %v5540
    %v5569 = vunpack.c.l.bf16 %v5541
    %v5570 = vunpack.c.l.bf16 %v5542
    %v5571 = vunpack.c.l.bf16 %v5543
    %v5572 = vunpack.c.l.bf16 %v5544
    %v5573 = vunpack.c.l.bf16 %v5545
    %v5574 = vunpack.c.l.bf16 %v5546
    %v5575 = vunpack.c.l.bf16 %v5547
    %v5576 = vunpack.c.l.bf16 %v5548
    %v5577 = vunpack.c.l.bf16 %v5549
    %v5578 = vunpack.c.l.bf16 %v5550
    %v5579 = vunpack.c.l.bf16 %v5551
    %v5580 = vunpack.c.l.bf16 %v5552
    %vm5581 = vcmp.gt.f32.partialorder %v5553, 0.0
    %vm5582 = vcmp.gt.f32.partialorder %v5554, 0.0
    %vm5583 = vcmp.gt.f32.partialorder %v5555, 0.0
    %vm5584 = vcmp.gt.f32.partialorder %v5556, 0.0
    %vm5585 = vcmp.gt.f32.partialorder %v5557, 0.0
    %vm5586 = vcmp.gt.f32.partialorder %v5558, 0.0
    %vm5587 = vcmp.gt.f32.partialorder %v5559, 0.0
    %vm5588 = vcmp.gt.f32.partialorder %v5560, 0.0
    %vm5589 = vcmp.gt.f32.partialorder %v5561, 0.0
    %vm5590 = vcmp.gt.f32.partialorder %v5562, 0.0
    %vm5591 = vcmp.gt.f32.partialorder %v5563, 0.0
    %vm5592 = vcmp.gt.f32.partialorder %v5564, 0.0
    %vm5593 = vcmp.gt.f32.partialorder %v5565, 0.0
    %vm5594 = vcmp.gt.f32.partialorder %v5566, 0.0
    %vm5595 = vcmp.gt.f32.partialorder %v5567, 0.0
    %vm5596 = vcmp.gt.f32.partialorder %v5568, 0.0
    %vm5597 = vcmp.gt.f32.partialorder %v5569, 0.0
    %vm5598 = vcmp.gt.f32.partialorder %v5570, 0.0
    %vm5599 = vcmp.gt.f32.partialorder %v5571, 0.0
    %vm5600 = vcmp.gt.f32.partialorder %v5572, 0.0
    %vm5601 = vcmp.gt.f32.partialorder %v5573, 0.0
    %vm5602 = vcmp.gt.f32.partialorder %v5574, 0.0
    %vm5603 = vcmp.gt.f32.partialorder %v5575, 0.0
    %vm5604 = vcmp.gt.f32.partialorder %v5576, 0.0
    %vm5605 = vcmp.gt.f32.partialorder %v5577, 0.0
    %vm5606 = vcmp.gt.f32.partialorder %v5578, 0.0
    %vm5607 = vcmp.gt.f32.partialorder %v5579, 0.0
    %vm5608 = vcmp.gt.f32.partialorder %v5580, 0.0
    %v5609 = vmin.f32 %v5553, 0.0
    %v5610 = vmin.f32 %v5554, 0.0
    %v5611 = vmin.f32 %v5555, 0.0
    %v5612 = vmin.f32 %v5556, 0.0
    %v5613 = vmin.f32 %v5557, 0.0
    %v5614 = vmin.f32 %v5558, 0.0
    %v5615 = vmin.f32 %v5559, 0.0
    %v5616 = vmin.f32 %v5560, 0.0
    %v5617 = vmin.f32 %v5561, 0.0
    %v5618 = vmin.f32 %v5562, 0.0
    %v5619 = vmin.f32 %v5563, 0.0
    %v5620 = vmin.f32 %v5564, 0.0
    %v5621 = vmin.f32 %v5565, 0.0
    %v5622 = vmin.f32 %v5566, 0.0
    %v5623 = vmin.f32 %v5567, 0.0
    %v5624 = vmin.f32 %v5568, 0.0
    %v5625 = vmin.f32 %v5569, 0.0
    %v5626 = vmin.f32 %v5570, 0.0
    %v5627 = vmin.f32 %v5571, 0.0
    %v5628 = vmin.f32 %v5572, 0.0
    %v5629 = vmin.f32 %v5573, 0.0
    %v5630 = vmin.f32 %v5574, 0.0
    %v5631 = vmin.f32 %v5575, 0.0
    %v5632 = vmin.f32 %v5576, 0.0
    %v5633 = vmin.f32 %v5577, 0.0
    %v5634 = vmin.f32 %v5578, 0.0
    %v5635 = vmin.f32 %v5579, 0.0
    %v5636 = vmin.f32 %v5580, 0.0
    %v5637 = vpack.c.bf16 %v5609, %v5609
    %v5638 = vpack.c.bf16 %v5610, %v5610
    %v5639 = vpack.c.bf16 %v5611, %v5611
    %v5640 = vpack.c.bf16 %v5612, %v5612
    %v5641 = vpack.c.bf16 %v5613, %v5613
    %v5642 = vpack.c.bf16 %v5614, %v5614
    %v5643 = vpack.c.bf16 %v5615, %v5615
    %v5644 = vpack.c.bf16 %v5616, %v5616
    %v5645 = vpack.c.bf16 %v5617, %v5617
    %v5646 = vpack.c.bf16 %v5618, %v5618
    %v5647 = vpack.c.bf16 %v5619, %v5619
    %v5648 = vpack.c.bf16 %v5620, %v5620
    %v5649 = vpack.c.bf16 %v5621, %v5621
    %v5650 = vpack.c.bf16 %v5622, %v5622
    %v5651 = vpack.c.bf16 %v5623, %v5623
    %v5652 = vpack.c.bf16 %v5624, %v5624
    %v5653 = vpack.c.bf16 %v5625, %v5625
    %v5654 = vpack.c.bf16 %v5626, %v5626
    %v5655 = vpack.c.bf16 %v5627, %v5627
    %v5656 = vpack.c.bf16 %v5628, %v5628
    %v5657 = vpack.c.bf16 %v5629, %v5629
    %v5658 = vpack.c.bf16 %v5630, %v5630
    %v5659 = vpack.c.bf16 %v5631, %v5631
    %v5660 = vpack.c.bf16 %v5632, %v5632
    %v5661 = vpack.c.bf16 %v5633, %v5633
    %v5662 = vpack.c.bf16 %v5634, %v5634
    %v5663 = vpack.c.bf16 %v5635, %v5635
    %v5664 = vpack.c.bf16 %v5636, %v5636
    %v5665 = vunpack.c.l.bf16 %v5637
    %v5666 = vunpack.c.l.bf16 %v5638
    %v5667 = vunpack.c.l.bf16 %v5639
    %v5668 = vunpack.c.l.bf16 %v5640
    %v5669 = vunpack.c.l.bf16 %v5641
    %v5670 = vunpack.c.l.bf16 %v5642
    %v5671 = vunpack.c.l.bf16 %v5643
    %v5672 = vunpack.c.l.bf16 %v5644
    %v5673 = vunpack.c.l.bf16 %v5645
    %v5674 = vunpack.c.l.bf16 %v5646
    %v5675 = vunpack.c.l.bf16 %v5647
    %v5676 = vunpack.c.l.bf16 %v5648
    %v5677 = vunpack.c.l.bf16 %v5649
    %v5678 = vunpack.c.l.bf16 %v5650
    %v5679 = vunpack.c.l.bf16 %v5651
    %v5680 = vunpack.c.l.bf16 %v5652
    %v5681 = vunpack.c.l.bf16 %v5653
    %v5682 = vunpack.c.l.bf16 %v5654
    %v5683 = vunpack.c.l.bf16 %v5655
    %v5684 = vunpack.c.l.bf16 %v5656
    %v5685 = vunpack.c.l.bf16 %v5657
    %v5686 = vunpack.c.l.bf16 %v5658
    %v5687 = vunpack.c.l.bf16 %v5659
    %v5688 = vunpack.c.l.bf16 %v5660
    %v5689 = vunpack.c.l.bf16 %v5661
    %v5690 = vunpack.c.l.bf16 %v5662
    %v5691 = vunpack.c.l.bf16 %v5663
    %v5692 = vunpack.c.l.bf16 %v5664
    %v5693 = vmul.f32 %v5665, 1.442695
    %v5694 = vpow.pop %v5693
    %v5695 = vmul.f32 %v5666, 1.442695
    %v5696 = vpow.pop %v5695
    %v5697 = vmul.f32 %v5667, 1.442695
    %v5698 = vpow.pop %v5697
    %v5699 = vmul.f32 %v5668, 1.442695
    %v5700 = vpow.pop %v5699
    %v5701 = vmul.f32 %v5669, 1.442695
    %v5702 = vpow.pop %v5701
    %v5703 = vmul.f32 %v5670, 1.442695
    %v5704 = vpow.pop %v5703
    %v5705 = vmul.f32 %v5671, 1.442695
    %v5706 = vpow.pop %v5705
    %v5707 = vmul.f32 %v5672, 1.442695
    %v5708 = vpow.pop %v5707
    %v5709 = vmul.f32 %v5673, 1.442695
    %v5710 = vpow.pop %v5709
    %v5711 = vmul.f32 %v5674, 1.442695
    %v5712 = vpow.pop %v5711
    %v5713 = vmul.f32 %v5675, 1.442695
    %v5714 = vpow.pop %v5713
    %v5715 = vmul.f32 %v5676, 1.442695
    %v5716 = vpow.pop %v5715
    %v5717 = vmul.f32 %v5677, 1.442695
    %v5718 = vpow.pop %v5717
    %v5719 = vmul.f32 %v5678, 1.442695
    %v5720 = vpow.pop %v5719
    %v5721 = vmul.f32 %v5679, 1.442695
    %v5722 = vpow.pop %v5721
    %v5723 = vmul.f32 %v5680, 1.442695
    %v5724 = vpow.pop %v5723
    %v5725 = vmul.f32 %v5681, 1.442695
    %v5726 = vpow.pop %v5725
    %v5727 = vmul.f32 %v5682, 1.442695
    %v5728 = vpow.pop %v5727
    %v5729 = vmul.f32 %v5683, 1.442695
    %v5730 = vpow.pop %v5729
    %v5731 = vmul.f32 %v5684, 1.442695
    %v5732 = vpow.pop %v5731
    %v5733 = vmul.f32 %v5685, 1.442695
    %v5734 = vpow.pop %v5733
    %v5735 = vmul.f32 %v5686, 1.442695
    %v5736 = vpow.pop %v5735
    %v5737 = vmul.f32 %v5687, 1.442695
    %v5738 = vpow.pop %v5737
    %v5739 = vmul.f32 %v5688, 1.442695
    %v5740 = vpow.pop %v5739
    %v5741 = vmul.f32 %v5689, 1.442695
    %v5742 = vpow.pop %v5741
    %v5743 = vmul.f32 %v5690, 1.442695
    %v5744 = vpow.pop %v5743
    %v5745 = vmul.f32 %v5691, 1.442695
    %v5746 = vpow.pop %v5745
    %v5747 = vmul.f32 %v5692, 1.442695
    %v5748 = vpow.pop %v5747
    %v5749 = vpack.c.bf16 %v5694, %v5694
    %v5750 = vpack.c.bf16 %v5696, %v5696
    %v5751 = vpack.c.bf16 %v5698, %v5698
    %v5752 = vpack.c.bf16 %v5700, %v5700
    %v5753 = vpack.c.bf16 %v5702, %v5702
    %v5754 = vpack.c.bf16 %v5704, %v5704
    %v5755 = vpack.c.bf16 %v5706, %v5706
    %v5756 = vpack.c.bf16 %v5708, %v5708
    %v5757 = vpack.c.bf16 %v5710, %v5710
    %v5758 = vpack.c.bf16 %v5712, %v5712
    %v5759 = vpack.c.bf16 %v5714, %v5714
    %v5760 = vpack.c.bf16 %v5716, %v5716
    %v5761 = vpack.c.bf16 %v5718, %v5718
    %v5762 = vpack.c.bf16 %v5720, %v5720
    %v5763 = vpack.c.bf16 %v5722, %v5722
    %v5764 = vpack.c.bf16 %v5724, %v5724
    %v5765 = vpack.c.bf16 %v5726, %v5726
    %v5766 = vpack.c.bf16 %v5728, %v5728
    %v5767 = vpack.c.bf16 %v5730, %v5730
    %v5768 = vpack.c.bf16 %v5732, %v5732
    %v5769 = vpack.c.bf16 %v5734, %v5734
    %v5770 = vpack.c.bf16 %v5736, %v5736
    %v5771 = vpack.c.bf16 %v5738, %v5738
    %v5772 = vpack.c.bf16 %v5740, %v5740
    %v5773 = vpack.c.bf16 %v5742, %v5742
    %v5774 = vpack.c.bf16 %v5744, %v5744
    %v5775 = vpack.c.bf16 %v5746, %v5746
    %v5776 = vpack.c.bf16 %v5748, %v5748
    %v5777 = vunpack.c.l.bf16 %v5749
    %v5778 = vunpack.c.l.bf16 %v5750
    %v5779 = vunpack.c.l.bf16 %v5751
    %v5780 = vunpack.c.l.bf16 %v5752
    %v5781 = vunpack.c.l.bf16 %v5753
    %v5782 = vunpack.c.l.bf16 %v5754
    %v5783 = vunpack.c.l.bf16 %v5755
    %v5784 = vunpack.c.l.bf16 %v5756
    %v5785 = vunpack.c.l.bf16 %v5757
    %v5786 = vunpack.c.l.bf16 %v5758
    %v5787 = vunpack.c.l.bf16 %v5759
    %v5788 = vunpack.c.l.bf16 %v5760
    %v5789 = vunpack.c.l.bf16 %v5761
    %v5790 = vunpack.c.l.bf16 %v5762
    %v5791 = vunpack.c.l.bf16 %v5763
    %v5792 = vunpack.c.l.bf16 %v5764
    %v5793 = vunpack.c.l.bf16 %v5765
    %v5794 = vunpack.c.l.bf16 %v5766
    %v5795 = vunpack.c.l.bf16 %v5767
    %v5796 = vunpack.c.l.bf16 %v5768
    %v5797 = vunpack.c.l.bf16 %v5769
    %v5798 = vunpack.c.l.bf16 %v5770
    %v5799 = vunpack.c.l.bf16 %v5771
    %v5800 = vunpack.c.l.bf16 %v5772
    %v5801 = vunpack.c.l.bf16 %v5773
    %v5802 = vunpack.c.l.bf16 %v5774
    %v5803 = vunpack.c.l.bf16 %v5775
    %v5804 = vunpack.c.l.bf16 %v5776
    %v5805 = vsub.f32 %v5777, 1.0
    %v5806 = vsub.f32 %v5778, 1.0
    %v5807 = vsub.f32 %v5779, 1.0
    %v5808 = vsub.f32 %v5780, 1.0
    %v5809 = vsub.f32 %v5781, 1.0
    %v5810 = vsub.f32 %v5782, 1.0
    %v5811 = vsub.f32 %v5783, 1.0
    %v5812 = vsub.f32 %v5784, 1.0
    %v5813 = vsub.f32 %v5785, 1.0
    %v5814 = vsub.f32 %v5786, 1.0
    %v5815 = vsub.f32 %v5787, 1.0
    %v5816 = vsub.f32 %v5788, 1.0
    %v5817 = vsub.f32 %v5789, 1.0
    %v5818 = vsub.f32 %v5790, 1.0
    %v5819 = vsub.f32 %v5791, 1.0
    %v5820 = vsub.f32 %v5792, 1.0
    %v5821 = vsub.f32 %v5793, 1.0
    %v5822 = vsub.f32 %v5794, 1.0
    %v5823 = vsub.f32 %v5795, 1.0
    %v5824 = vsub.f32 %v5796, 1.0
    %v5825 = vsub.f32 %v5797, 1.0
    %v5826 = vsub.f32 %v5798, 1.0
    %v5827 = vsub.f32 %v5799, 1.0
    %v5828 = vsub.f32 %v5800, 1.0
    %v5829 = vsub.f32 %v5801, 1.0
    %v5830 = vsub.f32 %v5802, 1.0
    %v5831 = vsub.f32 %v5803, 1.0
    %v5832 = vsub.f32 %v5804, 1.0
    %v5833 = vpack.c.bf16 %v5805, %v5805
    %v5834 = vpack.c.bf16 %v5806, %v5806
    %v5835 = vpack.c.bf16 %v5807, %v5807
    %v5836 = vpack.c.bf16 %v5808, %v5808
    %v5837 = vpack.c.bf16 %v5809, %v5809
    %v5838 = vpack.c.bf16 %v5810, %v5810
    %v5839 = vpack.c.bf16 %v5811, %v5811
    %v5840 = vpack.c.bf16 %v5812, %v5812
    %v5841 = vpack.c.bf16 %v5813, %v5813
    %v5842 = vpack.c.bf16 %v5814, %v5814
    %v5843 = vpack.c.bf16 %v5815, %v5815
    %v5844 = vpack.c.bf16 %v5816, %v5816
    %v5845 = vpack.c.bf16 %v5817, %v5817
    %v5846 = vpack.c.bf16 %v5818, %v5818
    %v5847 = vpack.c.bf16 %v5819, %v5819
    %v5848 = vpack.c.bf16 %v5820, %v5820
    %v5849 = vpack.c.bf16 %v5821, %v5821
    %v5850 = vpack.c.bf16 %v5822, %v5822
    %v5851 = vpack.c.bf16 %v5823, %v5823
    %v5852 = vpack.c.bf16 %v5824, %v5824
    %v5853 = vpack.c.bf16 %v5825, %v5825
    %v5854 = vpack.c.bf16 %v5826, %v5826
    %v5855 = vpack.c.bf16 %v5827, %v5827
    %v5856 = vpack.c.bf16 %v5828, %v5828
    %v5857 = vpack.c.bf16 %v5829, %v5829
    %v5858 = vpack.c.bf16 %v5830, %v5830
    %v5859 = vpack.c.bf16 %v5831, %v5831
    %v5860 = vpack.c.bf16 %v5832, %v5832
    %vm5861 = vmpackc.low %vm5581, %vm5581
    %vm5862 = vmpackc.low %vm5582, %vm5582
    %vm5863 = vmpackc.low %vm5583, %vm5583
    %vm5864 = vmpackc.low %vm5584, %vm5584
    %vm5865 = vmpackc.low %vm5585, %vm5585
    %vm5866 = vmpackc.low %vm5586, %vm5586
    %vm5867 = vmpackc.low %vm5587, %vm5587
    %vm5868 = vmpackc.low %vm5588, %vm5588
    %vm5869 = vmpackc.low %vm5589, %vm5589
    %vm5870 = vmpackc.low %vm5590, %vm5590
    %vm5871 = vmpackc.low %vm5591, %vm5591
    %vm5872 = vmpackc.low %vm5592, %vm5592
    %vm5873 = vmpackc.low %vm5593, %vm5593
    %vm5874 = vmpackc.low %vm5594, %vm5594
    %vm5875 = vmpackc.low %vm5595, %vm5595
    %vm5876 = vmpackc.low %vm5596, %vm5596
    %vm5877 = vmpackc.low %vm5597, %vm5597
    %vm5878 = vmpackc.low %vm5598, %vm5598
    %vm5879 = vmpackc.low %vm5599, %vm5599
    %vm5880 = vmpackc.low %vm5600, %vm5600
    %vm5881 = vmpackc.low %vm5601, %vm5601
    %vm5882 = vmpackc.low %vm5602, %vm5602
    %vm5883 = vmpackc.low %vm5603, %vm5603
    %vm5884 = vmpackc.low %vm5604, %vm5604
    %vm5885 = vmpackc.low %vm5605, %vm5605
    %vm5886 = vmpackc.low %vm5606, %vm5606
    %vm5887 = vmpackc.low %vm5607, %vm5607
    %vm5888 = vmpackc.low %vm5608, %vm5608
    %v5889 = vsel %vm5861, %v5525, %v5833
    %v5890 = vsel %vm5862, %v5526, %v5834
    %v5891 = vsel %vm5863, %v5527, %v5835
    %v5892 = vsel %vm5864, %v5528, %v5836
    %v5893 = vsel %vm5865, %v5529, %v5837
    %v5894 = vsel %vm5866, %v5530, %v5838
    %v5895 = vsel %vm5867, %v5531, %v5839
    %v5896 = vsel %vm5868, %v5532, %v5840
    %v5897 = vsel %vm5869, %v5533, %v5841
    %v5898 = vsel %vm5870, %v5534, %v5842
    %v5899 = vsel %vm5871, %v5535, %v5843
    %v5900 = vsel %vm5872, %v5536, %v5844
    %v5901 = vsel %vm5873, %v5537, %v5845
    %v5902 = vsel %vm5874, %v5538, %v5846
    %v5903 = vsel %vm5875, %v5539, %v5847
    %v5904 = vsel %vm5876, %v5540, %v5848
    %v5905 = vsel %vm5877, %v5541, %v5849
    %v5906 = vsel %vm5878, %v5542, %v5850
    %v5907 = vsel %vm5879, %v5543, %v5851
    %v5908 = vsel %vm5880, %v5544, %v5852
    %v5909 = vsel %vm5881, %v5545, %v5853
    %v5910 = vsel %vm5882, %v5546, %v5854
    %v5911 = vsel %vm5883, %v5547, %v5855
    %v5912 = vsel %vm5884, %v5548, %v5856
    %v5913 = vsel %vm5885, %v5549, %v5857
    %v5914 = vsel %vm5886, %v5550, %v5858
    %v5915 = vsel %vm5887, %v5551, %v5859
    %v5916 = vsel %vm5888, %v5552, %v5860
    %v5917 = vld [vmem:[%s6] sm:$0xff]
    %v5918 = vld [vmem:[%s6 + $0x8] sm:$0xff]
    %v5919 = vld [vmem:[%s6 + $0x10] sm:$0xff]
    %v5920 = vld [vmem:[%s6 + $0x18] sm:$0xff]
    %v5921 = vld [vmem:[%s6 + $0x20] sm:$0xff]
    %v5922 = vld [vmem:[%s6 + $0x28] sm:$0xff]
    %v5923 = vld [vmem:[%s6 + $0x30] sm:$0xff]
    %v5924 = vld [vmem:[%s6 + $0x38] sm:$0xff]
    %v5925 = vld [vmem:[%s6 + $0x40] sm:$0xff]
    %v5926 = vld [vmem:[%s6 + $0x48] sm:$0xff]
    %v5927 = vld [vmem:[%s6 + $0x50] sm:$0xff]
    %v5928 = vld [vmem:[%s6 + $0x58] sm:$0xff]
    %v5929 = vld [vmem:[%s6 + $0x60] sm:$0xff]
    %v5930 = vld [vmem:[%s6 + $0x68] sm:$0xff]
    %v5931 = vld [vmem:[%s6 + $0x70] sm:$0xff]
    %v5932 = vld [vmem:[%s6 + $0x78] sm:$0xff]
    %v5933 = vld [vmem:[%s6 + $0x80] sm:$0xff]
    %v5934 = vld [vmem:[%s6 + $0x88] sm:$0xff]
    %v5935 = vld [vmem:[%s6 + $0x90] sm:$0xff]
    %v5936 = vld [vmem:[%s6 + $0x98] sm:$0xff]
    %v5937 = vld [vmem:[%s6 + $0xa0] sm:$0xff]
    %v5938 = vld [vmem:[%s6 + $0xa8] sm:$0xff]
    %v5939 = vld [vmem:[%s6 + $0xb0] sm:$0xff]
    %v5940 = vld [vmem:[%s6 + $0xb8] sm:$0xff]
    %v5941 = vld [vmem:[%s6 + $0xc0] sm:$0xff]
    %v5942 = vld [vmem:[%s6 + $0xc8] sm:$0xff]
    %v5943 = vld [vmem:[%s6 + $0xd0] sm:$0xff]
    %v5944 = vld [vmem:[%s6 + $0xd8] sm:$0xff]
    %v5945 = vld [vmem:[%s6 + $0xe0] sm:$0xff]
    %v5946 = vld [vmem:[%s6 + $0xe8] sm:$0xff]
    %v5947 = vld [vmem:[%s6 + $0xf0] sm:$0xff]
    %v5948 = vld [vmem:[%s6 + $0xf8] sm:$0xff]
    %v5981 = vunpack.c.l.b16 %v5917
    %v5982 = vunpack.c.h.b16 %v5917
    %v5983 = vunpack.c.l.b16 %v5918
    %v5984 = vunpack.c.h.b16 %v5918
    %v5985 = vunpack.c.l.b16 %v5919
    %v5986 = vunpack.c.h.b16 %v5919
    %v5987 = vunpack.c.l.b16 %v5920
    %v5988 = vunpack.c.h.b16 %v5920
    %v5989 = vunpack.c.l.b16 %v5921
    %v5990 = vunpack.c.h.b16 %v5921
    %v5991 = vunpack.c.l.b16 %v5922
    %v5992 = vunpack.c.h.b16 %v5922
    %v5993 = vunpack.c.l.b16 %v5923
    %v5994 = vunpack.c.h.b16 %v5923
    %v5995 = vunpack.c.l.b16 %v5924
    %v5996 = vunpack.c.h.b16 %v5924
    %v5997 = vunpack.c.l.b16 %v5925
    %v5998 = vunpack.c.h.b16 %v5925
    %v5999 = vunpack.c.l.b16 %v5926
    %v6000 = vunpack.c.h.b16 %v5926
    %v6001 = vunpack.c.l.b16 %v5927
    %v6002 = vunpack.c.h.b16 %v5927
    %v6003 = vunpack.c.l.b16 %v5928
    %v6004 = vunpack.c.h.b16 %v5928
    %v6005 = vunpack.c.l.b16 %v5929
    %v6006 = vunpack.c.h.b16 %v5929
    %v6007 = vunpack.c.l.b16 %v5930
    %v6008 = vunpack.c.h.b16 %v5930
    %v6009 = vunpack.c.l.b16 %v5931
    %v6010 = vunpack.c.h.b16 %v5931
    %v6011 = vunpack.c.l.b16 %v5932
    %v6012 = vunpack.c.h.b16 %v5932
    %v6013 = vunpack.c.l.b16 %v5933
    %v6014 = vunpack.c.h.b16 %v5933
    %v6015 = vunpack.c.l.b16 %v5934
    %v6016 = vunpack.c.h.b16 %v5934
    %v6017 = vunpack.c.l.b16 %v5935
    %v6018 = vunpack.c.h.b16 %v5935
    %v6019 = vunpack.c.l.b16 %v5936
    %v6020 = vunpack.c.h.b16 %v5936
    %v6021 = vunpack.c.l.b16 %v5937
    %v6022 = vunpack.c.h.b16 %v5937
    %v6023 = vunpack.c.l.b16 %v5938
    %v6024 = vunpack.c.h.b16 %v5938
    %v6025 = vunpack.c.l.b16 %v5939
    %v6026 = vunpack.c.h.b16 %v5939
    %v6027 = vunpack.c.l.b16 %v5940
    %v6028 = vunpack.c.h.b16 %v5940
    %v6029 = vunpack.c.l.b16 %v5941
    %v6030 = vunpack.c.h.b16 %v5941
    %v6031 = vunpack.c.l.b16 %v5942
    %v6032 = vunpack.c.h.b16 %v5942
    %v6033 = vunpack.c.l.b16 %v5943
    %v6034 = vunpack.c.h.b16 %v5943
    %v6035 = vunpack.c.l.b16 %v5944
    %v6036 = vunpack.c.h.b16 %v5944
    %v6037 = vunpack.c.l.b16 %v5945
    %v6038 = vunpack.c.h.b16 %v5945
    %v6039 = vunpack.c.l.b16 %v5946
    %v6040 = vunpack.c.h.b16 %v5946
    %v6041 = vunpack.c.l.b16 %v5947
    %v6042 = vunpack.c.h.b16 %v5947
    %v6043 = vunpack.c.l.b16 %v5948
    %v6044 = vunpack.c.h.b16 %v5948
    %v6045 = vpack.c.b16 %v5983, %v5981
    %v6046 = vpack.c.b16 %v5984, %v5982
    %v6047 = vpack.c.b16 %v5987, %v5985
    %v6048 = vpack.c.b16 %v5988, %v5986
    %v6049 = vpack.c.b16 %v5991, %v5989
    %v6050 = vpack.c.b16 %v5992, %v5990
    %v6051 = vpack.c.b16 %v5995, %v5993
    %v6052 = vpack.c.b16 %v5996, %v5994
    %v6053 = vpack.c.b16 %v5999, %v5997
    %v6054 = vpack.c.b16 %v6000, %v5998
    %v6055 = vpack.c.b16 %v6003, %v6001
    %v6056 = vpack.c.b16 %v6004, %v6002
    %v6057 = vpack.c.b16 %v6007, %v6005
    %v6058 = vpack.c.b16 %v6008, %v6006
    %v6059 = vpack.c.b16 %v6011, %v6009
    %v6060 = vpack.c.b16 %v6012, %v6010
    %v6061 = vpack.c.b16 %v6015, %v6013
    %v6062 = vpack.c.b16 %v6016, %v6014
    %v6063 = vpack.c.b16 %v6019, %v6017
    %v6064 = vpack.c.b16 %v6020, %v6018
    %v6065 = vpack.c.b16 %v6023, %v6021
    %v6066 = vpack.c.b16 %v6024, %v6022
    %v6067 = vpack.c.b16 %v6027, %v6025
    %v6068 = vpack.c.b16 %v6028, %v6026
    %v6069 = vpack.c.b16 %v6031, %v6029
    %v6070 = vpack.c.b16 %v6032, %v6030
    %v6071 = vpack.c.b16 %v6035, %v6033
    %v6072 = vpack.c.b16 %v6036, %v6034
    %v6073 = vpack.c.b16 %v6039, %v6037
    %v6074 = vpack.c.b16 %v6040, %v6038
    %v6075 = vpack.c.b16 %v6043, %v6041
    %v6076 = vpack.c.b16 %v6044, %v6042
    %v6121 = vunpack.c.l.b16 %v5889
    %v6122 = vunpack.c.l.b16 %v5890
    %v6123 = vunpack.c.l.b16 %v5891
    %v6124 = vunpack.c.l.b16 %v5892
    %v6125 = vunpack.c.l.b16 %v5893
    %v6126 = vunpack.c.l.b16 %v5894
    %v6127 = vunpack.c.l.b16 %v5895
    %v6128 = vunpack.c.l.b16 %v5896
    %v6129 = vunpack.c.l.b16 %v5897
    %v6130 = vunpack.c.l.b16 %v5898
    %v6131 = vunpack.c.l.b16 %v5899
    %v6132 = vunpack.c.l.b16 %v5900
    %v6133 = vunpack.c.l.b16 %v5901
    %v6134 = vunpack.c.l.b16 %v5902
    %v6135 = vunpack.c.l.b16 %v5903
    %v6136 = vunpack.c.l.b16 %v5904
    %v6137 = vunpack.c.l.b16 %v5905
    %v6138 = vunpack.c.l.b16 %v5906
    %v6139 = vunpack.c.l.b16 %v5907
    %v6140 = vunpack.c.l.b16 %v5908
    %v6141 = vunpack.c.l.b16 %v5909
    %v6142 = vunpack.c.l.b16 %v5910
    %v6143 = vunpack.c.l.b16 %v5911
    %v6144 = vunpack.c.l.b16 %v5912
    %v6145 = vunpack.c.l.b16 %v5913
    %v6146 = vunpack.c.l.b16 %v5914
    %v6147 = vunpack.c.l.b16 %v5915
    %v6148 = vunpack.c.l.b16 %v5916
    %v6149 = vpack.c.b16 %v6122, %v6121
    %v6150 = vpack.c.b16 %v6124, %v6123
    %v6151 = vpack.c.b16 %v6126, %v6125
    %v6152 = vpack.c.b16 %v6128, %v6127
    %v6153 = vpack.c.b16 %v6130, %v6129
    %v6154 = vpack.c.b16 %v6132, %v6131
    %v6155 = vpack.c.b16 %v6134, %v6133
    %v6156 = vpack.c.b16 %v6136, %v6135
    %v6157 = vpack.c.b16 %v6138, %v6137
    %v6158 = vpack.c.b16 %v6140, %v6139
    %v6159 = vpack.c.b16 %v6142, %v6141
    %v6160 = vpack.c.b16 %v6144, %v6143
    %v6161 = vpack.c.b16 %v6146, %v6145
    %v6162 = vpack.c.b16 %v6148, %v6147
    %vm6177 = vcmask 785408
    %v6179 = vsel %vm6177, %v6046, 0
    %v6182 = vsel %vm6177, %v6048, 0
    %v6185 = vsel %vm6177, %v6050, 0
    %v6188 = vsel %vm6177, %v6052, 0
    %v6191 = vsel %vm6177, %v6054, 0
    %v6194 = vsel %vm6177, %v6056, 0
    %v6197 = vsel %vm6177, %v6058, 0
    %v6200 = vsel %vm6177, %v6060, 0
    %v6203 = vsel %vm6177, %v6062, 0
    %v6206 = vsel %vm6177, %v6064, 0
    %v6209 = vsel %vm6177, %v6066, 0
    %v6212 = vsel %vm6177, %v6068, 0
    %v6215 = vsel %vm6177, %v6070, 0
    %v6218 = vsel %vm6177, %v6072, 0
    %v6221 = vsel %vm6177, %v6074, 0
    %v6224 = vsel %vm6177, %v6076, 0
    %6226 = vmatpush.bf16.msra.mxu0 %v6156
    %6227 = vmatpush.bf16.msra.mxu0 %v6155
    %6228 = vmatpush.bf16.msra.mxu0 %v6154
    %6229 = vmatpush.bf16.msra.mxu0 %v6153
    %6230 = vmatpush.bf16.msra.mxu0 %v6152
    %6231 = vmatpush.bf16.msra.mxu0 %v6151
    %6232 = vmatpush.bf16.msra.mxu0 %v6150
    %6233 = vmatpush.bf16.msra.mxu0 %v6149
    %6234 = vmatmul.bf16.gmra.mxu0 %v6045
    %v6235 = vpop.f32.mrf.mxu0
    %v6236 = vadd.f32 0.0, %v6235
    %v6237 = vpop.f32.mrf.mxu0
    %v6238 = vadd.f32 0.0, %v6237
    %6239 = vmatmul.bf16.gmra.mxu0 %v6047
    %v6240 = vpop.f32.mrf.mxu0
    %v6241 = vadd.f32 0.0, %v6240
    %v6242 = vpop.f32.mrf.mxu0
    %v6243 = vadd.f32 0.0, %v6242
    %6244 = vmatmul.bf16.gmra.mxu0 %v6049
    %v6245 = vpop.f32.mrf.mxu0
    %v6246 = vadd.f32 0.0, %v6245
    %v6247 = vpop.f32.mrf.mxu0
    %v6248 = vadd.f32 0.0, %v6247
    %6249 = vmatmul.bf16.gmra.mxu0 %v6051
    %v6250 = vpop.f32.mrf.mxu0
    %v6251 = vadd.f32 0.0, %v6250
    %v6252 = vpop.f32.mrf.mxu0
    %v6253 = vadd.f32 0.0, %v6252
    %6254 = vmatmul.bf16.gmra.mxu0 %v6053
    %v6255 = vpop.f32.mrf.mxu0
    %v6256 = vadd.f32 0.0, %v6255
    %v6257 = vpop.f32.mrf.mxu0
    %v6258 = vadd.f32 0.0, %v6257
    %6259 = vmatmul.bf16.gmra.mxu0 %v6055
    %v6260 = vpop.f32.mrf.mxu0
    %v6261 = vadd.f32 0.0, %v6260
    %v6262 = vpop.f32.mrf.mxu0
    %v6263 = vadd.f32 0.0, %v6262
    %6264 = vmatmul.bf16.gmra.mxu0 %v6057
    %v6265 = vpop.f32.mrf.mxu0
    %v6266 = vadd.f32 0.0, %v6265
    %v6267 = vpop.f32.mrf.mxu0
    %v6268 = vadd.f32 0.0, %v6267
    %6269 = vmatmul.bf16.gmra.mxu0 %v6059
    %v6270 = vpop.f32.mrf.mxu0
    %v6271 = vadd.f32 0.0, %v6270
    %v6272 = vpop.f32.mrf.mxu0
    %v6273 = vadd.f32 0.0, %v6272
    %6274 = vmatmul.bf16.gmra.mxu0 %v6061
    %v6275 = vpop.f32.mrf.mxu0
    %v6276 = vadd.f32 0.0, %v6275
    %v6277 = vpop.f32.mrf.mxu0
    %v6278 = vadd.f32 0.0, %v6277
    %6279 = vmatmul.bf16.gmra.mxu0 %v6063
    %v6280 = vpop.f32.mrf.mxu0
    %v6281 = vadd.f32 0.0, %v6280
    %v6282 = vpop.f32.mrf.mxu0
    %v6283 = vadd.f32 0.0, %v6282
    %6284 = vmatmul.bf16.gmra.mxu0 %v6065
    %v6285 = vpop.f32.mrf.mxu0
    %v6286 = vadd.f32 0.0, %v6285
    %v6287 = vpop.f32.mrf.mxu0
    %v6288 = vadd.f32 0.0, %v6287
    %6289 = vmatmul.bf16.gmra.mxu0 %v6067
    %v6290 = vpop.f32.mrf.mxu0
    %v6291 = vadd.f32 0.0, %v6290
    %v6292 = vpop.f32.mrf.mxu0
    %v6293 = vadd.f32 0.0, %v6292
    %6294 = vmatmul.bf16.gmra.mxu0 %v6069
    %v6295 = vpop.f32.mrf.mxu0
    %v6296 = vadd.f32 0.0, %v6295
    %v6297 = vpop.f32.mrf.mxu0
    %v6298 = vadd.f32 0.0, %v6297
    %6299 = vmatmul.bf16.gmra.mxu0 %v6071
    %v6300 = vpop.f32.mrf.mxu0
    %v6301 = vadd.f32 0.0, %v6300
    %v6302 = vpop.f32.mrf.mxu0
    %v6303 = vadd.f32 0.0, %v6302
    %6304 = vmatmul.bf16.gmra.mxu0 %v6073
    %v6305 = vpop.f32.mrf.mxu0
    %v6306 = vadd.f32 0.0, %v6305
    %v6307 = vpop.f32.mrf.mxu0
    %v6308 = vadd.f32 0.0, %v6307
    %6309 = vmatmul.bf16.gmra.mxu0 %v6075
    %v6310 = vpop.f32.mrf.mxu0
    %v6311 = vadd.f32 0.0, %v6310
    %v6312 = vpop.f32.mrf.mxu0
    %v6313 = vadd.f32 0.0, %v6312
    %6314 = vdwg.mxu0
    %6315 = vmatpush.bf16.msra.mxu0 0
    %6316 = vmatpush.bf16.msra.mxu0 0
    %6317 = vmatpush.bf16.msra.mxu0 %v6162
    %6318 = vmatpush.bf16.msra.mxu0 %v6161
    %6319 = vmatpush.bf16.msra.mxu0 %v6160
    %6320 = vmatpush.bf16.msra.mxu0 %v6159
    %6321 = vmatpush.bf16.msra.mxu0 %v6158
    %6322 = vmatpush.bf16.msra.mxu0 %v6157
    %6323 = vmatmul.bf16.gmra.mxu0 %v6179
    %v6324 = vpop.f32.mrf.mxu0
    %v6325 = vadd.f32 %v6236, %v6324
    %v6326 = vpop.f32.mrf.mxu0
    %v6327 = vadd.f32 %v6238, %v6326
    %6328 = vmatmul.bf16.gmra.mxu0 %v6182
    %v6329 = vpop.f32.mrf.mxu0
    %v6330 = vadd.f32 %v6241, %v6329
    %v6331 = vpop.f32.mrf.mxu0
    %v6332 = vadd.f32 %v6243, %v6331
    %6333 = vmatmul.bf16.gmra.mxu0 %v6185
    %v6334 = vpop.f32.mrf.mxu0
    %v6335 = vadd.f32 %v6246, %v6334
    %v6336 = vpop.f32.mrf.mxu0
    %v6337 = vadd.f32 %v6248, %v6336
    %6338 = vmatmul.bf16.gmra.mxu0 %v6188
    %v6339 = vpop.f32.mrf.mxu0
    %v6340 = vadd.f32 %v6251, %v6339
    %v6341 = vpop.f32.mrf.mxu0
    %v6342 = vadd.f32 %v6253, %v6341
    %6343 = vmatmul.bf16.gmra.mxu0 %v6191
    %v6344 = vpop.f32.mrf.mxu0
    %v6345 = vadd.f32 %v6256, %v6344
    %v6346 = vpop.f32.mrf.mxu0
    %v6347 = vadd.f32 %v6258, %v6346
    %6348 = vmatmul.bf16.gmra.mxu0 %v6194
    %v6349 = vpop.f32.mrf.mxu0
    %v6350 = vadd.f32 %v6261, %v6349
    %v6351 = vpop.f32.mrf.mxu0
    %v6352 = vadd.f32 %v6263, %v6351
    %6353 = vmatmul.bf16.gmra.mxu0 %v6197
    %v6354 = vpop.f32.mrf.mxu0
    %v6355 = vadd.f32 %v6266, %v6354
    %v6356 = vpop.f32.mrf.mxu0
    %v6357 = vadd.f32 %v6268, %v6356
    %6358 = vmatmul.bf16.gmra.mxu0 %v6200
    %v6359 = vpop.f32.mrf.mxu0
    %v6360 = vadd.f32 %v6271, %v6359
    %v6361 = vpop.f32.mrf.mxu0
    %v6362 = vadd.f32 %v6273, %v6361
    %6363 = vmatmul.bf16.gmra.mxu0 %v6203
    %v6364 = vpop.f32.mrf.mxu0
    %v6365 = vadd.f32 %v6276, %v6364
    %v6366 = vpop.f32.mrf.mxu0
    %v6367 = vadd.f32 %v6278, %v6366
    %6368 = vmatmul.bf16.gmra.mxu0 %v6206
    %v6369 = vpop.f32.mrf.mxu0
    %v6370 = vadd.f32 %v6281, %v6369
    %v6371 = vpop.f32.mrf.mxu0
    %v6372 = vadd.f32 %v6283, %v6371
    %6373 = vmatmul.bf16.gmra.mxu0 %v6209
    %v6374 = vpop.f32.mrf.mxu0
    %v6375 = vadd.f32 %v6286, %v6374
    %v6376 = vpop.f32.mrf.mxu0
    %v6377 = vadd.f32 %v6288, %v6376
    %6378 = vmatmul.bf16.gmra.mxu0 %v6212
    %v6379 = vpop.f32.mrf.mxu0
    %v6380 = vadd.f32 %v6291, %v6379
    %v6381 = vpop.f32.mrf.mxu0
    %v6382 = vadd.f32 %v6293, %v6381
    %6383 = vmatmul.bf16.gmra.mxu0 %v6215
    %v6384 = vpop.f32.mrf.mxu0
    %v6385 = vadd.f32 %v6296, %v6384
    %v6386 = vpop.f32.mrf.mxu0
    %v6387 = vadd.f32 %v6298, %v6386
    %6388 = vmatmul.bf16.gmra.mxu0 %v6218
    %v6389 = vpop.f32.mrf.mxu0
    %v6390 = vadd.f32 %v6301, %v6389
    %v6391 = vpop.f32.mrf.mxu0
    %v6392 = vadd.f32 %v6303, %v6391
    %6393 = vmatmul.bf16.gmra.mxu0 %v6221
    %v6394 = vpop.f32.mrf.mxu0
    %v6395 = vadd.f32 %v6306, %v6394
    %v6396 = vpop.f32.mrf.mxu0
    %v6397 = vadd.f32 %v6308, %v6396
    %6398 = vmatmul.bf16.gmra.mxu0 %v6224
    %v6399 = vpop.f32.mrf.mxu0
    %v6400 = vadd.f32 %v6311, %v6399
    %v6401 = vpop.f32.mrf.mxu0
    %v6402 = vadd.f32 %v6313, %v6401
    %6403 = vdwg.mxu0
    %v6404 = vpack.c.bf16 %v6325, %v6325
    %v6405 = vpack.c.bf16 %v6327, %v6327
    %v6406 = vpack.c.bf16 %v6330, %v6330
    %v6407 = vpack.c.bf16 %v6332, %v6332
    %v6408 = vpack.c.bf16 %v6335, %v6335
    %v6409 = vpack.c.bf16 %v6337, %v6337
    %v6410 = vpack.c.bf16 %v6340, %v6340
    %v6411 = vpack.c.bf16 %v6342, %v6342
    %v6412 = vpack.c.bf16 %v6345, %v6345
    %v6413 = vpack.c.bf16 %v6347, %v6347
    %v6414 = vpack.c.bf16 %v6350, %v6350
    %v6415 = vpack.c.bf16 %v6352, %v6352
    %v6416 = vpack.c.bf16 %v6355, %v6355
    %v6417 = vpack.c.bf16 %v6357, %v6357
    %v6418 = vpack.c.bf16 %v6360, %v6360
    %v6419 = vpack.c.bf16 %v6362, %v6362
    %v6420 = vpack.c.bf16 %v6365, %v6365
    %v6421 = vpack.c.bf16 %v6367, %v6367
    %v6422 = vpack.c.bf16 %v6370, %v6370
    %v6423 = vpack.c.bf16 %v6372, %v6372
    %v6424 = vpack.c.bf16 %v6375, %v6375
    %v6425 = vpack.c.bf16 %v6377, %v6377
    %v6426 = vpack.c.bf16 %v6380, %v6380
    %v6427 = vpack.c.bf16 %v6382, %v6382
    %v6428 = vpack.c.bf16 %v6385, %v6385
    %v6429 = vpack.c.bf16 %v6387, %v6387
    %v6430 = vpack.c.bf16 %v6390, %v6390
    %v6431 = vpack.c.bf16 %v6392, %v6392
    %v6432 = vpack.c.bf16 %v6395, %v6395
    %v6433 = vpack.c.bf16 %v6397, %v6397
    %v6434 = vpack.c.bf16 %v6400, %v6400
    %v6435 = vpack.c.bf16 %v6402, %v6402
    %v6436 = vunpack.c.l.bf16 %v6404
    %v6437 = vunpack.c.l.bf16 %v6405
    %v6438 = vunpack.c.l.bf16 %v6406
    %v6439 = vunpack.c.l.bf16 %v6407
    %v6440 = vunpack.c.l.bf16 %v6408
    %v6441 = vunpack.c.l.bf16 %v6409
    %v6442 = vunpack.c.l.bf16 %v6410
    %v6443 = vunpack.c.l.bf16 %v6411
    %v6444 = vunpack.c.l.bf16 %v6420
    %v6445 = vunpack.c.l.bf16 %v6421
    %v6446 = vunpack.c.l.bf16 %v6422
    %v6447 = vunpack.c.l.bf16 %v6423
    %v6448 = vunpack.c.l.bf16 %v6424
    %v6449 = vunpack.c.l.bf16 %v6425
    %v6450 = vunpack.c.l.bf16 %v6426
    %v6451 = vunpack.c.l.bf16 %v6427
    %v6452 = vunpack.c.l.bf16 %v6412
    %v6453 = vunpack.c.l.bf16 %v6413
    %v6454 = vunpack.c.l.bf16 %v6414
    %v6455 = vunpack.c.l.bf16 %v6415
    %v6456 = vunpack.c.l.bf16 %v6416
    %v6457 = vunpack.c.l.bf16 %v6417
    %v6458 = vunpack.c.l.bf16 %v6418
    %v6459 = vunpack.c.l.bf16 %v6419
    %v6460 = vunpack.c.l.bf16 %v6428
    %v6461 = vunpack.c.l.bf16 %v6429
    %v6462 = vunpack.c.l.bf16 %v6430
    %v6463 = vunpack.c.l.bf16 %v6431
    %v6464 = vunpack.c.l.bf16 %v6432
    %v6465 = vunpack.c.l.bf16 %v6433
    %v6466 = vunpack.c.l.bf16 %v6434
    %v6467 = vunpack.c.l.bf16 %v6435
    %v6468 = vmax.f32 %v6436, %v6452
    %v6469 = vmax.f32 %v6437, %v6453
    %v6470 = vmax.f32 %v6438, %v6454
    %v6471 = vmax.f32 %v6439, %v6455
    %v6472 = vmax.f32 %v6440, %v6456
    %v6473 = vmax.f32 %v6441, %v6457
    %v6474 = vmax.f32 %v6442, %v6458
    %v6475 = vmax.f32 %v6443, %v6459
    %v6476 = vmax.f32 %v6444, %v6460
    %v6477 = vmax.f32 %v6445, %v6461
    %v6478 = vmax.f32 %v6446, %v6462
    %v6479 = vmax.f32 %v6447, %v6463
    %v6480 = vmax.f32 %v6448, %v6464
    %v6481 = vmax.f32 %v6449, %v6465
    %v6482 = vmax.f32 %v6450, %v6466
    %v6483 = vmax.f32 %v6451, %v6467
    %v6484 = vpack.c.bf16 %v6468, %v6468
    %v6485 = vpack.c.bf16 %v6469, %v6469
    %v6486 = vpack.c.bf16 %v6470, %v6470
    %v6487 = vpack.c.bf16 %v6471, %v6471
    %v6488 = vpack.c.bf16 %v6472, %v6472
    %v6489 = vpack.c.bf16 %v6473, %v6473
    %v6490 = vpack.c.bf16 %v6474, %v6474
    %v6491 = vpack.c.bf16 %v6475, %v6475
    %v6492 = vpack.c.bf16 %v6476, %v6476
    %v6493 = vpack.c.bf16 %v6477, %v6477
    %v6494 = vpack.c.bf16 %v6478, %v6478
    %v6495 = vpack.c.bf16 %v6479, %v6479
    %v6496 = vpack.c.bf16 %v6480, %v6480
    %v6497 = vpack.c.bf16 %v6481, %v6481
    %v6498 = vpack.c.bf16 %v6482, %v6482
    %v6499 = vpack.c.bf16 %v6483, %v6483
    %v6500 = vld [vmem:[%s7] sm:$0xf]
    %v6501 = vld [vmem:[%s7 + $0x4] sm:$0xf]
    %v6502 = vld [vmem:[%s7 + $0x8] sm:$0xf]
    %v6503 = vld [vmem:[%s7 + $0xc] sm:$0xf]
    %v6504 = vld [vmem:[%s7 + $0x10] sm:$0xf]
    %v6505 = vld [vmem:[%s7 + $0x14] sm:$0xf]
    %v6506 = vld [vmem:[%s7 + $0x18] sm:$0xf]
    %v6507 = vld [vmem:[%s7 + $0x1c] sm:$0xf]
    %v6508 = vld [vmem:[%s7 + $0x20] sm:$0xf]
    %v6509 = vld [vmem:[%s7 + $0x24] sm:$0xf]
    %v6510 = vld [vmem:[%s7 + $0x28] sm:$0xf]
    %v6511 = vld [vmem:[%s7 + $0x2c] sm:$0xf]
    %v6512 = vld [vmem:[%s7 + $0x30] sm:$0xf]
    %v6513 = vld [vmem:[%s7 + $0x34] sm:$0xf]
    %v6514 = vld [vmem:[%s7 + $0x38] sm:$0xf]
    %v6515 = vld [vmem:[%s7 + $0x3c] sm:$0xf]
    %6517 = vset.pattern.permute.xlu0 0
    %6518 = vperm.xlu0 %6517, %v6500
    %v6519 = vpop.permute.xlu0 %6518
    %v6522 = vunpack.c.l.s4 839922192
    %v6523 = vunpack.c.0.s8 %v6522
    %v6524 = vperm.slane %v6519, %v6523
    %6526 = vset.pattern.permute.xlu0 0
    %6527 = vperm.xlu0 %6526, %v6501
    %v6528 = vpop.permute.xlu0 %6527
    %v6531 = vunpack.c.l.s4 839922192
    %v6532 = vunpack.c.0.s8 %v6531
    %v6533 = vperm.slane %v6528, %v6532
    %6535 = vset.pattern.permute.xlu0 0
    %6536 = vperm.xlu0 %6535, %v6502
    %v6537 = vpop.permute.xlu0 %6536
    %v6540 = vunpack.c.l.s4 839922192
    %v6541 = vunpack.c.0.s8 %v6540
    %v6542 = vperm.slane %v6537, %v6541
    %6544 = vset.pattern.permute.xlu0 0
    %6545 = vperm.xlu0 %6544, %v6503
    %v6546 = vpop.permute.xlu0 %6545
    %v6549 = vunpack.c.l.s4 839922192
    %v6550 = vunpack.c.0.s8 %v6549
    %v6551 = vperm.slane %v6546, %v6550
    %6553 = vset.pattern.permute.xlu0 0
    %6554 = vperm.xlu0 %6553, %v6504
    %v6555 = vpop.permute.xlu0 %6554
    %v6558 = vunpack.c.l.s4 839922192
    %v6559 = vunpack.c.0.s8 %v6558
    %v6560 = vperm.slane %v6555, %v6559
    %6562 = vset.pattern.permute.xlu0 0
    %6563 = vperm.xlu0 %6562, %v6505
    %v6564 = vpop.permute.xlu0 %6563
    %v6567 = vunpack.c.l.s4 839922192
    %v6568 = vunpack.c.0.s8 %v6567
    %v6569 = vperm.slane %v6564, %v6568
    %6571 = vset.pattern.permute.xlu0 0
    %6572 = vperm.xlu0 %6571, %v6506
    %v6573 = vpop.permute.xlu0 %6572
    %v6576 = vunpack.c.l.s4 839922192
    %v6577 = vunpack.c.0.s8 %v6576
    %v6578 = vperm.slane %v6573, %v6577
    %6580 = vset.pattern.permute.xlu0 0
    %6581 = vperm.xlu0 %6580, %v6507
    %v6582 = vpop.permute.xlu0 %6581
    %v6585 = vunpack.c.l.s4 839922192
    %v6586 = vunpack.c.0.s8 %v6585
    %v6587 = vperm.slane %v6582, %v6586
    %6589 = vset.pattern.permute.xlu0 0
    %6590 = vperm.xlu0 %6589, %v6508
    %v6591 = vpop.permute.xlu0 %6590
    %v6594 = vunpack.c.l.s4 839922192
    %v6595 = vunpack.c.0.s8 %v6594
    %v6596 = vperm.slane %v6591, %v6595
    %6598 = vset.pattern.permute.xlu0 0
    %6599 = vperm.xlu0 %6598, %v6509
    %v6600 = vpop.permute.xlu0 %6599
    %v6603 = vunpack.c.l.s4 839922192
    %v6604 = vunpack.c.0.s8 %v6603
    %v6605 = vperm.slane %v6600, %v6604
    %6607 = vset.pattern.permute.xlu0 0
    %6608 = vperm.xlu0 %6607, %v6510
    %v6609 = vpop.permute.xlu0 %6608
    %v6612 = vunpack.c.l.s4 839922192
    %v6613 = vunpack.c.0.s8 %v6612
    %v6614 = vperm.slane %v6609, %v6613
    %6616 = vset.pattern.permute.xlu0 0
    %6617 = vperm.xlu0 %6616, %v6511
    %v6618 = vpop.permute.xlu0 %6617
    %v6621 = vunpack.c.l.s4 839922192
    %v6622 = vunpack.c.0.s8 %v6621
    %v6623 = vperm.slane %v6618, %v6622
    %6625 = vset.pattern.permute.xlu0 0
    %6626 = vperm.xlu0 %6625, %v6512
    %v6627 = vpop.permute.xlu0 %6626
    %v6630 = vunpack.c.l.s4 839922192
    %v6631 = vunpack.c.0.s8 %v6630
    %v6632 = vperm.slane %v6627, %v6631
    %6634 = vset.pattern.permute.xlu0 0
    %6635 = vperm.xlu0 %6634, %v6513
    %v6636 = vpop.permute.xlu0 %6635
    %v6639 = vunpack.c.l.s4 839922192
    %v6640 = vunpack.c.0.s8 %v6639
    %v6641 = vperm.slane %v6636, %v6640
    %6643 = vset.pattern.permute.xlu0 0
    %6644 = vperm.xlu0 %6643, %v6514
    %v6645 = vpop.permute.xlu0 %6644
    %v6648 = vunpack.c.l.s4 839922192
    %v6649 = vunpack.c.0.s8 %v6648
    %v6650 = vperm.slane %v6645, %v6649
    %6652 = vset.pattern.permute.xlu0 0
    %6653 = vperm.xlu0 %6652, %v6515
    %v6654 = vpop.permute.xlu0 %6653
    %v6657 = vunpack.c.l.s4 839922192
    %v6658 = vunpack.c.0.s8 %v6657
    %v6659 = vperm.slane %v6654, %v6658
    %v6660 = vunpack.c.l.bf16 %v6484
    %v6661 = vunpack.c.l.bf16 %v6485
    %v6662 = vunpack.c.l.bf16 %v6486
    %v6663 = vunpack.c.l.bf16 %v6487
    %v6664 = vunpack.c.l.bf16 %v6488
    %v6665 = vunpack.c.l.bf16 %v6489
    %v6666 = vunpack.c.l.bf16 %v6490
    %v6667 = vunpack.c.l.bf16 %v6491
    %v6668 = vunpack.c.l.bf16 %v6492
    %v6669 = vunpack.c.l.bf16 %v6493
    %v6670 = vunpack.c.l.bf16 %v6494
    %v6671 = vunpack.c.l.bf16 %v6495
    %v6672 = vunpack.c.l.bf16 %v6496
    %v6673 = vunpack.c.l.bf16 %v6497
    %v6674 = vunpack.c.l.bf16 %v6498
    %v6675 = vunpack.c.l.bf16 %v6499
    %v6676 = vunpack.c.l.bf16 %v6524
    %v6677 = vunpack.c.l.bf16 %v6533
    %v6678 = vunpack.c.l.bf16 %v6542
    %v6679 = vunpack.c.l.bf16 %v6551
    %v6680 = vunpack.c.l.bf16 %v6560
    %v6681 = vunpack.c.l.bf16 %v6569
    %v6682 = vunpack.c.l.bf16 %v6578
    %v6683 = vunpack.c.l.bf16 %v6587
    %v6684 = vunpack.c.l.bf16 %v6596
    %v6685 = vunpack.c.l.bf16 %v6605
    %v6686 = vunpack.c.l.bf16 %v6614
    %v6687 = vunpack.c.l.bf16 %v6623
    %v6688 = vunpack.c.l.bf16 %v6632
    %v6689 = vunpack.c.l.bf16 %v6641
    %v6690 = vunpack.c.l.bf16 %v6650
    %v6691 = vunpack.c.l.bf16 %v6659
    %v6692 = vadd.f32 %v6660, %v6676
    %v6693 = vadd.f32 %v6661, %v6677
    %v6694 = vadd.f32 %v6662, %v6678
    %v6695 = vadd.f32 %v6663, %v6679
    %v6696 = vadd.f32 %v6664, %v6680
    %v6697 = vadd.f32 %v6665, %v6681
    %v6698 = vadd.f32 %v6666, %v6682
    %v6699 = vadd.f32 %v6667, %v6683
    %v6700 = vadd.f32 %v6668, %v6684
    %v6701 = vadd.f32 %v6669, %v6685
    %v6702 = vadd.f32 %v6670, %v6686
    %v6703 = vadd.f32 %v6671, %v6687
    %v6704 = vadd.f32 %v6672, %v6688
    %v6705 = vadd.f32 %v6673, %v6689
    %v6706 = vadd.f32 %v6674, %v6690
    %v6707 = vadd.f32 %v6675, %v6691
    %v6708 = vpack.c.bf16 %v6692, %v6692
    %v6709 = vpack.c.bf16 %v6693, %v6693
    %v6710 = vpack.c.bf16 %v6694, %v6694
    %v6711 = vpack.c.bf16 %v6695, %v6695
    %v6712 = vpack.c.bf16 %v6696, %v6696
    %v6713 = vpack.c.bf16 %v6697, %v6697
    %v6714 = vpack.c.bf16 %v6698, %v6698
    %v6715 = vpack.c.bf16 %v6699, %v6699
    %v6716 = vpack.c.bf16 %v6700, %v6700
    %v6717 = vpack.c.bf16 %v6701, %v6701
    %v6718 = vpack.c.bf16 %v6702, %v6702
    %v6719 = vpack.c.bf16 %v6703, %v6703
    %v6720 = vpack.c.bf16 %v6704, %v6704
    %v6721 = vpack.c.bf16 %v6705, %v6705
    %v6722 = vpack.c.bf16 %v6706, %v6706
    %v6723 = vpack.c.bf16 %v6707, %v6707
    %v6724 = vunpack.c.l.bf16 %v6708
    %v6725 = vunpack.c.l.bf16 %v6709
    %v6726 = vunpack.c.l.bf16 %v6710
    %v6727 = vunpack.c.l.bf16 %v6711
    %v6728 = vunpack.c.l.bf16 %v6712
    %v6729 = vunpack.c.l.bf16 %v6713
    %v6730 = vunpack.c.l.bf16 %v6714
    %v6731 = vunpack.c.l.bf16 %v6715
    %v6732 = vunpack.c.l.bf16 %v6716
    %v6733 = vunpack.c.l.bf16 %v6717
    %v6734 = vunpack.c.l.bf16 %v6718
    %v6735 = vunpack.c.l.bf16 %v6719
    %v6736 = vunpack.c.l.bf16 %v6720
    %v6737 = vunpack.c.l.bf16 %v6721
    %v6738 = vunpack.c.l.bf16 %v6722
    %v6739 = vunpack.c.l.bf16 %v6723
    %vm6740 = vcmp.gt.f32.partialorder %v6724, 0.0
    %vm6741 = vcmp.gt.f32.partialorder %v6725, 0.0
    %vm6742 = vcmp.gt.f32.partialorder %v6726, 0.0
    %vm6743 = vcmp.gt.f32.partialorder %v6727, 0.0
    %vm6744 = vcmp.gt.f32.partialorder %v6728, 0.0
    %vm6745 = vcmp.gt.f32.partialorder %v6729, 0.0
    %vm6746 = vcmp.gt.f32.partialorder %v6730, 0.0
    %vm6747 = vcmp.gt.f32.partialorder %v6731, 0.0
    %vm6748 = vcmp.gt.f32.partialorder %v6732, 0.0
    %vm6749 = vcmp.gt.f32.partialorder %v6733, 0.0
    %vm6750 = vcmp.gt.f32.partialorder %v6734, 0.0
    %vm6751 = vcmp.gt.f32.partialorder %v6735, 0.0
    %vm6752 = vcmp.gt.f32.partialorder %v6736, 0.0
    %vm6753 = vcmp.gt.f32.partialorder %v6737, 0.0
    %vm6754 = vcmp.gt.f32.partialorder %v6738, 0.0
    %vm6755 = vcmp.gt.f32.partialorder %v6739, 0.0
    %v6756 = vmin.f32 %v6724, 0.0
    %v6757 = vmin.f32 %v6725, 0.0
    %v6758 = vmin.f32 %v6726, 0.0
    %v6759 = vmin.f32 %v6727, 0.0
    %v6760 = vmin.f32 %v6728, 0.0
    %v6761 = vmin.f32 %v6729, 0.0
    %v6762 = vmin.f32 %v6730, 0.0
    %v6763 = vmin.f32 %v6731, 0.0
    %v6764 = vmin.f32 %v6732, 0.0
    %v6765 = vmin.f32 %v6733, 0.0
    %v6766 = vmin.f32 %v6734, 0.0
    %v6767 = vmin.f32 %v6735, 0.0
    %v6768 = vmin.f32 %v6736, 0.0
    %v6769 = vmin.f32 %v6737, 0.0
    %v6770 = vmin.f32 %v6738, 0.0
    %v6771 = vmin.f32 %v6739, 0.0
    %v6772 = vpack.c.bf16 %v6756, %v6756
    %v6773 = vpack.c.bf16 %v6757, %v6757
    %v6774 = vpack.c.bf16 %v6758, %v6758
    %v6775 = vpack.c.bf16 %v6759, %v6759
    %v6776 = vpack.c.bf16 %v6760, %v6760
    %v6777 = vpack.c.bf16 %v6761, %v6761
    %v6778 = vpack.c.bf16 %v6762, %v6762
    %v6779 = vpack.c.bf16 %v6763, %v6763
    %v6780 = vpack.c.bf16 %v6764, %v6764
    %v6781 = vpack.c.bf16 %v6765, %v6765
    %v6782 = vpack.c.bf16 %v6766, %v6766
    %v6783 = vpack.c.bf16 %v6767, %v6767
    %v6784 = vpack.c.bf16 %v6768, %v6768
    %v6785 = vpack.c.bf16 %v6769, %v6769
    %v6786 = vpack.c.bf16 %v6770, %v6770
    %v6787 = vpack.c.bf16 %v6771, %v6771
    %v6788 = vunpack.c.l.bf16 %v6772
    %v6789 = vunpack.c.l.bf16 %v6773
    %v6790 = vunpack.c.l.bf16 %v6774
    %v6791 = vunpack.c.l.bf16 %v6775
    %v6792 = vunpack.c.l.bf16 %v6776
    %v6793 = vunpack.c.l.bf16 %v6777
    %v6794 = vunpack.c.l.bf16 %v6778
    %v6795 = vunpack.c.l.bf16 %v6779
    %v6796 = vunpack.c.l.bf16 %v6780
    %v6797 = vunpack.c.l.bf16 %v6781
    %v6798 = vunpack.c.l.bf16 %v6782
    %v6799 = vunpack.c.l.bf16 %v6783
    %v6800 = vunpack.c.l.bf16 %v6784
    %v6801 = vunpack.c.l.bf16 %v6785
    %v6802 = vunpack.c.l.bf16 %v6786
    %v6803 = vunpack.c.l.bf16 %v6787
    %v6804 = vmul.f32 %v6788, 1.442695
    %v6805 = vpow.pop %v6804
    %v6806 = vmul.f32 %v6789, 1.442695
    %v6807 = vpow.pop %v6806
    %v6808 = vmul.f32 %v6790, 1.442695
    %v6809 = vpow.pop %v6808
    %v6810 = vmul.f32 %v6791, 1.442695
    %v6811 = vpow.pop %v6810
    %v6812 = vmul.f32 %v6792, 1.442695
    %v6813 = vpow.pop %v6812
    %v6814 = vmul.f32 %v6793, 1.442695
    %v6815 = vpow.pop %v6814
    %v6816 = vmul.f32 %v6794, 1.442695
    %v6817 = vpow.pop %v6816
    %v6818 = vmul.f32 %v6795, 1.442695
    %v6819 = vpow.pop %v6818
    %v6820 = vmul.f32 %v6796, 1.442695
    %v6821 = vpow.pop %v6820
    %v6822 = vmul.f32 %v6797, 1.442695
    %v6823 = vpow.pop %v6822
    %v6824 = vmul.f32 %v6798, 1.442695
    %v6825 = vpow.pop %v6824
    %v6826 = vmul.f32 %v6799, 1.442695
    %v6827 = vpow.pop %v6826
    %v6828 = vmul.f32 %v6800, 1.442695
    %v6829 = vpow.pop %v6828
    %v6830 = vmul.f32 %v6801, 1.442695
    %v6831 = vpow.pop %v6830
    %v6832 = vmul.f32 %v6802, 1.442695
    %v6833 = vpow.pop %v6832
    %v6834 = vmul.f32 %v6803, 1.442695
    %v6835 = vpow.pop %v6834
    %v6836 = vpack.c.bf16 %v6805, %v6805
    %v6837 = vpack.c.bf16 %v6807, %v6807
    %v6838 = vpack.c.bf16 %v6809, %v6809
    %v6839 = vpack.c.bf16 %v6811, %v6811
    %v6840 = vpack.c.bf16 %v6813, %v6813
    %v6841 = vpack.c.bf16 %v6815, %v6815
    %v6842 = vpack.c.bf16 %v6817, %v6817
    %v6843 = vpack.c.bf16 %v6819, %v6819
    %v6844 = vpack.c.bf16 %v6821, %v6821
    %v6845 = vpack.c.bf16 %v6823, %v6823
    %v6846 = vpack.c.bf16 %v6825, %v6825
    %v6847 = vpack.c.bf16 %v6827, %v6827
    %v6848 = vpack.c.bf16 %v6829, %v6829
    %v6849 = vpack.c.bf16 %v6831, %v6831
    %v6850 = vpack.c.bf16 %v6833, %v6833
    %v6851 = vpack.c.bf16 %v6835, %v6835
    %v6852 = vunpack.c.l.bf16 %v6836
    %v6853 = vunpack.c.l.bf16 %v6837
    %v6854 = vunpack.c.l.bf16 %v6838
    %v6855 = vunpack.c.l.bf16 %v6839
    %v6856 = vunpack.c.l.bf16 %v6840
    %v6857 = vunpack.c.l.bf16 %v6841
    %v6858 = vunpack.c.l.bf16 %v6842
    %v6859 = vunpack.c.l.bf16 %v6843
    %v6860 = vunpack.c.l.bf16 %v6844
    %v6861 = vunpack.c.l.bf16 %v6845
    %v6862 = vunpack.c.l.bf16 %v6846
    %v6863 = vunpack.c.l.bf16 %v6847
    %v6864 = vunpack.c.l.bf16 %v6848
    %v6865 = vunpack.c.l.bf16 %v6849
    %v6866 = vunpack.c.l.bf16 %v6850
    %v6867 = vunpack.c.l.bf16 %v6851
    %v6868 = vsub.f32 %v6852, 1.0
    %v6869 = vsub.f32 %v6853, 1.0
    %v6870 = vsub.f32 %v6854, 1.0
    %v6871 = vsub.f32 %v6855, 1.0
    %v6872 = vsub.f32 %v6856, 1.0
    %v6873 = vsub.f32 %v6857, 1.0
    %v6874 = vsub.f32 %v6858, 1.0
    %v6875 = vsub.f32 %v6859, 1.0
    %v6876 = vsub.f32 %v6860, 1.0
    %v6877 = vsub.f32 %v6861, 1.0
    %v6878 = vsub.f32 %v6862, 1.0
    %v6879 = vsub.f32 %v6863, 1.0
    %v6880 = vsub.f32 %v6864, 1.0
    %v6881 = vsub.f32 %v6865, 1.0
    %v6882 = vsub.f32 %v6866, 1.0
    %v6883 = vsub.f32 %v6867, 1.0
    %v6884 = vpack.c.bf16 %v6868, %v6868
    %v6885 = vpack.c.bf16 %v6869, %v6869
    %v6886 = vpack.c.bf16 %v6870, %v6870
    %v6887 = vpack.c.bf16 %v6871, %v6871
    %v6888 = vpack.c.bf16 %v6872, %v6872
    %v6889 = vpack.c.bf16 %v6873, %v6873
    %v6890 = vpack.c.bf16 %v6874, %v6874
    %v6891 = vpack.c.bf16 %v6875, %v6875
    %v6892 = vpack.c.bf16 %v6876, %v6876
    %v6893 = vpack.c.bf16 %v6877, %v6877
    %v6894 = vpack.c.bf16 %v6878, %v6878
    %v6895 = vpack.c.bf16 %v6879, %v6879
    %v6896 = vpack.c.bf16 %v6880, %v6880
    %v6897 = vpack.c.bf16 %v6881, %v6881
    %v6898 = vpack.c.bf16 %v6882, %v6882
    %v6899 = vpack.c.bf16 %v6883, %v6883
    %vm6900 = vmpackc.low %vm6740, %vm6740
    %vm6901 = vmpackc.low %vm6741, %vm6741
    %vm6902 = vmpackc.low %vm6742, %vm6742
    %vm6903 = vmpackc.low %vm6743, %vm6743
    %vm6904 = vmpackc.low %vm6744, %vm6744
    %vm6905 = vmpackc.low %vm6745, %vm6745
    %vm6906 = vmpackc.low %vm6746, %vm6746
    %vm6907 = vmpackc.low %vm6747, %vm6747
    %vm6908 = vmpackc.low %vm6748, %vm6748
    %vm6909 = vmpackc.low %vm6749, %vm6749
    %vm6910 = vmpackc.low %vm6750, %vm6750
    %vm6911 = vmpackc.low %vm6751, %vm6751
    %vm6912 = vmpackc.low %vm6752, %vm6752
    %vm6913 = vmpackc.low %vm6753, %vm6753
    %vm6914 = vmpackc.low %vm6754, %vm6754
    %vm6915 = vmpackc.low %vm6755, %vm6755
    %v6916 = vsel %vm6900, %v6708, %v6884
    %v6917 = vsel %vm6901, %v6709, %v6885
    %v6918 = vsel %vm6902, %v6710, %v6886
    %v6919 = vsel %vm6903, %v6711, %v6887
    %v6920 = vsel %vm6904, %v6712, %v6888
    %v6921 = vsel %vm6905, %v6713, %v6889
    %v6922 = vsel %vm6906, %v6714, %v6890
    %v6923 = vsel %vm6907, %v6715, %v6891
    %v6924 = vsel %vm6908, %v6716, %v6892
    %v6925 = vsel %vm6909, %v6717, %v6893
    %v6926 = vsel %vm6910, %v6718, %v6894
    %v6927 = vsel %vm6911, %v6719, %v6895
    %v6928 = vsel %vm6912, %v6720, %v6896
    %v6929 = vsel %vm6913, %v6721, %v6897
    %v6930 = vsel %vm6914, %v6722, %v6898
    %v6931 = vsel %vm6915, %v6723, %v6899
    %v6932 = vld [vmem:[%s8] sm:$0xf]
    %v6933 = vld [vmem:[%s8 + $0x4] sm:$0xf]
    %v6934 = vld [vmem:[%s8 + $0x8] sm:$0xf]
    %v6935 = vld [vmem:[%s8 + $0xc] sm:$0xf]
    %v6936 = vld [vmem:[%s8 + $0x10] sm:$0xf]
    %v6937 = vld [vmem:[%s8 + $0x14] sm:$0xf]
    %v6938 = vld [vmem:[%s8 + $0x18] sm:$0xf]
    %v6939 = vld [vmem:[%s8 + $0x1c] sm:$0xf]
    %v6940 = vld [vmem:[%s9] sm:$0xff]
    %v6941 = vld [vmem:[%s9 + $0x8] sm:$0xff]
    %v6942 = vld [vmem:[%s9 + $0x10] sm:$0xff]
    %v6943 = vld [vmem:[%s9 + $0x18] sm:$0xff]
    %v6944 = vld [vmem:[%s9 + $0x20] sm:$0xff]
    %v6945 = vld [vmem:[%s9 + $0x28] sm:$0xff]
    %v6946 = vld [vmem:[%s9 + $0x30] sm:$0xff]
    %v6947 = vld [vmem:[%s9 + $0x38] sm:$0xff]
    %6949 = vset.pattern.permute.xlu0 0
    %6950 = vperm.xlu0 %6949, %v6940
    %v6951 = vpop.permute.xlu0 %6950
    %6954 = vset.pattern.permute.xlu0 0
    %6955 = vperm.xlu0 %6954, %v6941
    %v6956 = vpop.permute.xlu0 %6955
    %6959 = vset.pattern.permute.xlu0 0
    %6960 = vperm.xlu0 %6959, %v6942
    %v6961 = vpop.permute.xlu0 %6960
    %6964 = vset.pattern.permute.xlu0 0
    %6965 = vperm.xlu0 %6964, %v6943
    %v6966 = vpop.permute.xlu0 %6965
    %6969 = vset.pattern.permute.xlu0 0
    %6970 = vperm.xlu0 %6969, %v6944
    %v6971 = vpop.permute.xlu0 %6970
    %6974 = vset.pattern.permute.xlu0 0
    %6975 = vperm.xlu0 %6974, %v6945
    %v6976 = vpop.permute.xlu0 %6975
    %6979 = vset.pattern.permute.xlu0 0
    %6980 = vperm.xlu0 %6979, %v6946
    %v6981 = vpop.permute.xlu0 %6980
    %6984 = vset.pattern.permute.xlu0 0
    %6985 = vperm.xlu0 %6984, %v6947
    %v6986 = vpop.permute.xlu0 %6985
    %v6996 = vunpack.c.l.b16 %v6932
    %v6997 = vunpack.c.l.b16 %v6933
    %v6998 = vunpack.c.l.b16 %v6934
    %v6999 = vunpack.c.l.b16 %v6935
    %v7000 = vunpack.c.l.b16 %v6936
    %v7001 = vunpack.c.l.b16 %v6937
    %v7002 = vunpack.c.l.b16 %v6938
    %v7003 = vunpack.c.l.b16 %v6939
    %v7004 = vpack.c.b16 %v6997, %v6996
    %v7005 = vpack.c.b16 %v6999, %v6998
    %v7006 = vpack.c.b16 %v7001, %v7000
    %v7007 = vpack.c.b16 %v7003, %v7002
    %v7028 = vunpack.c.l.b16 %v6916
    %v7029 = vunpack.c.l.b16 %v6917
    %v7030 = vunpack.c.l.b16 %v6918
    %v7031 = vunpack.c.l.b16 %v6919
    %v7032 = vunpack.c.l.b16 %v6920
    %v7033 = vunpack.c.l.b16 %v6921
    %v7034 = vunpack.c.l.b16 %v6922
    %v7035 = vunpack.c.l.b16 %v6923
    %v7036 = vunpack.c.l.b16 %v6924
    %v7037 = vunpack.c.l.b16 %v6925
    %v7038 = vunpack.c.l.b16 %v6926
    %v7039 = vunpack.c.l.b16 %v6927
    %v7040 = vunpack.c.l.b16 %v6928
    %v7041 = vunpack.c.l.b16 %v6929
    %v7042 = vunpack.c.l.b16 %v6930
    %v7043 = vunpack.c.l.b16 %v6931
    %v7044 = vpack.c.b16 %v7029, %v7028
    %v7045 = vpack.c.b16 %v7031, %v7030
    %v7046 = vpack.c.b16 %v7033, %v7032
    %v7047 = vpack.c.b16 %v7035, %v7034
    %v7048 = vpack.c.b16 %v7037, %v7036
    %v7049 = vpack.c.b16 %v7039, %v7038
    %v7050 = vpack.c.b16 %v7041, %v7040
    %v7051 = vpack.c.b16 %v7043, %v7042
    %7060 = vmatpush.bf16.msra.mxu0 %v7051
    %7061 = vmatpush.bf16.msra.mxu0 %v7050
    %7062 = vmatpush.bf16.msra.mxu0 %v7049
    %7063 = vmatpush.bf16.msra.mxu0 %v7048
    %7064 = vmatpush.bf16.msra.mxu0 %v7047
    %7065 = vmatpush.bf16.msra.mxu0 %v7046
    %7066 = vmatpush.bf16.msra.mxu0 %v7045
    %7067 = vmatpush.bf16.msra.mxu0 %v7044
    %7068 = vmatmul.bf16.gmra.mxu0 %v7004
    %v7069 = vpop.f32.mrf.mxu0
    %v7070 = vadd.f32 %v6951, %v7069
    %v7071 = vpop.f32.mrf.mxu0
    %v7072 = vadd.f32 %v6956, %v7071
    %7073 = vmatmul.bf16.gmra.mxu0 %v7005
    %v7074 = vpop.f32.mrf.mxu0
    %v7075 = vadd.f32 %v6961, %v7074
    %v7076 = vpop.f32.mrf.mxu0
    %v7077 = vadd.f32 %v6966, %v7076
    %7078 = vmatmul.bf16.gmra.mxu0 %v7006
    %v7079 = vpop.f32.mrf.mxu0
    %v7080 = vadd.f32 %v6971, %v7079
    %v7081 = vpop.f32.mrf.mxu0
    %v7082 = vadd.f32 %v6976, %v7081
    %7083 = vmatmul.bf16.gmra.mxu0 %v7007
    %v7084 = vpop.f32.mrf.mxu0
    %v7085 = vadd.f32 %v6981, %v7084
    %v7086 = vpop.f32.mrf.mxu0
    %v7087 = vadd.f32 %v6986, %v7086
    %7088 = vdwg.mxu0
    %v7089 = vld [vmem:[%s10] sm:$0xf]
    %v7090 = vld [vmem:[%s10 + $0x4] sm:$0xf]
    %v7091 = vld [vmem:[%s10 + $0x8] sm:$0xf]
    %v7092 = vld [vmem:[%s10 + $0xc] sm:$0xf]
    %v7093 = vpack.c.bf16 %v7072, %v7070
    %v7094 = vpack.c.bf16 %v7077, %v7075
    %v7095 = vpack.c.bf16 %v7082, %v7080
    %v7096 = vpack.c.bf16 %v7087, %v7085
    %v7097 = vld [vmem:[%s11] sm:$0xff]
    %v7098 = vld [vmem:[%s11 + $0x8] sm:$0xff]
    %v7099 = vld [vmem:[%s11 + $0x10] sm:$0xff]
    %v7100 = vld [vmem:[%s11 + $0x18] sm:$0xff]
    %7102 = vset.pattern.permute.xlu0 0
    %7103 = vperm.xlu0 %7102, %v7097
    %v7104 = vpop.permute.xlu0 %7103
    %7107 = vset.pattern.permute.xlu0 0
    %7108 = vperm.xlu0 %7107, %v7098
    %v7109 = vpop.permute.xlu0 %7108
    %7112 = vset.pattern.permute.xlu0 0
    %7113 = vperm.xlu0 %7112, %v7099
    %v7114 = vpop.permute.xlu0 %7113
    %7117 = vset.pattern.permute.xlu0 0
    %7118 = vperm.xlu0 %7117, %v7100
    %v7119 = vpop.permute.xlu0 %7118
    %v7125 = vunpack.c.l.b16 %v7089
    %v7126 = vunpack.c.l.b16 %v7090
    %v7127 = vunpack.c.l.b16 %v7091
    %v7128 = vunpack.c.l.b16 %v7092
    %v7129 = vpack.c.b16 %v7126, %v7125
    %v7130 = vpack.c.b16 %v7128, %v7127
    %vm7131 = vcmask 523264
    %v7133 = vsel %vm7131, %v7129, 0
    %v7136 = vsel %vm7131, %v7130, 0
    %7138 = vmatpush.bf16.msra.mxu0 0
    %7139 = vmatpush.bf16.msra.mxu0 0
    %7140 = vmatpush.bf16.msra.mxu0 0
    %7141 = vmatpush.bf16.msra.mxu0 0
    %7142 = vmatpush.bf16.msra.mxu0 %v7096
    %7143 = vmatpush.bf16.msra.mxu0 %v7095
    %7144 = vmatpush.bf16.msra.mxu0 %v7094
    %7145 = vmatpush.bf16.msra.mxu0 %v7093
    %7146 = vmatmul.bf16.gmra.mxu0 %v7133
    %v7147 = vpop.f32.mrf.mxu0
    %v7148 = vadd.f32 %v7104, %v7147
    %v7149 = vpop.f32.mrf.mxu0
    %v7150 = vadd.f32 %v7109, %v7149
    %7151 = vmatmul.bf16.gmra.mxu0 %v7136
    %v7152 = vpop.f32.mrf.mxu0
    %v7153 = vadd.f32 %v7114, %v7152
    %v7154 = vpop.f32.mrf.mxu0
    %v7155 = vadd.f32 %v7119, %v7154
    %7156 = vdwg.mxu0
    %vm7157 = vcmp.gt.f32.partialorder %v7148, 0.0
    %vm7158 = vcmp.gt.f32.partialorder %v7150, 0.0
    %vm7159 = vcmp.gt.f32.partialorder %v7153, 0.0
    %vm7160 = vcmp.gt.f32.partialorder %v7155, 0.0
    %v7161 = vmin.f32 %v7148, 0.0
    %v7162 = vmin.f32 %v7150, 0.0
    %v7163 = vmin.f32 %v7153, 0.0
    %v7164 = vmin.f32 %v7155, 0.0
    %v7165 = vmul.f32 %v7161, 1.442695
    %v7166 = vpow.pop %v7165
    %v7167 = vmul.f32 %v7162, 1.442695
    %v7168 = vpow.pop %v7167
    %v7169 = vmul.f32 %v7163, 1.442695
    %v7170 = vpow.pop %v7169
    %v7171 = vmul.f32 %v7164, 1.442695
    %v7172 = vpow.pop %v7171
    %v7173 = vsub.f32 %v7166, 1.0
    %v7174 = vsub.f32 %v7168, 1.0
    %v7175 = vsub.f32 %v7170, 1.0
    %v7176 = vsub.f32 %v7172, 1.0
    %v7177 = vsel %vm7157, %v7148, %v7173
    %v7178 = vsel %vm7158, %v7150, %v7174
    %v7179 = vsel %vm7159, %v7153, %v7175
    %v7180 = vsel %vm7160, %v7155, %v7176
    %v7181 = vld [vmem:[%s12] sm:$0x1]
    %v7182 = vpack.c.bf16 %v7178, %v7177
    %v7183 = vpack.c.bf16 %v7180, %v7179
    %v7184 = vld [vmem:[#allocation2] sm:$0x1]
    %7186 = vset.pattern.permute.xlu0 0
    %7187 = vperm.xlu0 %7186, %v7184
    %v7188 = vpop.permute.xlu0 %7187
    %v7190 = vperm.slane %v7188, 0
    %vm7191 = vcmask 261120
    %v7193 = vsel %vm7191, %v7181, 0
    %7195 = vmatpush.bf16.msra.mxu0 0
    %7196 = vmatpush.bf16.msra.mxu0 0
    %7197 = vmatpush.bf16.msra.mxu0 0
    %7198 = vmatpush.bf16.msra.mxu0 0
    %7199 = vmatpush.bf16.msra.mxu0 0
    %7200 = vmatpush.bf16.msra.mxu0 0
    %7201 = vmatpush.bf16.msra.mxu0 %v7183
    %7202 = vmatpush.bf16.msra.mxu0 %v7182
    %7203 = vmatmul.bf16.gmra.mxu0 %v7193
    %v7204 = vpop.f32.mrf.mxu0
    %v7205 = vadd.f32 %v7190, %v7204
    %v7206 = vpop.f32.mrf.mxu0
    %7207 = vdwg.mxu0
    %v7208 = vxor.u32 %v7205, 2147483648
    %v7209 = vmul.f32 %v7208, 1.442695
    %v7210 = vpow.pop %v7209
    %v7211 = vadd.f32 %v7210, 1.0
    %v7212 = vrcp.pop %v7211
    %v7213 = vmul.f32 %v7211, %v7212
    %v7214 = vsub.f32 1.0, %v7213
    %v7215 = vmul.f32 %v7212, %v7214
    %v7216 = vadd.f32 %v7212, %v7215
    %vm7217 = vweird.f32 %v7211
    %vm7218 = vweird.f32 %v7212
    %vm7219 = vmor %vm7217, %vm7218
    %v7220 = vsel %vm7219, %v7212, %v7216
    %v7221 = vand.u32 2147483647, %v7211
    %vm7222 = vcmp.eq.f32.partialorder %v7221, 8.507059e+37
    %v7223 = vand.u32 %v7211, 2147483648
    %v7224 = vor.u32 1.1754944e-38, %v7223
    %v7225 = vsel %vm7222, %v7224, %v7220
    %v7226 = vmul.f32 1.0, %v7225
    %7227 = vst [vmem:[#allocation3] sm:$0x1] %v7226
    // Predicated region
    $region58: #{tpu_custom_call.1} parent=1 // pred_check
      _
    $region59: #{tpu_custom_call.1} parent=1 // pred_check_branch
      %7229 = sbr.rel (0) target = $region61
    $region60: #{tpu_custom_call.1} parent=1 // pred_region
      %7231 = vsyncadd [#allocation4], 0
      %s7233 = sshll.u32 [#allocation3], 4
      %s7234 = int_to_ptr.vmem [resolvable:$true] %s7233
      %s7235 = sshll.u32 %s14, 4
      %s7236 = int_to_ptr.hbm [resolvable:$true] %s7235
      %7238 = dma.vmem_to_hbm [thread:$0]  %s7234, 16, %s7236, [#allocation4]
    $region61: #{tpu_custom_call.1} parent=1 // pred_fallthru
      _
    // Predicated region
    $region62: #{tpu_custom_call.1} parent=1 // pred_check
      _
    $region63: #{tpu_custom_call.1} parent=1 // pred_check_branch
      %7240 = sbr.rel (0) target = $region65
    $region64: #{tpu_custom_call.1} parent=1 // pred_region
      %7242 = dma.done [#allocation4], 16
    $region65: #{tpu_custom_call.1} parent=1 // pred_fallthru
      _
    %7243 = vsyncpa [#allocation4], 1

</llo_original>
